<compile_context>
chip_gen: v7x
topology: tpu7x:2x2x1
jax: 0.10.0
libtpu: 0.0.40
codegen_flags: <defaults>
</compile_context>

<pallas_src>
import functools

import jax
import jax.numpy as jnp
from jax.experimental import pallas as pl
from jax.experimental.pallas import tpu as pltpu


_VMEM_LIMIT_BYTES = 32 * 1024 * 1024   # explicit; safe on v5e/v6e/v7x


def _round_up(x, m):
    return ((x + m - 1) // m) * m


# ----------------------------- Pallas kernels ------------------------------

def _matmul_bias_kernel(a_ref, b_ref, bias_ref, o_ref, *, activation):
    # patches(bf16) @ weight(bf16) -> f32 accumulate on the MXU, + bias epilogue
    acc = jnp.dot(a_ref[...], b_ref[...], preferred_element_type=jnp.float32)
    acc = acc + bias_ref[...]
    if activation == "sigmoid_relu":
        # final layer: Sigmoid followed by TransNet's outer F.relu
        acc = jnp.maximum(jax.nn.sigmoid(acc), 0.0)
    o_ref[...] = acc


def _instnorm_kernel(x_ref, o_ref, *, eps, relu):
    # x_ref: (1, H*W, C) -- per-(sample, channel) stats over the spatial axis
    x = x_ref[...]
    mean = jnp.mean(x, axis=1, keepdims=True)
    cx = x - mean
    var = jnp.mean(cx * cx, axis=1, keepdims=True)      # biased, like InstanceNorm2d
    y = cx * jax.lax.rsqrt(var + eps)
    if relu:
        y = jnp.maximum(y, 0.0)
    o_ref[...] = y


def _instnorm_add_relu_kernel(x_ref, res_ref, o_ref, *, eps):
    # fused tail of ResBlock: relu(InstanceNorm(x) + residual)
    x = x_ref[...]
    mean = jnp.mean(x, axis=1, keepdims=True)
    cx = x - mean
    var = jnp.mean(cx * cx, axis=1, keepdims=True)
    y = cx * jax.lax.rsqrt(var + eps)
    o_ref[...] = jnp.maximum(y + res_ref[...], 0.0)


# --------------------------- Pallas call wrappers ---------------------------

def _pallas_matmul_bias(a, b, bias, *, activation=None, tm=256):
    """a: [M, K] bf16, b: [K, Np] bf16 (Np multiple of 128), bias: [Np] f32."""
    M, K = a.shape
    K2, Np = b.shape
    assert K == K2
    tm = min(tm, M)
    Mp = _round_up(M, tm)
    if Mp != M:
        a = jnp.pad(a, ((0, Mp - M), (0, 0)))
    grid = (Mp // tm,)
    out = pl.pallas_call(
        functools.partial(_matmul_bias_kernel, activation=activation),
        out_shape=jax.ShapeDtypeStruct((Mp, Np), jnp.float32),
        grid=grid,
        in_specs=[
            pl.BlockSpec((tm, K), lambda i: (i, 0)),     # patches tile (pipelined)
            pl.BlockSpec((K, Np), lambda i: (0, 0)),     # weight, resident
            pl.BlockSpec((1, Np), lambda i: (0, 0)),     # bias, resident
        ],
        out_specs=pl.BlockSpec((tm, Np), lambda i: (i, 0)),
        compiler_params=pltpu.CompilerParams(
            dimension_semantics=("parallel",),
            vmem_limit_bytes=_VMEM_LIMIT_BYTES),
    )(a, b, bias.reshape(1, Np))
    return out[:M]


def pallas_instance_norm(x, *, residual=None, relu=True, eps=1e-5):
    """InstanceNorm2d on NHWC input, optional fused residual-add + ReLU."""
    N, H, W, C = x.shape
    HW = H * W
    x3 = x.reshape(N, HW, C)
    spec = pl.BlockSpec((1, HW, C), lambda n: (n, 0, 0))
    if residual is None:
        kern = functools.partial(_instnorm_kernel, eps=eps, relu=relu)
        operands = (x3,)
        in_specs = [spec]
    else:
        kern = functools.partial(_instnorm_add_relu_kernel, eps=eps)
        operands = (x3, residual.reshape(N, HW, C))
        in_specs = [spec, spec]
    y3 = pl.pallas_call(
        kern,
        out_shape=jax.ShapeDtypeStruct((N, HW, C), jnp.float32),
        grid=(N,),
        in_specs=in_specs,
        out_specs=spec,
        compiler_params=pltpu.CompilerParams(
            dimension_semantics=("parallel",),
            vmem_limit_bytes=_VMEM_LIMIT_BYTES),
    )(*operands)
    return y3.reshape(N, H, W, C)


# ------------------------------ conv wrapper --------------------------------

def conv2d_nhwc(x, w, bias=None, stride=1, pad=0, activation=None, tm=256):
    """NHWC conv with PyTorch weight layout [Cout, Cin, kh, kw], via im2col +
    grid-tiled Pallas MXU matmul (bf16 inputs, f32 accumulate, 128-lane output)."""
    N, H, W, Cin = x.shape
    Cout, Cin2, kh, kw = w.shape
    assert Cin == Cin2
    Ho = (H + 2 * pad - kh) // stride + 1
    Wo = (W + 2 * pad - kw) // stride + 1

    xp = jnp.pad(x, ((0, 0), (pad, pad), (pad, pad), (0, 0)))
    cols = []
    for i in range(kh):
        for j in range(kw):
            cols.append(xp[:, i:i + stride * Ho:stride, j:j + stride * Wo:stride, :])
    # (N, Ho, Wo, kh*kw, Cin) -> (N*Ho*Wo, kh*kw*Cin): column index = (tap)*Cin + cin
    patches = jnp.stack(cols, axis=3).reshape(N * Ho * Wo, kh * kw * Cin)

    K = kh * kw * Cin
    Kp = _round_up(K, 128)          # pad contraction dim to 128-multiple
    Np = _round_up(Cout, 128)       # lane-dense output (pad Cout -> 128)

    # weight [Cout, Cin, kh, kw] -> [kh, kw, Cin, Cout] -> [K, Cout], matching patches
    wmat = jnp.transpose(w, (2, 3, 1, 0)).reshape(K, Cout)
    wmat = jnp.pad(wmat, ((0, Kp - K), (0, Np - Cout))).astype(jnp.bfloat16)
    patches = jnp.pad(patches, ((0, 0), (0, Kp - K))).astype(jnp.bfloat16)

    if bias is None:
        b = jnp.zeros((Np,), jnp.float32)
    else:
        b = jnp.pad(bias.astype(jnp.float32), (0, Np - Cout))

    out = _pallas_matmul_bias(patches, wmat, b, activation=activation, tm=tm)
    out = out[:, :Cout]                                   # drop padded lanes
    return out.reshape(N, Ho, Wo, Cout)


def upsample_nearest2x_nhwc(x):
    # nn.Upsample(scale_factor=2, mode='nearest') — pure index replication (glue)
    return jnp.repeat(jnp.repeat(x, 2, axis=1), 2, axis=2)


def res_block(x, w_a, w_b):
    h = conv2d_nhwc(x, w_a, stride=1, pad=1)
    h = pallas_instance_norm(h, relu=True)
    h = conv2d_nhwc(h, w_b, stride=1, pad=1)
    # fused: relu(InstanceNorm(h) + x)
    return pallas_instance_norm(h, residual=x, relu=True)


# ------------------------------ parameters ----------------------------------

def init_params(key):
    def conv_w(k, cout, cin, ksz):
        fan_in = cin * ksz * ksz
        return (jax.random.normal(k, (cout, cin, ksz, ksz), jnp.float32)
                / jnp.sqrt(jnp.float32(fan_in)))

    keys = jax.random.split(key, 17)
    p = {}
    p["c1"] = conv_w(keys[0], 32, 3, 9)
    p["c2"] = conv_w(keys[1], 64, 32, 3)
    p["c3"] = conv_w(keys[2], 128, 64, 3)
    for r in range(5):
        p[f"r{r}_a"] = conv_w(keys[3 + 2 * r], 128, 128, 3)
        p[f"r{r}_b"] = conv_w(keys[4 + 2 * r], 128, 128, 3)
    p["c4"] = conv_w(keys[13], 64, 128, 3)
    p["c5"] = conv_w(keys[14], 32, 64, 3)
    p["c6"] = conv_w(keys[15], 3, 32, 9)
    p["c6_b"] = 0.01 * jax.random.normal(keys[16], (3,), jnp.float32)
    return p


# ------------------------------ full forward ---------------------------------

def transnet_forward(params, x_nchw):
    # Single layout change at entry; all internal activations are NHWC.
    h = jnp.transpose(x_nchw, (0, 2, 3, 1)).astype(jnp.float32)

    h = conv2d_nhwc(h, params["c1"], stride=1, pad=4)          # conv(3->32, k9) bias=False
    h = pallas_instance_norm(h, relu=True)
    h = conv2d_nhwc(h, params["c2"], stride=2, pad=1)          # conv(32->64, k3, s2)
    h = pallas_instance_norm(h, relu=True)
    h = conv2d_nhwc(h, params["c3"], stride=2, pad=1)          # conv(64->128, k3, s2)
    h = pallas_instance_norm(h, relu=True)

    for r in range(5):
        h = res_block(h, params[f"r{r}_a"], params[f"r{r}_b"])

    h = upsample_nearest2x_nhwc(h)
    h = conv2d_nhwc(h, params["c4"], stride=1, pad=1)          # conv(128->64, k3)
    h = pallas_instance_norm(h, relu=True)
    h = upsample_nearest2x_nhwc(h)
    h = conv2d_nhwc(h, params["c5"], stride=1, pad=1)          # conv(64->32, k3)
    h = pallas_instance_norm(h, relu=True)

    # conv(32->3, k9, bias) + Sigmoid + outer F.relu, fused into the matmul epilogue
    h = conv2d_nhwc(h, params["c6"], bias=params["c6_b"], stride=1, pad=4,
                    activation="sigmoid_relu")

    return jnp.transpose(h, (0, 3, 1, 2))                      # back to NCHW


# ---------------------------------- main -------------------------------------

if __name__ == "__main__":
    key = jax.random.PRNGKey(0)
    pkey, xkey = jax.random.split(key)
    params = init_params(pkey)
    x = jax.random.normal(xkey, (2, 3, 16, 16), jnp.float32)   # NCHW like PyTorch

    fwd = jax.jit(transnet_forward)
    y = fwd(params, x)
    y = jax.block_until_ready(y)

    assert y.shape == (2, 3, 16, 16), y.shape
    assert bool(jnp.all(jnp.isfinite(y)))
    assert bool(jnp.all(y >= 0.0)) and bool(jnp.all(y <= 1.0))  # sigmoid range
    print("KERNEL_OK")
</pallas_src>

<mosaic_0001>
module attributes {stable_mosaic.version = 11 : i64} {
  func.func @_matmul_bias_kernel(%arg0: i32, %arg1: memref<256x256xbf16, #tpu.memory_space<vmem>>, %arg2: memref<256x128xbf16, #tpu.memory_space<vmem>>, %arg3: memref<1x128xf32, #tpu.memory_space<vmem>>, %arg4: memref<256x128xf32, #tpu.memory_space<vmem>>) attributes {dimension_semantics = [#tpu.dimension_semantics<parallel>], iteration_bounds = array<i64: 2>, scalar_prefetch = 0 : i64, scratch_operands = 0 : i64, tpu.core_type = #tpu.core_type<tc>, window_params = [{transform_indices = @transform_0, window_bounds = array<i64: 256, 256>}, {pipeline_mode = #tpu.pipeline_mode<synchronous>, transform_indices = @transform_1, window_bounds = array<i64: 256, 128>}, {pipeline_mode = #tpu.pipeline_mode<synchronous>, transform_indices = @transform_2, window_bounds = array<i64: 1, 128>}, {transform_indices = @transform_3, window_bounds = array<i64: 256, 128>}]} {
    %c0 = arith.constant 0 : index
    %c0_0 = arith.constant 0 : index
    %0 = vector.load %arg1[%c0, %c0_0] : memref<256x256xbf16, #tpu.memory_space<vmem>>, vector<256x256xbf16>
    %c0_1 = arith.constant 0 : index
    %c0_2 = arith.constant 0 : index
    %1 = vector.load %arg2[%c0_1, %c0_2] : memref<256x128xbf16, #tpu.memory_space<vmem>>, vector<256x128xbf16>
    %cst = arith.constant dense<0.000000e+00> : vector<256x128xf32>
    %2 = tpu.matmul %0, %1, %cst {dimension_numbers = #tpu.dot_dimension_numbers<[1], [0], [0], [1], [0, 0, 1, 1], [], []>} : vector<256x256xbf16>, vector<256x128xbf16>, vector<256x128xf32> -> vector<256x128xf32>
    %c0_3 = arith.constant 0 : index
    %c0_4 = arith.constant 0 : index
    %3 = vector.load %arg3[%c0_3, %c0_4] : memref<1x128xf32, #tpu.memory_space<vmem>>, vector<1x128xf32>
    %4 = vector.broadcast %3 : vector<1x128xf32> to vector<256x128xf32>
    %5 = arith.addf %2, %4 : vector<256x128xf32>
    %c0_5 = arith.constant 0 : index
    %c0_6 = arith.constant 0 : index
    %6 = vector.load %arg4[%c0_5, %c0_6] : memref<256x128xf32, #tpu.memory_space<vmem>>, vector<256x128xf32>
    tpu.vector_store %arg4[%c0_5, %c0_6], %5 {strides = array<i32>} : memref<256x128xf32, #tpu.memory_space<vmem>>, vector<256x128xf32>,
    return
  }
  func.func @transform_0(%arg0: i32) -> (i32, i32) {
    %c0_i32 = arith.constant 0 : i32
    %c0_i32_0 = arith.constant 0 : i32
    return %arg0, %c0_i32 : i32, i32
  }
  func.func @transform_1(%arg0: i32) -> (i32, i32) {
    %c0_i32 = arith.constant 0 : i32
    %c0_i32_0 = arith.constant 0 : i32
    %c0_i32_1 = arith.constant 0 : i32
    return %c0_i32, %c0_i32_0 : i32, i32
  }
  func.func @transform_2(%arg0: i32) -> (i32, i32) {
    %c0_i32 = arith.constant 0 : i32
    %c0_i32_0 = arith.constant 0 : i32
    %c0_i32_1 = arith.constant 0 : i32
    return %c0_i32, %c0_i32_0 : i32, i32
  }
  func.func @transform_3(%arg0: i32) -> (i32, i32) {
    %c0_i32 = arith.constant 0 : i32
    %c0_i32_0 = arith.constant 0 : i32
    return %arg0, %c0_i32 : i32, i32
  }
}

module attributes {stable_mosaic.version = 11 : i64} {
  func.func @_instnorm_kernel(%arg0: i32, %arg1: memref<1x256x32xf32, #tpu.memory_space<vmem>>, %arg2: memref<1x256x32xf32, #tpu.memory_space<vmem>>) attributes {dimension_semantics = [#tpu.dimension_semantics<parallel>], iteration_bounds = array<i64: 2>, scalar_prefetch = 0 : i64, scratch_operands = 0 : i64, tpu.core_type = #tpu.core_type<tc>, window_params = [{transform_indices = @transform_0, window_bounds = array<i64: 1, 256, 32>}, {transform_indices = @transform_1, window_bounds = array<i64: 1, 256, 32>}]} {
    %c0 = arith.constant 0 : index
    %c0_0 = arith.constant 0 : index
    %c0_1 = arith.constant 0 : index
    %0 = vector.load %arg1[%c0, %c0_0, %c0_1] : memref<1x256x32xf32, #tpu.memory_space<vmem>>, vector<1x256x32xf32>
    %cst = arith.constant dense<0.000000e+00> : vector<1x32xf32>
    %1 = vector.multi_reduction <add>, %0, %cst [1] : vector<1x256x32xf32> to vector<1x32xf32>
    %2 = vector.shape_cast %1 : vector<1x32xf32> to vector<1x1x32xf32>
    %cst_2 = arith.constant 2.560000e+02 : f32
    %3 = vector.broadcast %cst_2 : f32 to vector<1x1x32xf32>
    %4 = arith.divf %2, %3 : vector<1x1x32xf32>
    %5 = vector.broadcast %4 : vector<1x1x32xf32> to vector<1x256x32xf32>
    %6 = arith.subf %0, %5 : vector<1x256x32xf32>
    %7 = arith.mulf %6, %6 : vector<1x256x32xf32>
    %cst_3 = arith.constant dense<0.000000e+00> : vector<1x32xf32>
    %8 = vector.multi_reduction <add>, %7, %cst_3 [1] : vector<1x256x32xf32> to vector<1x32xf32>
    %9 = vector.shape_cast %8 : vector<1x32xf32> to vector<1x1x32xf32>
    %cst_4 = arith.constant 2.560000e+02 : f32
    %10 = vector.broadcast %cst_4 : f32 to vector<1x1x32xf32>
    %11 = arith.divf %9, %10 : vector<1x1x32xf32>
    %cst_5 = arith.constant 9.99999974E-6 : f32
    %12 = vector.broadcast %cst_5 : f32 to vector<1x1x32xf32>
    %13 = arith.addf %11, %12 : vector<1x1x32xf32>
    %14 = math.rsqrt %13 : vector<1x1x32xf32>
    %15 = vector.broadcast %14 : vector<1x1x32xf32> to vector<1x256x32xf32>
    %16 = arith.mulf %6, %15 : vector<1x256x32xf32>
    %cst_6 = arith.constant 0.000000e+00 : f32
    %17 = vector.broadcast %cst_6 : f32 to vector<1x256x32xf32>
    %18 = arith.maximumf %16, %17 : vector<1x256x32xf32>
    %c0_7 = arith.constant 0 : index
    %c0_8 = arith.constant 0 : index
    %c0_9 = arith.constant 0 : index
    %19 = vector.load %arg2[%c0_7, %c0_8, %c0_9] : memref<1x256x32xf32, #tpu.memory_space<vmem>>, vector<1x256x32xf32>
    tpu.vector_store %arg2[%c0_7, %c0_8, %c0_9], %18 {strides = array<i32>} : memref<1x256x32xf32, #tpu.memory_space<vmem>>, vector<1x256x32xf32>,
    return
  }
  func.func @transform_0(%arg0: i32) -> (i32, i32, i32) {
    %c0_i32 = arith.constant 0 : i32
    %c0_i32_0 = arith.constant 0 : i32
    %c0_i32_1 = arith.constant 0 : i32
    return %arg0, %c0_i32, %c0_i32_0 : i32, i32, i32
  }
  func.func @transform_1(%arg0: i32) -> (i32, i32, i32) {
    %c0_i32 = arith.constant 0 : i32
    %c0_i32_0 = arith.constant 0 : i32
    %c0_i32_1 = arith.constant 0 : i32
    return %arg0, %c0_i32, %c0_i32_0 : i32, i32, i32
  }
}

module attributes {stable_mosaic.version = 11 : i64} {
  func.func @_matmul_bias_kernel(%arg0: i32, %arg1: memref<128x384xbf16, #tpu.memory_space<vmem>>, %arg2: memref<384x128xbf16, #tpu.memory_space<vmem>>, %arg3: memref<1x128xf32, #tpu.memory_space<vmem>>, %arg4: memref<128x128xf32, #tpu.memory_space<vmem>>) attributes {dimension_semantics = [#tpu.dimension_semantics<parallel>], iteration_bounds = array<i64: 1>, scalar_prefetch = 0 : i64, scratch_operands = 0 : i64, tpu.core_type = #tpu.core_type<tc>, window_params = [{transform_indices = @transform_0, window_bounds = array<i64: 128, 384>}, {pipeline_mode = #tpu.pipeline_mode<synchronous>, transform_indices = @transform_1, window_bounds = array<i64: 384, 128>}, {pipeline_mode = #tpu.pipeline_mode<synchronous>, transform_indices = @transform_2, window_bounds = array<i64: 1, 128>}, {transform_indices = @transform_3, window_bounds = array<i64: 128, 128>}]} {
    %c0 = arith.constant 0 : index
    %c0_0 = arith.constant 0 : index
    %0 = vector.load %arg1[%c0, %c0_0] : memref<128x384xbf16, #tpu.memory_space<vmem>>, vector<128x384xbf16>
    %c0_1 = arith.constant 0 : index
    %c0_2 = arith.constant 0 : index
    %1 = vector.load %arg2[%c0_1, %c0_2] : memref<384x128xbf16, #tpu.memory_space<vmem>>, vector<384x128xbf16>
    %cst = arith.constant dense<0.000000e+00> : vector<128x128xf32>
    %2 = tpu.matmul %0, %1, %cst {dimension_numbers = #tpu.dot_dimension_numbers<[1], [0], [0], [1], [0, 0, 1, 1], [], []>} : vector<128x384xbf16>, vector<384x128xbf16>, vector<128x128xf32> -> vector<128x128xf32>
    %c0_3 = arith.constant 0 : index
    %c0_4 = arith.constant 0 : index
    %3 = vector.load %arg3[%c0_3, %c0_4] : memref<1x128xf32, #tpu.memory_space<vmem>>, vector<1x128xf32>
    %4 = vector.broadcast %3 : vector<1x128xf32> to vector<128x128xf32>
    %5 = arith.addf %2, %4 : vector<128x128xf32>
    %c0_5 = arith.constant 0 : index
    %c0_6 = arith.constant 0 : index
    %6 = vector.load %arg4[%c0_5, %c0_6] : memref<128x128xf32, #tpu.memory_space<vmem>>, vector<128x128xf32>
    tpu.vector_store %arg4[%c0_5, %c0_6], %5 {strides = array<i32>} : memref<128x128xf32, #tpu.memory_space<vmem>>, vector<128x128xf32>,
    return
  }
  func.func @transform_0(%arg0: i32) -> (i32, i32) {
    %c0_i32 = arith.constant 0 : i32
    %c0_i32_0 = arith.constant 0 : i32
    return %arg0, %c0_i32 : i32, i32
  }
  func.func @transform_1(%arg0: i32) -> (i32, i32) {
    %c0_i32 = arith.constant 0 : i32
    %c0_i32_0 = arith.constant 0 : i32
    %c0_i32_1 = arith.constant 0 : i32
    return %c0_i32, %c0_i32_0 : i32, i32
  }
  func.func @transform_2(%arg0: i32) -> (i32, i32) {
    %c0_i32 = arith.constant 0 : i32
    %c0_i32_0 = arith.constant 0 : i32
    %c0_i32_1 = arith.constant 0 : i32
    return %c0_i32, %c0_i32_0 : i32, i32
  }
  func.func @transform_3(%arg0: i32) -> (i32, i32) {
    %c0_i32 = arith.constant 0 : i32
    %c0_i32_0 = arith.constant 0 : i32
    return %arg0, %c0_i32 : i32, i32
  }
}

module attributes {stable_mosaic.version = 11 : i64} {
  func.func @_instnorm_kernel(%arg0: i32, %arg1: memref<1x64x64xf32, #tpu.memory_space<vmem>>, %arg2: memref<1x64x64xf32, #tpu.memory_space<vmem>>) attributes {dimension_semantics = [#tpu.dimension_semantics<parallel>], iteration_bounds = array<i64: 2>, scalar_prefetch = 0 : i64, scratch_operands = 0 : i64, tpu.core_type = #tpu.core_type<tc>, window_params = [{transform_indices = @transform_0, window_bounds = array<i64: 1, 64, 64>}, {transform_indices = @transform_1, window_bounds = array<i64: 1, 64, 64>}]} {
    %c0 = arith.constant 0 : index
    %c0_0 = arith.constant 0 : index
    %c0_1 = arith.constant 0 : index
    %0 = vector.load %arg1[%c0, %c0_0, %c0_1] : memref<1x64x64xf32, #tpu.memory_space<vmem>>, vector<1x64x64xf32>
    %cst = arith.constant dense<0.000000e+00> : vector<1x64xf32>
    %1 = vector.multi_reduction <add>, %0, %cst [1] : vector<1x64x64xf32> to vector<1x64xf32>
    %2 = vector.shape_cast %1 : vector<1x64xf32> to vector<1x1x64xf32>
    %cst_2 = arith.constant 6.400000e+01 : f32
    %3 = vector.broadcast %cst_2 : f32 to vector<1x1x64xf32>
    %4 = arith.divf %2, %3 : vector<1x1x64xf32>
    %5 = vector.broadcast %4 : vector<1x1x64xf32> to vector<1x64x64xf32>
    %6 = arith.subf %0, %5 : vector<1x64x64xf32>
    %7 = arith.mulf %6, %6 : vector<1x64x64xf32>
    %cst_3 = arith.constant dense<0.000000e+00> : vector<1x64xf32>
    %8 = vector.multi_reduction <add>, %7, %cst_3 [1] : vector<1x64x64xf32> to vector<1x64xf32>
    %9 = vector.shape_cast %8 : vector<1x64xf32> to vector<1x1x64xf32>
    %cst_4 = arith.constant 6.400000e+01 : f32
    %10 = vector.broadcast %cst_4 : f32 to vector<1x1x64xf32>
    %11 = arith.divf %9, %10 : vector<1x1x64xf32>
    %cst_5 = arith.constant 9.99999974E-6 : f32
    %12 = vector.broadcast %cst_5 : f32 to vector<1x1x64xf32>
    %13 = arith.addf %11, %12 : vector<1x1x64xf32>
    %14 = math.rsqrt %13 : vector<1x1x64xf32>
    %15 = vector.broadcast %14 : vector<1x1x64xf32> to vector<1x64x64xf32>
    %16 = arith.mulf %6, %15 : vector<1x64x64xf32>
    %cst_6 = arith.constant 0.000000e+00 : f32
    %17 = vector.broadcast %cst_6 : f32 to vector<1x64x64xf32>
    %18 = arith.maximumf %16, %17 : vector<1x64x64xf32>
    %c0_7 = arith.constant 0 : index
    %c0_8 = arith.constant 0 : index
    %c0_9 = arith.constant 0 : index
    %19 = vector.load %arg2[%c0_7, %c0_8, %c0_9] : memref<1x64x64xf32, #tpu.memory_space<vmem>>, vector<1x64x64xf32>
    tpu.vector_store %arg2[%c0_7, %c0_8, %c0_9], %18 {strides = array<i32>} : memref<1x64x64xf32, #tpu.memory_space<vmem>>, vector<1x64x64xf32>,
    return
  }
  func.func @transform_0(%arg0: i32) -> (i32, i32, i32) {
    %c0_i32 = arith.constant 0 : i32
    %c0_i32_0 = arith.constant 0 : i32
    %c0_i32_1 = arith.constant 0 : i32
    return %arg0, %c0_i32, %c0_i32_0 : i32, i32, i32
  }
  func.func @transform_1(%arg0: i32) -> (i32, i32, i32) {
    %c0_i32 = arith.constant 0 : i32
    %c0_i32_0 = arith.constant 0 : i32
    %c0_i32_1 = arith.constant 0 : i32
    return %arg0, %c0_i32, %c0_i32_0 : i32, i32, i32
  }
}

module attributes {stable_mosaic.version = 11 : i64} {
  func.func @_matmul_bias_kernel(%arg0: i32, %arg1: memref<32x640xbf16, #tpu.memory_space<vmem>>, %arg2: memref<640x128xbf16, #tpu.memory_space<vmem>>, %arg3: memref<1x128xf32, #tpu.memory_space<vmem>>, %arg4: memref<32x128xf32, #tpu.memory_space<vmem>>) attributes {dimension_semantics = [#tpu.dimension_semantics<parallel>], iteration_bounds = array<i64: 1>, scalar_prefetch = 0 : i64, scratch_operands = 0 : i64, tpu.core_type = #tpu.core_type<tc>, window_params = [{transform_indices = @transform_0, window_bounds = array<i64: 32, 640>}, {pipeline_mode = #tpu.pipeline_mode<synchronous>, transform_indices = @transform_1, window_bounds = array<i64: 640, 128>}, {pipeline_mode = #tpu.pipeline_mode<synchronous>, transform_indices = @transform_2, window_bounds = array<i64: 1, 128>}, {transform_indices = @transform_3, window_bounds = array<i64: 32, 128>}]} {
    %c0 = arith.constant 0 : index
    %c0_0 = arith.constant 0 : index
    %0 = vector.load %arg1[%c0, %c0_0] : memref<32x640xbf16, #tpu.memory_space<vmem>>, vector<32x640xbf16>
    %c0_1 = arith.constant 0 : index
    %c0_2 = arith.constant 0 : index
    %1 = vector.load %arg2[%c0_1, %c0_2] : memref<640x128xbf16, #tpu.memory_space<vmem>>, vector<640x128xbf16>
    %cst = arith.constant dense<0.000000e+00> : vector<32x128xf32>
    %2 = tpu.matmul %0, %1, %cst {dimension_numbers = #tpu.dot_dimension_numbers<[1], [0], [0], [1], [0, 0, 1, 1], [], []>} : vector<32x640xbf16>, vector<640x128xbf16>, vector<32x128xf32> -> vector<32x128xf32>
    %c0_3 = arith.constant 0 : index
    %c0_4 = arith.constant 0 : index
    %3 = vector.load %arg3[%c0_3, %c0_4] : memref<1x128xf32, #tpu.memory_space<vmem>>, vector<1x128xf32>
    %4 = vector.broadcast %3 : vector<1x128xf32> to vector<32x128xf32>
    %5 = arith.addf %2, %4 : vector<32x128xf32>
    %c0_5 = arith.constant 0 : index
    %c0_6 = arith.constant 0 : index
    %6 = vector.load %arg4[%c0_5, %c0_6] : memref<32x128xf32, #tpu.memory_space<vmem>>, vector<32x128xf32>
    tpu.vector_store %arg4[%c0_5, %c0_6], %5 {strides = array<i32>} : memref<32x128xf32, #tpu.memory_space<vmem>>, vector<32x128xf32>,
    return
  }
  func.func @transform_0(%arg0: i32) -> (i32, i32) {
    %c0_i32 = arith.constant 0 : i32
    %c0_i32_0 = arith.constant 0 : i32
    return %arg0, %c0_i32 : i32, i32
  }
  func.func @transform_1(%arg0: i32) -> (i32, i32) {
    %c0_i32 = arith.constant 0 : i32
    %c0_i32_0 = arith.constant 0 : i32
    %c0_i32_1 = arith.constant 0 : i32
    return %c0_i32, %c0_i32_0 : i32, i32
  }
  func.func @transform_2(%arg0: i32) -> (i32, i32) {
    %c0_i32 = arith.constant 0 : i32
    %c0_i32_0 = arith.constant 0 : i32
    %c0_i32_1 = arith.constant 0 : i32
    return %c0_i32, %c0_i32_0 : i32, i32
  }
  func.func @transform_3(%arg0: i32) -> (i32, i32) {
    %c0_i32 = arith.constant 0 : i32
    %c0_i32_0 = arith.constant 0 : i32
    return %arg0, %c0_i32 : i32, i32
  }
}

module attributes {stable_mosaic.version = 11 : i64} {
  func.func @_instnorm_kernel(%arg0: i32, %arg1: memref<1x16x128xf32, #tpu.memory_space<vmem>>, %arg2: memref<1x16x128xf32, #tpu.memory_space<vmem>>) attributes {dimension_semantics = [#tpu.dimension_semantics<parallel>], iteration_bounds = array<i64: 2>, scalar_prefetch = 0 : i64, scratch_operands = 0 : i64, tpu.core_type = #tpu.core_type<tc>, window_params = [{transform_indices = @transform_0, window_bounds = array<i64: 1, 16, 128>}, {transform_indices = @transform_1, window_bounds = array<i64: 1, 16, 128>}]} {
    %c0 = arith.constant 0 : index
    %c0_0 = arith.constant 0 : index
    %c0_1 = arith.constant 0 : index
    %0 = vector.load %arg1[%c0, %c0_0, %c0_1] : memref<1x16x128xf32, #tpu.memory_space<vmem>>, vector<1x16x128xf32>
    %cst = arith.constant dense<0.000000e+00> : vector<1x128xf32>
    %1 = vector.multi_reduction <add>, %0, %cst [1] : vector<1x16x128xf32> to vector<1x128xf32>
    %2 = vector.shape_cast %1 : vector<1x128xf32> to vector<1x1x128xf32>
    %cst_2 = arith.constant 1.600000e+01 : f32
    %3 = vector.broadcast %cst_2 : f32 to vector<1x1x128xf32>
    %4 = arith.divf %2, %3 : vector<1x1x128xf32>
    %5 = vector.broadcast %4 : vector<1x1x128xf32> to vector<1x16x128xf32>
    %6 = arith.subf %0, %5 : vector<1x16x128xf32>
    %7 = arith.mulf %6, %6 : vector<1x16x128xf32>
    %cst_3 = arith.constant dense<0.000000e+00> : vector<1x128xf32>
    %8 = vector.multi_reduction <add>, %7, %cst_3 [1] : vector<1x16x128xf32> to vector<1x128xf32>
    %9 = vector.shape_cast %8 : vector<1x128xf32> to vector<1x1x128xf32>
    %cst_4 = arith.constant 1.600000e+01 : f32
    %10 = vector.broadcast %cst_4 : f32 to vector<1x1x128xf32>
    %11 = arith.divf %9, %10 : vector<1x1x128xf32>
    %cst_5 = arith.constant 9.99999974E-6 : f32
    %12 = vector.broadcast %cst_5 : f32 to vector<1x1x128xf32>
    %13 = arith.addf %11, %12 : vector<1x1x128xf32>
    %14 = math.rsqrt %13 : vector<1x1x128xf32>
    %15 = vector.broadcast %14 : vector<1x1x128xf32> to vector<1x16x128xf32>
    %16 = arith.mulf %6, %15 : vector<1x16x128xf32>
    %cst_6 = arith.constant 0.000000e+00 : f32
    %17 = vector.broadcast %cst_6 : f32 to vector<1x16x128xf32>
    %18 = arith.maximumf %16, %17 : vector<1x16x128xf32>
    %c0_7 = arith.constant 0 : index
    %c0_8 = arith.constant 0 : index
    %c0_9 = arith.constant 0 : index
    %19 = vector.load %arg2[%c0_7, %c0_8, %c0_9] : memref<1x16x128xf32, #tpu.memory_space<vmem>>, vector<1x16x128xf32>
    tpu.vector_store %arg2[%c0_7, %c0_8, %c0_9], %18 {strides = array<i32>} : memref<1x16x128xf32, #tpu.memory_space<vmem>>, vector<1x16x128xf32>,
    return
  }
  func.func @transform_0(%arg0: i32) -> (i32, i32, i32) {
    %c0_i32 = arith.constant 0 : i32
    %c0_i32_0 = arith.constant 0 : i32
    %c0_i32_1 = arith.constant 0 : i32
    return %arg0, %c0_i32, %c0_i32_0 : i32, i32, i32
  }
  func.func @transform_1(%arg0: i32) -> (i32, i32, i32) {
    %c0_i32 = arith.constant 0 : i32
    %c0_i32_0 = arith.constant 0 : i32
    %c0_i32_1 = arith.constant 0 : i32
    return %arg0, %c0_i32, %c0_i32_0 : i32, i32, i32
  }
}

module attributes {stable_mosaic.version = 11 : i64} {
  func.func @_matmul_bias_kernel(%arg0: i32, %arg1: memref<32x1152xbf16, #tpu.memory_space<vmem>>, %arg2: memref<1152x128xbf16, #tpu.memory_space<vmem>>, %arg3: memref<1x128xf32, #tpu.memory_space<vmem>>, %arg4: memref<32x128xf32, #tpu.memory_space<vmem>>) attributes {dimension_semantics = [#tpu.dimension_semantics<parallel>], iteration_bounds = array<i64: 1>, scalar_prefetch = 0 : i64, scratch_operands = 0 : i64, tpu.core_type = #tpu.core_type<tc>, window_params = [{transform_indices = @transform_0, window_bounds = array<i64: 32, 1152>}, {pipeline_mode = #tpu.pipeline_mode<synchronous>, transform_indices = @transform_1, window_bounds = array<i64: 1152, 128>}, {pipeline_mode = #tpu.pipeline_mode<synchronous>, transform_indices = @transform_2, window_bounds = array<i64: 1, 128>}, {transform_indices = @transform_3, window_bounds = array<i64: 32, 128>}]} {
    %c0 = arith.constant 0 : index
    %c0_0 = arith.constant 0 : index
    %0 = vector.load %arg1[%c0, %c0_0] : memref<32x1152xbf16, #tpu.memory_space<vmem>>, vector<32x1152xbf16>
    %c0_1 = arith.constant 0 : index
    %c0_2 = arith.constant 0 : index
    %1 = vector.load %arg2[%c0_1, %c0_2] : memref<1152x128xbf16, #tpu.memory_space<vmem>>, vector<1152x128xbf16>
    %cst = arith.constant dense<0.000000e+00> : vector<32x128xf32>
    %2 = tpu.matmul %0, %1, %cst {dimension_numbers = #tpu.dot_dimension_numbers<[1], [0], [0], [1], [0, 0, 1, 1], [], []>} : vector<32x1152xbf16>, vector<1152x128xbf16>, vector<32x128xf32> -> vector<32x128xf32>
    %c0_3 = arith.constant 0 : index
    %c0_4 = arith.constant 0 : index
    %3 = vector.load %arg3[%c0_3, %c0_4] : memref<1x128xf32, #tpu.memory_space<vmem>>, vector<1x128xf32>
    %4 = vector.broadcast %3 : vector<1x128xf32> to vector<32x128xf32>
    %5 = arith.addf %2, %4 : vector<32x128xf32>
    %c0_5 = arith.constant 0 : index
    %c0_6 = arith.constant 0 : index
    %6 = vector.load %arg4[%c0_5, %c0_6] : memref<32x128xf32, #tpu.memory_space<vmem>>, vector<32x128xf32>
    tpu.vector_store %arg4[%c0_5, %c0_6], %5 {strides = array<i32>} : memref<32x128xf32, #tpu.memory_space<vmem>>, vector<32x128xf32>,
    return
  }
  func.func @transform_0(%arg0: i32) -> (i32, i32) {
    %c0_i32 = arith.constant 0 : i32
    %c0_i32_0 = arith.constant 0 : i32
    return %arg0, %c0_i32 : i32, i32
  }
  func.func @transform_1(%arg0: i32) -> (i32, i32) {
    %c0_i32 = arith.constant 0 : i32
    %c0_i32_0 = arith.constant 0 : i32
    %c0_i32_1 = arith.constant 0 : i32
    return %c0_i32, %c0_i32_0 : i32, i32
  }
  func.func @transform_2(%arg0: i32) -> (i32, i32) {
    %c0_i32 = arith.constant 0 : i32
    %c0_i32_0 = arith.constant 0 : i32
    %c0_i32_1 = arith.constant 0 : i32
    return %c0_i32, %c0_i32_0 : i32, i32
  }
  func.func @transform_3(%arg0: i32) -> (i32, i32) {
    %c0_i32 = arith.constant 0 : i32
    %c0_i32_0 = arith.constant 0 : i32
    return %arg0, %c0_i32 : i32, i32
  }
}

module attributes {stable_mosaic.version = 11 : i64} {
  func.func @_instnorm_add_relu_kernel(%arg0: i32, %arg1: memref<1x16x128xf32, #tpu.memory_space<vmem>>, %arg2: memref<1x16x128xf32, #tpu.memory_space<vmem>>, %arg3: memref<1x16x128xf32, #tpu.memory_space<vmem>>) attributes {dimension_semantics = [#tpu.dimension_semantics<parallel>], iteration_bounds = array<i64: 2>, scalar_prefetch = 0 : i64, scratch_operands = 0 : i64, tpu.core_type = #tpu.core_type<tc>, window_params = [{transform_indices = @transform_0, window_bounds = array<i64: 1, 16, 128>}, {transform_indices = @transform_1, window_bounds = array<i64: 1, 16, 128>}, {transform_indices = @transform_2, window_bounds = array<i64: 1, 16, 128>}]} {
    %c0 = arith.constant 0 : index
    %c0_0 = arith.constant 0 : index
    %c0_1 = arith.constant 0 : index
    %0 = vector.load %arg1[%c0, %c0_0, %c0_1] : memref<1x16x128xf32, #tpu.memory_space<vmem>>, vector<1x16x128xf32>
    %cst = arith.constant dense<0.000000e+00> : vector<1x128xf32>
    %1 = vector.multi_reduction <add>, %0, %cst [1] : vector<1x16x128xf32> to vector<1x128xf32>
    %2 = vector.shape_cast %1 : vector<1x128xf32> to vector<1x1x128xf32>
    %cst_2 = arith.constant 1.600000e+01 : f32
    %3 = vector.broadcast %cst_2 : f32 to vector<1x1x128xf32>
    %4 = arith.divf %2, %3 : vector<1x1x128xf32>
    %5 = vector.broadcast %4 : vector<1x1x128xf32> to vector<1x16x128xf32>
    %6 = arith.subf %0, %5 : vector<1x16x128xf32>
    %7 = arith.mulf %6, %6 : vector<1x16x128xf32>
    %cst_3 = arith.constant dense<0.000000e+00> : vector<1x128xf32>
    %8 = vector.multi_reduction <add>, %7, %cst_3 [1] : vector<1x16x128xf32> to vector<1x128xf32>
    %9 = vector.shape_cast %8 : vector<1x128xf32> to vector<1x1x128xf32>
    %cst_4 = arith.constant 1.600000e+01 : f32
    %10 = vector.broadcast %cst_4 : f32 to vector<1x1x128xf32>
    %11 = arith.divf %9, %10 : vector<1x1x128xf32>
    %cst_5 = arith.constant 9.99999974E-6 : f32
    %12 = vector.broadcast %cst_5 : f32 to vector<1x1x128xf32>
    %13 = arith.addf %11, %12 : vector<1x1x128xf32>
    %14 = math.rsqrt %13 : vector<1x1x128xf32>
    %15 = vector.broadcast %14 : vector<1x1x128xf32> to vector<1x16x128xf32>
    %16 = arith.mulf %6, %15 : vector<1x16x128xf32>
    %c0_6 = arith.constant 0 : index
    %c0_7 = arith.constant 0 : index
    %c0_8 = arith.constant 0 : index
    %17 = vector.load %arg2[%c0_6, %c0_7, %c0_8] : memref<1x16x128xf32, #tpu.memory_space<vmem>>, vector<1x16x128xf32>
    %18 = arith.addf %16, %17 : vector<1x16x128xf32>
    %cst_9 = arith.constant 0.000000e+00 : f32
    %19 = vector.broadcast %cst_9 : f32 to vector<1x16x128xf32>
    %20 = arith.maximumf %18, %19 : vector<1x16x128xf32>
    %c0_10 = arith.constant 0 : index
    %c0_11 = arith.constant 0 : index
    %c0_12 = arith.constant 0 : index
    %21 = vector.load %arg3[%c0_10, %c0_11, %c0_12] : memref<1x16x128xf32, #tpu.memory_space<vmem>>, vector<1x16x128xf32>
    tpu.vector_store %arg3[%c0_10, %c0_11, %c0_12], %20 {strides = array<i32>} : memref<1x16x128xf32, #tpu.memory_space<vmem>>, vector<1x16x128xf32>,
    return
  }
  func.func @transform_0(%arg0: i32) -> (i32, i32, i32) {
    %c0_i32 = arith.constant 0 : i32
    %c0_i32_0 = arith.constant 0 : i32
    %c0_i32_1 = arith.constant 0 : i32
    return %arg0, %c0_i32, %c0_i32_0 : i32, i32, i32
  }
  func.func @transform_1(%arg0: i32) -> (i32, i32, i32) {
    %c0_i32 = arith.constant 0 : i32
    %c0_i32_0 = arith.constant 0 : i32
    %c0_i32_1 = arith.constant 0 : i32
    return %arg0, %c0_i32, %c0_i32_0 : i32, i32, i32
  }
  func.func @transform_2(%arg0: i32) -> (i32, i32, i32) {
    %c0_i32 = arith.constant 0 : i32
    %c0_i32_0 = arith.constant 0 : i32
    %c0_i32_1 = arith.constant 0 : i32
    return %arg0, %c0_i32, %c0_i32_0 : i32, i32, i32
  }
}

module attributes {stable_mosaic.version = 11 : i64} {
  func.func @_matmul_bias_kernel(%arg0: i32, %arg1: memref<128x1152xbf16, #tpu.memory_space<vmem>>, %arg2: memref<1152x128xbf16, #tpu.memory_space<vmem>>, %arg3: memref<1x128xf32, #tpu.memory_space<vmem>>, %arg4: memref<128x128xf32, #tpu.memory_space<vmem>>) attributes {dimension_semantics = [#tpu.dimension_semantics<parallel>], iteration_bounds = array<i64: 1>, scalar_prefetch = 0 : i64, scratch_operands = 0 : i64, tpu.core_type = #tpu.core_type<tc>, window_params = [{transform_indices = @transform_0, window_bounds = array<i64: 128, 1152>}, {pipeline_mode = #tpu.pipeline_mode<synchronous>, transform_indices = @transform_1, window_bounds = array<i64: 1152, 128>}, {pipeline_mode = #tpu.pipeline_mode<synchronous>, transform_indices = @transform_2, window_bounds = array<i64: 1, 128>}, {transform_indices = @transform_3, window_bounds = array<i64: 128, 128>}]} {
    %c0 = arith.constant 0 : index
    %c0_0 = arith.constant 0 : index
    %0 = vector.load %arg1[%c0, %c0_0] : memref<128x1152xbf16, #tpu.memory_space<vmem>>, vector<128x1152xbf16>
    %c0_1 = arith.constant 0 : index
    %c0_2 = arith.constant 0 : index
    %1 = vector.load %arg2[%c0_1, %c0_2] : memref<1152x128xbf16, #tpu.memory_space<vmem>>, vector<1152x128xbf16>
    %cst = arith.constant dense<0.000000e+00> : vector<128x128xf32>
    %2 = tpu.matmul %0, %1, %cst {dimension_numbers = #tpu.dot_dimension_numbers<[1], [0], [0], [1], [0, 0, 1, 1], [], []>} : vector<128x1152xbf16>, vector<1152x128xbf16>, vector<128x128xf32> -> vector<128x128xf32>
    %c0_3 = arith.constant 0 : index
    %c0_4 = arith.constant 0 : index
    %3 = vector.load %arg3[%c0_3, %c0_4] : memref<1x128xf32, #tpu.memory_space<vmem>>, vector<1x128xf32>
    %4 = vector.broadcast %3 : vector<1x128xf32> to vector<128x128xf32>
    %5 = arith.addf %2, %4 : vector<128x128xf32>
    %c0_5 = arith.constant 0 : index
    %c0_6 = arith.constant 0 : index
    %6 = vector.load %arg4[%c0_5, %c0_6] : memref<128x128xf32, #tpu.memory_space<vmem>>, vector<128x128xf32>
    tpu.vector_store %arg4[%c0_5, %c0_6], %5 {strides = array<i32>} : memref<128x128xf32, #tpu.memory_space<vmem>>, vector<128x128xf32>,
    return
  }
  func.func @transform_0(%arg0: i32) -> (i32, i32) {
    %c0_i32 = arith.constant 0 : i32
    %c0_i32_0 = arith.constant 0 : i32
    return %arg0, %c0_i32 : i32, i32
  }
  func.func @transform_1(%arg0: i32) -> (i32, i32) {
    %c0_i32 = arith.constant 0 : i32
    %c0_i32_0 = arith.constant 0 : i32
    %c0_i32_1 = arith.constant 0 : i32
    return %c0_i32, %c0_i32_0 : i32, i32
  }
  func.func @transform_2(%arg0: i32) -> (i32, i32) {
    %c0_i32 = arith.constant 0 : i32
    %c0_i32_0 = arith.constant 0 : i32
    %c0_i32_1 = arith.constant 0 : i32
    return %c0_i32, %c0_i32_0 : i32, i32
  }
  func.func @transform_3(%arg0: i32) -> (i32, i32) {
    %c0_i32 = arith.constant 0 : i32
    %c0_i32_0 = arith.constant 0 : i32
    return %arg0, %c0_i32 : i32, i32
  }
}

module attributes {stable_mosaic.version = 11 : i64} {
  func.func @_matmul_bias_kernel(%arg0: i32, %arg1: memref<256x640xbf16, #tpu.memory_space<vmem>>, %arg2: memref<640x128xbf16, #tpu.memory_space<vmem>>, %arg3: memref<1x128xf32, #tpu.memory_space<vmem>>, %arg4: memref<256x128xf32, #tpu.memory_space<vmem>>) attributes {dimension_semantics = [#tpu.dimension_semantics<parallel>], iteration_bounds = array<i64: 2>, scalar_prefetch = 0 : i64, scratch_operands = 0 : i64, tpu.core_type = #tpu.core_type<tc>, window_params = [{transform_indices = @transform_0, window_bounds = array<i64: 256, 640>}, {pipeline_mode = #tpu.pipeline_mode<synchronous>, transform_indices = @transform_1, window_bounds = array<i64: 640, 128>}, {pipeline_mode = #tpu.pipeline_mode<synchronous>, transform_indices = @transform_2, window_bounds = array<i64: 1, 128>}, {transform_indices = @transform_3, window_bounds = array<i64: 256, 128>}]} {
    %c0 = arith.constant 0 : index
    %c0_0 = arith.constant 0 : index
    %0 = vector.load %arg1[%c0, %c0_0] : memref<256x640xbf16, #tpu.memory_space<vmem>>, vector<256x640xbf16>
    %c0_1 = arith.constant 0 : index
    %c0_2 = arith.constant 0 : index
    %1 = vector.load %arg2[%c0_1, %c0_2] : memref<640x128xbf16, #tpu.memory_space<vmem>>, vector<640x128xbf16>
    %cst = arith.constant dense<0.000000e+00> : vector<256x128xf32>
    %2 = tpu.matmul %0, %1, %cst {dimension_numbers = #tpu.dot_dimension_numbers<[1], [0], [0], [1], [0, 0, 1, 1], [], []>} : vector<256x640xbf16>, vector<640x128xbf16>, vector<256x128xf32> -> vector<256x128xf32>
    %c0_3 = arith.constant 0 : index
    %c0_4 = arith.constant 0 : index
    %3 = vector.load %arg3[%c0_3, %c0_4] : memref<1x128xf32, #tpu.memory_space<vmem>>, vector<1x128xf32>
    %4 = vector.broadcast %3 : vector<1x128xf32> to vector<256x128xf32>
    %5 = arith.addf %2, %4 : vector<256x128xf32>
    %c0_5 = arith.constant 0 : index
    %c0_6 = arith.constant 0 : index
    %6 = vector.load %arg4[%c0_5, %c0_6] : memref<256x128xf32, #tpu.memory_space<vmem>>, vector<256x128xf32>
    tpu.vector_store %arg4[%c0_5, %c0_6], %5 {strides = array<i32>} : memref<256x128xf32, #tpu.memory_space<vmem>>, vector<256x128xf32>,
    return
  }
  func.func @transform_0(%arg0: i32) -> (i32, i32) {
    %c0_i32 = arith.constant 0 : i32
    %c0_i32_0 = arith.constant 0 : i32
    return %arg0, %c0_i32 : i32, i32
  }
  func.func @transform_1(%arg0: i32) -> (i32, i32) {
    %c0_i32 = arith.constant 0 : i32
    %c0_i32_0 = arith.constant 0 : i32
    %c0_i32_1 = arith.constant 0 : i32
    return %c0_i32, %c0_i32_0 : i32, i32
  }
  func.func @transform_2(%arg0: i32) -> (i32, i32) {
    %c0_i32 = arith.constant 0 : i32
    %c0_i32_0 = arith.constant 0 : i32
    %c0_i32_1 = arith.constant 0 : i32
    return %c0_i32, %c0_i32_0 : i32, i32
  }
  func.func @transform_3(%arg0: i32) -> (i32, i32) {
    %c0_i32 = arith.constant 0 : i32
    %c0_i32_0 = arith.constant 0 : i32
    return %arg0, %c0_i32 : i32, i32
  }
}

module attributes {stable_mosaic.version = 11 : i64} {
  func.func @_matmul_bias_kernel(%arg0: i32, %arg1: memref<256x2688xbf16, #tpu.memory_space<vmem>>, %arg2: memref<2688x128xbf16, #tpu.memory_space<vmem>>, %arg3: memref<1x128xf32, #tpu.memory_space<vmem>>, %arg4: memref<256x128xf32, #tpu.memory_space<vmem>>) attributes {dimension_semantics = [#tpu.dimension_semantics<parallel>], iteration_bounds = array<i64: 2>, scalar_prefetch = 0 : i64, scratch_operands = 0 : i64, tpu.core_type = #tpu.core_type<tc>, window_params = [{transform_indices = @transform_0, window_bounds = array<i64: 256, 2688>}, {pipeline_mode = #tpu.pipeline_mode<synchronous>, transform_indices = @transform_1, window_bounds = array<i64: 2688, 128>}, {pipeline_mode = #tpu.pipeline_mode<synchronous>, transform_indices = @transform_2, window_bounds = array<i64: 1, 128>}, {transform_indices = @transform_3, window_bounds = array<i64: 256, 128>}]} {
    %c0 = arith.constant 0 : index
    %c0_0 = arith.constant 0 : index
    %0 = vector.load %arg1[%c0, %c0_0] : memref<256x2688xbf16, #tpu.memory_space<vmem>>, vector<256x2688xbf16>
    %c0_1 = arith.constant 0 : index
    %c0_2 = arith.constant 0 : index
    %1 = vector.load %arg2[%c0_1, %c0_2] : memref<2688x128xbf16, #tpu.memory_space<vmem>>, vector<2688x128xbf16>
    %cst = arith.constant dense<0.000000e+00> : vector<256x128xf32>
    %2 = tpu.matmul %0, %1, %cst {dimension_numbers = #tpu.dot_dimension_numbers<[1], [0], [0], [1], [0, 0, 1, 1], [], []>} : vector<256x2688xbf16>, vector<2688x128xbf16>, vector<256x128xf32> -> vector<256x128xf32>
    %c0_3 = arith.constant 0 : index
    %c0_4 = arith.constant 0 : index
    %3 = vector.load %arg3[%c0_3, %c0_4] : memref<1x128xf32, #tpu.memory_space<vmem>>, vector<1x128xf32>
    %4 = vector.broadcast %3 : vector<1x128xf32> to vector<256x128xf32>
    %5 = arith.addf %2, %4 : vector<256x128xf32>
    %6 = arith.negf %5 : vector<256x128xf32>
    %7 = math.exp %6 : vector<256x128xf32>
    %cst_5 = arith.constant 1.000000e+00 : f32
    %8 = vector.broadcast %cst_5 : f32 to vector<256x128xf32>
    %9 = arith.addf %8, %7 : vector<256x128xf32>
    %10 = arith.divf %8, %9 : vector<256x128xf32>
    %cst_6 = arith.constant 0.000000e+00 : f32
    %11 = vector.broadcast %cst_6 : f32 to vector<256x128xf32>
    %12 = arith.maximumf %10, %11 : vector<256x128xf32>
    %c0_7 = arith.constant 0 : index
    %c0_8 = arith.constant 0 : index
    %13 = vector.load %arg4[%c0_7, %c0_8] : memref<256x128xf32, #tpu.memory_space<vmem>>, vector<256x128xf32>
    tpu.vector_store %arg4[%c0_7, %c0_8], %12 {strides = array<i32>} : memref<256x128xf32, #tpu.memory_space<vmem>>, vector<256x128xf32>,
    return
  }
  func.func @transform_0(%arg0: i32) -> (i32, i32) {
    %c0_i32 = arith.constant 0 : i32
    %c0_i32_0 = arith.constant 0 : i32
    return %arg0, %c0_i32 : i32, i32
  }
  func.func @transform_1(%arg0: i32) -> (i32, i32) {
    %c0_i32 = arith.constant 0 : i32
    %c0_i32_0 = arith.constant 0 : i32
    %c0_i32_1 = arith.constant 0 : i32
    return %c0_i32, %c0_i32_0 : i32, i32
  }
  func.func @transform_2(%arg0: i32) -> (i32, i32) {
    %c0_i32 = arith.constant 0 : i32
    %c0_i32_0 = arith.constant 0 : i32
    %c0_i32_1 = arith.constant 0 : i32
    return %c0_i32, %c0_i32_0 : i32, i32
  }
  func.func @transform_3(%arg0: i32) -> (i32, i32) {
    %c0_i32 = arith.constant 0 : i32
    %c0_i32_0 = arith.constant 0 : i32
    return %arg0, %c0_i32 : i32, i32
  }
}

</mosaic_0001>

<llo_original>
// kernel: transnet_forward.31
$region0: #{transnet_forward.31}
  #allocation0 [shape = 'u32[]', space=smem, size = 0x4, offset = 0x4, fixed_abs, tag = 'smem constant byte address 0x4 - core index']
  #allocation1 [shape = 'u32[144,128]{1,0:T(1,128)}', space=vmem, size = 0x12000, scoped, tag = 'internal scratch']
  %s0 = inlined_call_operand.vmem [shape: bf16[512,256], index: 0, kind: input, shape index: {}]
  %s1 = inlined_call_operand.vmem [shape: bf16[256,128], index: 1, kind: input, shape index: {}]
  %s2 = inlined_call_operand.vmem [shape: f32[1,128], index: 2, kind: input, shape index: {}]
  %s3 = inlined_call_operand.vmem [shape: f32[512,128], index: 3, kind: output, shape index: {}]
  %s4 = sld [smem:[#allocation0]]
  $region45: #{transnet_forward.31} parent=0
    _
  %s6 = ssub.s32 1, %s4
  %s7 = scalar_select 0, %s6, %s4
  loop: start=0, step=1, limit=4
  $region2: #{transnet_forward.31} parent=0 // loop_pre_header
    _
  $region3: #{transnet_forward.31} parent=0 // loop_header
    %s9 = sphi 0, %s13
    %p10 = scmp.ge.s32.totalorder %s9, 4
    %s19 = sphi 0, %s21
    %s22 = sphi 0, %s19
    %s23 = sphi 0, %s22
    %s39 = sphi 0, %s23
    %s43 = sphi 0, %s43
    %s45 = sphi 0, %s43
    %s46 = sphi 0, %s45
    %s60 = sphi 0, %s46
    %s64 = sphi 0, %s64
    %s66 = sphi 0, %s64
    %s67 = sphi 0, %s66
    %s81 = sphi 0, %s67
    %s87 = sphi 0, %s89
    %s90 = sphi 0, %s87
    %s91 = sphi 0, %s90
    %s107 = sphi 0, %s91
  $region4: #{transnet_forward.31} parent=0 // loop_header_branch
    %12 = sbr.rel (%p10) target = $region8
  $region5: #{transnet_forward.31} parent=0 // loop_body
    %s14 = ssub.s32 %s9, 1
    %s15 = ssub.s32 %s9, 2
    %s16 = sadd.s32 %s9, 1
    %s17 = ssub.s32 %s9, %s16
    %p18 = scmp.eq.s32.totalorder %s17, 0
    %s20 = sadd.s32 %s19, 1
    %s21 = scalar_select %p18, %s19, %s20
    %p24 = pneg %p18
    %p25 = scmp.eq.s32.totalorder %s9, 1
    %p26 = por %p24, %p25
    %p27 = scmp.ne.s32.totalorder %s19, %s22
    %p28 = scmp.eq.s32.totalorder %s9, 0
    %p29 = por %p27, %p28
    %p30 = scmp.ne.s32.totalorder %s19, %s22
    %p31 = scmp.eq.s32.totalorder %s14, 1
    %p32 = por %p30, %p31
    %p33 = scmp.ne.s32.totalorder %s22, %s23
    %p34 = scmp.eq.s32.totalorder %s14, 0
    %p35 = por %p33, %p34
    %p36 = scmp.ne.s32.totalorder %s22, %s23
    %p37 = scmp.eq.s32.totalorder %s15, 1
    %p38 = por %p36, %p37
    %p40 = scmp.ne.s32.totalorder %s23, %s39
    %p41 = scmp.eq.s32.totalorder %s15, 0
    %p42 = por %p40, %p41
    %s44 = sadd.s32 %s43, 1
    %p47 = scmp.eq.s32.totalorder %s9, 1
    %p48 = scmp.ne.s32.totalorder %s43, %s45
    %p49 = scmp.eq.s32.totalorder %s9, 0
    %p50 = por %p48, %p49
    %p51 = scmp.ne.s32.totalorder %s43, %s45
    %p52 = scmp.eq.s32.totalorder %s14, 1
    %p53 = por %p51, %p52
    %p54 = scmp.ne.s32.totalorder %s45, %s46
    %p55 = scmp.eq.s32.totalorder %s14, 0
    %p56 = por %p54, %p55
    %p57 = scmp.ne.s32.totalorder %s45, %s46
    %p58 = scmp.eq.s32.totalorder %s15, 1
    %p59 = por %p57, %p58
    %p61 = scmp.ne.s32.totalorder %s46, %s60
    %p62 = scmp.eq.s32.totalorder %s15, 0
    %p63 = por %p61, %p62
    %s65 = sadd.s32 %s64, 1
    %p68 = scmp.eq.s32.totalorder %s9, 1
    %p69 = scmp.ne.s32.totalorder %s64, %s66
    %p70 = scmp.eq.s32.totalorder %s9, 0
    %p71 = por %p69, %p70
    %p72 = scmp.ne.s32.totalorder %s64, %s66
    %p73 = scmp.eq.s32.totalorder %s14, 1
    %p74 = por %p72, %p73
    %p75 = scmp.ne.s32.totalorder %s66, %s67
    %p76 = scmp.eq.s32.totalorder %s14, 0
    %p77 = por %p75, %p76
    %p78 = scmp.ne.s32.totalorder %s66, %s67
    %p79 = scmp.eq.s32.totalorder %s15, 1
    %p80 = por %p78, %p79
    %p82 = scmp.ne.s32.totalorder %s67, %s81
    %p83 = scmp.eq.s32.totalorder %s15, 0
    %p84 = por %p82, %p83
    %s85 = ssub.s32 %s9, %s16
    %p86 = scmp.eq.s32.totalorder %s85, 0
    %s88 = sadd.s32 %s87, 1
    %s89 = scalar_select %p86, %s87, %s88
    %p92 = pneg %p86
    %p93 = scmp.eq.s32.totalorder %s9, 1
    %p94 = por %p92, %p93
    %p95 = scmp.ne.s32.totalorder %s87, %s90
    %p96 = scmp.eq.s32.totalorder %s9, 0
    %p97 = por %p95, %p96
    %p98 = scmp.ne.s32.totalorder %s87, %s90
    %p99 = scmp.eq.s32.totalorder %s14, 1
    %p100 = por %p98, %p99
    %p101 = scmp.ne.s32.totalorder %s90, %s91
    %p102 = scmp.eq.s32.totalorder %s14, 0
    %p103 = por %p101, %p102
    %p104 = scmp.ne.s32.totalorder %s90, %s91
    %p105 = scmp.eq.s32.totalorder %s15, 1
    %p106 = por %p104, %p105
    %p108 = scmp.ne.s32.totalorder %s91, %s107
    %p109 = scmp.eq.s32.totalorder %s15, 0
    %p110 = por %p108, %p109
    %p111 = scmp.le.s32.totalorder 1, %s9
    %p112 = scmp.lt.s32.totalorder %s9, 3
    %p113 = pnand %p111, %p112
    %p114 = pneg %p113
    // Predicated region
    $region9: #{transnet_forward.31} parent=5 // pred_check
      _
    $region10: #{transnet_forward.31} parent=5 // pred_check_branch
      %116 = sbr.rel (%p113) target = $region12
    $region11: #{transnet_forward.31} parent=5 // pred_region
      %s117 = ssub.s32 %s9, 1
      // Predicated region
      $region13: #{transnet_forward.31} parent=11 // pred_check
        %p118 = pneg %p56
      $region14: #{transnet_forward.31} parent=11 // pred_check_branch
        %120 = sbr.rel (%p118) target = $region16
      $region15: #{transnet_forward.31} parent=11 // pred_region
        _
      $region16: #{transnet_forward.31} parent=11 // pred_fallthru
        _
      // Predicated region
      $region17: #{transnet_forward.31} parent=11 // pred_check
        %p121 = pneg %p77
      $region18: #{transnet_forward.31} parent=11 // pred_check_branch
        %123 = sbr.rel (%p121) target = $region20
      $region19: #{transnet_forward.31} parent=11 // pred_region
        _
      $region20: #{transnet_forward.31} parent=11 // pred_fallthru
        _
    $region12: #{transnet_forward.31} parent=5 // pred_fallthru
      _
    %p124 = scmp.lt.s32.totalorder %s9, 2
    // Predicated region
    $region21: #{transnet_forward.31} parent=5 // pred_check
      %p125 = pneg %p124
    $region22: #{transnet_forward.31} parent=5 // pred_check_branch
      %127 = sbr.rel (%p125) target = $region24
    $region23: #{transnet_forward.31} parent=5 // pred_region
      // Predicated region
      $region25: #{transnet_forward.31} parent=23 // pred_check
        %p128 = pneg %p29
      $region26: #{transnet_forward.31} parent=23 // pred_check_branch
        %130 = sbr.rel (%p128) target = $region28
      $region27: #{transnet_forward.31} parent=23 // pred_region
        %s131 = smul.u32 32, %s9
        %p132 = scmp.lt.s32.totalorder %s131, 63
        %s133 = scalar_select %p132, %s131, 63
        %s134 = smul.addr %s133, 2
        %s135 = smul.addr %s134, 4
        %s136 = scalar_lea.vmem %s0, %s135
        %s137 = smul.u32 32, %s9
      $region28: #{transnet_forward.31} parent=23 // pred_fallthru
        _
    $region24: #{transnet_forward.31} parent=5 // pred_fallthru
      _
    %p138 = scmp.le.s32.totalorder 1, %s9
    %p139 = scmp.lt.s32.totalorder %s9, 3
    %p140 = pnand %p138, %p139
    %p141 = pneg %p140
    // Predicated region
    $region29: #{transnet_forward.31} parent=5 // pred_check
      _
    $region30: #{transnet_forward.31} parent=5 // pred_check_branch
      %143 = sbr.rel (%p140) target = $region32
    $region31: #{transnet_forward.31} parent=5 // pred_region
      %s144 = ssub.s32 %s9, 1
      %s145 = smul.u32 32, %s14
      %p146 = scmp.lt.s32.totalorder %s145, 63
      %s147 = scalar_select %p146, %s145, 63
      %s148 = smul.addr %s147, 2
      %s149 = smul.addr %s148, 4
      %s150 = scalar_lea.vmem %s0, %s149
      %p151 = pneg %p35
      %p152 = pneg %p32
      %p153 = pneg %p56
      %p154 = pneg %p53
      %p155 = pneg %p77
      %p156 = pneg %p74
      %p157 = pneg %p103
      %p158 = pneg %p100
      %s159 = smul.u32 32, %s14
      %p160 = scmp.lt.s32.totalorder %s159, 63
      %s161 = scalar_select %p160, %s159, 63
      %s162 = smul.addr %s161, 8
      %s163 = scalar_lea.vmem %s3, %s162
      %s164 = smul.u32 32, %s14
      %p165 = scmp.lt.s32.totalorder %s164, 63
      %s166 = scalar_select %p165, %s164, 63
      %s167 = smul.addr %s166, 2
      %s168 = smul.addr %s167, 4
      %s169 = scalar_lea.vmem %s0, %s168
      %s170 = smul.u32 32, %s14
      %s171 = smul.u32 32, %s14
      %p172 = scmp.lt.s32.totalorder %s171, 63
      %s173 = scalar_select %p172, %s171, 63
      %s174 = smul.addr %s173, 8
      %s175 = scalar_lea.vmem %s3, %s174
      %s176 = smul.u32 32, %s14
      %v178 = vld [vmem:[%s169] sm:$0xff]
      %v179 = vld [vmem:[%s169 + $0x8] sm:$0xff]
      %v180 = vld [vmem:[%s169 + $0x10] sm:$0xff]
      %v181 = vld [vmem:[%s169 + $0x18] sm:$0xff]
      %v182 = vld [vmem:[%s169 + $0x20] sm:$0xff]
      %v183 = vld [vmem:[%s169 + $0x28] sm:$0xff]
      %v184 = vld [vmem:[%s169 + $0x30] sm:$0xff]
      %v185 = vld [vmem:[%s169 + $0x38] sm:$0xff]
      %v186 = vld [vmem:[%s169 + $0x40] sm:$0xff]
      %v187 = vld [vmem:[%s169 + $0x48] sm:$0xff]
      %v188 = vld [vmem:[%s169 + $0x50] sm:$0xff]
      %v189 = vld [vmem:[%s169 + $0x58] sm:$0xff]
      %v190 = vld [vmem:[%s169 + $0x60] sm:$0xff]
      %v191 = vld [vmem:[%s169 + $0x68] sm:$0xff]
      %v192 = vld [vmem:[%s169 + $0x70] sm:$0xff]
      %v193 = vld [vmem:[%s169 + $0x78] sm:$0xff]
      %v194 = vld [vmem:[%s169 + $0x80] sm:$0xff]
      %v195 = vld [vmem:[%s169 + $0x88] sm:$0xff]
      %v196 = vld [vmem:[%s169 + $0x90] sm:$0xff]
      %v197 = vld [vmem:[%s169 + $0x98] sm:$0xff]
      %v198 = vld [vmem:[%s169 + $0xa0] sm:$0xff]
      %v199 = vld [vmem:[%s169 + $0xa8] sm:$0xff]
      %v200 = vld [vmem:[%s169 + $0xb0] sm:$0xff]
      %v201 = vld [vmem:[%s169 + $0xb8] sm:$0xff]
      %v202 = vld [vmem:[%s169 + $0xc0] sm:$0xff]
      %v203 = vld [vmem:[%s169 + $0xc8] sm:$0xff]
      %v204 = vld [vmem:[%s169 + $0xd0] sm:$0xff]
      %v205 = vld [vmem:[%s169 + $0xd8] sm:$0xff]
      %v206 = vld [vmem:[%s169 + $0xe0] sm:$0xff]
      %v207 = vld [vmem:[%s169 + $0xe8] sm:$0xff]
      %v208 = vld [vmem:[%s169 + $0xf0] sm:$0xff]
      %v209 = vld [vmem:[%s169 + $0xf8] sm:$0xff]
      %v210 = vld [vmem:[%s1] sm:$0xf]
      %v211 = vld [vmem:[%s1 + $0x4] sm:$0xf]
      %v212 = vld [vmem:[%s1 + $0x8] sm:$0xf]
      %v213 = vld [vmem:[%s1 + $0xc] sm:$0xf]
      %v214 = vld [vmem:[%s1 + $0x10] sm:$0xf]
      %v215 = vld [vmem:[%s1 + $0x14] sm:$0xf]
      %v216 = vld [vmem:[%s1 + $0x18] sm:$0xf]
      %v217 = vld [vmem:[%s1 + $0x1c] sm:$0xf]
      %v218 = vld [vmem:[%s1 + $0x20] sm:$0xf]
      %v219 = vld [vmem:[%s1 + $0x24] sm:$0xf]
      %v220 = vld [vmem:[%s1 + $0x28] sm:$0xf]
      %v221 = vld [vmem:[%s1 + $0x2c] sm:$0xf]
      %v222 = vld [vmem:[%s1 + $0x30] sm:$0xf]
      %v223 = vld [vmem:[%s1 + $0x34] sm:$0xf]
      %v224 = vld [vmem:[%s1 + $0x38] sm:$0xf]
      %v225 = vld [vmem:[%s1 + $0x3c] sm:$0xf]
      %v226 = vld [vmem:[%s1 + $0x40] sm:$0xf]
      %v227 = vld [vmem:[%s1 + $0x44] sm:$0xf]
      %v228 = vld [vmem:[%s1 + $0x48] sm:$0xf]
      %v229 = vld [vmem:[%s1 + $0x4c] sm:$0xf]
      %v230 = vld [vmem:[%s1 + $0x50] sm:$0xf]
      %v231 = vld [vmem:[%s1 + $0x54] sm:$0xf]
      %v232 = vld [vmem:[%s1 + $0x58] sm:$0xf]
      %v233 = vld [vmem:[%s1 + $0x5c] sm:$0xf]
      %v234 = vld [vmem:[%s1 + $0x60] sm:$0xf]
      %v235 = vld [vmem:[%s1 + $0x64] sm:$0xf]
      %v236 = vld [vmem:[%s1 + $0x68] sm:$0xf]
      %v237 = vld [vmem:[%s1 + $0x6c] sm:$0xf]
      %v238 = vld [vmem:[%s1 + $0x70] sm:$0xf]
      %v239 = vld [vmem:[%s1 + $0x74] sm:$0xf]
      %v240 = vld [vmem:[%s1 + $0x78] sm:$0xf]
      %v241 = vld [vmem:[%s1 + $0x7c] sm:$0xf]
      %v242 = vld [vmem:[%s2] sm:$0x1]
      %v244 = vlaneseq
      %v245 = vshrl.u32 %v244, 7
      %v246 = vsub.s32 0, %v245
      %v247 = vrot.slane %v242, %v246
      %v281 = vunpack.c.l.b16 %v178
      %v282 = vunpack.c.h.b16 %v178
      %v283 = vunpack.c.l.b16 %v179
      %v284 = vunpack.c.h.b16 %v179
      %v285 = vunpack.c.l.b16 %v180
      %v286 = vunpack.c.h.b16 %v180
      %v287 = vunpack.c.l.b16 %v181
      %v288 = vunpack.c.h.b16 %v181
      %v289 = vunpack.c.l.b16 %v182
      %v290 = vunpack.c.h.b16 %v182
      %v291 = vunpack.c.l.b16 %v183
      %v292 = vunpack.c.h.b16 %v183
      %v293 = vunpack.c.l.b16 %v184
      %v294 = vunpack.c.h.b16 %v184
      %v295 = vunpack.c.l.b16 %v185
      %v296 = vunpack.c.h.b16 %v185
      %v297 = vunpack.c.l.b16 %v186
      %v298 = vunpack.c.h.b16 %v186
      %v299 = vunpack.c.l.b16 %v187
      %v300 = vunpack.c.h.b16 %v187
      %v301 = vunpack.c.l.b16 %v188
      %v302 = vunpack.c.h.b16 %v188
      %v303 = vunpack.c.l.b16 %v189
      %v304 = vunpack.c.h.b16 %v189
      %v305 = vunpack.c.l.b16 %v190
      %v306 = vunpack.c.h.b16 %v190
      %v307 = vunpack.c.l.b16 %v191
      %v308 = vunpack.c.h.b16 %v191
      %v309 = vunpack.c.l.b16 %v192
      %v310 = vunpack.c.h.b16 %v192
      %v311 = vunpack.c.l.b16 %v193
      %v312 = vunpack.c.h.b16 %v193
      %v313 = vunpack.c.l.b16 %v194
      %v314 = vunpack.c.h.b16 %v194
      %v315 = vunpack.c.l.b16 %v195
      %v316 = vunpack.c.h.b16 %v195
      %v317 = vunpack.c.l.b16 %v196
      %v318 = vunpack.c.h.b16 %v196
      %v319 = vunpack.c.l.b16 %v197
      %v320 = vunpack.c.h.b16 %v197
      %v321 = vunpack.c.l.b16 %v198
      %v322 = vunpack.c.h.b16 %v198
      %v323 = vunpack.c.l.b16 %v199
      %v324 = vunpack.c.h.b16 %v199
      %v325 = vunpack.c.l.b16 %v200
      %v326 = vunpack.c.h.b16 %v200
      %v327 = vunpack.c.l.b16 %v201
      %v328 = vunpack.c.h.b16 %v201
      %v329 = vunpack.c.l.b16 %v202
      %v330 = vunpack.c.h.b16 %v202
      %v331 = vunpack.c.l.b16 %v203
      %v332 = vunpack.c.h.b16 %v203
      %v333 = vunpack.c.l.b16 %v204
      %v334 = vunpack.c.h.b16 %v204
      %v335 = vunpack.c.l.b16 %v205
      %v336 = vunpack.c.h.b16 %v205
      %v337 = vunpack.c.l.b16 %v206
      %v338 = vunpack.c.h.b16 %v206
      %v339 = vunpack.c.l.b16 %v207
      %v340 = vunpack.c.h.b16 %v207
      %v341 = vunpack.c.l.b16 %v208
      %v342 = vunpack.c.h.b16 %v208
      %v343 = vunpack.c.l.b16 %v209
      %v344 = vunpack.c.h.b16 %v209
      %v345 = vpack.c.b16 %v283, %v281
      %v346 = vpack.c.b16 %v284, %v282
      %v347 = vpack.c.b16 %v287, %v285
      %v348 = vpack.c.b16 %v288, %v286
      %v349 = vpack.c.b16 %v291, %v289
      %v350 = vpack.c.b16 %v292, %v290
      %v351 = vpack.c.b16 %v295, %v293
      %v352 = vpack.c.b16 %v296, %v294
      %v353 = vpack.c.b16 %v299, %v297
      %v354 = vpack.c.b16 %v300, %v298
      %v355 = vpack.c.b16 %v303, %v301
      %v356 = vpack.c.b16 %v304, %v302
      %v357 = vpack.c.b16 %v307, %v305
      %v358 = vpack.c.b16 %v308, %v306
      %v359 = vpack.c.b16 %v311, %v309
      %v360 = vpack.c.b16 %v312, %v310
      %v361 = vpack.c.b16 %v315, %v313
      %v362 = vpack.c.b16 %v316, %v314
      %v363 = vpack.c.b16 %v319, %v317
      %v364 = vpack.c.b16 %v320, %v318
      %v365 = vpack.c.b16 %v323, %v321
      %v366 = vpack.c.b16 %v324, %v322
      %v367 = vpack.c.b16 %v327, %v325
      %v368 = vpack.c.b16 %v328, %v326
      %v369 = vpack.c.b16 %v331, %v329
      %v370 = vpack.c.b16 %v332, %v330
      %v371 = vpack.c.b16 %v335, %v333
      %v372 = vpack.c.b16 %v336, %v334
      %v373 = vpack.c.b16 %v339, %v337
      %v374 = vpack.c.b16 %v340, %v338
      %v375 = vpack.c.b16 %v343, %v341
      %v376 = vpack.c.b16 %v344, %v342
      %v441 = vunpack.c.l.b16 %v210
      %v442 = vunpack.c.l.b16 %v211
      %v443 = vunpack.c.l.b16 %v212
      %v444 = vunpack.c.l.b16 %v213
      %v445 = vunpack.c.l.b16 %v214
      %v446 = vunpack.c.l.b16 %v215
      %v447 = vunpack.c.l.b16 %v216
      %v448 = vunpack.c.l.b16 %v217
      %v449 = vunpack.c.l.b16 %v218
      %v450 = vunpack.c.l.b16 %v219
      %v451 = vunpack.c.l.b16 %v220
      %v452 = vunpack.c.l.b16 %v221
      %v453 = vunpack.c.l.b16 %v222
      %v454 = vunpack.c.l.b16 %v223
      %v455 = vunpack.c.l.b16 %v224
      %v456 = vunpack.c.l.b16 %v225
      %v457 = vunpack.c.l.b16 %v226
      %v458 = vunpack.c.l.b16 %v227
      %v459 = vunpack.c.l.b16 %v228
      %v460 = vunpack.c.l.b16 %v229
      %v461 = vunpack.c.l.b16 %v230
      %v462 = vunpack.c.l.b16 %v231
      %v463 = vunpack.c.l.b16 %v232
      %v464 = vunpack.c.l.b16 %v233
      %v465 = vunpack.c.l.b16 %v234
      %v466 = vunpack.c.l.b16 %v235
      %v467 = vunpack.c.l.b16 %v236
      %v468 = vunpack.c.l.b16 %v237
      %v469 = vunpack.c.l.b16 %v238
      %v470 = vunpack.c.l.b16 %v239
      %v471 = vunpack.c.l.b16 %v240
      %v472 = vunpack.c.l.b16 %v241
      %v473 = vpack.c.b16 %v442, %v441
      %v474 = vpack.c.b16 %v444, %v443
      %v475 = vpack.c.b16 %v446, %v445
      %v476 = vpack.c.b16 %v448, %v447
      %v477 = vpack.c.b16 %v450, %v449
      %v478 = vpack.c.b16 %v452, %v451
      %v479 = vpack.c.b16 %v454, %v453
      %v480 = vpack.c.b16 %v456, %v455
      %v481 = vpack.c.b16 %v458, %v457
      %v482 = vpack.c.b16 %v460, %v459
      %v483 = vpack.c.b16 %v462, %v461
      %v484 = vpack.c.b16 %v464, %v463
      %v485 = vpack.c.b16 %v466, %v465
      %v486 = vpack.c.b16 %v468, %v467
      %v487 = vpack.c.b16 %v470, %v469
      %v488 = vpack.c.b16 %v472, %v471
      %505 = vmatprep.subr.bf16.mxu0 0
      %506 = vmatpush1.bf16.msra.mxu0 %v473
      %507 = vmatprep.subr.bf16.mxu0 0
      %508 = vmatpush1.bf16.msra.mxu0 %v474
      %509 = vmatprep.subr.bf16.mxu0 0
      %510 = vmatpush1.bf16.msra.mxu0 %v475
      %511 = vmatprep.subr.bf16.mxu0 0
      %512 = vmatpush1.bf16.msra.mxu0 %v476
      %513 = vmatprep.subr.bf16.mxu0 0
      %514 = vmatpush1.bf16.msra.mxu0 %v477
      %515 = vmatprep.subr.bf16.mxu0 0
      %516 = vmatpush1.bf16.msra.mxu0 %v478
      %517 = vmatprep.subr.bf16.mxu0 0
      %518 = vmatpush1.bf16.msra.mxu0 %v479
      %519 = vmatprep.subr.bf16.mxu0 0
      %520 = vmatpush1.bf16.msra.mxu0 %v480
      %521 = vmatprep.subr.bf16.mxu0 0
      %522 = vmatpush1.bf16.msra.mxu0 %v481
      %523 = vmatprep.subr.bf16.mxu0 0
      %524 = vmatpush1.bf16.msra.mxu0 %v482
      %525 = vmatprep.subr.bf16.mxu0 0
      %526 = vmatpush1.bf16.msra.mxu0 %v483
      %527 = vmatprep.subr.bf16.mxu0 0
      %528 = vmatpush1.bf16.msra.mxu0 %v484
      %529 = vmatprep.subr.bf16.mxu0 0
      %530 = vmatpush1.bf16.msra.mxu0 %v485
      %531 = vmatprep.subr.bf16.mxu0 0
      %532 = vmatpush1.bf16.msra.mxu0 %v486
      %533 = vmatprep.subr.bf16.mxu0 0
      %534 = vmatpush1.bf16.msra.mxu0 %v487
      %535 = vmatprep.subr.bf16.mxu0 0
      %536 = vmatpush1.bf16.msra.mxu0 %v488
      %537 = vmatprep.mubr.bf16.mxu0 %v346
      %538 = vmatmul.mubr.bf16.gmra.mrb[0].mxu0 %v345
      %v539 = vpop.f32.mrb[0].mxu0
      %v540 = vadd.f32 %v247, %v539
      %v541 = vpop.f32.mrb[0].mxu0
      %v542 = vpop.f32.mrb[0].mxu0
      %v543 = vadd.f32 %v247, %v542
      %v544 = vpop.f32.mrb[0].mxu0
      %545 = vmatprep.mubr.bf16.mxu0 %v348
      %546 = vmatmul.mubr.bf16.gmra.mrb[0].mxu0 %v347
      %v547 = vpop.f32.mrb[0].mxu0
      %v548 = vadd.f32 %v247, %v547
      %v549 = vpop.f32.mrb[0].mxu0
      %v550 = vpop.f32.mrb[0].mxu0
      %v551 = vadd.f32 %v247, %v550
      %v552 = vpop.f32.mrb[0].mxu0
      %553 = vmatprep.mubr.bf16.mxu0 %v350
      %554 = vmatmul.mubr.bf16.gmra.mrb[0].mxu0 %v349
      %v555 = vpop.f32.mrb[0].mxu0
      %v556 = vadd.f32 %v247, %v555
      %v557 = vpop.f32.mrb[0].mxu0
      %v558 = vpop.f32.mrb[0].mxu0
      %v559 = vadd.f32 %v247, %v558
      %v560 = vpop.f32.mrb[0].mxu0
      %561 = vmatprep.mubr.bf16.mxu0 %v352
      %562 = vmatmul.mubr.bf16.gmra.mrb[0].mxu0 %v351
      %v563 = vpop.f32.mrb[0].mxu0
      %v564 = vadd.f32 %v247, %v563
      %v565 = vpop.f32.mrb[0].mxu0
      %v566 = vpop.f32.mrb[0].mxu0
      %v567 = vadd.f32 %v247, %v566
      %v568 = vpop.f32.mrb[0].mxu0
      %569 = vmatprep.mubr.bf16.mxu0 %v354
      %570 = vmatmul.mubr.bf16.gmra.mrb[0].mxu0 %v353
      %v571 = vpop.f32.mrb[0].mxu0
      %v572 = vadd.f32 %v247, %v571
      %v573 = vpop.f32.mrb[0].mxu0
      %v574 = vpop.f32.mrb[0].mxu0
      %v575 = vadd.f32 %v247, %v574
      %v576 = vpop.f32.mrb[0].mxu0
      %577 = vmatprep.mubr.bf16.mxu0 %v356
      %578 = vmatmul.mubr.bf16.gmra.mrb[0].mxu0 %v355
      %v579 = vpop.f32.mrb[0].mxu0
      %v580 = vadd.f32 %v247, %v579
      %v581 = vpop.f32.mrb[0].mxu0
      %v582 = vpop.f32.mrb[0].mxu0
      %v583 = vadd.f32 %v247, %v582
      %v584 = vpop.f32.mrb[0].mxu0
      %585 = vmatprep.mubr.bf16.mxu0 %v358
      %586 = vmatmul.mubr.bf16.gmra.mrb[0].mxu0 %v357
      %v587 = vpop.f32.mrb[0].mxu0
      %v588 = vadd.f32 %v247, %v587
      %v589 = vpop.f32.mrb[0].mxu0
      %v590 = vpop.f32.mrb[0].mxu0
      %v591 = vadd.f32 %v247, %v590
      %v592 = vpop.f32.mrb[0].mxu0
      %593 = vmatprep.mubr.bf16.mxu0 %v360
      %594 = vmatmul.mubr.bf16.gmra.mrb[0].mxu0 %v359
      %v595 = vpop.f32.mrb[0].mxu0
      %v596 = vadd.f32 %v247, %v595
      %v597 = vpop.f32.mrb[0].mxu0
      %v598 = vpop.f32.mrb[0].mxu0
      %v599 = vadd.f32 %v247, %v598
      %v600 = vpop.f32.mrb[0].mxu0
      %601 = vmatprep.mubr.bf16.mxu0 %v362
      %602 = vmatmul.mubr.bf16.gmra.mrb[0].mxu0 %v361
      %v603 = vpop.f32.mrb[0].mxu0
      %v604 = vadd.f32 %v247, %v603
      %v605 = vpop.f32.mrb[0].mxu0
      %v606 = vpop.f32.mrb[0].mxu0
      %v607 = vadd.f32 %v247, %v606
      %v608 = vpop.f32.mrb[0].mxu0
      %609 = vmatprep.mubr.bf16.mxu0 %v364
      %610 = vmatmul.mubr.bf16.gmra.mrb[0].mxu0 %v363
      %v611 = vpop.f32.mrb[0].mxu0
      %v612 = vadd.f32 %v247, %v611
      %v613 = vpop.f32.mrb[0].mxu0
      %v614 = vpop.f32.mrb[0].mxu0
      %v615 = vadd.f32 %v247, %v614
      %v616 = vpop.f32.mrb[0].mxu0
      %617 = vmatprep.mubr.bf16.mxu0 %v366
      %618 = vmatmul.mubr.bf16.gmra.mrb[0].mxu0 %v365
      %v619 = vpop.f32.mrb[0].mxu0
      %v620 = vadd.f32 %v247, %v619
      %v621 = vpop.f32.mrb[0].mxu0
      %v622 = vpop.f32.mrb[0].mxu0
      %v623 = vadd.f32 %v247, %v622
      %v624 = vpop.f32.mrb[0].mxu0
      %625 = vmatprep.mubr.bf16.mxu0 %v368
      %626 = vmatmul.mubr.bf16.gmra.mrb[0].mxu0 %v367
      %v627 = vpop.f32.mrb[0].mxu0
      %v628 = vadd.f32 %v247, %v627
      %v629 = vpop.f32.mrb[0].mxu0
      %v630 = vpop.f32.mrb[0].mxu0
      %v631 = vadd.f32 %v247, %v630
      %v632 = vpop.f32.mrb[0].mxu0
      %633 = vmatprep.mubr.bf16.mxu0 %v370
      %634 = vmatmul.mubr.bf16.gmra.mrb[0].mxu0 %v369
      %v635 = vpop.f32.mrb[0].mxu0
      %v636 = vadd.f32 %v247, %v635
      %v637 = vpop.f32.mrb[0].mxu0
      %v638 = vpop.f32.mrb[0].mxu0
      %v639 = vadd.f32 %v247, %v638
      %v640 = vpop.f32.mrb[0].mxu0
      %641 = vmatprep.mubr.bf16.mxu0 %v372
      %642 = vmatmul.mubr.bf16.gmra.mrb[0].mxu0 %v371
      %v643 = vpop.f32.mrb[0].mxu0
      %v644 = vadd.f32 %v247, %v643
      %v645 = vpop.f32.mrb[0].mxu0
      %v646 = vpop.f32.mrb[0].mxu0
      %v647 = vadd.f32 %v247, %v646
      %v648 = vpop.f32.mrb[0].mxu0
      %649 = vmatprep.mubr.bf16.mxu0 %v374
      %650 = vmatmul.mubr.bf16.gmra.mrb[0].mxu0 %v373
      %v651 = vpop.f32.mrb[0].mxu0
      %v652 = vadd.f32 %v247, %v651
      %v653 = vpop.f32.mrb[0].mxu0
      %v654 = vpop.f32.mrb[0].mxu0
      %v655 = vadd.f32 %v247, %v654
      %v656 = vpop.f32.mrb[0].mxu0
      %657 = vmatprep.mubr.bf16.mxu0 %v376
      %658 = vmatmul.mubr.bf16.gmra.mrb[0].mxu0 %v375
      %v659 = vpop.f32.mrb[0].mxu0
      %v660 = vadd.f32 %v247, %v659
      %v661 = vpop.f32.mrb[0].mxu0
      %v662 = vpop.f32.mrb[0].mxu0
      %v663 = vadd.f32 %v247, %v662
      %v664 = vpop.f32.mrb[0].mxu0
      %665 = vdwg.mxu0
      %666 = vst [vmem:[%s175] sm:$0xff] %v540
      %667 = vst [vmem:[%s175 + $0x8] sm:$0xff] %v543
      %668 = vst [vmem:[%s175 + $0x10] sm:$0xff] %v548
      %669 = vst [vmem:[%s175 + $0x18] sm:$0xff] %v551
      %670 = vst [vmem:[%s175 + $0x20] sm:$0xff] %v556
      %671 = vst [vmem:[%s175 + $0x28] sm:$0xff] %v559
      %672 = vst [vmem:[%s175 + $0x30] sm:$0xff] %v564
      %673 = vst [vmem:[%s175 + $0x38] sm:$0xff] %v567
      %674 = vst [vmem:[%s175 + $0x40] sm:$0xff] %v572
      %675 = vst [vmem:[%s175 + $0x48] sm:$0xff] %v575
      %676 = vst [vmem:[%s175 + $0x50] sm:$0xff] %v580
      %677 = vst [vmem:[%s175 + $0x58] sm:$0xff] %v583
      %678 = vst [vmem:[%s175 + $0x60] sm:$0xff] %v588
      %679 = vst [vmem:[%s175 + $0x68] sm:$0xff] %v591
      %680 = vst [vmem:[%s175 + $0x70] sm:$0xff] %v596
      %681 = vst [vmem:[%s175 + $0x78] sm:$0xff] %v599
      %682 = vst [vmem:[%s175 + $0x80] sm:$0xff] %v604
      %683 = vst [vmem:[%s175 + $0x88] sm:$0xff] %v607
      %684 = vst [vmem:[%s175 + $0x90] sm:$0xff] %v612
      %685 = vst [vmem:[%s175 + $0x98] sm:$0xff] %v615
      %686 = vst [vmem:[%s175 + $0xa0] sm:$0xff] %v620
      %687 = vst [vmem:[%s175 + $0xa8] sm:$0xff] %v623
      %688 = vst [vmem:[%s175 + $0xb0] sm:$0xff] %v628
      %689 = vst [vmem:[%s175 + $0xb8] sm:$0xff] %v631
      %690 = vst [vmem:[%s175 + $0xc0] sm:$0xff] %v636
      %691 = vst [vmem:[%s175 + $0xc8] sm:$0xff] %v639
      %692 = vst [vmem:[%s175 + $0xd0] sm:$0xff] %v644
      %693 = vst [vmem:[%s175 + $0xd8] sm:$0xff] %v647
      %694 = vst [vmem:[%s175 + $0xe0] sm:$0xff] %v652
      %695 = vst [vmem:[%s175 + $0xe8] sm:$0xff] %v655
      %696 = vst [vmem:[%s175 + $0xf0] sm:$0xff] %v660
      %697 = vst [vmem:[%s175 + $0xf8] sm:$0xff] %v663
      %s698 = smul.u32 32, %s14
      %p699 = scmp.lt.s32.totalorder %s698, 63
      %s700 = scalar_select %p699, %s698, 63
      %s701 = smul.addr %s700, 8
      %s702 = scalar_lea.vmem %s3, %s701
      // Predicated region
      $region33: #{transnet_forward.31} parent=31 // pred_check
        %p703 = pneg %p100
      $region34: #{transnet_forward.31} parent=31 // pred_check_branch
        %705 = sbr.rel (%p703) target = $region36
      $region35: #{transnet_forward.31} parent=31 // pred_region
        %s706 = smul.u32 32, %s14
      $region36: #{transnet_forward.31} parent=31 // pred_fallthru
        _
    $region32: #{transnet_forward.31} parent=5 // pred_fallthru
      _
    %p707 = scmp.le.s32.totalorder 2, %s9
    // Predicated region
    $region37: #{transnet_forward.31} parent=5 // pred_check
      %p708 = pneg %p707
    $region38: #{transnet_forward.31} parent=5 // pred_check_branch
      %710 = sbr.rel (%p708) target = $region40
    $region39: #{transnet_forward.31} parent=5 // pred_region
      %s711 = ssub.s32 %s9, 2
      // Predicated region
      $region41: #{transnet_forward.31} parent=39 // pred_check
        %p712 = pneg %p106
      $region42: #{transnet_forward.31} parent=39 // pred_check_branch
        %714 = sbr.rel (%p712) target = $region44
      $region43: #{transnet_forward.31} parent=39 // pred_region
        %s715 = smul.u32 32, %s15
        %p716 = scmp.lt.s32.totalorder %s715, 63
        %s717 = scalar_select %p716, %s715, 63
        %s718 = smul.addr %s717, 8
        %s719 = scalar_lea.vmem %s3, %s718
      $region44: #{transnet_forward.31} parent=39 // pred_fallthru
        _
    $region40: #{transnet_forward.31} parent=5 // pred_fallthru
      _
  $region6: #{transnet_forward.31} parent=0 // loop_footer
    %s13 = sadd.s32 1, %s9
  $region7: #{transnet_forward.31} parent=0 // loop_footer_branch
    %8 = sbr.rel target = $region3
  $region8: #{transnet_forward.31} parent=0 // loop_exit
    _

// kernel: transnet_forward.32
$region0: #{transnet_forward.32}
  #allocation0 [shape = 'u32[]', space=smem, size = 0x4, offset = 0x4, fixed_abs, tag = 'smem constant byte address 0x4 - core index']
  #allocation1 [shape = 'u32[144,128]{1,0:T(1,128)}', space=vmem, size = 0x12000, scoped, tag = 'internal scratch']
  %s0 = inlined_call_operand.vmem [shape: f32[2,256,32], index: 0, kind: input, shape index: {}]
  %s1 = inlined_call_operand.vmem [shape: f32[2,256,32], index: 1, kind: output, shape index: {}]
  %s2 = sld [smem:[#allocation0]]
  $region37: #{transnet_forward.32} parent=0
    _
  %s4 = ssub.s32 1, %s2
  %s5 = scalar_select 0, %s4, %s2
  loop: start=0, step=1, limit=4
  $region2: #{transnet_forward.32} parent=0 // loop_pre_header
    _
  $region3: #{transnet_forward.32} parent=0 // loop_header
    %s7 = sphi 0, %s11
    %p8 = scmp.ge.s32.totalorder %s7, 4
    %s17 = sphi 0, %s19
    %s20 = sphi 0, %s17
    %s21 = sphi 0, %s20
    %s37 = sphi 0, %s21
    %s43 = sphi 0, %s45
    %s46 = sphi 0, %s43
    %s47 = sphi 0, %s46
    %s63 = sphi 0, %s47
  $region4: #{transnet_forward.32} parent=0 // loop_header_branch
    %10 = sbr.rel (%p8) target = $region8
  $region5: #{transnet_forward.32} parent=0 // loop_body
    %s12 = ssub.s32 %s7, 1
    %s13 = ssub.s32 %s7, 2
    %s14 = sadd.s32 %s7, 1
    %s15 = ssub.s32 %s7, %s14
    %p16 = scmp.eq.s32.totalorder %s15, 0
    %s18 = sadd.s32 %s17, 1
    %s19 = scalar_select %p16, %s17, %s18
    %p22 = pneg %p16
    %p23 = scmp.eq.s32.totalorder %s7, 1
    %p24 = por %p22, %p23
    %p25 = scmp.ne.s32.totalorder %s17, %s20
    %p26 = scmp.eq.s32.totalorder %s7, 0
    %p27 = por %p25, %p26
    %p28 = scmp.ne.s32.totalorder %s17, %s20
    %p29 = scmp.eq.s32.totalorder %s12, 1
    %p30 = por %p28, %p29
    %p31 = scmp.ne.s32.totalorder %s20, %s21
    %p32 = scmp.eq.s32.totalorder %s12, 0
    %p33 = por %p31, %p32
    %p34 = scmp.ne.s32.totalorder %s20, %s21
    %p35 = scmp.eq.s32.totalorder %s13, 1
    %p36 = por %p34, %p35
    %p38 = scmp.ne.s32.totalorder %s21, %s37
    %p39 = scmp.eq.s32.totalorder %s13, 0
    %p40 = por %p38, %p39
    %s41 = ssub.s32 %s7, %s14
    %p42 = scmp.eq.s32.totalorder %s41, 0
    %s44 = sadd.s32 %s43, 1
    %s45 = scalar_select %p42, %s43, %s44
    %p48 = pneg %p42
    %p49 = scmp.eq.s32.totalorder %s7, 1
    %p50 = por %p48, %p49
    %p51 = scmp.ne.s32.totalorder %s43, %s46
    %p52 = scmp.eq.s32.totalorder %s7, 0
    %p53 = por %p51, %p52
    %p54 = scmp.ne.s32.totalorder %s43, %s46
    %p55 = scmp.eq.s32.totalorder %s12, 1
    %p56 = por %p54, %p55
    %p57 = scmp.ne.s32.totalorder %s46, %s47
    %p58 = scmp.eq.s32.totalorder %s12, 0
    %p59 = por %p57, %p58
    %p60 = scmp.ne.s32.totalorder %s46, %s47
    %p61 = scmp.eq.s32.totalorder %s13, 1
    %p62 = por %p60, %p61
    %p64 = scmp.ne.s32.totalorder %s47, %s63
    %p65 = scmp.eq.s32.totalorder %s13, 0
    %p66 = por %p64, %p65
    %p67 = scmp.le.s32.totalorder 1, %s7
    %p68 = scmp.lt.s32.totalorder %s7, 3
    %p69 = pnand %p67, %p68
    %p70 = pneg %p69
    // Predicated region
    $region9: #{transnet_forward.32} parent=5 // pred_check
      _
    $region10: #{transnet_forward.32} parent=5 // pred_check_branch
      %72 = sbr.rel (%p69) target = $region12
    $region11: #{transnet_forward.32} parent=5 // pred_region
      %s73 = ssub.s32 %s7, 1
    $region12: #{transnet_forward.32} parent=5 // pred_fallthru
      _
    %p74 = scmp.lt.s32.totalorder %s7, 2
    // Predicated region
    $region13: #{transnet_forward.32} parent=5 // pred_check
      %p75 = pneg %p74
    $region14: #{transnet_forward.32} parent=5 // pred_check_branch
      %77 = sbr.rel (%p75) target = $region16
    $region15: #{transnet_forward.32} parent=5 // pred_region
      // Predicated region
      $region17: #{transnet_forward.32} parent=15 // pred_check
        %p78 = pneg %p27
      $region18: #{transnet_forward.32} parent=15 // pred_check_branch
        %80 = sbr.rel (%p78) target = $region20
      $region19: #{transnet_forward.32} parent=15 // pred_region
        %p81 = scmp.lt.s32.totalorder %s7, 1
        %s82 = scalar_select %p81, %s7, 1
        %s83 = smul.addr %s82, 32
        %s84 = smul.addr %s83, 8
        %s85 = scalar_lea.vmem %s0, %s84
      $region20: #{transnet_forward.32} parent=15 // pred_fallthru
        _
    $region16: #{transnet_forward.32} parent=5 // pred_fallthru
      _
    %p86 = scmp.le.s32.totalorder 1, %s7
    %p87 = scmp.lt.s32.totalorder %s7, 3
    %p88 = pnand %p86, %p87
    %p89 = pneg %p88
    // Predicated region
    $region21: #{transnet_forward.32} parent=5 // pred_check
      _
    $region22: #{transnet_forward.32} parent=5 // pred_check_branch
      %91 = sbr.rel (%p88) target = $region24
    $region23: #{transnet_forward.32} parent=5 // pred_region
      %s92 = ssub.s32 %s7, 1
      %p93 = scmp.lt.s32.totalorder %s12, 1
      %s94 = scalar_select %p93, %s12, 1
      %s95 = smul.addr %s94, 32
      %s96 = smul.addr %s95, 8
      %s97 = scalar_lea.vmem %s0, %s96
      %p98 = pneg %p33
      %p99 = pneg %p30
      %p100 = pneg %p59
      %p101 = pneg %p56
      %p102 = scmp.lt.s32.totalorder %s12, 1
      %s103 = scalar_select %p102, %s12, 1
      %s104 = smul.addr %s103, 32
      %s105 = smul.addr %s104, 8
      %s106 = scalar_lea.vmem %s1, %s105
      %p107 = scmp.lt.s32.totalorder %s12, 1
      %s108 = scalar_select %p107, %s12, 1
      %s109 = smul.addr %s108, 32
      %s110 = smul.addr %s109, 8
      %s111 = scalar_lea.vmem %s0, %s110
      %p112 = scmp.lt.s32.totalorder %s12, 1
      %s113 = scalar_select %p112, %s12, 1
      %s114 = smul.addr %s113, 32
      %s115 = smul.addr %s114, 8
      %s116 = scalar_lea.vmem %s1, %s115
      %v117 = vld [vmem:[%s111] sm:$0xff]
      %v118 = vld [vmem:[%s111 + $0x8] sm:$0xff]
      %v119 = vld [vmem:[%s111 + $0x10] sm:$0xff]
      %v120 = vld [vmem:[%s111 + $0x18] sm:$0xff]
      %v121 = vld [vmem:[%s111 + $0x20] sm:$0xff]
      %v122 = vld [vmem:[%s111 + $0x28] sm:$0xff]
      %v123 = vld [vmem:[%s111 + $0x30] sm:$0xff]
      %v124 = vld [vmem:[%s111 + $0x38] sm:$0xff]
      %v125 = vld [vmem:[%s111 + $0x40] sm:$0xff]
      %v126 = vld [vmem:[%s111 + $0x48] sm:$0xff]
      %v127 = vld [vmem:[%s111 + $0x50] sm:$0xff]
      %v128 = vld [vmem:[%s111 + $0x58] sm:$0xff]
      %v129 = vld [vmem:[%s111 + $0x60] sm:$0xff]
      %v130 = vld [vmem:[%s111 + $0x68] sm:$0xff]
      %v131 = vld [vmem:[%s111 + $0x70] sm:$0xff]
      %v132 = vld [vmem:[%s111 + $0x78] sm:$0xff]
      %v133 = vld [vmem:[%s111 + $0x80] sm:$0xff]
      %v134 = vld [vmem:[%s111 + $0x88] sm:$0xff]
      %v135 = vld [vmem:[%s111 + $0x90] sm:$0xff]
      %v136 = vld [vmem:[%s111 + $0x98] sm:$0xff]
      %v137 = vld [vmem:[%s111 + $0xa0] sm:$0xff]
      %v138 = vld [vmem:[%s111 + $0xa8] sm:$0xff]
      %v139 = vld [vmem:[%s111 + $0xb0] sm:$0xff]
      %v140 = vld [vmem:[%s111 + $0xb8] sm:$0xff]
      %v141 = vld [vmem:[%s111 + $0xc0] sm:$0xff]
      %v142 = vld [vmem:[%s111 + $0xc8] sm:$0xff]
      %v143 = vld [vmem:[%s111 + $0xd0] sm:$0xff]
      %v144 = vld [vmem:[%s111 + $0xd8] sm:$0xff]
      %v145 = vld [vmem:[%s111 + $0xe0] sm:$0xff]
      %v146 = vld [vmem:[%s111 + $0xe8] sm:$0xff]
      %v147 = vld [vmem:[%s111 + $0xf0] sm:$0xff]
      %v148 = vld [vmem:[%s111 + $0xf8] sm:$0xff]
      %vm149 = vcmask 261120
      %v150 = vsel %vm149, %v117, 0.0
      %v151 = vsel %vm149, %v118, 0.0
      %v152 = vadd.f32 %v150, %v151
      %v153 = vsel %vm149, %v119, 0.0
      %v154 = vadd.f32 %v152, %v153
      %v155 = vsel %vm149, %v120, 0.0
      %v156 = vadd.f32 %v154, %v155
      %v157 = vsel %vm149, %v121, 0.0
      %v158 = vadd.f32 %v156, %v157
      %v159 = vsel %vm149, %v122, 0.0
      %v160 = vadd.f32 %v158, %v159
      %v161 = vsel %vm149, %v123, 0.0
      %v162 = vadd.f32 %v160, %v161
      %v163 = vsel %vm149, %v124, 0.0
      %v164 = vadd.f32 %v162, %v163
      %v165 = vsel %vm149, %v125, 0.0
      %v166 = vadd.f32 %v164, %v165
      %v167 = vsel %vm149, %v126, 0.0
      %v168 = vadd.f32 %v166, %v167
      %v169 = vsel %vm149, %v127, 0.0
      %v170 = vadd.f32 %v168, %v169
      %v171 = vsel %vm149, %v128, 0.0
      %v172 = vadd.f32 %v170, %v171
      %v173 = vsel %vm149, %v129, 0.0
      %v174 = vadd.f32 %v172, %v173
      %v175 = vsel %vm149, %v130, 0.0
      %v176 = vadd.f32 %v174, %v175
      %v177 = vsel %vm149, %v131, 0.0
      %v178 = vadd.f32 %v176, %v177
      %v179 = vsel %vm149, %v132, 0.0
      %v180 = vadd.f32 %v178, %v179
      %v181 = vsel %vm149, %v133, 0.0
      %v182 = vadd.f32 %v180, %v181
      %v183 = vsel %vm149, %v134, 0.0
      %v184 = vadd.f32 %v182, %v183
      %v185 = vsel %vm149, %v135, 0.0
      %v186 = vadd.f32 %v184, %v185
      %v187 = vsel %vm149, %v136, 0.0
      %v188 = vadd.f32 %v186, %v187
      %v189 = vsel %vm149, %v137, 0.0
      %v190 = vadd.f32 %v188, %v189
      %v191 = vsel %vm149, %v138, 0.0
      %v192 = vadd.f32 %v190, %v191
      %v193 = vsel %vm149, %v139, 0.0
      %v194 = vadd.f32 %v192, %v193
      %v195 = vsel %vm149, %v140, 0.0
      %v196 = vadd.f32 %v194, %v195
      %v197 = vsel %vm149, %v141, 0.0
      %v198 = vadd.f32 %v196, %v197
      %v199 = vsel %vm149, %v142, 0.0
      %v200 = vadd.f32 %v198, %v199
      %v201 = vsel %vm149, %v143, 0.0
      %v202 = vadd.f32 %v200, %v201
      %v203 = vsel %vm149, %v144, 0.0
      %v204 = vadd.f32 %v202, %v203
      %v205 = vsel %vm149, %v145, 0.0
      %v206 = vadd.f32 %v204, %v205
      %v207 = vsel %vm149, %v146, 0.0
      %v208 = vadd.f32 %v206, %v207
      %v209 = vsel %vm149, %v147, 0.0
      %v210 = vadd.f32 %v208, %v209
      %v211 = vsel %vm149, %v148, 0.0
      %v212 = vadd.f32 %v210, %v211
      %v213 = vrot.slane %v212, 4
      %v214 = vadd.f32 %v212, %v213
      %v215 = vrot.slane %v214, 2
      %v216 = vadd.f32 %v214, %v215
      %v217 = vrot.slane %v216, 1
      %v218 = vadd.f32 %v216, %v217
      %v219 = vrcp.pop 256.0
      %v220 = vmul.f32 %v218, %v219
      %v221 = vsub.f32 %v117, %v220
      %v222 = vsub.f32 %v118, %v220
      %v223 = vsub.f32 %v119, %v220
      %v224 = vsub.f32 %v120, %v220
      %v225 = vsub.f32 %v121, %v220
      %v226 = vsub.f32 %v122, %v220
      %v227 = vsub.f32 %v123, %v220
      %v228 = vsub.f32 %v124, %v220
      %v229 = vsub.f32 %v125, %v220
      %v230 = vsub.f32 %v126, %v220
      %v231 = vsub.f32 %v127, %v220
      %v232 = vsub.f32 %v128, %v220
      %v233 = vsub.f32 %v129, %v220
      %v234 = vsub.f32 %v130, %v220
      %v235 = vsub.f32 %v131, %v220
      %v236 = vsub.f32 %v132, %v220
      %v237 = vsub.f32 %v133, %v220
      %v238 = vsub.f32 %v134, %v220
      %v239 = vsub.f32 %v135, %v220
      %v240 = vsub.f32 %v136, %v220
      %v241 = vsub.f32 %v137, %v220
      %v242 = vsub.f32 %v138, %v220
      %v243 = vsub.f32 %v139, %v220
      %v244 = vsub.f32 %v140, %v220
      %v245 = vsub.f32 %v141, %v220
      %v246 = vsub.f32 %v142, %v220
      %v247 = vsub.f32 %v143, %v220
      %v248 = vsub.f32 %v144, %v220
      %v249 = vsub.f32 %v145, %v220
      %v250 = vsub.f32 %v146, %v220
      %v251 = vsub.f32 %v147, %v220
      %v252 = vsub.f32 %v148, %v220
      %v253 = vmul.f32 %v221, %v221
      %v254 = vmul.f32 %v222, %v222
      %v255 = vmul.f32 %v223, %v223
      %v256 = vmul.f32 %v224, %v224
      %v257 = vmul.f32 %v225, %v225
      %v258 = vmul.f32 %v226, %v226
      %v259 = vmul.f32 %v227, %v227
      %v260 = vmul.f32 %v228, %v228
      %v261 = vmul.f32 %v229, %v229
      %v262 = vmul.f32 %v230, %v230
      %v263 = vmul.f32 %v231, %v231
      %v264 = vmul.f32 %v232, %v232
      %v265 = vmul.f32 %v233, %v233
      %v266 = vmul.f32 %v234, %v234
      %v267 = vmul.f32 %v235, %v235
      %v268 = vmul.f32 %v236, %v236
      %v269 = vmul.f32 %v237, %v237
      %v270 = vmul.f32 %v238, %v238
      %v271 = vmul.f32 %v239, %v239
      %v272 = vmul.f32 %v240, %v240
      %v273 = vmul.f32 %v241, %v241
      %v274 = vmul.f32 %v242, %v242
      %v275 = vmul.f32 %v243, %v243
      %v276 = vmul.f32 %v244, %v244
      %v277 = vmul.f32 %v245, %v245
      %v278 = vmul.f32 %v246, %v246
      %v279 = vmul.f32 %v247, %v247
      %v280 = vmul.f32 %v248, %v248
      %v281 = vmul.f32 %v249, %v249
      %v282 = vmul.f32 %v250, %v250
      %v283 = vmul.f32 %v251, %v251
      %v284 = vmul.f32 %v252, %v252
      %v285 = vsel %vm149, %v253, 0.0
      %v286 = vsel %vm149, %v254, 0.0
      %v287 = vadd.f32 %v285, %v286
      %v288 = vsel %vm149, %v255, 0.0
      %v289 = vadd.f32 %v287, %v288
      %v290 = vsel %vm149, %v256, 0.0
      %v291 = vadd.f32 %v289, %v290
      %v292 = vsel %vm149, %v257, 0.0
      %v293 = vadd.f32 %v291, %v292
      %v294 = vsel %vm149, %v258, 0.0
      %v295 = vadd.f32 %v293, %v294
      %v296 = vsel %vm149, %v259, 0.0
      %v297 = vadd.f32 %v295, %v296
      %v298 = vsel %vm149, %v260, 0.0
      %v299 = vadd.f32 %v297, %v298
      %v300 = vsel %vm149, %v261, 0.0
      %v301 = vadd.f32 %v299, %v300
      %v302 = vsel %vm149, %v262, 0.0
      %v303 = vadd.f32 %v301, %v302
      %v304 = vsel %vm149, %v263, 0.0
      %v305 = vadd.f32 %v303, %v304
      %v306 = vsel %vm149, %v264, 0.0
      %v307 = vadd.f32 %v305, %v306
      %v308 = vsel %vm149, %v265, 0.0
      %v309 = vadd.f32 %v307, %v308
      %v310 = vsel %vm149, %v266, 0.0
      %v311 = vadd.f32 %v309, %v310
      %v312 = vsel %vm149, %v267, 0.0
      %v313 = vadd.f32 %v311, %v312
      %v314 = vsel %vm149, %v268, 0.0
      %v315 = vadd.f32 %v313, %v314
      %v316 = vsel %vm149, %v269, 0.0
      %v317 = vadd.f32 %v315, %v316
      %v318 = vsel %vm149, %v270, 0.0
      %v319 = vadd.f32 %v317, %v318
      %v320 = vsel %vm149, %v271, 0.0
      %v321 = vadd.f32 %v319, %v320
      %v322 = vsel %vm149, %v272, 0.0
      %v323 = vadd.f32 %v321, %v322
      %v324 = vsel %vm149, %v273, 0.0
      %v325 = vadd.f32 %v323, %v324
      %v326 = vsel %vm149, %v274, 0.0
      %v327 = vadd.f32 %v325, %v326
      %v328 = vsel %vm149, %v275, 0.0
      %v329 = vadd.f32 %v327, %v328
      %v330 = vsel %vm149, %v276, 0.0
      %v331 = vadd.f32 %v329, %v330
      %v332 = vsel %vm149, %v277, 0.0
      %v333 = vadd.f32 %v331, %v332
      %v334 = vsel %vm149, %v278, 0.0
      %v335 = vadd.f32 %v333, %v334
      %v336 = vsel %vm149, %v279, 0.0
      %v337 = vadd.f32 %v335, %v336
      %v338 = vsel %vm149, %v280, 0.0
      %v339 = vadd.f32 %v337, %v338
      %v340 = vsel %vm149, %v281, 0.0
      %v341 = vadd.f32 %v339, %v340
      %v342 = vsel %vm149, %v282, 0.0
      %v343 = vadd.f32 %v341, %v342
      %v344 = vsel %vm149, %v283, 0.0
      %v345 = vadd.f32 %v343, %v344
      %v346 = vsel %vm149, %v284, 0.0
      %v347 = vadd.f32 %v345, %v346
      %v348 = vrot.slane %v347, 4
      %v349 = vadd.f32 %v347, %v348
      %v350 = vrot.slane %v349, 2
      %v351 = vadd.f32 %v349, %v350
      %v352 = vrot.slane %v351, 1
      %v353 = vadd.f32 %v351, %v352
      %v354 = vmul.f32 %v353, %v219
      %v355 = vadd.f32 %v354, 1e-05
      %v356 = vrsqrt.pop %v355
      %v357 = vmul.f32 %v221, %v356
      %v358 = vmul.f32 %v222, %v356
      %v359 = vmul.f32 %v223, %v356
      %v360 = vmul.f32 %v224, %v356
      %v361 = vmul.f32 %v225, %v356
      %v362 = vmul.f32 %v226, %v356
      %v363 = vmul.f32 %v227, %v356
      %v364 = vmul.f32 %v228, %v356
      %v365 = vmul.f32 %v229, %v356
      %v366 = vmul.f32 %v230, %v356
      %v367 = vmul.f32 %v231, %v356
      %v368 = vmul.f32 %v232, %v356
      %v369 = vmul.f32 %v233, %v356
      %v370 = vmul.f32 %v234, %v356
      %v371 = vmul.f32 %v235, %v356
      %v372 = vmul.f32 %v236, %v356
      %v373 = vmul.f32 %v237, %v356
      %v374 = vmul.f32 %v238, %v356
      %v375 = vmul.f32 %v239, %v356
      %v376 = vmul.f32 %v240, %v356
      %v377 = vmul.f32 %v241, %v356
      %v378 = vmul.f32 %v242, %v356
      %v379 = vmul.f32 %v243, %v356
      %v380 = vmul.f32 %v244, %v356
      %v381 = vmul.f32 %v245, %v356
      %v382 = vmul.f32 %v246, %v356
      %v383 = vmul.f32 %v247, %v356
      %v384 = vmul.f32 %v248, %v356
      %v385 = vmul.f32 %v249, %v356
      %v386 = vmul.f32 %v250, %v356
      %v387 = vmul.f32 %v251, %v356
      %v388 = vmul.f32 %v252, %v356
      %v389 = vmax.f32 %v357, 0.0
      %v390 = vmax.f32 %v358, 0.0
      %v391 = vmax.f32 %v359, 0.0
      %v392 = vmax.f32 %v360, 0.0
      %v393 = vmax.f32 %v361, 0.0
      %v394 = vmax.f32 %v362, 0.0
      %v395 = vmax.f32 %v363, 0.0
      %v396 = vmax.f32 %v364, 0.0
      %v397 = vmax.f32 %v365, 0.0
      %v398 = vmax.f32 %v366, 0.0
      %v399 = vmax.f32 %v367, 0.0
      %v400 = vmax.f32 %v368, 0.0
      %v401 = vmax.f32 %v369, 0.0
      %v402 = vmax.f32 %v370, 0.0
      %v403 = vmax.f32 %v371, 0.0
      %v404 = vmax.f32 %v372, 0.0
      %v405 = vmax.f32 %v373, 0.0
      %v406 = vmax.f32 %v374, 0.0
      %v407 = vmax.f32 %v375, 0.0
      %v408 = vmax.f32 %v376, 0.0
      %v409 = vmax.f32 %v377, 0.0
      %v410 = vmax.f32 %v378, 0.0
      %v411 = vmax.f32 %v379, 0.0
      %v412 = vmax.f32 %v380, 0.0
      %v413 = vmax.f32 %v381, 0.0
      %v414 = vmax.f32 %v382, 0.0
      %v415 = vmax.f32 %v383, 0.0
      %v416 = vmax.f32 %v384, 0.0
      %v417 = vmax.f32 %v385, 0.0
      %v418 = vmax.f32 %v386, 0.0
      %v419 = vmax.f32 %v387, 0.0
      %v420 = vmax.f32 %v388, 0.0
      %421 = vst.msk [vmem:[%s116] sm:$0xff] %vm149, %v389
      %422 = vst.msk [vmem:[%s116 + $0x8] sm:$0xff] %vm149, %v390
      %423 = vst.msk [vmem:[%s116 + $0x10] sm:$0xff] %vm149, %v391
      %424 = vst.msk [vmem:[%s116 + $0x18] sm:$0xff] %vm149, %v392
      %425 = vst.msk [vmem:[%s116 + $0x20] sm:$0xff] %vm149, %v393
      %426 = vst.msk [vmem:[%s116 + $0x28] sm:$0xff] %vm149, %v394
      %427 = vst.msk [vmem:[%s116 + $0x30] sm:$0xff] %vm149, %v395
      %428 = vst.msk [vmem:[%s116 + $0x38] sm:$0xff] %vm149, %v396
      %429 = vst.msk [vmem:[%s116 + $0x40] sm:$0xff] %vm149, %v397
      %430 = vst.msk [vmem:[%s116 + $0x48] sm:$0xff] %vm149, %v398
      %431 = vst.msk [vmem:[%s116 + $0x50] sm:$0xff] %vm149, %v399
      %432 = vst.msk [vmem:[%s116 + $0x58] sm:$0xff] %vm149, %v400
      %433 = vst.msk [vmem:[%s116 + $0x60] sm:$0xff] %vm149, %v401
      %434 = vst.msk [vmem:[%s116 + $0x68] sm:$0xff] %vm149, %v402
      %435 = vst.msk [vmem:[%s116 + $0x70] sm:$0xff] %vm149, %v403
      %436 = vst.msk [vmem:[%s116 + $0x78] sm:$0xff] %vm149, %v404
      %437 = vst.msk [vmem:[%s116 + $0x80] sm:$0xff] %vm149, %v405
      %438 = vst.msk [vmem:[%s116 + $0x88] sm:$0xff] %vm149, %v406
      %439 = vst.msk [vmem:[%s116 + $0x90] sm:$0xff] %vm149, %v407
      %440 = vst.msk [vmem:[%s116 + $0x98] sm:$0xff] %vm149, %v408
      %441 = vst.msk [vmem:[%s116 + $0xa0] sm:$0xff] %vm149, %v409
      %442 = vst.msk [vmem:[%s116 + $0xa8] sm:$0xff] %vm149, %v410
      %443 = vst.msk [vmem:[%s116 + $0xb0] sm:$0xff] %vm149, %v411
      %444 = vst.msk [vmem:[%s116 + $0xb8] sm:$0xff] %vm149, %v412
      %445 = vst.msk [vmem:[%s116 + $0xc0] sm:$0xff] %vm149, %v413
      %446 = vst.msk [vmem:[%s116 + $0xc8] sm:$0xff] %vm149, %v414
      %447 = vst.msk [vmem:[%s116 + $0xd0] sm:$0xff] %vm149, %v415
      %448 = vst.msk [vmem:[%s116 + $0xd8] sm:$0xff] %vm149, %v416
      %449 = vst.msk [vmem:[%s116 + $0xe0] sm:$0xff] %vm149, %v417
      %450 = vst.msk [vmem:[%s116 + $0xe8] sm:$0xff] %vm149, %v418
      %451 = vst.msk [vmem:[%s116 + $0xf0] sm:$0xff] %vm149, %v419
      %452 = vst.msk [vmem:[%s116 + $0xf8] sm:$0xff] %vm149, %v420
      %p453 = scmp.lt.s32.totalorder %s12, 1
      %s454 = scalar_select %p453, %s12, 1
      %s455 = smul.addr %s454, 32
      %s456 = smul.addr %s455, 8
      %s457 = scalar_lea.vmem %s1, %s456
      // Predicated region
      $region25: #{transnet_forward.32} parent=23 // pred_check
        %p458 = pneg %p56
      $region26: #{transnet_forward.32} parent=23 // pred_check_branch
        %460 = sbr.rel (%p458) target = $region28
      $region27: #{transnet_forward.32} parent=23 // pred_region
        _
      $region28: #{transnet_forward.32} parent=23 // pred_fallthru
        _
    $region24: #{transnet_forward.32} parent=5 // pred_fallthru
      _
    %p461 = scmp.le.s32.totalorder 2, %s7
    // Predicated region
    $region29: #{transnet_forward.32} parent=5 // pred_check
      %p462 = pneg %p461
    $region30: #{transnet_forward.32} parent=5 // pred_check_branch
      %464 = sbr.rel (%p462) target = $region32
    $region31: #{transnet_forward.32} parent=5 // pred_region
      %s465 = ssub.s32 %s7, 2
      // Predicated region
      $region33: #{transnet_forward.32} parent=31 // pred_check
        %p466 = pneg %p62
      $region34: #{transnet_forward.32} parent=31 // pred_check_branch
        %468 = sbr.rel (%p466) target = $region36
      $region35: #{transnet_forward.32} parent=31 // pred_region
        %p469 = scmp.lt.s32.totalorder %s13, 1
        %s470 = scalar_select %p469, %s13, 1
        %s471 = smul.addr %s470, 32
        %s472 = smul.addr %s471, 8
        %s473 = scalar_lea.vmem %s1, %s472
      $region36: #{transnet_forward.32} parent=31 // pred_fallthru
        _
    $region32: #{transnet_forward.32} parent=5 // pred_fallthru
      _
  $region6: #{transnet_forward.32} parent=0 // loop_footer
    %s11 = sadd.s32 1, %s7
  $region7: #{transnet_forward.32} parent=0 // loop_footer_branch
    %6 = sbr.rel target = $region3
  $region8: #{transnet_forward.32} parent=0 // loop_exit
    _

// kernel: transnet_forward.33
$region0: #{transnet_forward.33}
  #allocation0 [shape = 'u32[]', space=smem, size = 0x4, offset = 0x4, fixed_abs, tag = 'smem constant byte address 0x4 - core index']
  #allocation1 [shape = 'u32[144,128]{1,0:T(1,128)}', space=vmem, size = 0x12000, scoped, tag = 'internal scratch']
  %s0 = inlined_call_operand.vmem [shape: bf16[128,384], index: 0, kind: input, shape index: {}]
  %s1 = inlined_call_operand.vmem [shape: bf16[384,128], index: 1, kind: input, shape index: {}]
  %s2 = inlined_call_operand.vmem [shape: f32[1,128], index: 2, kind: input, shape index: {}]
  %s3 = inlined_call_operand.vmem [shape: f32[128,128], index: 3, kind: output, shape index: {}]
  %s4 = sld [smem:[#allocation0]]
  $region22: #{transnet_forward.33} parent=0
    _
  %s6 = ssub.s32 1, %s4
  %s7 = scalar_select 0, %s6, %s4
  // Predicated region
  $region2: #{transnet_forward.33} parent=0 // pred_check
    _
  $region3: #{transnet_forward.33} parent=0 // pred_check_branch
    %9 = sbr.rel (0) target = $region5
  $region4: #{transnet_forward.33} parent=0 // pred_region
    _
  $region5: #{transnet_forward.33} parent=0 // pred_fallthru
    _
  // Predicated region
  $region6: #{transnet_forward.33} parent=0 // pred_check
    _
  $region7: #{transnet_forward.33} parent=0 // pred_check_branch
    %11 = sbr.rel (0) target = $region9
  $region8: #{transnet_forward.33} parent=0 // pred_region
    _
  $region9: #{transnet_forward.33} parent=0 // pred_fallthru
    _
  // Predicated region
  $region10: #{transnet_forward.33} parent=0 // pred_check
    _
  $region11: #{transnet_forward.33} parent=0 // pred_check_branch
    %13 = sbr.rel (0) target = $region13
  $region12: #{transnet_forward.33} parent=0 // pred_region
    _
  $region13: #{transnet_forward.33} parent=0 // pred_fallthru
    _
  %v15 = vld [vmem:[%s0] sm:$0xff]
  %v16 = vld [vmem:[%s0 + $0x8] sm:$0xf]
  %v17 = vld [vmem:[%s0 + $0xc] sm:$0xff]
  %v18 = vld [vmem:[%s0 + $0x14] sm:$0xf]
  %v19 = vld [vmem:[%s0 + $0x18] sm:$0xff]
  %v20 = vld [vmem:[%s0 + $0x20] sm:$0xf]
  %v21 = vld [vmem:[%s0 + $0x24] sm:$0xff]
  %v22 = vld [vmem:[%s0 + $0x2c] sm:$0xf]
  %v23 = vld [vmem:[%s0 + $0x30] sm:$0xff]
  %v24 = vld [vmem:[%s0 + $0x38] sm:$0xf]
  %v25 = vld [vmem:[%s0 + $0x3c] sm:$0xff]
  %v26 = vld [vmem:[%s0 + $0x44] sm:$0xf]
  %v27 = vld [vmem:[%s0 + $0x48] sm:$0xff]
  %v28 = vld [vmem:[%s0 + $0x50] sm:$0xf]
  %v29 = vld [vmem:[%s0 + $0x54] sm:$0xff]
  %v30 = vld [vmem:[%s0 + $0x5c] sm:$0xf]
  %v31 = vld [vmem:[%s0 + $0x60] sm:$0xff]
  %v32 = vld [vmem:[%s0 + $0x68] sm:$0xf]
  %v33 = vld [vmem:[%s0 + $0x6c] sm:$0xff]
  %v34 = vld [vmem:[%s0 + $0x74] sm:$0xf]
  %v35 = vld [vmem:[%s0 + $0x78] sm:$0xff]
  %v36 = vld [vmem:[%s0 + $0x80] sm:$0xf]
  %v37 = vld [vmem:[%s0 + $0x84] sm:$0xff]
  %v38 = vld [vmem:[%s0 + $0x8c] sm:$0xf]
  %v39 = vld [vmem:[%s0 + $0x90] sm:$0xff]
  %v40 = vld [vmem:[%s0 + $0x98] sm:$0xf]
  %v41 = vld [vmem:[%s0 + $0x9c] sm:$0xff]
  %v42 = vld [vmem:[%s0 + $0xa4] sm:$0xf]
  %v43 = vld [vmem:[%s0 + $0xa8] sm:$0xff]
  %v44 = vld [vmem:[%s0 + $0xb0] sm:$0xf]
  %v45 = vld [vmem:[%s0 + $0xb4] sm:$0xff]
  %v46 = vld [vmem:[%s0 + $0xbc] sm:$0xf]
  %v47 = vld [vmem:[%s1] sm:$0xf]
  %v48 = vld [vmem:[%s1 + $0x4] sm:$0xf]
  %v49 = vld [vmem:[%s1 + $0x8] sm:$0xf]
  %v50 = vld [vmem:[%s1 + $0xc] sm:$0xf]
  %v51 = vld [vmem:[%s1 + $0x10] sm:$0xf]
  %v52 = vld [vmem:[%s1 + $0x14] sm:$0xf]
  %v53 = vld [vmem:[%s1 + $0x18] sm:$0xf]
  %v54 = vld [vmem:[%s1 + $0x1c] sm:$0xf]
  %v55 = vld [vmem:[%s1 + $0x20] sm:$0xf]
  %v56 = vld [vmem:[%s1 + $0x24] sm:$0xf]
  %v57 = vld [vmem:[%s1 + $0x28] sm:$0xf]
  %v58 = vld [vmem:[%s1 + $0x2c] sm:$0xf]
  %v59 = vld [vmem:[%s1 + $0x30] sm:$0xf]
  %v60 = vld [vmem:[%s1 + $0x34] sm:$0xf]
  %v61 = vld [vmem:[%s1 + $0x38] sm:$0xf]
  %v62 = vld [vmem:[%s1 + $0x3c] sm:$0xf]
  %v63 = vld [vmem:[%s1 + $0x40] sm:$0xf]
  %v64 = vld [vmem:[%s1 + $0x44] sm:$0xf]
  %v65 = vld [vmem:[%s1 + $0x48] sm:$0xf]
  %v66 = vld [vmem:[%s1 + $0x4c] sm:$0xf]
  %v67 = vld [vmem:[%s1 + $0x50] sm:$0xf]
  %v68 = vld [vmem:[%s1 + $0x54] sm:$0xf]
  %v69 = vld [vmem:[%s1 + $0x58] sm:$0xf]
  %v70 = vld [vmem:[%s1 + $0x5c] sm:$0xf]
  %v71 = vld [vmem:[%s1 + $0x60] sm:$0xf]
  %v72 = vld [vmem:[%s1 + $0x64] sm:$0xf]
  %v73 = vld [vmem:[%s1 + $0x68] sm:$0xf]
  %v74 = vld [vmem:[%s1 + $0x6c] sm:$0xf]
  %v75 = vld [vmem:[%s1 + $0x70] sm:$0xf]
  %v76 = vld [vmem:[%s1 + $0x74] sm:$0xf]
  %v77 = vld [vmem:[%s1 + $0x78] sm:$0xf]
  %v78 = vld [vmem:[%s1 + $0x7c] sm:$0xf]
  %v79 = vld [vmem:[%s1 + $0x80] sm:$0xf]
  %v80 = vld [vmem:[%s1 + $0x84] sm:$0xf]
  %v81 = vld [vmem:[%s1 + $0x88] sm:$0xf]
  %v82 = vld [vmem:[%s1 + $0x8c] sm:$0xf]
  %v83 = vld [vmem:[%s1 + $0x90] sm:$0xf]
  %v84 = vld [vmem:[%s1 + $0x94] sm:$0xf]
  %v85 = vld [vmem:[%s1 + $0x98] sm:$0xf]
  %v86 = vld [vmem:[%s1 + $0x9c] sm:$0xf]
  %v87 = vld [vmem:[%s1 + $0xa0] sm:$0xf]
  %v88 = vld [vmem:[%s1 + $0xa4] sm:$0xf]
  %v89 = vld [vmem:[%s1 + $0xa8] sm:$0xf]
  %v90 = vld [vmem:[%s1 + $0xac] sm:$0xf]
  %v91 = vld [vmem:[%s1 + $0xb0] sm:$0xf]
  %v92 = vld [vmem:[%s1 + $0xb4] sm:$0xf]
  %v93 = vld [vmem:[%s1 + $0xb8] sm:$0xf]
  %v94 = vld [vmem:[%s1 + $0xbc] sm:$0xf]
  %v95 = vld [vmem:[%s2] sm:$0x1]
  %v97 = vlaneseq
  %v98 = vshrl.u32 %v97, 7
  %v99 = vsub.s32 0, %v98
  %v100 = vrot.slane %v95, %v99
  %v134 = vunpack.c.l.b16 %v15
  %v135 = vunpack.c.h.b16 %v15
  %v136 = vunpack.c.l.b16 %v16
  %v137 = vunpack.c.l.b16 %v17
  %v138 = vunpack.c.h.b16 %v17
  %v139 = vunpack.c.l.b16 %v18
  %v140 = vunpack.c.l.b16 %v19
  %v141 = vunpack.c.h.b16 %v19
  %v142 = vunpack.c.l.b16 %v20
  %v143 = vunpack.c.l.b16 %v21
  %v144 = vunpack.c.h.b16 %v21
  %v145 = vunpack.c.l.b16 %v22
  %v146 = vunpack.c.l.b16 %v23
  %v147 = vunpack.c.h.b16 %v23
  %v148 = vunpack.c.l.b16 %v24
  %v149 = vunpack.c.l.b16 %v25
  %v150 = vunpack.c.h.b16 %v25
  %v151 = vunpack.c.l.b16 %v26
  %v152 = vunpack.c.l.b16 %v27
  %v153 = vunpack.c.h.b16 %v27
  %v154 = vunpack.c.l.b16 %v28
  %v155 = vunpack.c.l.b16 %v29
  %v156 = vunpack.c.h.b16 %v29
  %v157 = vunpack.c.l.b16 %v30
  %v158 = vunpack.c.l.b16 %v31
  %v159 = vunpack.c.h.b16 %v31
  %v160 = vunpack.c.l.b16 %v32
  %v161 = vunpack.c.l.b16 %v33
  %v162 = vunpack.c.h.b16 %v33
  %v163 = vunpack.c.l.b16 %v34
  %v164 = vunpack.c.l.b16 %v35
  %v165 = vunpack.c.h.b16 %v35
  %v166 = vunpack.c.l.b16 %v36
  %v167 = vunpack.c.l.b16 %v37
  %v168 = vunpack.c.h.b16 %v37
  %v169 = vunpack.c.l.b16 %v38
  %v170 = vunpack.c.l.b16 %v39
  %v171 = vunpack.c.h.b16 %v39
  %v172 = vunpack.c.l.b16 %v40
  %v173 = vunpack.c.l.b16 %v41
  %v174 = vunpack.c.h.b16 %v41
  %v175 = vunpack.c.l.b16 %v42
  %v176 = vunpack.c.l.b16 %v43
  %v177 = vunpack.c.h.b16 %v43
  %v178 = vunpack.c.l.b16 %v44
  %v179 = vunpack.c.l.b16 %v45
  %v180 = vunpack.c.h.b16 %v45
  %v181 = vunpack.c.l.b16 %v46
  %v182 = vpack.c.b16 %v137, %v134
  %v183 = vpack.c.b16 %v138, %v135
  %v184 = vpack.c.b16 %v139, %v136
  %v185 = vpack.c.b16 %v143, %v140
  %v186 = vpack.c.b16 %v144, %v141
  %v187 = vpack.c.b16 %v145, %v142
  %v188 = vpack.c.b16 %v149, %v146
  %v189 = vpack.c.b16 %v150, %v147
  %v190 = vpack.c.b16 %v151, %v148
  %v191 = vpack.c.b16 %v155, %v152
  %v192 = vpack.c.b16 %v156, %v153
  %v193 = vpack.c.b16 %v157, %v154
  %v194 = vpack.c.b16 %v161, %v158
  %v195 = vpack.c.b16 %v162, %v159
  %v196 = vpack.c.b16 %v163, %v160
  %v197 = vpack.c.b16 %v167, %v164
  %v198 = vpack.c.b16 %v168, %v165
  %v199 = vpack.c.b16 %v169, %v166
  %v200 = vpack.c.b16 %v173, %v170
  %v201 = vpack.c.b16 %v174, %v171
  %v202 = vpack.c.b16 %v175, %v172
  %v203 = vpack.c.b16 %v179, %v176
  %v204 = vpack.c.b16 %v180, %v177
  %v205 = vpack.c.b16 %v181, %v178
  %v278 = vunpack.c.l.b16 %v47
  %v279 = vunpack.c.l.b16 %v48
  %v280 = vunpack.c.l.b16 %v49
  %v281 = vunpack.c.l.b16 %v50
  %v282 = vunpack.c.l.b16 %v51
  %v283 = vunpack.c.l.b16 %v52
  %v284 = vunpack.c.l.b16 %v53
  %v285 = vunpack.c.l.b16 %v54
  %v286 = vunpack.c.l.b16 %v55
  %v287 = vunpack.c.l.b16 %v56
  %v288 = vunpack.c.l.b16 %v57
  %v289 = vunpack.c.l.b16 %v58
  %v290 = vunpack.c.l.b16 %v59
  %v291 = vunpack.c.l.b16 %v60
  %v292 = vunpack.c.l.b16 %v61
  %v293 = vunpack.c.l.b16 %v62
  %v294 = vunpack.c.l.b16 %v63
  %v295 = vunpack.c.l.b16 %v64
  %v296 = vunpack.c.l.b16 %v65
  %v297 = vunpack.c.l.b16 %v66
  %v298 = vunpack.c.l.b16 %v67
  %v299 = vunpack.c.l.b16 %v68
  %v300 = vunpack.c.l.b16 %v69
  %v301 = vunpack.c.l.b16 %v70
  %v302 = vunpack.c.l.b16 %v71
  %v303 = vunpack.c.l.b16 %v72
  %v304 = vunpack.c.l.b16 %v73
  %v305 = vunpack.c.l.b16 %v74
  %v306 = vunpack.c.l.b16 %v75
  %v307 = vunpack.c.l.b16 %v76
  %v308 = vunpack.c.l.b16 %v77
  %v309 = vunpack.c.l.b16 %v78
  %v310 = vunpack.c.l.b16 %v79
  %v311 = vunpack.c.l.b16 %v80
  %v312 = vunpack.c.l.b16 %v81
  %v313 = vunpack.c.l.b16 %v82
  %v314 = vunpack.c.l.b16 %v83
  %v315 = vunpack.c.l.b16 %v84
  %v316 = vunpack.c.l.b16 %v85
  %v317 = vunpack.c.l.b16 %v86
  %v318 = vunpack.c.l.b16 %v87
  %v319 = vunpack.c.l.b16 %v88
  %v320 = vunpack.c.l.b16 %v89
  %v321 = vunpack.c.l.b16 %v90
  %v322 = vunpack.c.l.b16 %v91
  %v323 = vunpack.c.l.b16 %v92
  %v324 = vunpack.c.l.b16 %v93
  %v325 = vunpack.c.l.b16 %v94
  %v326 = vpack.c.b16 %v279, %v278
  %v327 = vpack.c.b16 %v281, %v280
  %v328 = vpack.c.b16 %v283, %v282
  %v329 = vpack.c.b16 %v285, %v284
  %v330 = vpack.c.b16 %v287, %v286
  %v331 = vpack.c.b16 %v289, %v288
  %v332 = vpack.c.b16 %v291, %v290
  %v333 = vpack.c.b16 %v293, %v292
  %v334 = vpack.c.b16 %v295, %v294
  %v335 = vpack.c.b16 %v297, %v296
  %v336 = vpack.c.b16 %v299, %v298
  %v337 = vpack.c.b16 %v301, %v300
  %v338 = vpack.c.b16 %v303, %v302
  %v339 = vpack.c.b16 %v305, %v304
  %v340 = vpack.c.b16 %v307, %v306
  %v341 = vpack.c.b16 %v309, %v308
  %v342 = vpack.c.b16 %v311, %v310
  %v343 = vpack.c.b16 %v313, %v312
  %v344 = vpack.c.b16 %v315, %v314
  %v345 = vpack.c.b16 %v317, %v316
  %v346 = vpack.c.b16 %v319, %v318
  %v347 = vpack.c.b16 %v321, %v320
  %v348 = vpack.c.b16 %v323, %v322
  %v349 = vpack.c.b16 %v325, %v324
  %374 = vmatprep.subr.bf16.mxu0 0
  %375 = vmatpush1.bf16.msra.mxu0 %v326
  %376 = vmatprep.subr.bf16.mxu0 0
  %377 = vmatpush1.bf16.msra.mxu0 %v327
  %378 = vmatprep.subr.bf16.mxu0 0
  %379 = vmatpush1.bf16.msra.mxu0 %v328
  %380 = vmatprep.subr.bf16.mxu0 0
  %381 = vmatpush1.bf16.msra.mxu0 %v329
  %382 = vmatprep.subr.bf16.mxu0 0
  %383 = vmatpush1.bf16.msra.mxu0 %v330
  %384 = vmatprep.subr.bf16.mxu0 0
  %385 = vmatpush1.bf16.msra.mxu0 %v331
  %386 = vmatprep.subr.bf16.mxu0 0
  %387 = vmatpush1.bf16.msra.mxu0 %v332
  %388 = vmatprep.subr.bf16.mxu0 0
  %389 = vmatpush1.bf16.msra.mxu0 %v333
  %390 = vmatprep.subr.bf16.mxu0 0
  %391 = vmatpush1.bf16.msra.mxu0 %v334
  %392 = vmatprep.subr.bf16.mxu0 0
  %393 = vmatpush1.bf16.msra.mxu0 %v335
  %394 = vmatprep.subr.bf16.mxu0 0
  %395 = vmatpush1.bf16.msra.mxu0 %v336
  %396 = vmatprep.subr.bf16.mxu0 0
  %397 = vmatpush1.bf16.msra.mxu0 %v337
  %398 = vmatprep.subr.bf16.mxu0 0
  %399 = vmatpush1.bf16.msra.mxu0 %v338
  %400 = vmatprep.subr.bf16.mxu0 0
  %401 = vmatpush1.bf16.msra.mxu0 %v339
  %402 = vmatprep.subr.bf16.mxu0 0
  %403 = vmatpush1.bf16.msra.mxu0 %v340
  %404 = vmatprep.subr.bf16.mxu0 0
  %405 = vmatpush1.bf16.msra.mxu0 %v341
  %406 = vmatprep.mubr.bf16.mxu0 %v183
  %407 = vmatmul.mubr.bf16.gmra.mrb[0].mxu0 %v182
  %v408 = vpop.f32.mrb[0].mxu0
  %v409 = vadd.f32 %v100, %v408
  %v410 = vpop.f32.mrb[0].mxu0
  %v411 = vpop.f32.mrb[0].mxu0
  %v412 = vadd.f32 %v100, %v411
  %v413 = vpop.f32.mrb[0].mxu0
  %414 = vmatprep.mubr.bf16.mxu0 %v186
  %415 = vmatmul.mubr.bf16.gmra.mrb[0].mxu0 %v185
  %v416 = vpop.f32.mrb[0].mxu0
  %v417 = vadd.f32 %v100, %v416
  %v418 = vpop.f32.mrb[0].mxu0
  %v419 = vpop.f32.mrb[0].mxu0
  %v420 = vadd.f32 %v100, %v419
  %v421 = vpop.f32.mrb[0].mxu0
  %422 = vmatprep.mubr.bf16.mxu0 %v189
  %423 = vmatmul.mubr.bf16.gmra.mrb[0].mxu0 %v188
  %v424 = vpop.f32.mrb[0].mxu0
  %v425 = vadd.f32 %v100, %v424
  %v426 = vpop.f32.mrb[0].mxu0
  %v427 = vpop.f32.mrb[0].mxu0
  %v428 = vadd.f32 %v100, %v427
  %v429 = vpop.f32.mrb[0].mxu0
  %430 = vmatprep.mubr.bf16.mxu0 %v192
  %431 = vmatmul.mubr.bf16.gmra.mrb[0].mxu0 %v191
  %v432 = vpop.f32.mrb[0].mxu0
  %v433 = vadd.f32 %v100, %v432
  %v434 = vpop.f32.mrb[0].mxu0
  %v435 = vpop.f32.mrb[0].mxu0
  %v436 = vadd.f32 %v100, %v435
  %v437 = vpop.f32.mrb[0].mxu0
  %438 = vmatprep.mubr.bf16.mxu0 %v195
  %439 = vmatmul.mubr.bf16.gmra.mrb[0].mxu0 %v194
  %v440 = vpop.f32.mrb[0].mxu0
  %v441 = vadd.f32 %v100, %v440
  %v442 = vpop.f32.mrb[0].mxu0
  %v443 = vpop.f32.mrb[0].mxu0
  %v444 = vadd.f32 %v100, %v443
  %v445 = vpop.f32.mrb[0].mxu0
  %446 = vmatprep.mubr.bf16.mxu0 %v198
  %447 = vmatmul.mubr.bf16.gmra.mrb[0].mxu0 %v197
  %v448 = vpop.f32.mrb[0].mxu0
  %v449 = vadd.f32 %v100, %v448
  %v450 = vpop.f32.mrb[0].mxu0
  %v451 = vpop.f32.mrb[0].mxu0
  %v452 = vadd.f32 %v100, %v451
  %v453 = vpop.f32.mrb[0].mxu0
  %454 = vmatprep.mubr.bf16.mxu0 %v201
  %455 = vmatmul.mubr.bf16.gmra.mrb[0].mxu0 %v200
  %v456 = vpop.f32.mrb[0].mxu0
  %v457 = vadd.f32 %v100, %v456
  %v458 = vpop.f32.mrb[0].mxu0
  %v459 = vpop.f32.mrb[0].mxu0
  %v460 = vadd.f32 %v100, %v459
  %v461 = vpop.f32.mrb[0].mxu0
  %462 = vmatprep.mubr.bf16.mxu0 %v204
  %463 = vmatmul.mubr.bf16.gmra.mrb[0].mxu0 %v203
  %v464 = vpop.f32.mrb[0].mxu0
  %v465 = vadd.f32 %v100, %v464
  %v466 = vpop.f32.mrb[0].mxu0
  %v467 = vpop.f32.mrb[0].mxu0
  %v468 = vadd.f32 %v100, %v467
  %v469 = vpop.f32.mrb[0].mxu0
  %470 = vdwg.mxu0
  %471 = vmatprep.subr.bf16.mxu0 0
  %472 = vmatpush1.bf16.msra.mxu0 %v342
  %473 = vmatprep.subr.bf16.mxu0 0
  %474 = vmatpush1.bf16.msra.mxu0 %v343
  %475 = vmatprep.subr.bf16.mxu0 0
  %476 = vmatpush1.bf16.msra.mxu0 %v344
  %477 = vmatprep.subr.bf16.mxu0 0
  %478 = vmatpush1.bf16.msra.mxu0 %v345
  %479 = vmatprep.subr.bf16.mxu0 0
  %480 = vmatpush1.bf16.msra.mxu0 %v346
  %481 = vmatprep.subr.bf16.mxu0 0
  %482 = vmatpush1.bf16.msra.mxu0 %v347
  %483 = vmatprep.subr.bf16.mxu0 0
  %484 = vmatpush1.bf16.msra.mxu0 %v348
  %485 = vmatprep.subr.bf16.mxu0 0
  %486 = vmatpush1.bf16.msra.mxu0 %v349
  %487 = vmatprep.subr.bf16.mxu0 0
  %488 = vmatpush1.bf16.msra.mxu0 0
  %489 = vmatprep.subr.bf16.mxu0 0
  %490 = vmatpush1.bf16.msra.mxu0 0
  %491 = vmatprep.subr.bf16.mxu0 0
  %492 = vmatpush1.bf16.msra.mxu0 0
  %493 = vmatprep.subr.bf16.mxu0 0
  %494 = vmatpush1.bf16.msra.mxu0 0
  %495 = vmatprep.subr.bf16.mxu0 0
  %496 = vmatpush1.bf16.msra.mxu0 0
  %497 = vmatprep.subr.bf16.mxu0 0
  %498 = vmatpush1.bf16.msra.mxu0 0
  %499 = vmatprep.subr.bf16.mxu0 0
  %500 = vmatpush1.bf16.msra.mxu0 0
  %501 = vmatprep.subr.bf16.mxu0 0
  %502 = vmatpush1.bf16.msra.mxu0 0
  %503 = vmatprep.mubr.bf16.mxu0 0
  %504 = vmatmul.mubr.bf16.gmra.mrb[0].mxu0 %v184
  %v505 = vpop.f32.mrb[0].mxu0
  %v506 = vadd.f32 %v409, %v505
  %v507 = vpop.f32.mrb[0].mxu0
  %v508 = vpop.f32.mrb[0].mxu0
  %v509 = vadd.f32 %v412, %v508
  %v510 = vpop.f32.mrb[0].mxu0
  %511 = vmatprep.mubr.bf16.mxu0 0
  %512 = vmatmul.mubr.bf16.gmra.mrb[0].mxu0 %v187
  %v513 = vpop.f32.mrb[0].mxu0
  %v514 = vadd.f32 %v417, %v513
  %v515 = vpop.f32.mrb[0].mxu0
  %v516 = vpop.f32.mrb[0].mxu0
  %v517 = vadd.f32 %v420, %v516
  %v518 = vpop.f32.mrb[0].mxu0
  %519 = vmatprep.mubr.bf16.mxu0 0
  %520 = vmatmul.mubr.bf16.gmra.mrb[0].mxu0 %v190
  %v521 = vpop.f32.mrb[0].mxu0
  %v522 = vadd.f32 %v425, %v521
  %v523 = vpop.f32.mrb[0].mxu0
  %v524 = vpop.f32.mrb[0].mxu0
  %v525 = vadd.f32 %v428, %v524
  %v526 = vpop.f32.mrb[0].mxu0
  %527 = vmatprep.mubr.bf16.mxu0 0
  %528 = vmatmul.mubr.bf16.gmra.mrb[0].mxu0 %v193
  %v529 = vpop.f32.mrb[0].mxu0
  %v530 = vadd.f32 %v433, %v529
  %v531 = vpop.f32.mrb[0].mxu0
  %v532 = vpop.f32.mrb[0].mxu0
  %v533 = vadd.f32 %v436, %v532
  %v534 = vpop.f32.mrb[0].mxu0
  %535 = vmatprep.mubr.bf16.mxu0 0
  %536 = vmatmul.mubr.bf16.gmra.mrb[0].mxu0 %v196
  %v537 = vpop.f32.mrb[0].mxu0
  %v538 = vadd.f32 %v441, %v537
  %v539 = vpop.f32.mrb[0].mxu0
  %v540 = vpop.f32.mrb[0].mxu0
  %v541 = vadd.f32 %v444, %v540
  %v542 = vpop.f32.mrb[0].mxu0
  %543 = vmatprep.mubr.bf16.mxu0 0
  %544 = vmatmul.mubr.bf16.gmra.mrb[0].mxu0 %v199
  %v545 = vpop.f32.mrb[0].mxu0
  %v546 = vadd.f32 %v449, %v545
  %v547 = vpop.f32.mrb[0].mxu0
  %v548 = vpop.f32.mrb[0].mxu0
  %v549 = vadd.f32 %v452, %v548
  %v550 = vpop.f32.mrb[0].mxu0
  %551 = vmatprep.mubr.bf16.mxu0 0
  %552 = vmatmul.mubr.bf16.gmra.mrb[0].mxu0 %v202
  %v553 = vpop.f32.mrb[0].mxu0
  %v554 = vadd.f32 %v457, %v553
  %v555 = vpop.f32.mrb[0].mxu0
  %v556 = vpop.f32.mrb[0].mxu0
  %v557 = vadd.f32 %v460, %v556
  %v558 = vpop.f32.mrb[0].mxu0
  %559 = vmatprep.mubr.bf16.mxu0 0
  %560 = vmatmul.mubr.bf16.gmra.mrb[0].mxu0 %v205
  %v561 = vpop.f32.mrb[0].mxu0
  %v562 = vadd.f32 %v465, %v561
  %v563 = vpop.f32.mrb[0].mxu0
  %v564 = vpop.f32.mrb[0].mxu0
  %v565 = vadd.f32 %v468, %v564
  %v566 = vpop.f32.mrb[0].mxu0
  %567 = vdwg.mxu0
  %568 = vst [vmem:[%s3] sm:$0xff] %v506
  %569 = vst [vmem:[%s3 + $0x8] sm:$0xff] %v509
  %570 = vst [vmem:[%s3 + $0x10] sm:$0xff] %v514
  %571 = vst [vmem:[%s3 + $0x18] sm:$0xff] %v517
  %572 = vst [vmem:[%s3 + $0x20] sm:$0xff] %v522
  %573 = vst [vmem:[%s3 + $0x28] sm:$0xff] %v525
  %574 = vst [vmem:[%s3 + $0x30] sm:$0xff] %v530
  %575 = vst [vmem:[%s3 + $0x38] sm:$0xff] %v533
  %576 = vst [vmem:[%s3 + $0x40] sm:$0xff] %v538
  %577 = vst [vmem:[%s3 + $0x48] sm:$0xff] %v541
  %578 = vst [vmem:[%s3 + $0x50] sm:$0xff] %v546
  %579 = vst [vmem:[%s3 + $0x58] sm:$0xff] %v549
  %580 = vst [vmem:[%s3 + $0x60] sm:$0xff] %v554
  %581 = vst [vmem:[%s3 + $0x68] sm:$0xff] %v557
  %582 = vst [vmem:[%s3 + $0x70] sm:$0xff] %v562
  %583 = vst [vmem:[%s3 + $0x78] sm:$0xff] %v565
  // Predicated region
  $region14: #{transnet_forward.33} parent=0 // pred_check
    _
  $region15: #{transnet_forward.33} parent=0 // pred_check_branch
    %585 = sbr.rel (0) target = $region17
  $region16: #{transnet_forward.33} parent=0 // pred_region
    _
  $region17: #{transnet_forward.33} parent=0 // pred_fallthru
    _
  // Predicated region
  $region18: #{transnet_forward.33} parent=0 // pred_check
    _
  $region19: #{transnet_forward.33} parent=0 // pred_check_branch
    %587 = sbr.rel (0) target = $region21
  $region20: #{transnet_forward.33} parent=0 // pred_region
    _
  $region21: #{transnet_forward.33} parent=0 // pred_fallthru
    _

// kernel: transnet_forward.34
$region0: #{transnet_forward.34}
  #allocation0 [shape = 'u32[]', space=smem, size = 0x4, offset = 0x4, fixed_abs, tag = 'smem constant byte address 0x4 - core index']
  #allocation1 [shape = 'u32[144,128]{1,0:T(1,128)}', space=vmem, size = 0x12000, scoped, tag = 'internal scratch']
  %s0 = inlined_call_operand.vmem [shape: f32[2,64,64], index: 0, kind: input, shape index: {}]
  %s1 = inlined_call_operand.vmem [shape: f32[2,64,64], index: 1, kind: output, shape index: {}]
  %s2 = sld [smem:[#allocation0]]
  $region37: #{transnet_forward.34} parent=0
    _
  %s4 = ssub.s32 1, %s2
  %s5 = scalar_select 0, %s4, %s2
  loop: start=0, step=1, limit=4
  $region2: #{transnet_forward.34} parent=0 // loop_pre_header
    _
  $region3: #{transnet_forward.34} parent=0 // loop_header
    %s7 = sphi 0, %s11
    %p8 = scmp.ge.s32.totalorder %s7, 4
    %s17 = sphi 0, %s19
    %s20 = sphi 0, %s17
    %s21 = sphi 0, %s20
    %s37 = sphi 0, %s21
    %s43 = sphi 0, %s45
    %s46 = sphi 0, %s43
    %s47 = sphi 0, %s46
    %s63 = sphi 0, %s47
  $region4: #{transnet_forward.34} parent=0 // loop_header_branch
    %10 = sbr.rel (%p8) target = $region8
  $region5: #{transnet_forward.34} parent=0 // loop_body
    %s12 = ssub.s32 %s7, 1
    %s13 = ssub.s32 %s7, 2
    %s14 = sadd.s32 %s7, 1
    %s15 = ssub.s32 %s7, %s14
    %p16 = scmp.eq.s32.totalorder %s15, 0
    %s18 = sadd.s32 %s17, 1
    %s19 = scalar_select %p16, %s17, %s18
    %p22 = pneg %p16
    %p23 = scmp.eq.s32.totalorder %s7, 1
    %p24 = por %p22, %p23
    %p25 = scmp.ne.s32.totalorder %s17, %s20
    %p26 = scmp.eq.s32.totalorder %s7, 0
    %p27 = por %p25, %p26
    %p28 = scmp.ne.s32.totalorder %s17, %s20
    %p29 = scmp.eq.s32.totalorder %s12, 1
    %p30 = por %p28, %p29
    %p31 = scmp.ne.s32.totalorder %s20, %s21
    %p32 = scmp.eq.s32.totalorder %s12, 0
    %p33 = por %p31, %p32
    %p34 = scmp.ne.s32.totalorder %s20, %s21
    %p35 = scmp.eq.s32.totalorder %s13, 1
    %p36 = por %p34, %p35
    %p38 = scmp.ne.s32.totalorder %s21, %s37
    %p39 = scmp.eq.s32.totalorder %s13, 0
    %p40 = por %p38, %p39
    %s41 = ssub.s32 %s7, %s14
    %p42 = scmp.eq.s32.totalorder %s41, 0
    %s44 = sadd.s32 %s43, 1
    %s45 = scalar_select %p42, %s43, %s44
    %p48 = pneg %p42
    %p49 = scmp.eq.s32.totalorder %s7, 1
    %p50 = por %p48, %p49
    %p51 = scmp.ne.s32.totalorder %s43, %s46
    %p52 = scmp.eq.s32.totalorder %s7, 0
    %p53 = por %p51, %p52
    %p54 = scmp.ne.s32.totalorder %s43, %s46
    %p55 = scmp.eq.s32.totalorder %s12, 1
    %p56 = por %p54, %p55
    %p57 = scmp.ne.s32.totalorder %s46, %s47
    %p58 = scmp.eq.s32.totalorder %s12, 0
    %p59 = por %p57, %p58
    %p60 = scmp.ne.s32.totalorder %s46, %s47
    %p61 = scmp.eq.s32.totalorder %s13, 1
    %p62 = por %p60, %p61
    %p64 = scmp.ne.s32.totalorder %s47, %s63
    %p65 = scmp.eq.s32.totalorder %s13, 0
    %p66 = por %p64, %p65
    %p67 = scmp.le.s32.totalorder 1, %s7
    %p68 = scmp.lt.s32.totalorder %s7, 3
    %p69 = pnand %p67, %p68
    %p70 = pneg %p69
    // Predicated region
    $region9: #{transnet_forward.34} parent=5 // pred_check
      _
    $region10: #{transnet_forward.34} parent=5 // pred_check_branch
      %72 = sbr.rel (%p69) target = $region12
    $region11: #{transnet_forward.34} parent=5 // pred_region
      %s73 = ssub.s32 %s7, 1
    $region12: #{transnet_forward.34} parent=5 // pred_fallthru
      _
    %p74 = scmp.lt.s32.totalorder %s7, 2
    // Predicated region
    $region13: #{transnet_forward.34} parent=5 // pred_check
      %p75 = pneg %p74
    $region14: #{transnet_forward.34} parent=5 // pred_check_branch
      %77 = sbr.rel (%p75) target = $region16
    $region15: #{transnet_forward.34} parent=5 // pred_region
      // Predicated region
      $region17: #{transnet_forward.34} parent=15 // pred_check
        %p78 = pneg %p27
      $region18: #{transnet_forward.34} parent=15 // pred_check_branch
        %80 = sbr.rel (%p78) target = $region20
      $region19: #{transnet_forward.34} parent=15 // pred_region
        %p81 = scmp.lt.s32.totalorder %s7, 1
        %s82 = scalar_select %p81, %s7, 1
        %s83 = smul.addr %s82, 8
        %s84 = smul.addr %s83, 8
        %s85 = scalar_lea.vmem %s0, %s84
      $region20: #{transnet_forward.34} parent=15 // pred_fallthru
        _
    $region16: #{transnet_forward.34} parent=5 // pred_fallthru
      _
    %p86 = scmp.le.s32.totalorder 1, %s7
    %p87 = scmp.lt.s32.totalorder %s7, 3
    %p88 = pnand %p86, %p87
    %p89 = pneg %p88
    // Predicated region
    $region21: #{transnet_forward.34} parent=5 // pred_check
      _
    $region22: #{transnet_forward.34} parent=5 // pred_check_branch
      %91 = sbr.rel (%p88) target = $region24
    $region23: #{transnet_forward.34} parent=5 // pred_region
      %s92 = ssub.s32 %s7, 1
      %p93 = scmp.lt.s32.totalorder %s12, 1
      %s94 = scalar_select %p93, %s12, 1
      %s95 = smul.addr %s94, 8
      %s96 = smul.addr %s95, 8
      %s97 = scalar_lea.vmem %s0, %s96
      %p98 = pneg %p33
      %p99 = pneg %p30
      %p100 = pneg %p59
      %p101 = pneg %p56
      %p102 = scmp.lt.s32.totalorder %s12, 1
      %s103 = scalar_select %p102, %s12, 1
      %s104 = smul.addr %s103, 8
      %s105 = smul.addr %s104, 8
      %s106 = scalar_lea.vmem %s1, %s105
      %p107 = scmp.lt.s32.totalorder %s12, 1
      %s108 = scalar_select %p107, %s12, 1
      %s109 = smul.addr %s108, 8
      %s110 = smul.addr %s109, 8
      %s111 = scalar_lea.vmem %s0, %s110
      %p112 = scmp.lt.s32.totalorder %s12, 1
      %s113 = scalar_select %p112, %s12, 1
      %s114 = smul.addr %s113, 8
      %s115 = smul.addr %s114, 8
      %s116 = scalar_lea.vmem %s1, %s115
      %v117 = vld [vmem:[%s111] sm:$0xff]
      %v118 = vld [vmem:[%s111 + $0x8] sm:$0xff]
      %v119 = vld [vmem:[%s111 + $0x10] sm:$0xff]
      %v120 = vld [vmem:[%s111 + $0x18] sm:$0xff]
      %v121 = vld [vmem:[%s111 + $0x20] sm:$0xff]
      %v122 = vld [vmem:[%s111 + $0x28] sm:$0xff]
      %v123 = vld [vmem:[%s111 + $0x30] sm:$0xff]
      %v124 = vld [vmem:[%s111 + $0x38] sm:$0xff]
      %vm125 = vcmask 523264
      %v126 = vsel %vm125, %v117, 0.0
      %v127 = vsel %vm125, %v118, 0.0
      %v128 = vadd.f32 %v126, %v127
      %v129 = vsel %vm125, %v119, 0.0
      %v130 = vadd.f32 %v128, %v129
      %v131 = vsel %vm125, %v120, 0.0
      %v132 = vadd.f32 %v130, %v131
      %v133 = vsel %vm125, %v121, 0.0
      %v134 = vadd.f32 %v132, %v133
      %v135 = vsel %vm125, %v122, 0.0
      %v136 = vadd.f32 %v134, %v135
      %v137 = vsel %vm125, %v123, 0.0
      %v138 = vadd.f32 %v136, %v137
      %v139 = vsel %vm125, %v124, 0.0
      %v140 = vadd.f32 %v138, %v139
      %v141 = vrot.slane %v140, 4
      %v142 = vadd.f32 %v140, %v141
      %v143 = vrot.slane %v142, 2
      %v144 = vadd.f32 %v142, %v143
      %v145 = vrot.slane %v144, 1
      %v146 = vadd.f32 %v144, %v145
      %v147 = vrcp.pop 64.0
      %v148 = vmul.f32 %v146, %v147
      %v149 = vsub.f32 %v117, %v148
      %v150 = vsub.f32 %v118, %v148
      %v151 = vsub.f32 %v119, %v148
      %v152 = vsub.f32 %v120, %v148
      %v153 = vsub.f32 %v121, %v148
      %v154 = vsub.f32 %v122, %v148
      %v155 = vsub.f32 %v123, %v148
      %v156 = vsub.f32 %v124, %v148
      %v157 = vmul.f32 %v149, %v149
      %v158 = vmul.f32 %v150, %v150
      %v159 = vmul.f32 %v151, %v151
      %v160 = vmul.f32 %v152, %v152
      %v161 = vmul.f32 %v153, %v153
      %v162 = vmul.f32 %v154, %v154
      %v163 = vmul.f32 %v155, %v155
      %v164 = vmul.f32 %v156, %v156
      %v165 = vsel %vm125, %v157, 0.0
      %v166 = vsel %vm125, %v158, 0.0
      %v167 = vadd.f32 %v165, %v166
      %v168 = vsel %vm125, %v159, 0.0
      %v169 = vadd.f32 %v167, %v168
      %v170 = vsel %vm125, %v160, 0.0
      %v171 = vadd.f32 %v169, %v170
      %v172 = vsel %vm125, %v161, 0.0
      %v173 = vadd.f32 %v171, %v172
      %v174 = vsel %vm125, %v162, 0.0
      %v175 = vadd.f32 %v173, %v174
      %v176 = vsel %vm125, %v163, 0.0
      %v177 = vadd.f32 %v175, %v176
      %v178 = vsel %vm125, %v164, 0.0
      %v179 = vadd.f32 %v177, %v178
      %v180 = vrot.slane %v179, 4
      %v181 = vadd.f32 %v179, %v180
      %v182 = vrot.slane %v181, 2
      %v183 = vadd.f32 %v181, %v182
      %v184 = vrot.slane %v183, 1
      %v185 = vadd.f32 %v183, %v184
      %v186 = vmul.f32 %v185, %v147
      %v187 = vadd.f32 %v186, 1e-05
      %v188 = vrsqrt.pop %v187
      %v189 = vmul.f32 %v149, %v188
      %v190 = vmul.f32 %v150, %v188
      %v191 = vmul.f32 %v151, %v188
      %v192 = vmul.f32 %v152, %v188
      %v193 = vmul.f32 %v153, %v188
      %v194 = vmul.f32 %v154, %v188
      %v195 = vmul.f32 %v155, %v188
      %v196 = vmul.f32 %v156, %v188
      %v197 = vmax.f32 %v189, 0.0
      %v198 = vmax.f32 %v190, 0.0
      %v199 = vmax.f32 %v191, 0.0
      %v200 = vmax.f32 %v192, 0.0
      %v201 = vmax.f32 %v193, 0.0
      %v202 = vmax.f32 %v194, 0.0
      %v203 = vmax.f32 %v195, 0.0
      %v204 = vmax.f32 %v196, 0.0
      %205 = vst.msk [vmem:[%s116] sm:$0xff] %vm125, %v197
      %206 = vst.msk [vmem:[%s116 + $0x8] sm:$0xff] %vm125, %v198
      %207 = vst.msk [vmem:[%s116 + $0x10] sm:$0xff] %vm125, %v199
      %208 = vst.msk [vmem:[%s116 + $0x18] sm:$0xff] %vm125, %v200
      %209 = vst.msk [vmem:[%s116 + $0x20] sm:$0xff] %vm125, %v201
      %210 = vst.msk [vmem:[%s116 + $0x28] sm:$0xff] %vm125, %v202
      %211 = vst.msk [vmem:[%s116 + $0x30] sm:$0xff] %vm125, %v203
      %212 = vst.msk [vmem:[%s116 + $0x38] sm:$0xff] %vm125, %v204
      %p213 = scmp.lt.s32.totalorder %s12, 1
      %s214 = scalar_select %p213, %s12, 1
      %s215 = smul.addr %s214, 8
      %s216 = smul.addr %s215, 8
      %s217 = scalar_lea.vmem %s1, %s216
      // Predicated region
      $region25: #{transnet_forward.34} parent=23 // pred_check
        %p218 = pneg %p56
      $region26: #{transnet_forward.34} parent=23 // pred_check_branch
        %220 = sbr.rel (%p218) target = $region28
      $region27: #{transnet_forward.34} parent=23 // pred_region
        _
      $region28: #{transnet_forward.34} parent=23 // pred_fallthru
        _
    $region24: #{transnet_forward.34} parent=5 // pred_fallthru
      _
    %p221 = scmp.le.s32.totalorder 2, %s7
    // Predicated region
    $region29: #{transnet_forward.34} parent=5 // pred_check
      %p222 = pneg %p221
    $region30: #{transnet_forward.34} parent=5 // pred_check_branch
      %224 = sbr.rel (%p222) target = $region32
    $region31: #{transnet_forward.34} parent=5 // pred_region
      %s225 = ssub.s32 %s7, 2
      // Predicated region
      $region33: #{transnet_forward.34} parent=31 // pred_check
        %p226 = pneg %p62
      $region34: #{transnet_forward.34} parent=31 // pred_check_branch
        %228 = sbr.rel (%p226) target = $region36
      $region35: #{transnet_forward.34} parent=31 // pred_region
        %p229 = scmp.lt.s32.totalorder %s13, 1
        %s230 = scalar_select %p229, %s13, 1
        %s231 = smul.addr %s230, 8
        %s232 = smul.addr %s231, 8
        %s233 = scalar_lea.vmem %s1, %s232
      $region36: #{transnet_forward.34} parent=31 // pred_fallthru
        _
    $region32: #{transnet_forward.34} parent=5 // pred_fallthru
      _
  $region6: #{transnet_forward.34} parent=0 // loop_footer
    %s11 = sadd.s32 1, %s7
  $region7: #{transnet_forward.34} parent=0 // loop_footer_branch
    %6 = sbr.rel target = $region3
  $region8: #{transnet_forward.34} parent=0 // loop_exit
    _

// kernel: transnet_forward.36
$region0: #{transnet_forward.36}
  #allocation0 [shape = 'u32[]', space=smem, size = 0x4, offset = 0x4, fixed_abs, tag = 'smem constant byte address 0x4 - core index']
  #allocation1 [shape = 'u32[144,128]{1,0:T(1,128)}', space=vmem, size = 0x12000, scoped, tag = 'internal scratch']
  %s0 = inlined_call_operand.vmem [shape: f32[2,16,128], index: 0, kind: input, shape index: {}]
  %s1 = inlined_call_operand.vmem [shape: f32[2,16,128], index: 1, kind: output, shape index: {}]
  %s2 = sld [smem:[#allocation0]]
  $region37: #{transnet_forward.36} parent=0
    _
  %s4 = ssub.s32 1, %s2
  %s5 = scalar_select 0, %s4, %s2
  loop: start=0, step=1, limit=4
  $region2: #{transnet_forward.36} parent=0 // loop_pre_header
    _
  $region3: #{transnet_forward.36} parent=0 // loop_header
    %s7 = sphi 0, %s11
    %p8 = scmp.ge.s32.totalorder %s7, 4
    %s17 = sphi 0, %s19
    %s20 = sphi 0, %s17
    %s21 = sphi 0, %s20
    %s37 = sphi 0, %s21
    %s43 = sphi 0, %s45
    %s46 = sphi 0, %s43
    %s47 = sphi 0, %s46
    %s63 = sphi 0, %s47
  $region4: #{transnet_forward.36} parent=0 // loop_header_branch
    %10 = sbr.rel (%p8) target = $region8
  $region5: #{transnet_forward.36} parent=0 // loop_body
    %s12 = ssub.s32 %s7, 1
    %s13 = ssub.s32 %s7, 2
    %s14 = sadd.s32 %s7, 1
    %s15 = ssub.s32 %s7, %s14
    %p16 = scmp.eq.s32.totalorder %s15, 0
    %s18 = sadd.s32 %s17, 1
    %s19 = scalar_select %p16, %s17, %s18
    %p22 = pneg %p16
    %p23 = scmp.eq.s32.totalorder %s7, 1
    %p24 = por %p22, %p23
    %p25 = scmp.ne.s32.totalorder %s17, %s20
    %p26 = scmp.eq.s32.totalorder %s7, 0
    %p27 = por %p25, %p26
    %p28 = scmp.ne.s32.totalorder %s17, %s20
    %p29 = scmp.eq.s32.totalorder %s12, 1
    %p30 = por %p28, %p29
    %p31 = scmp.ne.s32.totalorder %s20, %s21
    %p32 = scmp.eq.s32.totalorder %s12, 0
    %p33 = por %p31, %p32
    %p34 = scmp.ne.s32.totalorder %s20, %s21
    %p35 = scmp.eq.s32.totalorder %s13, 1
    %p36 = por %p34, %p35
    %p38 = scmp.ne.s32.totalorder %s21, %s37
    %p39 = scmp.eq.s32.totalorder %s13, 0
    %p40 = por %p38, %p39
    %s41 = ssub.s32 %s7, %s14
    %p42 = scmp.eq.s32.totalorder %s41, 0
    %s44 = sadd.s32 %s43, 1
    %s45 = scalar_select %p42, %s43, %s44
    %p48 = pneg %p42
    %p49 = scmp.eq.s32.totalorder %s7, 1
    %p50 = por %p48, %p49
    %p51 = scmp.ne.s32.totalorder %s43, %s46
    %p52 = scmp.eq.s32.totalorder %s7, 0
    %p53 = por %p51, %p52
    %p54 = scmp.ne.s32.totalorder %s43, %s46
    %p55 = scmp.eq.s32.totalorder %s12, 1
    %p56 = por %p54, %p55
    %p57 = scmp.ne.s32.totalorder %s46, %s47
    %p58 = scmp.eq.s32.totalorder %s12, 0
    %p59 = por %p57, %p58
    %p60 = scmp.ne.s32.totalorder %s46, %s47
    %p61 = scmp.eq.s32.totalorder %s13, 1
    %p62 = por %p60, %p61
    %p64 = scmp.ne.s32.totalorder %s47, %s63
    %p65 = scmp.eq.s32.totalorder %s13, 0
    %p66 = por %p64, %p65
    %p67 = scmp.le.s32.totalorder 1, %s7
    %p68 = scmp.lt.s32.totalorder %s7, 3
    %p69 = pnand %p67, %p68
    %p70 = pneg %p69
    // Predicated region
    $region9: #{transnet_forward.36} parent=5 // pred_check
      _
    $region10: #{transnet_forward.36} parent=5 // pred_check_branch
      %72 = sbr.rel (%p69) target = $region12
    $region11: #{transnet_forward.36} parent=5 // pred_region
      %s73 = ssub.s32 %s7, 1
    $region12: #{transnet_forward.36} parent=5 // pred_fallthru
      _
    %p74 = scmp.lt.s32.totalorder %s7, 2
    // Predicated region
    $region13: #{transnet_forward.36} parent=5 // pred_check
      %p75 = pneg %p74
    $region14: #{transnet_forward.36} parent=5 // pred_check_branch
      %77 = sbr.rel (%p75) target = $region16
    $region15: #{transnet_forward.36} parent=5 // pred_region
      // Predicated region
      $region17: #{transnet_forward.36} parent=15 // pred_check
        %p78 = pneg %p27
      $region18: #{transnet_forward.36} parent=15 // pred_check_branch
        %80 = sbr.rel (%p78) target = $region20
      $region19: #{transnet_forward.36} parent=15 // pred_region
        %p81 = scmp.lt.s32.totalorder %s7, 1
        %s82 = scalar_select %p81, %s7, 1
        %s83 = smul.addr %s82, 2
        %s84 = smul.addr %s83, 8
        %s85 = scalar_lea.vmem %s0, %s84
      $region20: #{transnet_forward.36} parent=15 // pred_fallthru
        _
    $region16: #{transnet_forward.36} parent=5 // pred_fallthru
      _
    %p86 = scmp.le.s32.totalorder 1, %s7
    %p87 = scmp.lt.s32.totalorder %s7, 3
    %p88 = pnand %p86, %p87
    %p89 = pneg %p88
    // Predicated region
    $region21: #{transnet_forward.36} parent=5 // pred_check
      _
    $region22: #{transnet_forward.36} parent=5 // pred_check_branch
      %91 = sbr.rel (%p88) target = $region24
    $region23: #{transnet_forward.36} parent=5 // pred_region
      %s92 = ssub.s32 %s7, 1
      %p93 = scmp.lt.s32.totalorder %s12, 1
      %s94 = scalar_select %p93, %s12, 1
      %s95 = smul.addr %s94, 2
      %s96 = smul.addr %s95, 8
      %s97 = scalar_lea.vmem %s0, %s96
      %p98 = pneg %p33
      %p99 = pneg %p30
      %p100 = pneg %p59
      %p101 = pneg %p56
      %p102 = scmp.lt.s32.totalorder %s12, 1
      %s103 = scalar_select %p102, %s12, 1
      %s104 = smul.addr %s103, 2
      %s105 = smul.addr %s104, 8
      %s106 = scalar_lea.vmem %s1, %s105
      %p107 = scmp.lt.s32.totalorder %s12, 1
      %s108 = scalar_select %p107, %s12, 1
      %s109 = smul.addr %s108, 2
      %s110 = smul.addr %s109, 8
      %s111 = scalar_lea.vmem %s0, %s110
      %p112 = scmp.lt.s32.totalorder %s12, 1
      %s113 = scalar_select %p112, %s12, 1
      %s114 = smul.addr %s113, 2
      %s115 = smul.addr %s114, 8
      %s116 = scalar_lea.vmem %s1, %s115
      %v117 = vld [vmem:[%s111] sm:$0xff]
      %v118 = vld [vmem:[%s111 + $0x8] sm:$0xff]
      %v119 = vadd.f32 %v117, %v118
      %v120 = vrot.slane %v119, 4
      %v121 = vadd.f32 %v119, %v120
      %v122 = vrot.slane %v121, 2
      %v123 = vadd.f32 %v121, %v122
      %v124 = vrot.slane %v123, 1
      %v125 = vadd.f32 %v123, %v124
      %v126 = vrcp.pop 16.0
      %v127 = vmul.f32 %v125, %v126
      %v128 = vsub.f32 %v117, %v127
      %v129 = vsub.f32 %v118, %v127
      %v130 = vmul.f32 %v128, %v128
      %v131 = vmul.f32 %v129, %v129
      %v132 = vadd.f32 %v130, %v131
      %v133 = vrot.slane %v132, 4
      %v134 = vadd.f32 %v132, %v133
      %v135 = vrot.slane %v134, 2
      %v136 = vadd.f32 %v134, %v135
      %v137 = vrot.slane %v136, 1
      %v138 = vadd.f32 %v136, %v137
      %v139 = vmul.f32 %v138, %v126
      %v140 = vadd.f32 %v139, 1e-05
      %v141 = vrsqrt.pop %v140
      %v142 = vmul.f32 %v128, %v141
      %v143 = vmul.f32 %v129, %v141
      %v144 = vmax.f32 %v142, 0.0
      %v145 = vmax.f32 %v143, 0.0
      %146 = vst [vmem:[%s116] sm:$0xff] %v144
      %147 = vst [vmem:[%s116 + $0x8] sm:$0xff] %v145
      %p148 = scmp.lt.s32.totalorder %s12, 1
      %s149 = scalar_select %p148, %s12, 1
      %s150 = smul.addr %s149, 2
      %s151 = smul.addr %s150, 8
      %s152 = scalar_lea.vmem %s1, %s151
      // Predicated region
      $region25: #{transnet_forward.36} parent=23 // pred_check
        %p153 = pneg %p56
      $region26: #{transnet_forward.36} parent=23 // pred_check_branch
        %155 = sbr.rel (%p153) target = $region28
      $region27: #{transnet_forward.36} parent=23 // pred_region
        _
      $region28: #{transnet_forward.36} parent=23 // pred_fallthru
        _
    $region24: #{transnet_forward.36} parent=5 // pred_fallthru
      _
    %p156 = scmp.le.s32.totalorder 2, %s7
    // Predicated region
    $region29: #{transnet_forward.36} parent=5 // pred_check
      %p157 = pneg %p156
    $region30: #{transnet_forward.36} parent=5 // pred_check_branch
      %159 = sbr.rel (%p157) target = $region32
    $region31: #{transnet_forward.36} parent=5 // pred_region
      %s160 = ssub.s32 %s7, 2
      // Predicated region
      $region33: #{transnet_forward.36} parent=31 // pred_check
        %p161 = pneg %p62
      $region34: #{transnet_forward.36} parent=31 // pred_check_branch
        %163 = sbr.rel (%p161) target = $region36
      $region35: #{transnet_forward.36} parent=31 // pred_region
        %p164 = scmp.lt.s32.totalorder %s13, 1
        %s165 = scalar_select %p164, %s13, 1
        %s166 = smul.addr %s165, 2
        %s167 = smul.addr %s166, 8
        %s168 = scalar_lea.vmem %s1, %s167
      $region36: #{transnet_forward.36} parent=31 // pred_fallthru
        _
    $region32: #{transnet_forward.36} parent=5 // pred_fallthru
      _
  $region6: #{transnet_forward.36} parent=0 // loop_footer
    %s11 = sadd.s32 1, %s7
  $region7: #{transnet_forward.36} parent=0 // loop_footer_branch
    %6 = sbr.rel target = $region3
  $region8: #{transnet_forward.36} parent=0 // loop_exit
    _

// kernel: transnet_forward.35
$region0: #{transnet_forward.35}
  #allocation0 [shape = 'u32[]', space=smem, size = 0x4, offset = 0x4, fixed_abs, tag = 'smem constant byte address 0x4 - core index']
  #allocation1 [shape = 'u32[144,128]{1,0:T(1,128)}', space=vmem, size = 0x12000, scoped, tag = 'internal scratch']
  %s0 = inlined_call_operand.vmem [shape: bf16[32,640], index: 0, kind: input, shape index: {}]
  %s1 = inlined_call_operand.vmem [shape: bf16[640,128], index: 1, kind: input, shape index: {}]
  %s2 = inlined_call_operand.vmem [shape: f32[1,128], index: 2, kind: input, shape index: {}]
  %s3 = inlined_call_operand.vmem [shape: f32[32,128], index: 3, kind: output, shape index: {}]
  %s4 = sld [smem:[#allocation0]]
  $region22: #{transnet_forward.35} parent=0
    _
  %s6 = ssub.s32 1, %s4
  %s7 = scalar_select 0, %s6, %s4
  // Predicated region
  $region2: #{transnet_forward.35} parent=0 // pred_check
    _
  $region3: #{transnet_forward.35} parent=0 // pred_check_branch
    %9 = sbr.rel (0) target = $region5
  $region4: #{transnet_forward.35} parent=0 // pred_region
    _
  $region5: #{transnet_forward.35} parent=0 // pred_fallthru
    _
  // Predicated region
  $region6: #{transnet_forward.35} parent=0 // pred_check
    _
  $region7: #{transnet_forward.35} parent=0 // pred_check_branch
    %11 = sbr.rel (0) target = $region9
  $region8: #{transnet_forward.35} parent=0 // pred_region
    _
  $region9: #{transnet_forward.35} parent=0 // pred_fallthru
    _
  // Predicated region
  $region10: #{transnet_forward.35} parent=0 // pred_check
    _
  $region11: #{transnet_forward.35} parent=0 // pred_check_branch
    %13 = sbr.rel (0) target = $region13
  $region12: #{transnet_forward.35} parent=0 // pred_region
    _
  $region13: #{transnet_forward.35} parent=0 // pred_fallthru
    _
  %v15 = vld [vmem:[%s0] sm:$0xff]
  %v16 = vld [vmem:[%s0 + $0x8] sm:$0xff]
  %v17 = vld [vmem:[%s0 + $0x10] sm:$0xf]
  %v18 = vld [vmem:[%s0 + $0x14] sm:$0xff]
  %v19 = vld [vmem:[%s0 + $0x1c] sm:$0xff]
  %v20 = vld [vmem:[%s0 + $0x24] sm:$0xf]
  %v21 = vld [vmem:[%s0 + $0x28] sm:$0xff]
  %v22 = vld [vmem:[%s0 + $0x30] sm:$0xff]
  %v23 = vld [vmem:[%s0 + $0x38] sm:$0xf]
  %v24 = vld [vmem:[%s0 + $0x3c] sm:$0xff]
  %v25 = vld [vmem:[%s0 + $0x44] sm:$0xff]
  %v26 = vld [vmem:[%s0 + $0x4c] sm:$0xf]
  %v27 = vld [vmem:[%s1] sm:$0xf]
  %v28 = vld [vmem:[%s1 + $0x4] sm:$0xf]
  %v29 = vld [vmem:[%s1 + $0x8] sm:$0xf]
  %v30 = vld [vmem:[%s1 + $0xc] sm:$0xf]
  %v31 = vld [vmem:[%s1 + $0x10] sm:$0xf]
  %v32 = vld [vmem:[%s1 + $0x14] sm:$0xf]
  %v33 = vld [vmem:[%s1 + $0x18] sm:$0xf]
  %v34 = vld [vmem:[%s1 + $0x1c] sm:$0xf]
  %v35 = vld [vmem:[%s1 + $0x20] sm:$0xf]
  %v36 = vld [vmem:[%s1 + $0x24] sm:$0xf]
  %v37 = vld [vmem:[%s1 + $0x28] sm:$0xf]
  %v38 = vld [vmem:[%s1 + $0x2c] sm:$0xf]
  %v39 = vld [vmem:[%s1 + $0x30] sm:$0xf]
  %v40 = vld [vmem:[%s1 + $0x34] sm:$0xf]
  %v41 = vld [vmem:[%s1 + $0x38] sm:$0xf]
  %v42 = vld [vmem:[%s1 + $0x3c] sm:$0xf]
  %v43 = vld [vmem:[%s1 + $0x40] sm:$0xf]
  %v44 = vld [vmem:[%s1 + $0x44] sm:$0xf]
  %v45 = vld [vmem:[%s1 + $0x48] sm:$0xf]
  %v46 = vld [vmem:[%s1 + $0x4c] sm:$0xf]
  %v47 = vld [vmem:[%s1 + $0x50] sm:$0xf]
  %v48 = vld [vmem:[%s1 + $0x54] sm:$0xf]
  %v49 = vld [vmem:[%s1 + $0x58] sm:$0xf]
  %v50 = vld [vmem:[%s1 + $0x5c] sm:$0xf]
  %v51 = vld [vmem:[%s1 + $0x60] sm:$0xf]
  %v52 = vld [vmem:[%s1 + $0x64] sm:$0xf]
  %v53 = vld [vmem:[%s1 + $0x68] sm:$0xf]
  %v54 = vld [vmem:[%s1 + $0x6c] sm:$0xf]
  %v55 = vld [vmem:[%s1 + $0x70] sm:$0xf]
  %v56 = vld [vmem:[%s1 + $0x74] sm:$0xf]
  %v57 = vld [vmem:[%s1 + $0x78] sm:$0xf]
  %v58 = vld [vmem:[%s1 + $0x7c] sm:$0xf]
  %v59 = vld [vmem:[%s1 + $0x80] sm:$0xf]
  %v60 = vld [vmem:[%s1 + $0x84] sm:$0xf]
  %v61 = vld [vmem:[%s1 + $0x88] sm:$0xf]
  %v62 = vld [vmem:[%s1 + $0x8c] sm:$0xf]
  %v63 = vld [vmem:[%s1 + $0x90] sm:$0xf]
  %v64 = vld [vmem:[%s1 + $0x94] sm:$0xf]
  %v65 = vld [vmem:[%s1 + $0x98] sm:$0xf]
  %v66 = vld [vmem:[%s1 + $0x9c] sm:$0xf]
  %v67 = vld [vmem:[%s1 + $0xa0] sm:$0xf]
  %v68 = vld [vmem:[%s1 + $0xa4] sm:$0xf]
  %v69 = vld [vmem:[%s1 + $0xa8] sm:$0xf]
  %v70 = vld [vmem:[%s1 + $0xac] sm:$0xf]
  %v71 = vld [vmem:[%s1 + $0xb0] sm:$0xf]
  %v72 = vld [vmem:[%s1 + $0xb4] sm:$0xf]
  %v73 = vld [vmem:[%s1 + $0xb8] sm:$0xf]
  %v74 = vld [vmem:[%s1 + $0xbc] sm:$0xf]
  %v75 = vld [vmem:[%s1 + $0xc0] sm:$0xf]
  %v76 = vld [vmem:[%s1 + $0xc4] sm:$0xf]
  %v77 = vld [vmem:[%s1 + $0xc8] sm:$0xf]
  %v78 = vld [vmem:[%s1 + $0xcc] sm:$0xf]
  %v79 = vld [vmem:[%s1 + $0xd0] sm:$0xf]
  %v80 = vld [vmem:[%s1 + $0xd4] sm:$0xf]
  %v81 = vld [vmem:[%s1 + $0xd8] sm:$0xf]
  %v82 = vld [vmem:[%s1 + $0xdc] sm:$0xf]
  %v83 = vld [vmem:[%s1 + $0xe0] sm:$0xf]
  %v84 = vld [vmem:[%s1 + $0xe4] sm:$0xf]
  %v85 = vld [vmem:[%s1 + $0xe8] sm:$0xf]
  %v86 = vld [vmem:[%s1 + $0xec] sm:$0xf]
  %v87 = vld [vmem:[%s1 + $0xf0] sm:$0xf]
  %v88 = vld [vmem:[%s1 + $0xf4] sm:$0xf]
  %v89 = vld [vmem:[%s1 + $0xf8] sm:$0xf]
  %v90 = vld [vmem:[%s1 + $0xfc] sm:$0xf]
  %v91 = vld [vmem:[%s1 + $0x100] sm:$0xf]
  %v92 = vld [vmem:[%s1 + $0x104] sm:$0xf]
  %v93 = vld [vmem:[%s1 + $0x108] sm:$0xf]
  %v94 = vld [vmem:[%s1 + $0x10c] sm:$0xf]
  %v95 = vld [vmem:[%s1 + $0x110] sm:$0xf]
  %v96 = vld [vmem:[%s1 + $0x114] sm:$0xf]
  %v97 = vld [vmem:[%s1 + $0x118] sm:$0xf]
  %v98 = vld [vmem:[%s1 + $0x11c] sm:$0xf]
  %v99 = vld [vmem:[%s1 + $0x120] sm:$0xf]
  %v100 = vld [vmem:[%s1 + $0x124] sm:$0xf]
  %v101 = vld [vmem:[%s1 + $0x128] sm:$0xf]
  %v102 = vld [vmem:[%s1 + $0x12c] sm:$0xf]
  %v103 = vld [vmem:[%s1 + $0x130] sm:$0xf]
  %v104 = vld [vmem:[%s1 + $0x134] sm:$0xf]
  %v105 = vld [vmem:[%s1 + $0x138] sm:$0xf]
  %v106 = vld [vmem:[%s1 + $0x13c] sm:$0xf]
  %v107 = vld [vmem:[%s2] sm:$0x1]
  %v109 = vlaneseq
  %v110 = vshrl.u32 %v109, 7
  %v111 = vsub.s32 0, %v110
  %v112 = vrot.slane %v107, %v111
  %v126 = vunpack.c.l.b16 %v15
  %v127 = vunpack.c.h.b16 %v15
  %v128 = vunpack.c.l.b16 %v16
  %v129 = vunpack.c.h.b16 %v16
  %v130 = vunpack.c.l.b16 %v17
  %v131 = vunpack.c.l.b16 %v18
  %v132 = vunpack.c.h.b16 %v18
  %v133 = vunpack.c.l.b16 %v19
  %v134 = vunpack.c.h.b16 %v19
  %v135 = vunpack.c.l.b16 %v20
  %v136 = vunpack.c.l.b16 %v21
  %v137 = vunpack.c.h.b16 %v21
  %v138 = vunpack.c.l.b16 %v22
  %v139 = vunpack.c.h.b16 %v22
  %v140 = vunpack.c.l.b16 %v23
  %v141 = vunpack.c.l.b16 %v24
  %v142 = vunpack.c.h.b16 %v24
  %v143 = vunpack.c.l.b16 %v25
  %v144 = vunpack.c.h.b16 %v25
  %v145 = vunpack.c.l.b16 %v26
  %v146 = vpack.c.b16 %v131, %v126
  %v147 = vpack.c.b16 %v132, %v127
  %v148 = vpack.c.b16 %v133, %v128
  %v149 = vpack.c.b16 %v134, %v129
  %v150 = vpack.c.b16 %v135, %v130
  %v151 = vpack.c.b16 %v141, %v136
  %v152 = vpack.c.b16 %v142, %v137
  %v153 = vpack.c.b16 %v143, %v138
  %v154 = vpack.c.b16 %v144, %v139
  %v155 = vpack.c.b16 %v145, %v140
  %v246 = vunpack.c.l.b16 %v27
  %v247 = vunpack.c.l.b16 %v28
  %v248 = vunpack.c.l.b16 %v29
  %v249 = vunpack.c.l.b16 %v30
  %v250 = vunpack.c.l.b16 %v31
  %v251 = vunpack.c.l.b16 %v32
  %v252 = vunpack.c.l.b16 %v33
  %v253 = vunpack.c.l.b16 %v34
  %v254 = vunpack.c.l.b16 %v35
  %v255 = vunpack.c.l.b16 %v36
  %v256 = vunpack.c.l.b16 %v37
  %v257 = vunpack.c.l.b16 %v38
  %v258 = vunpack.c.l.b16 %v39
  %v259 = vunpack.c.l.b16 %v40
  %v260 = vunpack.c.l.b16 %v41
  %v261 = vunpack.c.l.b16 %v42
  %v262 = vunpack.c.l.b16 %v43
  %v263 = vunpack.c.l.b16 %v44
  %v264 = vunpack.c.l.b16 %v45
  %v265 = vunpack.c.l.b16 %v46
  %v266 = vunpack.c.l.b16 %v47
  %v267 = vunpack.c.l.b16 %v48
  %v268 = vunpack.c.l.b16 %v49
  %v269 = vunpack.c.l.b16 %v50
  %v270 = vunpack.c.l.b16 %v51
  %v271 = vunpack.c.l.b16 %v52
  %v272 = vunpack.c.l.b16 %v53
  %v273 = vunpack.c.l.b16 %v54
  %v274 = vunpack.c.l.b16 %v55
  %v275 = vunpack.c.l.b16 %v56
  %v276 = vunpack.c.l.b16 %v57
  %v277 = vunpack.c.l.b16 %v58
  %v278 = vunpack.c.l.b16 %v59
  %v279 = vunpack.c.l.b16 %v60
  %v280 = vunpack.c.l.b16 %v61
  %v281 = vunpack.c.l.b16 %v62
  %v282 = vunpack.c.l.b16 %v63
  %v283 = vunpack.c.l.b16 %v64
  %v284 = vunpack.c.l.b16 %v65
  %v285 = vunpack.c.l.b16 %v66
  %v286 = vunpack.c.l.b16 %v67
  %v287 = vunpack.c.l.b16 %v68
  %v288 = vunpack.c.l.b16 %v69
  %v289 = vunpack.c.l.b16 %v70
  %v290 = vunpack.c.l.b16 %v71
  %v291 = vunpack.c.l.b16 %v72
  %v292 = vunpack.c.l.b16 %v73
  %v293 = vunpack.c.l.b16 %v74
  %v294 = vunpack.c.l.b16 %v75
  %v295 = vunpack.c.l.b16 %v76
  %v296 = vunpack.c.l.b16 %v77
  %v297 = vunpack.c.l.b16 %v78
  %v298 = vunpack.c.l.b16 %v79
  %v299 = vunpack.c.l.b16 %v80
  %v300 = vunpack.c.l.b16 %v81
  %v301 = vunpack.c.l.b16 %v82
  %v302 = vunpack.c.l.b16 %v83
  %v303 = vunpack.c.l.b16 %v84
  %v304 = vunpack.c.l.b16 %v85
  %v305 = vunpack.c.l.b16 %v86
  %v306 = vunpack.c.l.b16 %v87
  %v307 = vunpack.c.l.b16 %v88
  %v308 = vunpack.c.l.b16 %v89
  %v309 = vunpack.c.l.b16 %v90
  %v310 = vunpack.c.l.b16 %v91
  %v311 = vunpack.c.l.b16 %v92
  %v312 = vunpack.c.l.b16 %v93
  %v313 = vunpack.c.l.b16 %v94
  %v314 = vunpack.c.l.b16 %v95
  %v315 = vunpack.c.l.b16 %v96
  %v316 = vunpack.c.l.b16 %v97
  %v317 = vunpack.c.l.b16 %v98
  %v318 = vunpack.c.l.b16 %v99
  %v319 = vunpack.c.l.b16 %v100
  %v320 = vunpack.c.l.b16 %v101
  %v321 = vunpack.c.l.b16 %v102
  %v322 = vunpack.c.l.b16 %v103
  %v323 = vunpack.c.l.b16 %v104
  %v324 = vunpack.c.l.b16 %v105
  %v325 = vunpack.c.l.b16 %v106
  %v326 = vpack.c.b16 %v247, %v246
  %v327 = vpack.c.b16 %v249, %v248
  %v328 = vpack.c.b16 %v251, %v250
  %v329 = vpack.c.b16 %v253, %v252
  %v330 = vpack.c.b16 %v255, %v254
  %v331 = vpack.c.b16 %v257, %v256
  %v332 = vpack.c.b16 %v259, %v258
  %v333 = vpack.c.b16 %v261, %v260
  %v334 = vpack.c.b16 %v263, %v262
  %v335 = vpack.c.b16 %v265, %v264
  %v336 = vpack.c.b16 %v267, %v266
  %v337 = vpack.c.b16 %v269, %v268
  %v338 = vpack.c.b16 %v271, %v270
  %v339 = vpack.c.b16 %v273, %v272
  %v340 = vpack.c.b16 %v275, %v274
  %v341 = vpack.c.b16 %v277, %v276
  %v342 = vpack.c.b16 %v279, %v278
  %v343 = vpack.c.b16 %v281, %v280
  %v344 = vpack.c.b16 %v283, %v282
  %v345 = vpack.c.b16 %v285, %v284
  %v346 = vpack.c.b16 %v287, %v286
  %v347 = vpack.c.b16 %v289, %v288
  %v348 = vpack.c.b16 %v291, %v290
  %v349 = vpack.c.b16 %v293, %v292
  %v350 = vpack.c.b16 %v295, %v294
  %v351 = vpack.c.b16 %v297, %v296
  %v352 = vpack.c.b16 %v299, %v298
  %v353 = vpack.c.b16 %v301, %v300
  %v354 = vpack.c.b16 %v303, %v302
  %v355 = vpack.c.b16 %v305, %v304
  %v356 = vpack.c.b16 %v307, %v306
  %v357 = vpack.c.b16 %v309, %v308
  %v358 = vpack.c.b16 %v311, %v310
  %v359 = vpack.c.b16 %v313, %v312
  %v360 = vpack.c.b16 %v315, %v314
  %v361 = vpack.c.b16 %v317, %v316
  %v362 = vpack.c.b16 %v319, %v318
  %v363 = vpack.c.b16 %v321, %v320
  %v364 = vpack.c.b16 %v323, %v322
  %v365 = vpack.c.b16 %v325, %v324
  %406 = vmatprep.subr.bf16.mxu0 0
  %407 = vmatpush1.bf16.msra.mxu0 %v326
  %408 = vmatprep.subr.bf16.mxu0 0
  %409 = vmatpush1.bf16.msra.mxu0 %v327
  %410 = vmatprep.subr.bf16.mxu0 0
  %411 = vmatpush1.bf16.msra.mxu0 %v328
  %412 = vmatprep.subr.bf16.mxu0 0
  %413 = vmatpush1.bf16.msra.mxu0 %v329
  %414 = vmatprep.subr.bf16.mxu0 0
  %415 = vmatpush1.bf16.msra.mxu0 %v330
  %416 = vmatprep.subr.bf16.mxu0 0
  %417 = vmatpush1.bf16.msra.mxu0 %v331
  %418 = vmatprep.subr.bf16.mxu0 0
  %419 = vmatpush1.bf16.msra.mxu0 %v332
  %420 = vmatprep.subr.bf16.mxu0 0
  %421 = vmatpush1.bf16.msra.mxu0 %v333
  %422 = vmatprep.subr.bf16.mxu0 0
  %423 = vmatpush1.bf16.msra.mxu0 %v334
  %424 = vmatprep.subr.bf16.mxu0 0
  %425 = vmatpush1.bf16.msra.mxu0 %v335
  %426 = vmatprep.subr.bf16.mxu0 0
  %427 = vmatpush1.bf16.msra.mxu0 %v336
  %428 = vmatprep.subr.bf16.mxu0 0
  %429 = vmatpush1.bf16.msra.mxu0 %v337
  %430 = vmatprep.subr.bf16.mxu0 0
  %431 = vmatpush1.bf16.msra.mxu0 %v338
  %432 = vmatprep.subr.bf16.mxu0 0
  %433 = vmatpush1.bf16.msra.mxu0 %v339
  %434 = vmatprep.subr.bf16.mxu0 0
  %435 = vmatpush1.bf16.msra.mxu0 %v340
  %436 = vmatprep.subr.bf16.mxu0 0
  %437 = vmatpush1.bf16.msra.mxu0 %v341
  %438 = vmatprep.mubr.bf16.mxu0 %v147
  %439 = vmatmul.mubr.bf16.gmra.mrb[0].mxu0 %v146
  %v440 = vpop.f32.mrb[0].mxu0
  %v441 = vadd.f32 %v112, %v440
  %v442 = vpop.f32.mrb[0].mxu0
  %v443 = vpop.f32.mrb[0].mxu0
  %v444 = vadd.f32 %v112, %v443
  %v445 = vpop.f32.mrb[0].mxu0
  %446 = vmatprep.mubr.bf16.mxu0 %v152
  %447 = vmatmul.mubr.bf16.gmra.mrb[0].mxu0 %v151
  %v448 = vpop.f32.mrb[0].mxu0
  %v449 = vadd.f32 %v112, %v448
  %v450 = vpop.f32.mrb[0].mxu0
  %v451 = vpop.f32.mrb[0].mxu0
  %v452 = vadd.f32 %v112, %v451
  %v453 = vpop.f32.mrb[0].mxu0
  %454 = vdwg.mxu0
  %455 = vmatprep.subr.bf16.mxu0 0
  %456 = vmatpush1.bf16.msra.mxu0 %v342
  %457 = vmatprep.subr.bf16.mxu0 0
  %458 = vmatpush1.bf16.msra.mxu0 %v343
  %459 = vmatprep.subr.bf16.mxu0 0
  %460 = vmatpush1.bf16.msra.mxu0 %v344
  %461 = vmatprep.subr.bf16.mxu0 0
  %462 = vmatpush1.bf16.msra.mxu0 %v345
  %463 = vmatprep.subr.bf16.mxu0 0
  %464 = vmatpush1.bf16.msra.mxu0 %v346
  %465 = vmatprep.subr.bf16.mxu0 0
  %466 = vmatpush1.bf16.msra.mxu0 %v347
  %467 = vmatprep.subr.bf16.mxu0 0
  %468 = vmatpush1.bf16.msra.mxu0 %v348
  %469 = vmatprep.subr.bf16.mxu0 0
  %470 = vmatpush1.bf16.msra.mxu0 %v349
  %471 = vmatprep.subr.bf16.mxu0 0
  %472 = vmatpush1.bf16.msra.mxu0 %v350
  %473 = vmatprep.subr.bf16.mxu0 0
  %474 = vmatpush1.bf16.msra.mxu0 %v351
  %475 = vmatprep.subr.bf16.mxu0 0
  %476 = vmatpush1.bf16.msra.mxu0 %v352
  %477 = vmatprep.subr.bf16.mxu0 0
  %478 = vmatpush1.bf16.msra.mxu0 %v353
  %479 = vmatprep.subr.bf16.mxu0 0
  %480 = vmatpush1.bf16.msra.mxu0 %v354
  %481 = vmatprep.subr.bf16.mxu0 0
  %482 = vmatpush1.bf16.msra.mxu0 %v355
  %483 = vmatprep.subr.bf16.mxu0 0
  %484 = vmatpush1.bf16.msra.mxu0 %v356
  %485 = vmatprep.subr.bf16.mxu0 0
  %486 = vmatpush1.bf16.msra.mxu0 %v357
  %487 = vmatprep.mubr.bf16.mxu0 %v149
  %488 = vmatmul.mubr.bf16.gmra.mrb[0].mxu0 %v148
  %v489 = vpop.f32.mrb[0].mxu0
  %v490 = vadd.f32 %v441, %v489
  %v491 = vpop.f32.mrb[0].mxu0
  %v492 = vpop.f32.mrb[0].mxu0
  %v493 = vadd.f32 %v444, %v492
  %v494 = vpop.f32.mrb[0].mxu0
  %495 = vmatprep.mubr.bf16.mxu0 %v154
  %496 = vmatmul.mubr.bf16.gmra.mrb[0].mxu0 %v153
  %v497 = vpop.f32.mrb[0].mxu0
  %v498 = vadd.f32 %v449, %v497
  %v499 = vpop.f32.mrb[0].mxu0
  %v500 = vpop.f32.mrb[0].mxu0
  %v501 = vadd.f32 %v452, %v500
  %v502 = vpop.f32.mrb[0].mxu0
  %503 = vdwg.mxu0
  %504 = vmatprep.subr.bf16.mxu0 0
  %505 = vmatpush1.bf16.msra.mxu0 %v358
  %506 = vmatprep.subr.bf16.mxu0 0
  %507 = vmatpush1.bf16.msra.mxu0 %v359
  %508 = vmatprep.subr.bf16.mxu0 0
  %509 = vmatpush1.bf16.msra.mxu0 %v360
  %510 = vmatprep.subr.bf16.mxu0 0
  %511 = vmatpush1.bf16.msra.mxu0 %v361
  %512 = vmatprep.subr.bf16.mxu0 0
  %513 = vmatpush1.bf16.msra.mxu0 %v362
  %514 = vmatprep.subr.bf16.mxu0 0
  %515 = vmatpush1.bf16.msra.mxu0 %v363
  %516 = vmatprep.subr.bf16.mxu0 0
  %517 = vmatpush1.bf16.msra.mxu0 %v364
  %518 = vmatprep.subr.bf16.mxu0 0
  %519 = vmatpush1.bf16.msra.mxu0 %v365
  %520 = vmatprep.subr.bf16.mxu0 0
  %521 = vmatpush1.bf16.msra.mxu0 0
  %522 = vmatprep.subr.bf16.mxu0 0
  %523 = vmatpush1.bf16.msra.mxu0 0
  %524 = vmatprep.subr.bf16.mxu0 0
  %525 = vmatpush1.bf16.msra.mxu0 0
  %526 = vmatprep.subr.bf16.mxu0 0
  %527 = vmatpush1.bf16.msra.mxu0 0
  %528 = vmatprep.subr.bf16.mxu0 0
  %529 = vmatpush1.bf16.msra.mxu0 0
  %530 = vmatprep.subr.bf16.mxu0 0
  %531 = vmatpush1.bf16.msra.mxu0 0
  %532 = vmatprep.subr.bf16.mxu0 0
  %533 = vmatpush1.bf16.msra.mxu0 0
  %534 = vmatprep.subr.bf16.mxu0 0
  %535 = vmatpush1.bf16.msra.mxu0 0
  %536 = vmatprep.mubr.bf16.mxu0 0
  %537 = vmatmul.mubr.bf16.gmra.mrb[0].mxu0 %v150
  %v538 = vpop.f32.mrb[0].mxu0
  %v539 = vadd.f32 %v490, %v538
  %v540 = vpop.f32.mrb[0].mxu0
  %v541 = vpop.f32.mrb[0].mxu0
  %v542 = vadd.f32 %v493, %v541
  %v543 = vpop.f32.mrb[0].mxu0
  %544 = vmatprep.mubr.bf16.mxu0 0
  %545 = vmatmul.mubr.bf16.gmra.mrb[0].mxu0 %v155
  %v546 = vpop.f32.mrb[0].mxu0
  %v547 = vadd.f32 %v498, %v546
  %v548 = vpop.f32.mrb[0].mxu0
  %v549 = vpop.f32.mrb[0].mxu0
  %v550 = vadd.f32 %v501, %v549
  %v551 = vpop.f32.mrb[0].mxu0
  %552 = vdwg.mxu0
  %553 = vst [vmem:[%s3] sm:$0xff] %v539
  %554 = vst [vmem:[%s3 + $0x8] sm:$0xff] %v542
  %555 = vst [vmem:[%s3 + $0x10] sm:$0xff] %v547
  %556 = vst [vmem:[%s3 + $0x18] sm:$0xff] %v550
  // Predicated region
  $region14: #{transnet_forward.35} parent=0 // pred_check
    _
  $region15: #{transnet_forward.35} parent=0 // pred_check_branch
    %558 = sbr.rel (0) target = $region17
  $region16: #{transnet_forward.35} parent=0 // pred_region
    _
  $region17: #{transnet_forward.35} parent=0 // pred_fallthru
    _
  // Predicated region
  $region18: #{transnet_forward.35} parent=0 // pred_check
    _
  $region19: #{transnet_forward.35} parent=0 // pred_check_branch
    %560 = sbr.rel (0) target = $region21
  $region20: #{transnet_forward.35} parent=0 // pred_region
    _
  $region21: #{transnet_forward.35} parent=0 // pred_fallthru
    _

// kernel: transnet_forward.40
$region0: #{transnet_forward.40}
  #allocation0 [shape = 'u32[]', space=smem, size = 0x4, offset = 0x4, fixed_abs, tag = 'smem constant byte address 0x4 - core index']
  #allocation1 [shape = 'u32[144,128]{1,0:T(1,128)}', space=vmem, size = 0x12000, scoped, tag = 'internal scratch']
  %s0 = inlined_call_operand.vmem [shape: f32[2,16,128], index: 0, kind: input, shape index: {}]
  %s1 = inlined_call_operand.vmem [shape: f32[2,16,128], index: 1, kind: input, shape index: {}]
  %s2 = inlined_call_operand.vmem [shape: f32[2,16,128], index: 2, kind: output, shape index: {}]
  %s3 = sld [smem:[#allocation0]]
  $region41: #{transnet_forward.40} parent=0
    _
  %s5 = ssub.s32 1, %s3
  %s6 = scalar_select 0, %s5, %s3
  loop: start=0, step=1, limit=4
  $region2: #{transnet_forward.40} parent=0 // loop_pre_header
    _
  $region3: #{transnet_forward.40} parent=0 // loop_header
    %s8 = sphi 0, %s12
    %p9 = scmp.ge.s32.totalorder %s8, 4
    %s18 = sphi 0, %s20
    %s21 = sphi 0, %s18
    %s22 = sphi 0, %s21
    %s38 = sphi 0, %s22
    %s44 = sphi 0, %s46
    %s47 = sphi 0, %s44
    %s48 = sphi 0, %s47
    %s64 = sphi 0, %s48
    %s70 = sphi 0, %s72
    %s73 = sphi 0, %s70
    %s74 = sphi 0, %s73
    %s90 = sphi 0, %s74
  $region4: #{transnet_forward.40} parent=0 // loop_header_branch
    %11 = sbr.rel (%p9) target = $region8
  $region5: #{transnet_forward.40} parent=0 // loop_body
    %s13 = ssub.s32 %s8, 1
    %s14 = ssub.s32 %s8, 2
    %s15 = sadd.s32 %s8, 1
    %s16 = ssub.s32 %s8, %s15
    %p17 = scmp.eq.s32.totalorder %s16, 0
    %s19 = sadd.s32 %s18, 1
    %s20 = scalar_select %p17, %s18, %s19
    %p23 = pneg %p17
    %p24 = scmp.eq.s32.totalorder %s8, 1
    %p25 = por %p23, %p24
    %p26 = scmp.ne.s32.totalorder %s18, %s21
    %p27 = scmp.eq.s32.totalorder %s8, 0
    %p28 = por %p26, %p27
    %p29 = scmp.ne.s32.totalorder %s18, %s21
    %p30 = scmp.eq.s32.totalorder %s13, 1
    %p31 = por %p29, %p30
    %p32 = scmp.ne.s32.totalorder %s21, %s22
    %p33 = scmp.eq.s32.totalorder %s13, 0
    %p34 = por %p32, %p33
    %p35 = scmp.ne.s32.totalorder %s21, %s22
    %p36 = scmp.eq.s32.totalorder %s14, 1
    %p37 = por %p35, %p36
    %p39 = scmp.ne.s32.totalorder %s22, %s38
    %p40 = scmp.eq.s32.totalorder %s14, 0
    %p41 = por %p39, %p40
    %s42 = ssub.s32 %s8, %s15
    %p43 = scmp.eq.s32.totalorder %s42, 0
    %s45 = sadd.s32 %s44, 1
    %s46 = scalar_select %p43, %s44, %s45
    %p49 = pneg %p43
    %p50 = scmp.eq.s32.totalorder %s8, 1
    %p51 = por %p49, %p50
    %p52 = scmp.ne.s32.totalorder %s44, %s47
    %p53 = scmp.eq.s32.totalorder %s8, 0
    %p54 = por %p52, %p53
    %p55 = scmp.ne.s32.totalorder %s44, %s47
    %p56 = scmp.eq.s32.totalorder %s13, 1
    %p57 = por %p55, %p56
    %p58 = scmp.ne.s32.totalorder %s47, %s48
    %p59 = scmp.eq.s32.totalorder %s13, 0
    %p60 = por %p58, %p59
    %p61 = scmp.ne.s32.totalorder %s47, %s48
    %p62 = scmp.eq.s32.totalorder %s14, 1
    %p63 = por %p61, %p62
    %p65 = scmp.ne.s32.totalorder %s48, %s64
    %p66 = scmp.eq.s32.totalorder %s14, 0
    %p67 = por %p65, %p66
    %s68 = ssub.s32 %s8, %s15
    %p69 = scmp.eq.s32.totalorder %s68, 0
    %s71 = sadd.s32 %s70, 1
    %s72 = scalar_select %p69, %s70, %s71
    %p75 = pneg %p69
    %p76 = scmp.eq.s32.totalorder %s8, 1
    %p77 = por %p75, %p76
    %p78 = scmp.ne.s32.totalorder %s70, %s73
    %p79 = scmp.eq.s32.totalorder %s8, 0
    %p80 = por %p78, %p79
    %p81 = scmp.ne.s32.totalorder %s70, %s73
    %p82 = scmp.eq.s32.totalorder %s13, 1
    %p83 = por %p81, %p82
    %p84 = scmp.ne.s32.totalorder %s73, %s74
    %p85 = scmp.eq.s32.totalorder %s13, 0
    %p86 = por %p84, %p85
    %p87 = scmp.ne.s32.totalorder %s73, %s74
    %p88 = scmp.eq.s32.totalorder %s14, 1
    %p89 = por %p87, %p88
    %p91 = scmp.ne.s32.totalorder %s74, %s90
    %p92 = scmp.eq.s32.totalorder %s14, 0
    %p93 = por %p91, %p92
    %p94 = scmp.le.s32.totalorder 1, %s8
    %p95 = scmp.lt.s32.totalorder %s8, 3
    %p96 = pnand %p94, %p95
    %p97 = pneg %p96
    // Predicated region
    $region9: #{transnet_forward.40} parent=5 // pred_check
      _
    $region10: #{transnet_forward.40} parent=5 // pred_check_branch
      %99 = sbr.rel (%p96) target = $region12
    $region11: #{transnet_forward.40} parent=5 // pred_region
      %s100 = ssub.s32 %s8, 1
    $region12: #{transnet_forward.40} parent=5 // pred_fallthru
      _
    %p101 = scmp.lt.s32.totalorder %s8, 2
    // Predicated region
    $region13: #{transnet_forward.40} parent=5 // pred_check
      %p102 = pneg %p101
    $region14: #{transnet_forward.40} parent=5 // pred_check_branch
      %104 = sbr.rel (%p102) target = $region16
    $region15: #{transnet_forward.40} parent=5 // pred_region
      // Predicated region
      $region17: #{transnet_forward.40} parent=15 // pred_check
        %p105 = pneg %p28
      $region18: #{transnet_forward.40} parent=15 // pred_check_branch
        %107 = sbr.rel (%p105) target = $region20
      $region19: #{transnet_forward.40} parent=15 // pred_region
        %p108 = scmp.lt.s32.totalorder %s8, 1
        %s109 = scalar_select %p108, %s8, 1
        %s110 = smul.addr %s109, 2
        %s111 = smul.addr %s110, 8
        %s112 = scalar_lea.vmem %s0, %s111
      $region20: #{transnet_forward.40} parent=15 // pred_fallthru
        _
      // Predicated region
      $region21: #{transnet_forward.40} parent=15 // pred_check
        %p113 = pneg %p54
      $region22: #{transnet_forward.40} parent=15 // pred_check_branch
        %115 = sbr.rel (%p113) target = $region24
      $region23: #{transnet_forward.40} parent=15 // pred_region
        %p116 = scmp.lt.s32.totalorder %s8, 1
        %s117 = scalar_select %p116, %s8, 1
        %s118 = smul.addr %s117, 2
        %s119 = smul.addr %s118, 8
        %s120 = scalar_lea.vmem %s1, %s119
      $region24: #{transnet_forward.40} parent=15 // pred_fallthru
        _
    $region16: #{transnet_forward.40} parent=5 // pred_fallthru
      _
    %p121 = scmp.le.s32.totalorder 1, %s8
    %p122 = scmp.lt.s32.totalorder %s8, 3
    %p123 = pnand %p121, %p122
    %p124 = pneg %p123
    // Predicated region
    $region25: #{transnet_forward.40} parent=5 // pred_check
      _
    $region26: #{transnet_forward.40} parent=5 // pred_check_branch
      %126 = sbr.rel (%p123) target = $region28
    $region27: #{transnet_forward.40} parent=5 // pred_region
      %s127 = ssub.s32 %s8, 1
      %p128 = scmp.lt.s32.totalorder %s13, 1
      %s129 = scalar_select %p128, %s13, 1
      %s130 = smul.addr %s129, 2
      %s131 = smul.addr %s130, 8
      %s132 = scalar_lea.vmem %s0, %s131
      %p133 = pneg %p34
      %p134 = pneg %p31
      %p135 = scmp.lt.s32.totalorder %s13, 1
      %s136 = scalar_select %p135, %s13, 1
      %s137 = smul.addr %s136, 2
      %s138 = smul.addr %s137, 8
      %s139 = scalar_lea.vmem %s1, %s138
      %p140 = pneg %p60
      %p141 = pneg %p57
      %p142 = pneg %p86
      %p143 = pneg %p83
      %p144 = scmp.lt.s32.totalorder %s13, 1
      %s145 = scalar_select %p144, %s13, 1
      %s146 = smul.addr %s145, 2
      %s147 = smul.addr %s146, 8
      %s148 = scalar_lea.vmem %s2, %s147
      %p149 = scmp.lt.s32.totalorder %s13, 1
      %s150 = scalar_select %p149, %s13, 1
      %s151 = smul.addr %s150, 2
      %s152 = smul.addr %s151, 8
      %s153 = scalar_lea.vmem %s0, %s152
      %p154 = scmp.lt.s32.totalorder %s13, 1
      %s155 = scalar_select %p154, %s13, 1
      %s156 = smul.addr %s155, 2
      %s157 = smul.addr %s156, 8
      %s158 = scalar_lea.vmem %s1, %s157
      %p159 = scmp.lt.s32.totalorder %s13, 1
      %s160 = scalar_select %p159, %s13, 1
      %s161 = smul.addr %s160, 2
      %s162 = smul.addr %s161, 8
      %s163 = scalar_lea.vmem %s2, %s162
      %v164 = vld [vmem:[%s153] sm:$0xff]
      %v165 = vld [vmem:[%s153 + $0x8] sm:$0xff]
      %v166 = vadd.f32 %v164, %v165
      %v167 = vrot.slane %v166, 4
      %v168 = vadd.f32 %v166, %v167
      %v169 = vrot.slane %v168, 2
      %v170 = vadd.f32 %v168, %v169
      %v171 = vrot.slane %v170, 1
      %v172 = vadd.f32 %v170, %v171
      %v173 = vrcp.pop 16.0
      %v174 = vmul.f32 %v172, %v173
      %v175 = vsub.f32 %v164, %v174
      %v176 = vsub.f32 %v165, %v174
      %v177 = vmul.f32 %v175, %v175
      %v178 = vmul.f32 %v176, %v176
      %v179 = vadd.f32 %v177, %v178
      %v180 = vrot.slane %v179, 4
      %v181 = vadd.f32 %v179, %v180
      %v182 = vrot.slane %v181, 2
      %v183 = vadd.f32 %v181, %v182
      %v184 = vrot.slane %v183, 1
      %v185 = vadd.f32 %v183, %v184
      %v186 = vmul.f32 %v185, %v173
      %v187 = vadd.f32 %v186, 1e-05
      %v188 = vrsqrt.pop %v187
      %v189 = vmul.f32 %v175, %v188
      %v190 = vmul.f32 %v176, %v188
      %v191 = vld [vmem:[%s158] sm:$0xff]
      %v192 = vld [vmem:[%s158 + $0x8] sm:$0xff]
      %v193 = vadd.f32 %v189, %v191
      %v194 = vadd.f32 %v190, %v192
      %v195 = vmax.f32 %v193, 0.0
      %v196 = vmax.f32 %v194, 0.0
      %197 = vst [vmem:[%s163] sm:$0xff] %v195
      %198 = vst [vmem:[%s163 + $0x8] sm:$0xff] %v196
      %p199 = scmp.lt.s32.totalorder %s13, 1
      %s200 = scalar_select %p199, %s13, 1
      %s201 = smul.addr %s200, 2
      %s202 = smul.addr %s201, 8
      %s203 = scalar_lea.vmem %s2, %s202
      // Predicated region
      $region29: #{transnet_forward.40} parent=27 // pred_check
        %p204 = pneg %p83
      $region30: #{transnet_forward.40} parent=27 // pred_check_branch
        %206 = sbr.rel (%p204) target = $region32
      $region31: #{transnet_forward.40} parent=27 // pred_region
        _
      $region32: #{transnet_forward.40} parent=27 // pred_fallthru
        _
    $region28: #{transnet_forward.40} parent=5 // pred_fallthru
      _
    %p207 = scmp.le.s32.totalorder 2, %s8
    // Predicated region
    $region33: #{transnet_forward.40} parent=5 // pred_check
      %p208 = pneg %p207
    $region34: #{transnet_forward.40} parent=5 // pred_check_branch
      %210 = sbr.rel (%p208) target = $region36
    $region35: #{transnet_forward.40} parent=5 // pred_region
      %s211 = ssub.s32 %s8, 2
      // Predicated region
      $region37: #{transnet_forward.40} parent=35 // pred_check
        %p212 = pneg %p89
      $region38: #{transnet_forward.40} parent=35 // pred_check_branch
        %214 = sbr.rel (%p212) target = $region40
      $region39: #{transnet_forward.40} parent=35 // pred_region
        %p215 = scmp.lt.s32.totalorder %s14, 1
        %s216 = scalar_select %p215, %s14, 1
        %s217 = smul.addr %s216, 2
        %s218 = smul.addr %s217, 8
        %s219 = scalar_lea.vmem %s2, %s218
      $region40: #{transnet_forward.40} parent=35 // pred_fallthru
        _
    $region36: #{transnet_forward.40} parent=5 // pred_fallthru
      _
  $region6: #{transnet_forward.40} parent=0 // loop_footer
    %s12 = sadd.s32 1, %s8
  $region7: #{transnet_forward.40} parent=0 // loop_footer_branch
    %7 = sbr.rel target = $region3
  $region8: #{transnet_forward.40} parent=0 // loop_exit
    _

// kernel: transnet_forward.37
$region0: #{transnet_forward.37}
  #allocation0 [shape = 'u32[]', space=smem, size = 0x4, offset = 0x4, fixed_abs, tag = 'smem constant byte address 0x4 - core index']
  #allocation1 [shape = 'u32[144,128]{1,0:T(1,128)}', space=vmem, size = 0x12000, scoped, tag = 'internal scratch']
  %s0 = inlined_call_operand.vmem [shape: bf16[32,1152], index: 0, kind: input, shape index: {}]
  %s1 = inlined_call_operand.vmem [shape: bf16[1152,128], index: 1, kind: input, shape index: {}]
  %s2 = inlined_call_operand.vmem [shape: f32[1,128], index: 2, kind: input, shape index: {}]
  %s3 = inlined_call_operand.vmem [shape: f32[32,128], index: 3, kind: output, shape index: {}]
  %s4 = sld [smem:[#allocation0]]
  $region22: #{transnet_forward.37} parent=0
    _
  %s6 = ssub.s32 1, %s4
  %s7 = scalar_select 0, %s6, %s4
  // Predicated region
  $region2: #{transnet_forward.37} parent=0 // pred_check
    _
  $region3: #{transnet_forward.37} parent=0 // pred_check_branch
    %9 = sbr.rel (0) target = $region5
  $region4: #{transnet_forward.37} parent=0 // pred_region
    _
  $region5: #{transnet_forward.37} parent=0 // pred_fallthru
    _
  // Predicated region
  $region6: #{transnet_forward.37} parent=0 // pred_check
    _
  $region7: #{transnet_forward.37} parent=0 // pred_check_branch
    %11 = sbr.rel (0) target = $region9
  $region8: #{transnet_forward.37} parent=0 // pred_region
    _
  $region9: #{transnet_forward.37} parent=0 // pred_fallthru
    _
  // Predicated region
  $region10: #{transnet_forward.37} parent=0 // pred_check
    _
  $region11: #{transnet_forward.37} parent=0 // pred_check_branch
    %13 = sbr.rel (0) target = $region13
  $region12: #{transnet_forward.37} parent=0 // pred_region
    _
  $region13: #{transnet_forward.37} parent=0 // pred_fallthru
    _
  %v15 = vld [vmem:[%s0] sm:$0xff]
  %v16 = vld [vmem:[%s0 + $0x8] sm:$0xff]
  %v17 = vld [vmem:[%s0 + $0x10] sm:$0xff]
  %v18 = vld [vmem:[%s0 + $0x18] sm:$0xff]
  %v19 = vld [vmem:[%s0 + $0x20] sm:$0xf]
  %v20 = vld [vmem:[%s0 + $0x24] sm:$0xff]
  %v21 = vld [vmem:[%s0 + $0x2c] sm:$0xff]
  %v22 = vld [vmem:[%s0 + $0x34] sm:$0xff]
  %v23 = vld [vmem:[%s0 + $0x3c] sm:$0xff]
  %v24 = vld [vmem:[%s0 + $0x44] sm:$0xf]
  %v25 = vld [vmem:[%s0 + $0x48] sm:$0xff]
  %v26 = vld [vmem:[%s0 + $0x50] sm:$0xff]
  %v27 = vld [vmem:[%s0 + $0x58] sm:$0xff]
  %v28 = vld [vmem:[%s0 + $0x60] sm:$0xff]
  %v29 = vld [vmem:[%s0 + $0x68] sm:$0xf]
  %v30 = vld [vmem:[%s0 + $0x6c] sm:$0xff]
  %v31 = vld [vmem:[%s0 + $0x74] sm:$0xff]
  %v32 = vld [vmem:[%s0 + $0x7c] sm:$0xff]
  %v33 = vld [vmem:[%s0 + $0x84] sm:$0xff]
  %v34 = vld [vmem:[%s0 + $0x8c] sm:$0xf]
  %v35 = vld [vmem:[%s1] sm:$0xf]
  %v36 = vld [vmem:[%s1 + $0x4] sm:$0xf]
  %v37 = vld [vmem:[%s1 + $0x8] sm:$0xf]
  %v38 = vld [vmem:[%s1 + $0xc] sm:$0xf]
  %v39 = vld [vmem:[%s1 + $0x10] sm:$0xf]
  %v40 = vld [vmem:[%s1 + $0x14] sm:$0xf]
  %v41 = vld [vmem:[%s1 + $0x18] sm:$0xf]
  %v42 = vld [vmem:[%s1 + $0x1c] sm:$0xf]
  %v43 = vld [vmem:[%s1 + $0x20] sm:$0xf]
  %v44 = vld [vmem:[%s1 + $0x24] sm:$0xf]
  %v45 = vld [vmem:[%s1 + $0x28] sm:$0xf]
  %v46 = vld [vmem:[%s1 + $0x2c] sm:$0xf]
  %v47 = vld [vmem:[%s1 + $0x30] sm:$0xf]
  %v48 = vld [vmem:[%s1 + $0x34] sm:$0xf]
  %v49 = vld [vmem:[%s1 + $0x38] sm:$0xf]
  %v50 = vld [vmem:[%s1 + $0x3c] sm:$0xf]
  %v51 = vld [vmem:[%s1 + $0x40] sm:$0xf]
  %v52 = vld [vmem:[%s1 + $0x44] sm:$0xf]
  %v53 = vld [vmem:[%s1 + $0x48] sm:$0xf]
  %v54 = vld [vmem:[%s1 + $0x4c] sm:$0xf]
  %v55 = vld [vmem:[%s1 + $0x50] sm:$0xf]
  %v56 = vld [vmem:[%s1 + $0x54] sm:$0xf]
  %v57 = vld [vmem:[%s1 + $0x58] sm:$0xf]
  %v58 = vld [vmem:[%s1 + $0x5c] sm:$0xf]
  %v59 = vld [vmem:[%s1 + $0x60] sm:$0xf]
  %v60 = vld [vmem:[%s1 + $0x64] sm:$0xf]
  %v61 = vld [vmem:[%s1 + $0x68] sm:$0xf]
  %v62 = vld [vmem:[%s1 + $0x6c] sm:$0xf]
  %v63 = vld [vmem:[%s1 + $0x70] sm:$0xf]
  %v64 = vld [vmem:[%s1 + $0x74] sm:$0xf]
  %v65 = vld [vmem:[%s1 + $0x78] sm:$0xf]
  %v66 = vld [vmem:[%s1 + $0x7c] sm:$0xf]
  %v67 = vld [vmem:[%s1 + $0x80] sm:$0xf]
  %v68 = vld [vmem:[%s1 + $0x84] sm:$0xf]
  %v69 = vld [vmem:[%s1 + $0x88] sm:$0xf]
  %v70 = vld [vmem:[%s1 + $0x8c] sm:$0xf]
  %v71 = vld [vmem:[%s1 + $0x90] sm:$0xf]
  %v72 = vld [vmem:[%s1 + $0x94] sm:$0xf]
  %v73 = vld [vmem:[%s1 + $0x98] sm:$0xf]
  %v74 = vld [vmem:[%s1 + $0x9c] sm:$0xf]
  %v75 = vld [vmem:[%s1 + $0xa0] sm:$0xf]
  %v76 = vld [vmem:[%s1 + $0xa4] sm:$0xf]
  %v77 = vld [vmem:[%s1 + $0xa8] sm:$0xf]
  %v78 = vld [vmem:[%s1 + $0xac] sm:$0xf]
  %v79 = vld [vmem:[%s1 + $0xb0] sm:$0xf]
  %v80 = vld [vmem:[%s1 + $0xb4] sm:$0xf]
  %v81 = vld [vmem:[%s1 + $0xb8] sm:$0xf]
  %v82 = vld [vmem:[%s1 + $0xbc] sm:$0xf]
  %v83 = vld [vmem:[%s1 + $0xc0] sm:$0xf]
  %v84 = vld [vmem:[%s1 + $0xc4] sm:$0xf]
  %v85 = vld [vmem:[%s1 + $0xc8] sm:$0xf]
  %v86 = vld [vmem:[%s1 + $0xcc] sm:$0xf]
  %v87 = vld [vmem:[%s1 + $0xd0] sm:$0xf]
  %v88 = vld [vmem:[%s1 + $0xd4] sm:$0xf]
  %v89 = vld [vmem:[%s1 + $0xd8] sm:$0xf]
  %v90 = vld [vmem:[%s1 + $0xdc] sm:$0xf]
  %v91 = vld [vmem:[%s1 + $0xe0] sm:$0xf]
  %v92 = vld [vmem:[%s1 + $0xe4] sm:$0xf]
  %v93 = vld [vmem:[%s1 + $0xe8] sm:$0xf]
  %v94 = vld [vmem:[%s1 + $0xec] sm:$0xf]
  %v95 = vld [vmem:[%s1 + $0xf0] sm:$0xf]
  %v96 = vld [vmem:[%s1 + $0xf4] sm:$0xf]
  %v97 = vld [vmem:[%s1 + $0xf8] sm:$0xf]
  %v98 = vld [vmem:[%s1 + $0xfc] sm:$0xf]
  %v99 = vld [vmem:[%s1 + $0x100] sm:$0xf]
  %v100 = vld [vmem:[%s1 + $0x104] sm:$0xf]
  %v101 = vld [vmem:[%s1 + $0x108] sm:$0xf]
  %v102 = vld [vmem:[%s1 + $0x10c] sm:$0xf]
  %v103 = vld [vmem:[%s1 + $0x110] sm:$0xf]
  %v104 = vld [vmem:[%s1 + $0x114] sm:$0xf]
  %v105 = vld [vmem:[%s1 + $0x118] sm:$0xf]
  %v106 = vld [vmem:[%s1 + $0x11c] sm:$0xf]
  %v107 = vld [vmem:[%s1 + $0x120] sm:$0xf]
  %v108 = vld [vmem:[%s1 + $0x124] sm:$0xf]
  %v109 = vld [vmem:[%s1 + $0x128] sm:$0xf]
  %v110 = vld [vmem:[%s1 + $0x12c] sm:$0xf]
  %v111 = vld [vmem:[%s1 + $0x130] sm:$0xf]
  %v112 = vld [vmem:[%s1 + $0x134] sm:$0xf]
  %v113 = vld [vmem:[%s1 + $0x138] sm:$0xf]
  %v114 = vld [vmem:[%s1 + $0x13c] sm:$0xf]
  %v115 = vld [vmem:[%s1 + $0x140] sm:$0xf]
  %v116 = vld [vmem:[%s1 + $0x144] sm:$0xf]
  %v117 = vld [vmem:[%s1 + $0x148] sm:$0xf]
  %v118 = vld [vmem:[%s1 + $0x14c] sm:$0xf]
  %v119 = vld [vmem:[%s1 + $0x150] sm:$0xf]
  %v120 = vld [vmem:[%s1 + $0x154] sm:$0xf]
  %v121 = vld [vmem:[%s1 + $0x158] sm:$0xf]
  %v122 = vld [vmem:[%s1 + $0x15c] sm:$0xf]
  %v123 = vld [vmem:[%s1 + $0x160] sm:$0xf]
  %v124 = vld [vmem:[%s1 + $0x164] sm:$0xf]
  %v125 = vld [vmem:[%s1 + $0x168] sm:$0xf]
  %v126 = vld [vmem:[%s1 + $0x16c] sm:$0xf]
  %v127 = vld [vmem:[%s1 + $0x170] sm:$0xf]
  %v128 = vld [vmem:[%s1 + $0x174] sm:$0xf]
  %v129 = vld [vmem:[%s1 + $0x178] sm:$0xf]
  %v130 = vld [vmem:[%s1 + $0x17c] sm:$0xf]
  %v131 = vld [vmem:[%s1 + $0x180] sm:$0xf]
  %v132 = vld [vmem:[%s1 + $0x184] sm:$0xf]
  %v133 = vld [vmem:[%s1 + $0x188] sm:$0xf]
  %v134 = vld [vmem:[%s1 + $0x18c] sm:$0xf]
  %v135 = vld [vmem:[%s1 + $0x190] sm:$0xf]
  %v136 = vld [vmem:[%s1 + $0x194] sm:$0xf]
  %v137 = vld [vmem:[%s1 + $0x198] sm:$0xf]
  %v138 = vld [vmem:[%s1 + $0x19c] sm:$0xf]
  %v139 = vld [vmem:[%s1 + $0x1a0] sm:$0xf]
  %v140 = vld [vmem:[%s1 + $0x1a4] sm:$0xf]
  %v141 = vld [vmem:[%s1 + $0x1a8] sm:$0xf]
  %v142 = vld [vmem:[%s1 + $0x1ac] sm:$0xf]
  %v143 = vld [vmem:[%s1 + $0x1b0] sm:$0xf]
  %v144 = vld [vmem:[%s1 + $0x1b4] sm:$0xf]
  %v145 = vld [vmem:[%s1 + $0x1b8] sm:$0xf]
  %v146 = vld [vmem:[%s1 + $0x1bc] sm:$0xf]
  %v147 = vld [vmem:[%s1 + $0x1c0] sm:$0xf]
  %v148 = vld [vmem:[%s1 + $0x1c4] sm:$0xf]
  %v149 = vld [vmem:[%s1 + $0x1c8] sm:$0xf]
  %v150 = vld [vmem:[%s1 + $0x1cc] sm:$0xf]
  %v151 = vld [vmem:[%s1 + $0x1d0] sm:$0xf]
  %v152 = vld [vmem:[%s1 + $0x1d4] sm:$0xf]
  %v153 = vld [vmem:[%s1 + $0x1d8] sm:$0xf]
  %v154 = vld [vmem:[%s1 + $0x1dc] sm:$0xf]
  %v155 = vld [vmem:[%s1 + $0x1e0] sm:$0xf]
  %v156 = vld [vmem:[%s1 + $0x1e4] sm:$0xf]
  %v157 = vld [vmem:[%s1 + $0x1e8] sm:$0xf]
  %v158 = vld [vmem:[%s1 + $0x1ec] sm:$0xf]
  %v159 = vld [vmem:[%s1 + $0x1f0] sm:$0xf]
  %v160 = vld [vmem:[%s1 + $0x1f4] sm:$0xf]
  %v161 = vld [vmem:[%s1 + $0x1f8] sm:$0xf]
  %v162 = vld [vmem:[%s1 + $0x1fc] sm:$0xf]
  %v163 = vld [vmem:[%s1 + $0x200] sm:$0xf]
  %v164 = vld [vmem:[%s1 + $0x204] sm:$0xf]
  %v165 = vld [vmem:[%s1 + $0x208] sm:$0xf]
  %v166 = vld [vmem:[%s1 + $0x20c] sm:$0xf]
  %v167 = vld [vmem:[%s1 + $0x210] sm:$0xf]
  %v168 = vld [vmem:[%s1 + $0x214] sm:$0xf]
  %v169 = vld [vmem:[%s1 + $0x218] sm:$0xf]
  %v170 = vld [vmem:[%s1 + $0x21c] sm:$0xf]
  %v171 = vld [vmem:[%s1 + $0x220] sm:$0xf]
  %v172 = vld [vmem:[%s1 + $0x224] sm:$0xf]
  %v173 = vld [vmem:[%s1 + $0x228] sm:$0xf]
  %v174 = vld [vmem:[%s1 + $0x22c] sm:$0xf]
  %v175 = vld [vmem:[%s1 + $0x230] sm:$0xf]
  %v176 = vld [vmem:[%s1 + $0x234] sm:$0xf]
  %v177 = vld [vmem:[%s1 + $0x238] sm:$0xf]
  %v178 = vld [vmem:[%s1 + $0x23c] sm:$0xf]
  %v179 = vld [vmem:[%s2] sm:$0x1]
  %v181 = vlaneseq
  %v182 = vshrl.u32 %v181, 7
  %v183 = vsub.s32 0, %v182
  %v184 = vrot.slane %v179, %v183
  %v206 = vunpack.c.l.b16 %v15
  %v207 = vunpack.c.h.b16 %v15
  %v208 = vunpack.c.l.b16 %v16
  %v209 = vunpack.c.h.b16 %v16
  %v210 = vunpack.c.l.b16 %v17
  %v211 = vunpack.c.h.b16 %v17
  %v212 = vunpack.c.l.b16 %v18
  %v213 = vunpack.c.h.b16 %v18
  %v214 = vunpack.c.l.b16 %v19
  %v215 = vunpack.c.l.b16 %v20
  %v216 = vunpack.c.h.b16 %v20
  %v217 = vunpack.c.l.b16 %v21
  %v218 = vunpack.c.h.b16 %v21
  %v219 = vunpack.c.l.b16 %v22
  %v220 = vunpack.c.h.b16 %v22
  %v221 = vunpack.c.l.b16 %v23
  %v222 = vunpack.c.h.b16 %v23
  %v223 = vunpack.c.l.b16 %v24
  %v224 = vunpack.c.l.b16 %v25
  %v225 = vunpack.c.h.b16 %v25
  %v226 = vunpack.c.l.b16 %v26
  %v227 = vunpack.c.h.b16 %v26
  %v228 = vunpack.c.l.b16 %v27
  %v229 = vunpack.c.h.b16 %v27
  %v230 = vunpack.c.l.b16 %v28
  %v231 = vunpack.c.h.b16 %v28
  %v232 = vunpack.c.l.b16 %v29
  %v233 = vunpack.c.l.b16 %v30
  %v234 = vunpack.c.h.b16 %v30
  %v235 = vunpack.c.l.b16 %v31
  %v236 = vunpack.c.h.b16 %v31
  %v237 = vunpack.c.l.b16 %v32
  %v238 = vunpack.c.h.b16 %v32
  %v239 = vunpack.c.l.b16 %v33
  %v240 = vunpack.c.h.b16 %v33
  %v241 = vunpack.c.l.b16 %v34
  %v242 = vpack.c.b16 %v215, %v206
  %v243 = vpack.c.b16 %v216, %v207
  %v244 = vpack.c.b16 %v217, %v208
  %v245 = vpack.c.b16 %v218, %v209
  %v246 = vpack.c.b16 %v219, %v210
  %v247 = vpack.c.b16 %v220, %v211
  %v248 = vpack.c.b16 %v221, %v212
  %v249 = vpack.c.b16 %v222, %v213
  %v250 = vpack.c.b16 %v223, %v214
  %v251 = vpack.c.b16 %v233, %v224
  %v252 = vpack.c.b16 %v234, %v225
  %v253 = vpack.c.b16 %v235, %v226
  %v254 = vpack.c.b16 %v236, %v227
  %v255 = vpack.c.b16 %v237, %v228
  %v256 = vpack.c.b16 %v238, %v229
  %v257 = vpack.c.b16 %v239, %v230
  %v258 = vpack.c.b16 %v240, %v231
  %v259 = vpack.c.b16 %v241, %v232
  %v422 = vunpack.c.l.b16 %v35
  %v423 = vunpack.c.l.b16 %v36
  %v424 = vunpack.c.l.b16 %v37
  %v425 = vunpack.c.l.b16 %v38
  %v426 = vunpack.c.l.b16 %v39
  %v427 = vunpack.c.l.b16 %v40
  %v428 = vunpack.c.l.b16 %v41
  %v429 = vunpack.c.l.b16 %v42
  %v430 = vunpack.c.l.b16 %v43
  %v431 = vunpack.c.l.b16 %v44
  %v432 = vunpack.c.l.b16 %v45
  %v433 = vunpack.c.l.b16 %v46
  %v434 = vunpack.c.l.b16 %v47
  %v435 = vunpack.c.l.b16 %v48
  %v436 = vunpack.c.l.b16 %v49
  %v437 = vunpack.c.l.b16 %v50
  %v438 = vunpack.c.l.b16 %v51
  %v439 = vunpack.c.l.b16 %v52
  %v440 = vunpack.c.l.b16 %v53
  %v441 = vunpack.c.l.b16 %v54
  %v442 = vunpack.c.l.b16 %v55
  %v443 = vunpack.c.l.b16 %v56
  %v444 = vunpack.c.l.b16 %v57
  %v445 = vunpack.c.l.b16 %v58
  %v446 = vunpack.c.l.b16 %v59
  %v447 = vunpack.c.l.b16 %v60
  %v448 = vunpack.c.l.b16 %v61
  %v449 = vunpack.c.l.b16 %v62
  %v450 = vunpack.c.l.b16 %v63
  %v451 = vunpack.c.l.b16 %v64
  %v452 = vunpack.c.l.b16 %v65
  %v453 = vunpack.c.l.b16 %v66
  %v454 = vunpack.c.l.b16 %v67
  %v455 = vunpack.c.l.b16 %v68
  %v456 = vunpack.c.l.b16 %v69
  %v457 = vunpack.c.l.b16 %v70
  %v458 = vunpack.c.l.b16 %v71
  %v459 = vunpack.c.l.b16 %v72
  %v460 = vunpack.c.l.b16 %v73
  %v461 = vunpack.c.l.b16 %v74
  %v462 = vunpack.c.l.b16 %v75
  %v463 = vunpack.c.l.b16 %v76
  %v464 = vunpack.c.l.b16 %v77
  %v465 = vunpack.c.l.b16 %v78
  %v466 = vunpack.c.l.b16 %v79
  %v467 = vunpack.c.l.b16 %v80
  %v468 = vunpack.c.l.b16 %v81
  %v469 = vunpack.c.l.b16 %v82
  %v470 = vunpack.c.l.b16 %v83
  %v471 = vunpack.c.l.b16 %v84
  %v472 = vunpack.c.l.b16 %v85
  %v473 = vunpack.c.l.b16 %v86
  %v474 = vunpack.c.l.b16 %v87
  %v475 = vunpack.c.l.b16 %v88
  %v476 = vunpack.c.l.b16 %v89
  %v477 = vunpack.c.l.b16 %v90
  %v478 = vunpack.c.l.b16 %v91
  %v479 = vunpack.c.l.b16 %v92
  %v480 = vunpack.c.l.b16 %v93
  %v481 = vunpack.c.l.b16 %v94
  %v482 = vunpack.c.l.b16 %v95
  %v483 = vunpack.c.l.b16 %v96
  %v484 = vunpack.c.l.b16 %v97
  %v485 = vunpack.c.l.b16 %v98
  %v486 = vunpack.c.l.b16 %v99
  %v487 = vunpack.c.l.b16 %v100
  %v488 = vunpack.c.l.b16 %v101
  %v489 = vunpack.c.l.b16 %v102
  %v490 = vunpack.c.l.b16 %v103
  %v491 = vunpack.c.l.b16 %v104
  %v492 = vunpack.c.l.b16 %v105
  %v493 = vunpack.c.l.b16 %v106
  %v494 = vunpack.c.l.b16 %v107
  %v495 = vunpack.c.l.b16 %v108
  %v496 = vunpack.c.l.b16 %v109
  %v497 = vunpack.c.l.b16 %v110
  %v498 = vunpack.c.l.b16 %v111
  %v499 = vunpack.c.l.b16 %v112
  %v500 = vunpack.c.l.b16 %v113
  %v501 = vunpack.c.l.b16 %v114
  %v502 = vunpack.c.l.b16 %v115
  %v503 = vunpack.c.l.b16 %v116
  %v504 = vunpack.c.l.b16 %v117
  %v505 = vunpack.c.l.b16 %v118
  %v506 = vunpack.c.l.b16 %v119
  %v507 = vunpack.c.l.b16 %v120
  %v508 = vunpack.c.l.b16 %v121
  %v509 = vunpack.c.l.b16 %v122
  %v510 = vunpack.c.l.b16 %v123
  %v511 = vunpack.c.l.b16 %v124
  %v512 = vunpack.c.l.b16 %v125
  %v513 = vunpack.c.l.b16 %v126
  %v514 = vunpack.c.l.b16 %v127
  %v515 = vunpack.c.l.b16 %v128
  %v516 = vunpack.c.l.b16 %v129
  %v517 = vunpack.c.l.b16 %v130
  %v518 = vunpack.c.l.b16 %v131
  %v519 = vunpack.c.l.b16 %v132
  %v520 = vunpack.c.l.b16 %v133
  %v521 = vunpack.c.l.b16 %v134
  %v522 = vunpack.c.l.b16 %v135
  %v523 = vunpack.c.l.b16 %v136
  %v524 = vunpack.c.l.b16 %v137
  %v525 = vunpack.c.l.b16 %v138
  %v526 = vunpack.c.l.b16 %v139
  %v527 = vunpack.c.l.b16 %v140
  %v528 = vunpack.c.l.b16 %v141
  %v529 = vunpack.c.l.b16 %v142
  %v530 = vunpack.c.l.b16 %v143
  %v531 = vunpack.c.l.b16 %v144
  %v532 = vunpack.c.l.b16 %v145
  %v533 = vunpack.c.l.b16 %v146
  %v534 = vunpack.c.l.b16 %v147
  %v535 = vunpack.c.l.b16 %v148
  %v536 = vunpack.c.l.b16 %v149
  %v537 = vunpack.c.l.b16 %v150
  %v538 = vunpack.c.l.b16 %v151
  %v539 = vunpack.c.l.b16 %v152
  %v540 = vunpack.c.l.b16 %v153
  %v541 = vunpack.c.l.b16 %v154
  %v542 = vunpack.c.l.b16 %v155
  %v543 = vunpack.c.l.b16 %v156
  %v544 = vunpack.c.l.b16 %v157
  %v545 = vunpack.c.l.b16 %v158
  %v546 = vunpack.c.l.b16 %v159
  %v547 = vunpack.c.l.b16 %v160
  %v548 = vunpack.c.l.b16 %v161
  %v549 = vunpack.c.l.b16 %v162
  %v550 = vunpack.c.l.b16 %v163
  %v551 = vunpack.c.l.b16 %v164
  %v552 = vunpack.c.l.b16 %v165
  %v553 = vunpack.c.l.b16 %v166
  %v554 = vunpack.c.l.b16 %v167
  %v555 = vunpack.c.l.b16 %v168
  %v556 = vunpack.c.l.b16 %v169
  %v557 = vunpack.c.l.b16 %v170
  %v558 = vunpack.c.l.b16 %v171
  %v559 = vunpack.c.l.b16 %v172
  %v560 = vunpack.c.l.b16 %v173
  %v561 = vunpack.c.l.b16 %v174
  %v562 = vunpack.c.l.b16 %v175
  %v563 = vunpack.c.l.b16 %v176
  %v564 = vunpack.c.l.b16 %v177
  %v565 = vunpack.c.l.b16 %v178
  %v566 = vpack.c.b16 %v423, %v422
  %v567 = vpack.c.b16 %v425, %v424
  %v568 = vpack.c.b16 %v427, %v426
  %v569 = vpack.c.b16 %v429, %v428
  %v570 = vpack.c.b16 %v431, %v430
  %v571 = vpack.c.b16 %v433, %v432
  %v572 = vpack.c.b16 %v435, %v434
  %v573 = vpack.c.b16 %v437, %v436
  %v574 = vpack.c.b16 %v439, %v438
  %v575 = vpack.c.b16 %v441, %v440
  %v576 = vpack.c.b16 %v443, %v442
  %v577 = vpack.c.b16 %v445, %v444
  %v578 = vpack.c.b16 %v447, %v446
  %v579 = vpack.c.b16 %v449, %v448
  %v580 = vpack.c.b16 %v451, %v450
  %v581 = vpack.c.b16 %v453, %v452
  %v582 = vpack.c.b16 %v455, %v454
  %v583 = vpack.c.b16 %v457, %v456
  %v584 = vpack.c.b16 %v459, %v458
  %v585 = vpack.c.b16 %v461, %v460
  %v586 = vpack.c.b16 %v463, %v462
  %v587 = vpack.c.b16 %v465, %v464
  %v588 = vpack.c.b16 %v467, %v466
  %v589 = vpack.c.b16 %v469, %v468
  %v590 = vpack.c.b16 %v471, %v470
  %v591 = vpack.c.b16 %v473, %v472
  %v592 = vpack.c.b16 %v475, %v474
  %v593 = vpack.c.b16 %v477, %v476
  %v594 = vpack.c.b16 %v479, %v478
  %v595 = vpack.c.b16 %v481, %v480
  %v596 = vpack.c.b16 %v483, %v482
  %v597 = vpack.c.b16 %v485, %v484
  %v598 = vpack.c.b16 %v487, %v486
  %v599 = vpack.c.b16 %v489, %v488
  %v600 = vpack.c.b16 %v491, %v490
  %v601 = vpack.c.b16 %v493, %v492
  %v602 = vpack.c.b16 %v495, %v494
  %v603 = vpack.c.b16 %v497, %v496
  %v604 = vpack.c.b16 %v499, %v498
  %v605 = vpack.c.b16 %v501, %v500
  %v606 = vpack.c.b16 %v503, %v502
  %v607 = vpack.c.b16 %v505, %v504
  %v608 = vpack.c.b16 %v507, %v506
  %v609 = vpack.c.b16 %v509, %v508
  %v610 = vpack.c.b16 %v511, %v510
  %v611 = vpack.c.b16 %v513, %v512
  %v612 = vpack.c.b16 %v515, %v514
  %v613 = vpack.c.b16 %v517, %v516
  %v614 = vpack.c.b16 %v519, %v518
  %v615 = vpack.c.b16 %v521, %v520
  %v616 = vpack.c.b16 %v523, %v522
  %v617 = vpack.c.b16 %v525, %v524
  %v618 = vpack.c.b16 %v527, %v526
  %v619 = vpack.c.b16 %v529, %v528
  %v620 = vpack.c.b16 %v531, %v530
  %v621 = vpack.c.b16 %v533, %v532
  %v622 = vpack.c.b16 %v535, %v534
  %v623 = vpack.c.b16 %v537, %v536
  %v624 = vpack.c.b16 %v539, %v538
  %v625 = vpack.c.b16 %v541, %v540
  %v626 = vpack.c.b16 %v543, %v542
  %v627 = vpack.c.b16 %v545, %v544
  %v628 = vpack.c.b16 %v547, %v546
  %v629 = vpack.c.b16 %v549, %v548
  %v630 = vpack.c.b16 %v551, %v550
  %v631 = vpack.c.b16 %v553, %v552
  %v632 = vpack.c.b16 %v555, %v554
  %v633 = vpack.c.b16 %v557, %v556
  %v634 = vpack.c.b16 %v559, %v558
  %v635 = vpack.c.b16 %v561, %v560
  %v636 = vpack.c.b16 %v563, %v562
  %v637 = vpack.c.b16 %v565, %v564
  %710 = vmatprep.subr.bf16.mxu0 0
  %711 = vmatpush1.bf16.msra.mxu0 %v566
  %712 = vmatprep.subr.bf16.mxu0 0
  %713 = vmatpush1.bf16.msra.mxu0 %v567
  %714 = vmatprep.subr.bf16.mxu0 0
  %715 = vmatpush1.bf16.msra.mxu0 %v568
  %716 = vmatprep.subr.bf16.mxu0 0
  %717 = vmatpush1.bf16.msra.mxu0 %v569
  %718 = vmatprep.subr.bf16.mxu0 0
  %719 = vmatpush1.bf16.msra.mxu0 %v570
  %720 = vmatprep.subr.bf16.mxu0 0
  %721 = vmatpush1.bf16.msra.mxu0 %v571
  %722 = vmatprep.subr.bf16.mxu0 0
  %723 = vmatpush1.bf16.msra.mxu0 %v572
  %724 = vmatprep.subr.bf16.mxu0 0
  %725 = vmatpush1.bf16.msra.mxu0 %v573
  %726 = vmatprep.subr.bf16.mxu0 0
  %727 = vmatpush1.bf16.msra.mxu0 %v574
  %728 = vmatprep.subr.bf16.mxu0 0
  %729 = vmatpush1.bf16.msra.mxu0 %v575
  %730 = vmatprep.subr.bf16.mxu0 0
  %731 = vmatpush1.bf16.msra.mxu0 %v576
  %732 = vmatprep.subr.bf16.mxu0 0
  %733 = vmatpush1.bf16.msra.mxu0 %v577
  %734 = vmatprep.subr.bf16.mxu0 0
  %735 = vmatpush1.bf16.msra.mxu0 %v578
  %736 = vmatprep.subr.bf16.mxu0 0
  %737 = vmatpush1.bf16.msra.mxu0 %v579
  %738 = vmatprep.subr.bf16.mxu0 0
  %739 = vmatpush1.bf16.msra.mxu0 %v580
  %740 = vmatprep.subr.bf16.mxu0 0
  %741 = vmatpush1.bf16.msra.mxu0 %v581
  %742 = vmatprep.mubr.bf16.mxu0 %v243
  %743 = vmatmul.mubr.bf16.gmra.mrb[0].mxu0 %v242
  %v744 = vpop.f32.mrb[0].mxu0
  %v745 = vadd.f32 %v184, %v744
  %v746 = vpop.f32.mrb[0].mxu0
  %v747 = vpop.f32.mrb[0].mxu0
  %v748 = vadd.f32 %v184, %v747
  %v749 = vpop.f32.mrb[0].mxu0
  %750 = vmatprep.mubr.bf16.mxu0 %v252
  %751 = vmatmul.mubr.bf16.gmra.mrb[0].mxu0 %v251
  %v752 = vpop.f32.mrb[0].mxu0
  %v753 = vadd.f32 %v184, %v752
  %v754 = vpop.f32.mrb[0].mxu0
  %v755 = vpop.f32.mrb[0].mxu0
  %v756 = vadd.f32 %v184, %v755
  %v757 = vpop.f32.mrb[0].mxu0
  %758 = vdwg.mxu0
  %759 = vmatprep.subr.bf16.mxu0 0
  %760 = vmatpush1.bf16.msra.mxu0 %v582
  %761 = vmatprep.subr.bf16.mxu0 0
  %762 = vmatpush1.bf16.msra.mxu0 %v583
  %763 = vmatprep.subr.bf16.mxu0 0
  %764 = vmatpush1.bf16.msra.mxu0 %v584
  %765 = vmatprep.subr.bf16.mxu0 0
  %766 = vmatpush1.bf16.msra.mxu0 %v585
  %767 = vmatprep.subr.bf16.mxu0 0
  %768 = vmatpush1.bf16.msra.mxu0 %v586
  %769 = vmatprep.subr.bf16.mxu0 0
  %770 = vmatpush1.bf16.msra.mxu0 %v587
  %771 = vmatprep.subr.bf16.mxu0 0
  %772 = vmatpush1.bf16.msra.mxu0 %v588
  %773 = vmatprep.subr.bf16.mxu0 0
  %774 = vmatpush1.bf16.msra.mxu0 %v589
  %775 = vmatprep.subr.bf16.mxu0 0
  %776 = vmatpush1.bf16.msra.mxu0 %v590
  %777 = vmatprep.subr.bf16.mxu0 0
  %778 = vmatpush1.bf16.msra.mxu0 %v591
  %779 = vmatprep.subr.bf16.mxu0 0
  %780 = vmatpush1.bf16.msra.mxu0 %v592
  %781 = vmatprep.subr.bf16.mxu0 0
  %782 = vmatpush1.bf16.msra.mxu0 %v593
  %783 = vmatprep.subr.bf16.mxu0 0
  %784 = vmatpush1.bf16.msra.mxu0 %v594
  %785 = vmatprep.subr.bf16.mxu0 0
  %786 = vmatpush1.bf16.msra.mxu0 %v595
  %787 = vmatprep.subr.bf16.mxu0 0
  %788 = vmatpush1.bf16.msra.mxu0 %v596
  %789 = vmatprep.subr.bf16.mxu0 0
  %790 = vmatpush1.bf16.msra.mxu0 %v597
  %791 = vmatprep.mubr.bf16.mxu0 %v245
  %792 = vmatmul.mubr.bf16.gmra.mrb[0].mxu0 %v244
  %v793 = vpop.f32.mrb[0].mxu0
  %v794 = vadd.f32 %v745, %v793
  %v795 = vpop.f32.mrb[0].mxu0
  %v796 = vpop.f32.mrb[0].mxu0
  %v797 = vadd.f32 %v748, %v796
  %v798 = vpop.f32.mrb[0].mxu0
  %799 = vmatprep.mubr.bf16.mxu0 %v254
  %800 = vmatmul.mubr.bf16.gmra.mrb[0].mxu0 %v253
  %v801 = vpop.f32.mrb[0].mxu0
  %v802 = vadd.f32 %v753, %v801
  %v803 = vpop.f32.mrb[0].mxu0
  %v804 = vpop.f32.mrb[0].mxu0
  %v805 = vadd.f32 %v756, %v804
  %v806 = vpop.f32.mrb[0].mxu0
  %807 = vdwg.mxu0
  %808 = vmatprep.subr.bf16.mxu0 0
  %809 = vmatpush1.bf16.msra.mxu0 %v598
  %810 = vmatprep.subr.bf16.mxu0 0
  %811 = vmatpush1.bf16.msra.mxu0 %v599
  %812 = vmatprep.subr.bf16.mxu0 0
  %813 = vmatpush1.bf16.msra.mxu0 %v600
  %814 = vmatprep.subr.bf16.mxu0 0
  %815 = vmatpush1.bf16.msra.mxu0 %v601
  %816 = vmatprep.subr.bf16.mxu0 0
  %817 = vmatpush1.bf16.msra.mxu0 %v602
  %818 = vmatprep.subr.bf16.mxu0 0
  %819 = vmatpush1.bf16.msra.mxu0 %v603
  %820 = vmatprep.subr.bf16.mxu0 0
  %821 = vmatpush1.bf16.msra.mxu0 %v604
  %822 = vmatprep.subr.bf16.mxu0 0
  %823 = vmatpush1.bf16.msra.mxu0 %v605
  %824 = vmatprep.subr.bf16.mxu0 0
  %825 = vmatpush1.bf16.msra.mxu0 %v606
  %826 = vmatprep.subr.bf16.mxu0 0
  %827 = vmatpush1.bf16.msra.mxu0 %v607
  %828 = vmatprep.subr.bf16.mxu0 0
  %829 = vmatpush1.bf16.msra.mxu0 %v608
  %830 = vmatprep.subr.bf16.mxu0 0
  %831 = vmatpush1.bf16.msra.mxu0 %v609
  %832 = vmatprep.subr.bf16.mxu0 0
  %833 = vmatpush1.bf16.msra.mxu0 %v610
  %834 = vmatprep.subr.bf16.mxu0 0
  %835 = vmatpush1.bf16.msra.mxu0 %v611
  %836 = vmatprep.subr.bf16.mxu0 0
  %837 = vmatpush1.bf16.msra.mxu0 %v612
  %838 = vmatprep.subr.bf16.mxu0 0
  %839 = vmatpush1.bf16.msra.mxu0 %v613
  %840 = vmatprep.mubr.bf16.mxu0 %v247
  %841 = vmatmul.mubr.bf16.gmra.mrb[0].mxu0 %v246
  %v842 = vpop.f32.mrb[0].mxu0
  %v843 = vadd.f32 %v794, %v842
  %v844 = vpop.f32.mrb[0].mxu0
  %v845 = vpop.f32.mrb[0].mxu0
  %v846 = vadd.f32 %v797, %v845
  %v847 = vpop.f32.mrb[0].mxu0
  %848 = vmatprep.mubr.bf16.mxu0 %v256
  %849 = vmatmul.mubr.bf16.gmra.mrb[0].mxu0 %v255
  %v850 = vpop.f32.mrb[0].mxu0
  %v851 = vadd.f32 %v802, %v850
  %v852 = vpop.f32.mrb[0].mxu0
  %v853 = vpop.f32.mrb[0].mxu0
  %v854 = vadd.f32 %v805, %v853
  %v855 = vpop.f32.mrb[0].mxu0
  %856 = vdwg.mxu0
  %857 = vmatprep.subr.bf16.mxu0 0
  %858 = vmatpush1.bf16.msra.mxu0 %v614
  %859 = vmatprep.subr.bf16.mxu0 0
  %860 = vmatpush1.bf16.msra.mxu0 %v615
  %861 = vmatprep.subr.bf16.mxu0 0
  %862 = vmatpush1.bf16.msra.mxu0 %v616
  %863 = vmatprep.subr.bf16.mxu0 0
  %864 = vmatpush1.bf16.msra.mxu0 %v617
  %865 = vmatprep.subr.bf16.mxu0 0
  %866 = vmatpush1.bf16.msra.mxu0 %v618
  %867 = vmatprep.subr.bf16.mxu0 0
  %868 = vmatpush1.bf16.msra.mxu0 %v619
  %869 = vmatprep.subr.bf16.mxu0 0
  %870 = vmatpush1.bf16.msra.mxu0 %v620
  %871 = vmatprep.subr.bf16.mxu0 0
  %872 = vmatpush1.bf16.msra.mxu0 %v621
  %873 = vmatprep.subr.bf16.mxu0 0
  %874 = vmatpush1.bf16.msra.mxu0 %v622
  %875 = vmatprep.subr.bf16.mxu0 0
  %876 = vmatpush1.bf16.msra.mxu0 %v623
  %877 = vmatprep.subr.bf16.mxu0 0
  %878 = vmatpush1.bf16.msra.mxu0 %v624
  %879 = vmatprep.subr.bf16.mxu0 0
  %880 = vmatpush1.bf16.msra.mxu0 %v625
  %881 = vmatprep.subr.bf16.mxu0 0
  %882 = vmatpush1.bf16.msra.mxu0 %v626
  %883 = vmatprep.subr.bf16.mxu0 0
  %884 = vmatpush1.bf16.msra.mxu0 %v627
  %885 = vmatprep.subr.bf16.mxu0 0
  %886 = vmatpush1.bf16.msra.mxu0 %v628
  %887 = vmatprep.subr.bf16.mxu0 0
  %888 = vmatpush1.bf16.msra.mxu0 %v629
  %889 = vmatprep.mubr.bf16.mxu0 %v249
  %890 = vmatmul.mubr.bf16.gmra.mrb[0].mxu0 %v248
  %v891 = vpop.f32.mrb[0].mxu0
  %v892 = vadd.f32 %v843, %v891
  %v893 = vpop.f32.mrb[0].mxu0
  %v894 = vpop.f32.mrb[0].mxu0
  %v895 = vadd.f32 %v846, %v894
  %v896 = vpop.f32.mrb[0].mxu0
  %897 = vmatprep.mubr.bf16.mxu0 %v258
  %898 = vmatmul.mubr.bf16.gmra.mrb[0].mxu0 %v257
  %v899 = vpop.f32.mrb[0].mxu0
  %v900 = vadd.f32 %v851, %v899
  %v901 = vpop.f32.mrb[0].mxu0
  %v902 = vpop.f32.mrb[0].mxu0
  %v903 = vadd.f32 %v854, %v902
  %v904 = vpop.f32.mrb[0].mxu0
  %905 = vdwg.mxu0
  %906 = vmatprep.subr.bf16.mxu0 0
  %907 = vmatpush1.bf16.msra.mxu0 %v630
  %908 = vmatprep.subr.bf16.mxu0 0
  %909 = vmatpush1.bf16.msra.mxu0 %v631
  %910 = vmatprep.subr.bf16.mxu0 0
  %911 = vmatpush1.bf16.msra.mxu0 %v632
  %912 = vmatprep.subr.bf16.mxu0 0
  %913 = vmatpush1.bf16.msra.mxu0 %v633
  %914 = vmatprep.subr.bf16.mxu0 0
  %915 = vmatpush1.bf16.msra.mxu0 %v634
  %916 = vmatprep.subr.bf16.mxu0 0
  %917 = vmatpush1.bf16.msra.mxu0 %v635
  %918 = vmatprep.subr.bf16.mxu0 0
  %919 = vmatpush1.bf16.msra.mxu0 %v636
  %920 = vmatprep.subr.bf16.mxu0 0
  %921 = vmatpush1.bf16.msra.mxu0 %v637
  %922 = vmatprep.subr.bf16.mxu0 0
  %923 = vmatpush1.bf16.msra.mxu0 0
  %924 = vmatprep.subr.bf16.mxu0 0
  %925 = vmatpush1.bf16.msra.mxu0 0
  %926 = vmatprep.subr.bf16.mxu0 0
  %927 = vmatpush1.bf16.msra.mxu0 0
  %928 = vmatprep.subr.bf16.mxu0 0
  %929 = vmatpush1.bf16.msra.mxu0 0
  %930 = vmatprep.subr.bf16.mxu0 0
  %931 = vmatpush1.bf16.msra.mxu0 0
  %932 = vmatprep.subr.bf16.mxu0 0
  %933 = vmatpush1.bf16.msra.mxu0 0
  %934 = vmatprep.subr.bf16.mxu0 0
  %935 = vmatpush1.bf16.msra.mxu0 0
  %936 = vmatprep.subr.bf16.mxu0 0
  %937 = vmatpush1.bf16.msra.mxu0 0
  %938 = vmatprep.mubr.bf16.mxu0 0
  %939 = vmatmul.mubr.bf16.gmra.mrb[0].mxu0 %v250
  %v940 = vpop.f32.mrb[0].mxu0
  %v941 = vadd.f32 %v892, %v940
  %v942 = vpop.f32.mrb[0].mxu0
  %v943 = vpop.f32.mrb[0].mxu0
  %v944 = vadd.f32 %v895, %v943
  %v945 = vpop.f32.mrb[0].mxu0
  %946 = vmatprep.mubr.bf16.mxu0 0
  %947 = vmatmul.mubr.bf16.gmra.mrb[0].mxu0 %v259
  %v948 = vpop.f32.mrb[0].mxu0
  %v949 = vadd.f32 %v900, %v948
  %v950 = vpop.f32.mrb[0].mxu0
  %v951 = vpop.f32.mrb[0].mxu0
  %v952 = vadd.f32 %v903, %v951
  %v953 = vpop.f32.mrb[0].mxu0
  %954 = vdwg.mxu0
  %955 = vst [vmem:[%s3] sm:$0xff] %v941
  %956 = vst [vmem:[%s3 + $0x8] sm:$0xff] %v944
  %957 = vst [vmem:[%s3 + $0x10] sm:$0xff] %v949
  %958 = vst [vmem:[%s3 + $0x18] sm:$0xff] %v952
  // Predicated region
  $region14: #{transnet_forward.37} parent=0 // pred_check
    _
  $region15: #{transnet_forward.37} parent=0 // pred_check_branch
    %960 = sbr.rel (0) target = $region17
  $region16: #{transnet_forward.37} parent=0 // pred_region
    _
  $region17: #{transnet_forward.37} parent=0 // pred_fallthru
    _
  // Predicated region
  $region18: #{transnet_forward.37} parent=0 // pred_check
    _
  $region19: #{transnet_forward.37} parent=0 // pred_check_branch
    %962 = sbr.rel (0) target = $region21
  $region20: #{transnet_forward.37} parent=0 // pred_region
    _
  $region21: #{transnet_forward.37} parent=0 // pred_fallthru
    _

// kernel: transnet_forward.57
$region0: #{transnet_forward.57}
  #allocation0 [shape = 'u32[]', space=smem, size = 0x4, offset = 0x4, fixed_abs, tag = 'smem constant byte address 0x4 - core index']
  #allocation1 [shape = 'u32[144,128]{1,0:T(1,128)}', space=vmem, size = 0x12000, scoped, tag = 'internal scratch']
  %s0 = inlined_call_operand.vmem [shape: bf16[128,1152], index: 0, kind: input, shape index: {}]
  %s1 = inlined_call_operand.vmem [shape: bf16[1152,128], index: 1, kind: input, shape index: {}]
  %s2 = inlined_call_operand.vmem [shape: f32[1,128], index: 2, kind: input, shape index: {}]
  %s3 = inlined_call_operand.vmem [shape: f32[128,128], index: 3, kind: output, shape index: {}]
  %s4 = sld [smem:[#allocation0]]
  $region22: #{transnet_forward.57} parent=0
    _
  %s6 = ssub.s32 1, %s4
  %s7 = scalar_select 0, %s6, %s4
  // Predicated region
  $region2: #{transnet_forward.57} parent=0 // pred_check
    _
  $region3: #{transnet_forward.57} parent=0 // pred_check_branch
    %9 = sbr.rel (0) target = $region5
  $region4: #{transnet_forward.57} parent=0 // pred_region
    _
  $region5: #{transnet_forward.57} parent=0 // pred_fallthru
    _
  // Predicated region
  $region6: #{transnet_forward.57} parent=0 // pred_check
    _
  $region7: #{transnet_forward.57} parent=0 // pred_check_branch
    %11 = sbr.rel (0) target = $region9
  $region8: #{transnet_forward.57} parent=0 // pred_region
    _
  $region9: #{transnet_forward.57} parent=0 // pred_fallthru
    _
  // Predicated region
  $region10: #{transnet_forward.57} parent=0 // pred_check
    _
  $region11: #{transnet_forward.57} parent=0 // pred_check_branch
    %13 = sbr.rel (0) target = $region13
  $region12: #{transnet_forward.57} parent=0 // pred_region
    _
  $region13: #{transnet_forward.57} parent=0 // pred_fallthru
    _
  %v15 = vld [vmem:[%s0] sm:$0xff]
  %v16 = vld [vmem:[%s0 + $0x8] sm:$0xff]
  %v17 = vld [vmem:[%s0 + $0x10] sm:$0xff]
  %v18 = vld [vmem:[%s0 + $0x18] sm:$0xff]
  %v19 = vld [vmem:[%s0 + $0x20] sm:$0xf]
  %v20 = vld [vmem:[%s0 + $0x24] sm:$0xff]
  %v21 = vld [vmem:[%s0 + $0x2c] sm:$0xff]
  %v22 = vld [vmem:[%s0 + $0x34] sm:$0xff]
  %v23 = vld [vmem:[%s0 + $0x3c] sm:$0xff]
  %v24 = vld [vmem:[%s0 + $0x44] sm:$0xf]
  %v25 = vld [vmem:[%s0 + $0x48] sm:$0xff]
  %v26 = vld [vmem:[%s0 + $0x50] sm:$0xff]
  %v27 = vld [vmem:[%s0 + $0x58] sm:$0xff]
  %v28 = vld [vmem:[%s0 + $0x60] sm:$0xff]
  %v29 = vld [vmem:[%s0 + $0x68] sm:$0xf]
  %v30 = vld [vmem:[%s0 + $0x6c] sm:$0xff]
  %v31 = vld [vmem:[%s0 + $0x74] sm:$0xff]
  %v32 = vld [vmem:[%s0 + $0x7c] sm:$0xff]
  %v33 = vld [vmem:[%s0 + $0x84] sm:$0xff]
  %v34 = vld [vmem:[%s0 + $0x8c] sm:$0xf]
  %v35 = vld [vmem:[%s0 + $0x90] sm:$0xff]
  %v36 = vld [vmem:[%s0 + $0x98] sm:$0xff]
  %v37 = vld [vmem:[%s0 + $0xa0] sm:$0xff]
  %v38 = vld [vmem:[%s0 + $0xa8] sm:$0xff]
  %v39 = vld [vmem:[%s0 + $0xb0] sm:$0xf]
  %v40 = vld [vmem:[%s0 + $0xb4] sm:$0xff]
  %v41 = vld [vmem:[%s0 + $0xbc] sm:$0xff]
  %v42 = vld [vmem:[%s0 + $0xc4] sm:$0xff]
  %v43 = vld [vmem:[%s0 + $0xcc] sm:$0xff]
  %v44 = vld [vmem:[%s0 + $0xd4] sm:$0xf]
  %v45 = vld [vmem:[%s0 + $0xd8] sm:$0xff]
  %v46 = vld [vmem:[%s0 + $0xe0] sm:$0xff]
  %v47 = vld [vmem:[%s0 + $0xe8] sm:$0xff]
  %v48 = vld [vmem:[%s0 + $0xf0] sm:$0xff]
  %v49 = vld [vmem:[%s0 + $0xf8] sm:$0xf]
  %v50 = vld [vmem:[%s0 + $0xfc] sm:$0xff]
  %v51 = vld [vmem:[%s0 + $0x104] sm:$0xff]
  %v52 = vld [vmem:[%s0 + $0x10c] sm:$0xff]
  %v53 = vld [vmem:[%s0 + $0x114] sm:$0xff]
  %v54 = vld [vmem:[%s0 + $0x11c] sm:$0xf]
  %v55 = vld [vmem:[%s0 + $0x120] sm:$0xff]
  %v56 = vld [vmem:[%s0 + $0x128] sm:$0xff]
  %v57 = vld [vmem:[%s0 + $0x130] sm:$0xff]
  %v58 = vld [vmem:[%s0 + $0x138] sm:$0xff]
  %v59 = vld [vmem:[%s0 + $0x140] sm:$0xf]
  %v60 = vld [vmem:[%s0 + $0x144] sm:$0xff]
  %v61 = vld [vmem:[%s0 + $0x14c] sm:$0xff]
  %v62 = vld [vmem:[%s0 + $0x154] sm:$0xff]
  %v63 = vld [vmem:[%s0 + $0x15c] sm:$0xff]
  %v64 = vld [vmem:[%s0 + $0x164] sm:$0xf]
  %v65 = vld [vmem:[%s0 + $0x168] sm:$0xff]
  %v66 = vld [vmem:[%s0 + $0x170] sm:$0xff]
  %v67 = vld [vmem:[%s0 + $0x178] sm:$0xff]
  %v68 = vld [vmem:[%s0 + $0x180] sm:$0xff]
  %v69 = vld [vmem:[%s0 + $0x188] sm:$0xf]
  %v70 = vld [vmem:[%s0 + $0x18c] sm:$0xff]
  %v71 = vld [vmem:[%s0 + $0x194] sm:$0xff]
  %v72 = vld [vmem:[%s0 + $0x19c] sm:$0xff]
  %v73 = vld [vmem:[%s0 + $0x1a4] sm:$0xff]
  %v74 = vld [vmem:[%s0 + $0x1ac] sm:$0xf]
  %v75 = vld [vmem:[%s0 + $0x1b0] sm:$0xff]
  %v76 = vld [vmem:[%s0 + $0x1b8] sm:$0xff]
  %v77 = vld [vmem:[%s0 + $0x1c0] sm:$0xff]
  %v78 = vld [vmem:[%s0 + $0x1c8] sm:$0xff]
  %v79 = vld [vmem:[%s0 + $0x1d0] sm:$0xf]
  %v80 = vld [vmem:[%s0 + $0x1d4] sm:$0xff]
  %v81 = vld [vmem:[%s0 + $0x1dc] sm:$0xff]
  %v82 = vld [vmem:[%s0 + $0x1e4] sm:$0xff]
  %v83 = vld [vmem:[%s0 + $0x1ec] sm:$0xff]
  %v84 = vld [vmem:[%s0 + $0x1f4] sm:$0xf]
  %v85 = vld [vmem:[%s0 + $0x1f8] sm:$0xff]
  %v86 = vld [vmem:[%s0 + $0x200] sm:$0xff]
  %v87 = vld [vmem:[%s0 + $0x208] sm:$0xff]
  %v88 = vld [vmem:[%s0 + $0x210] sm:$0xff]
  %v89 = vld [vmem:[%s0 + $0x218] sm:$0xf]
  %v90 = vld [vmem:[%s0 + $0x21c] sm:$0xff]
  %v91 = vld [vmem:[%s0 + $0x224] sm:$0xff]
  %v92 = vld [vmem:[%s0 + $0x22c] sm:$0xff]
  %v93 = vld [vmem:[%s0 + $0x234] sm:$0xff]
  %v94 = vld [vmem:[%s0 + $0x23c] sm:$0xf]
  %v95 = vld [vmem:[%s1] sm:$0xf]
  %v96 = vld [vmem:[%s1 + $0x4] sm:$0xf]
  %v97 = vld [vmem:[%s1 + $0x8] sm:$0xf]
  %v98 = vld [vmem:[%s1 + $0xc] sm:$0xf]
  %v99 = vld [vmem:[%s1 + $0x10] sm:$0xf]
  %v100 = vld [vmem:[%s1 + $0x14] sm:$0xf]
  %v101 = vld [vmem:[%s1 + $0x18] sm:$0xf]
  %v102 = vld [vmem:[%s1 + $0x1c] sm:$0xf]
  %v103 = vld [vmem:[%s1 + $0x20] sm:$0xf]
  %v104 = vld [vmem:[%s1 + $0x24] sm:$0xf]
  %v105 = vld [vmem:[%s1 + $0x28] sm:$0xf]
  %v106 = vld [vmem:[%s1 + $0x2c] sm:$0xf]
  %v107 = vld [vmem:[%s1 + $0x30] sm:$0xf]
  %v108 = vld [vmem:[%s1 + $0x34] sm:$0xf]
  %v109 = vld [vmem:[%s1 + $0x38] sm:$0xf]
  %v110 = vld [vmem:[%s1 + $0x3c] sm:$0xf]
  %v111 = vld [vmem:[%s1 + $0x40] sm:$0xf]
  %v112 = vld [vmem:[%s1 + $0x44] sm:$0xf]
  %v113 = vld [vmem:[%s1 + $0x48] sm:$0xf]
  %v114 = vld [vmem:[%s1 + $0x4c] sm:$0xf]
  %v115 = vld [vmem:[%s1 + $0x50] sm:$0xf]
  %v116 = vld [vmem:[%s1 + $0x54] sm:$0xf]
  %v117 = vld [vmem:[%s1 + $0x58] sm:$0xf]
  %v118 = vld [vmem:[%s1 + $0x5c] sm:$0xf]
  %v119 = vld [vmem:[%s1 + $0x60] sm:$0xf]
  %v120 = vld [vmem:[%s1 + $0x64] sm:$0xf]
  %v121 = vld [vmem:[%s1 + $0x68] sm:$0xf]
  %v122 = vld [vmem:[%s1 + $0x6c] sm:$0xf]
  %v123 = vld [vmem:[%s1 + $0x70] sm:$0xf]
  %v124 = vld [vmem:[%s1 + $0x74] sm:$0xf]
  %v125 = vld [vmem:[%s1 + $0x78] sm:$0xf]
  %v126 = vld [vmem:[%s1 + $0x7c] sm:$0xf]
  %v127 = vld [vmem:[%s1 + $0x80] sm:$0xf]
  %v128 = vld [vmem:[%s1 + $0x84] sm:$0xf]
  %v129 = vld [vmem:[%s1 + $0x88] sm:$0xf]
  %v130 = vld [vmem:[%s1 + $0x8c] sm:$0xf]
  %v131 = vld [vmem:[%s1 + $0x90] sm:$0xf]
  %v132 = vld [vmem:[%s1 + $0x94] sm:$0xf]
  %v133 = vld [vmem:[%s1 + $0x98] sm:$0xf]
  %v134 = vld [vmem:[%s1 + $0x9c] sm:$0xf]
  %v135 = vld [vmem:[%s1 + $0xa0] sm:$0xf]
  %v136 = vld [vmem:[%s1 + $0xa4] sm:$0xf]
  %v137 = vld [vmem:[%s1 + $0xa8] sm:$0xf]
  %v138 = vld [vmem:[%s1 + $0xac] sm:$0xf]
  %v139 = vld [vmem:[%s1 + $0xb0] sm:$0xf]
  %v140 = vld [vmem:[%s1 + $0xb4] sm:$0xf]
  %v141 = vld [vmem:[%s1 + $0xb8] sm:$0xf]
  %v142 = vld [vmem:[%s1 + $0xbc] sm:$0xf]
  %v143 = vld [vmem:[%s1 + $0xc0] sm:$0xf]
  %v144 = vld [vmem:[%s1 + $0xc4] sm:$0xf]
  %v145 = vld [vmem:[%s1 + $0xc8] sm:$0xf]
  %v146 = vld [vmem:[%s1 + $0xcc] sm:$0xf]
  %v147 = vld [vmem:[%s1 + $0xd0] sm:$0xf]
  %v148 = vld [vmem:[%s1 + $0xd4] sm:$0xf]
  %v149 = vld [vmem:[%s1 + $0xd8] sm:$0xf]
  %v150 = vld [vmem:[%s1 + $0xdc] sm:$0xf]
  %v151 = vld [vmem:[%s1 + $0xe0] sm:$0xf]
  %v152 = vld [vmem:[%s1 + $0xe4] sm:$0xf]
  %v153 = vld [vmem:[%s1 + $0xe8] sm:$0xf]
  %v154 = vld [vmem:[%s1 + $0xec] sm:$0xf]
  %v155 = vld [vmem:[%s1 + $0xf0] sm:$0xf]
  %v156 = vld [vmem:[%s1 + $0xf4] sm:$0xf]
  %v157 = vld [vmem:[%s1 + $0xf8] sm:$0xf]
  %v158 = vld [vmem:[%s1 + $0xfc] sm:$0xf]
  %v159 = vld [vmem:[%s1 + $0x100] sm:$0xf]
  %v160 = vld [vmem:[%s1 + $0x104] sm:$0xf]
  %v161 = vld [vmem:[%s1 + $0x108] sm:$0xf]
  %v162 = vld [vmem:[%s1 + $0x10c] sm:$0xf]
  %v163 = vld [vmem:[%s1 + $0x110] sm:$0xf]
  %v164 = vld [vmem:[%s1 + $0x114] sm:$0xf]
  %v165 = vld [vmem:[%s1 + $0x118] sm:$0xf]
  %v166 = vld [vmem:[%s1 + $0x11c] sm:$0xf]
  %v167 = vld [vmem:[%s1 + $0x120] sm:$0xf]
  %v168 = vld [vmem:[%s1 + $0x124] sm:$0xf]
  %v169 = vld [vmem:[%s1 + $0x128] sm:$0xf]
  %v170 = vld [vmem:[%s1 + $0x12c] sm:$0xf]
  %v171 = vld [vmem:[%s1 + $0x130] sm:$0xf]
  %v172 = vld [vmem:[%s1 + $0x134] sm:$0xf]
  %v173 = vld [vmem:[%s1 + $0x138] sm:$0xf]
  %v174 = vld [vmem:[%s1 + $0x13c] sm:$0xf]
  %v175 = vld [vmem:[%s1 + $0x140] sm:$0xf]
  %v176 = vld [vmem:[%s1 + $0x144] sm:$0xf]
  %v177 = vld [vmem:[%s1 + $0x148] sm:$0xf]
  %v178 = vld [vmem:[%s1 + $0x14c] sm:$0xf]
  %v179 = vld [vmem:[%s1 + $0x150] sm:$0xf]
  %v180 = vld [vmem:[%s1 + $0x154] sm:$0xf]
  %v181 = vld [vmem:[%s1 + $0x158] sm:$0xf]
  %v182 = vld [vmem:[%s1 + $0x15c] sm:$0xf]
  %v183 = vld [vmem:[%s1 + $0x160] sm:$0xf]
  %v184 = vld [vmem:[%s1 + $0x164] sm:$0xf]
  %v185 = vld [vmem:[%s1 + $0x168] sm:$0xf]
  %v186 = vld [vmem:[%s1 + $0x16c] sm:$0xf]
  %v187 = vld [vmem:[%s1 + $0x170] sm:$0xf]
  %v188 = vld [vmem:[%s1 + $0x174] sm:$0xf]
  %v189 = vld [vmem:[%s1 + $0x178] sm:$0xf]
  %v190 = vld [vmem:[%s1 + $0x17c] sm:$0xf]
  %v191 = vld [vmem:[%s1 + $0x180] sm:$0xf]
  %v192 = vld [vmem:[%s1 + $0x184] sm:$0xf]
  %v193 = vld [vmem:[%s1 + $0x188] sm:$0xf]
  %v194 = vld [vmem:[%s1 + $0x18c] sm:$0xf]
  %v195 = vld [vmem:[%s1 + $0x190] sm:$0xf]
  %v196 = vld [vmem:[%s1 + $0x194] sm:$0xf]
  %v197 = vld [vmem:[%s1 + $0x198] sm:$0xf]
  %v198 = vld [vmem:[%s1 + $0x19c] sm:$0xf]
  %v199 = vld [vmem:[%s1 + $0x1a0] sm:$0xf]
  %v200 = vld [vmem:[%s1 + $0x1a4] sm:$0xf]
  %v201 = vld [vmem:[%s1 + $0x1a8] sm:$0xf]
  %v202 = vld [vmem:[%s1 + $0x1ac] sm:$0xf]
  %v203 = vld [vmem:[%s1 + $0x1b0] sm:$0xf]
  %v204 = vld [vmem:[%s1 + $0x1b4] sm:$0xf]
  %v205 = vld [vmem:[%s1 + $0x1b8] sm:$0xf]
  %v206 = vld [vmem:[%s1 + $0x1bc] sm:$0xf]
  %v207 = vld [vmem:[%s1 + $0x1c0] sm:$0xf]
  %v208 = vld [vmem:[%s1 + $0x1c4] sm:$0xf]
  %v209 = vld [vmem:[%s1 + $0x1c8] sm:$0xf]
  %v210 = vld [vmem:[%s1 + $0x1cc] sm:$0xf]
  %v211 = vld [vmem:[%s1 + $0x1d0] sm:$0xf]
  %v212 = vld [vmem:[%s1 + $0x1d4] sm:$0xf]
  %v213 = vld [vmem:[%s1 + $0x1d8] sm:$0xf]
  %v214 = vld [vmem:[%s1 + $0x1dc] sm:$0xf]
  %v215 = vld [vmem:[%s1 + $0x1e0] sm:$0xf]
  %v216 = vld [vmem:[%s1 + $0x1e4] sm:$0xf]
  %v217 = vld [vmem:[%s1 + $0x1e8] sm:$0xf]
  %v218 = vld [vmem:[%s1 + $0x1ec] sm:$0xf]
  %v219 = vld [vmem:[%s1 + $0x1f0] sm:$0xf]
  %v220 = vld [vmem:[%s1 + $0x1f4] sm:$0xf]
  %v221 = vld [vmem:[%s1 + $0x1f8] sm:$0xf]
  %v222 = vld [vmem:[%s1 + $0x1fc] sm:$0xf]
  %v223 = vld [vmem:[%s1 + $0x200] sm:$0xf]
  %v224 = vld [vmem:[%s1 + $0x204] sm:$0xf]
  %v225 = vld [vmem:[%s1 + $0x208] sm:$0xf]
  %v226 = vld [vmem:[%s1 + $0x20c] sm:$0xf]
  %v227 = vld [vmem:[%s1 + $0x210] sm:$0xf]
  %v228 = vld [vmem:[%s1 + $0x214] sm:$0xf]
  %v229 = vld [vmem:[%s1 + $0x218] sm:$0xf]
  %v230 = vld [vmem:[%s1 + $0x21c] sm:$0xf]
  %v231 = vld [vmem:[%s1 + $0x220] sm:$0xf]
  %v232 = vld [vmem:[%s1 + $0x224] sm:$0xf]
  %v233 = vld [vmem:[%s1 + $0x228] sm:$0xf]
  %v234 = vld [vmem:[%s1 + $0x22c] sm:$0xf]
  %v235 = vld [vmem:[%s1 + $0x230] sm:$0xf]
  %v236 = vld [vmem:[%s1 + $0x234] sm:$0xf]
  %v237 = vld [vmem:[%s1 + $0x238] sm:$0xf]
  %v238 = vld [vmem:[%s1 + $0x23c] sm:$0xf]
  %v239 = vld [vmem:[%s2] sm:$0x1]
  %v241 = vlaneseq
  %v242 = vshrl.u32 %v241, 7
  %v243 = vsub.s32 0, %v242
  %v244 = vrot.slane %v239, %v243
  %v326 = vunpack.c.l.b16 %v15
  %v327 = vunpack.c.h.b16 %v15
  %v328 = vunpack.c.l.b16 %v16
  %v329 = vunpack.c.h.b16 %v16
  %v330 = vunpack.c.l.b16 %v17
  %v331 = vunpack.c.h.b16 %v17
  %v332 = vunpack.c.l.b16 %v18
  %v333 = vunpack.c.h.b16 %v18
  %v334 = vunpack.c.l.b16 %v19
  %v335 = vunpack.c.l.b16 %v20
  %v336 = vunpack.c.h.b16 %v20
  %v337 = vunpack.c.l.b16 %v21
  %v338 = vunpack.c.h.b16 %v21
  %v339 = vunpack.c.l.b16 %v22
  %v340 = vunpack.c.h.b16 %v22
  %v341 = vunpack.c.l.b16 %v23
  %v342 = vunpack.c.h.b16 %v23
  %v343 = vunpack.c.l.b16 %v24
  %v344 = vunpack.c.l.b16 %v25
  %v345 = vunpack.c.h.b16 %v25
  %v346 = vunpack.c.l.b16 %v26
  %v347 = vunpack.c.h.b16 %v26
  %v348 = vunpack.c.l.b16 %v27
  %v349 = vunpack.c.h.b16 %v27
  %v350 = vunpack.c.l.b16 %v28
  %v351 = vunpack.c.h.b16 %v28
  %v352 = vunpack.c.l.b16 %v29
  %v353 = vunpack.c.l.b16 %v30
  %v354 = vunpack.c.h.b16 %v30
  %v355 = vunpack.c.l.b16 %v31
  %v356 = vunpack.c.h.b16 %v31
  %v357 = vunpack.c.l.b16 %v32
  %v358 = vunpack.c.h.b16 %v32
  %v359 = vunpack.c.l.b16 %v33
  %v360 = vunpack.c.h.b16 %v33
  %v361 = vunpack.c.l.b16 %v34
  %v362 = vunpack.c.l.b16 %v35
  %v363 = vunpack.c.h.b16 %v35
  %v364 = vunpack.c.l.b16 %v36
  %v365 = vunpack.c.h.b16 %v36
  %v366 = vunpack.c.l.b16 %v37
  %v367 = vunpack.c.h.b16 %v37
  %v368 = vunpack.c.l.b16 %v38
  %v369 = vunpack.c.h.b16 %v38
  %v370 = vunpack.c.l.b16 %v39
  %v371 = vunpack.c.l.b16 %v40
  %v372 = vunpack.c.h.b16 %v40
  %v373 = vunpack.c.l.b16 %v41
  %v374 = vunpack.c.h.b16 %v41
  %v375 = vunpack.c.l.b16 %v42
  %v376 = vunpack.c.h.b16 %v42
  %v377 = vunpack.c.l.b16 %v43
  %v378 = vunpack.c.h.b16 %v43
  %v379 = vunpack.c.l.b16 %v44
  %v380 = vunpack.c.l.b16 %v45
  %v381 = vunpack.c.h.b16 %v45
  %v382 = vunpack.c.l.b16 %v46
  %v383 = vunpack.c.h.b16 %v46
  %v384 = vunpack.c.l.b16 %v47
  %v385 = vunpack.c.h.b16 %v47
  %v386 = vunpack.c.l.b16 %v48
  %v387 = vunpack.c.h.b16 %v48
  %v388 = vunpack.c.l.b16 %v49
  %v389 = vunpack.c.l.b16 %v50
  %v390 = vunpack.c.h.b16 %v50
  %v391 = vunpack.c.l.b16 %v51
  %v392 = vunpack.c.h.b16 %v51
  %v393 = vunpack.c.l.b16 %v52
  %v394 = vunpack.c.h.b16 %v52
  %v395 = vunpack.c.l.b16 %v53
  %v396 = vunpack.c.h.b16 %v53
  %v397 = vunpack.c.l.b16 %v54
  %v398 = vunpack.c.l.b16 %v55
  %v399 = vunpack.c.h.b16 %v55
  %v400 = vunpack.c.l.b16 %v56
  %v401 = vunpack.c.h.b16 %v56
  %v402 = vunpack.c.l.b16 %v57
  %v403 = vunpack.c.h.b16 %v57
  %v404 = vunpack.c.l.b16 %v58
  %v405 = vunpack.c.h.b16 %v58
  %v406 = vunpack.c.l.b16 %v59
  %v407 = vunpack.c.l.b16 %v60
  %v408 = vunpack.c.h.b16 %v60
  %v409 = vunpack.c.l.b16 %v61
  %v410 = vunpack.c.h.b16 %v61
  %v411 = vunpack.c.l.b16 %v62
  %v412 = vunpack.c.h.b16 %v62
  %v413 = vunpack.c.l.b16 %v63
  %v414 = vunpack.c.h.b16 %v63
  %v415 = vunpack.c.l.b16 %v64
  %v416 = vunpack.c.l.b16 %v65
  %v417 = vunpack.c.h.b16 %v65
  %v418 = vunpack.c.l.b16 %v66
  %v419 = vunpack.c.h.b16 %v66
  %v420 = vunpack.c.l.b16 %v67
  %v421 = vunpack.c.h.b16 %v67
  %v422 = vunpack.c.l.b16 %v68
  %v423 = vunpack.c.h.b16 %v68
  %v424 = vunpack.c.l.b16 %v69
  %v425 = vunpack.c.l.b16 %v70
  %v426 = vunpack.c.h.b16 %v70
  %v427 = vunpack.c.l.b16 %v71
  %v428 = vunpack.c.h.b16 %v71
  %v429 = vunpack.c.l.b16 %v72
  %v430 = vunpack.c.h.b16 %v72
  %v431 = vunpack.c.l.b16 %v73
  %v432 = vunpack.c.h.b16 %v73
  %v433 = vunpack.c.l.b16 %v74
  %v434 = vunpack.c.l.b16 %v75
  %v435 = vunpack.c.h.b16 %v75
  %v436 = vunpack.c.l.b16 %v76
  %v437 = vunpack.c.h.b16 %v76
  %v438 = vunpack.c.l.b16 %v77
  %v439 = vunpack.c.h.b16 %v77
  %v440 = vunpack.c.l.b16 %v78
  %v441 = vunpack.c.h.b16 %v78
  %v442 = vunpack.c.l.b16 %v79
  %v443 = vunpack.c.l.b16 %v80
  %v444 = vunpack.c.h.b16 %v80
  %v445 = vunpack.c.l.b16 %v81
  %v446 = vunpack.c.h.b16 %v81
  %v447 = vunpack.c.l.b16 %v82
  %v448 = vunpack.c.h.b16 %v82
  %v449 = vunpack.c.l.b16 %v83
  %v450 = vunpack.c.h.b16 %v83
  %v451 = vunpack.c.l.b16 %v84
  %v452 = vunpack.c.l.b16 %v85
  %v453 = vunpack.c.h.b16 %v85
  %v454 = vunpack.c.l.b16 %v86
  %v455 = vunpack.c.h.b16 %v86
  %v456 = vunpack.c.l.b16 %v87
  %v457 = vunpack.c.h.b16 %v87
  %v458 = vunpack.c.l.b16 %v88
  %v459 = vunpack.c.h.b16 %v88
  %v460 = vunpack.c.l.b16 %v89
  %v461 = vunpack.c.l.b16 %v90
  %v462 = vunpack.c.h.b16 %v90
  %v463 = vunpack.c.l.b16 %v91
  %v464 = vunpack.c.h.b16 %v91
  %v465 = vunpack.c.l.b16 %v92
  %v466 = vunpack.c.h.b16 %v92
  %v467 = vunpack.c.l.b16 %v93
  %v468 = vunpack.c.h.b16 %v93
  %v469 = vunpack.c.l.b16 %v94
  %v470 = vpack.c.b16 %v335, %v326
  %v471 = vpack.c.b16 %v336, %v327
  %v472 = vpack.c.b16 %v337, %v328
  %v473 = vpack.c.b16 %v338, %v329
  %v474 = vpack.c.b16 %v339, %v330
  %v475 = vpack.c.b16 %v340, %v331
  %v476 = vpack.c.b16 %v341, %v332
  %v477 = vpack.c.b16 %v342, %v333
  %v478 = vpack.c.b16 %v343, %v334
  %v479 = vpack.c.b16 %v353, %v344
  %v480 = vpack.c.b16 %v354, %v345
  %v481 = vpack.c.b16 %v355, %v346
  %v482 = vpack.c.b16 %v356, %v347
  %v483 = vpack.c.b16 %v357, %v348
  %v484 = vpack.c.b16 %v358, %v349
  %v485 = vpack.c.b16 %v359, %v350
  %v486 = vpack.c.b16 %v360, %v351
  %v487 = vpack.c.b16 %v361, %v352
  %v488 = vpack.c.b16 %v371, %v362
  %v489 = vpack.c.b16 %v372, %v363
  %v490 = vpack.c.b16 %v373, %v364
  %v491 = vpack.c.b16 %v374, %v365
  %v492 = vpack.c.b16 %v375, %v366
  %v493 = vpack.c.b16 %v376, %v367
  %v494 = vpack.c.b16 %v377, %v368
  %v495 = vpack.c.b16 %v378, %v369
  %v496 = vpack.c.b16 %v379, %v370
  %v497 = vpack.c.b16 %v389, %v380
  %v498 = vpack.c.b16 %v390, %v381
  %v499 = vpack.c.b16 %v391, %v382
  %v500 = vpack.c.b16 %v392, %v383
  %v501 = vpack.c.b16 %v393, %v384
  %v502 = vpack.c.b16 %v394, %v385
  %v503 = vpack.c.b16 %v395, %v386
  %v504 = vpack.c.b16 %v396, %v387
  %v505 = vpack.c.b16 %v397, %v388
  %v506 = vpack.c.b16 %v407, %v398
  %v507 = vpack.c.b16 %v408, %v399
  %v508 = vpack.c.b16 %v409, %v400
  %v509 = vpack.c.b16 %v410, %v401
  %v510 = vpack.c.b16 %v411, %v402
  %v511 = vpack.c.b16 %v412, %v403
  %v512 = vpack.c.b16 %v413, %v404
  %v513 = vpack.c.b16 %v414, %v405
  %v514 = vpack.c.b16 %v415, %v406
  %v515 = vpack.c.b16 %v425, %v416
  %v516 = vpack.c.b16 %v426, %v417
  %v517 = vpack.c.b16 %v427, %v418
  %v518 = vpack.c.b16 %v428, %v419
  %v519 = vpack.c.b16 %v429, %v420
  %v520 = vpack.c.b16 %v430, %v421
  %v521 = vpack.c.b16 %v431, %v422
  %v522 = vpack.c.b16 %v432, %v423
  %v523 = vpack.c.b16 %v433, %v424
  %v524 = vpack.c.b16 %v443, %v434
  %v525 = vpack.c.b16 %v444, %v435
  %v526 = vpack.c.b16 %v445, %v436
  %v527 = vpack.c.b16 %v446, %v437
  %v528 = vpack.c.b16 %v447, %v438
  %v529 = vpack.c.b16 %v448, %v439
  %v530 = vpack.c.b16 %v449, %v440
  %v531 = vpack.c.b16 %v450, %v441
  %v532 = vpack.c.b16 %v451, %v442
  %v533 = vpack.c.b16 %v461, %v452
  %v534 = vpack.c.b16 %v462, %v453
  %v535 = vpack.c.b16 %v463, %v454
  %v536 = vpack.c.b16 %v464, %v455
  %v537 = vpack.c.b16 %v465, %v456
  %v538 = vpack.c.b16 %v466, %v457
  %v539 = vpack.c.b16 %v467, %v458
  %v540 = vpack.c.b16 %v468, %v459
  %v541 = vpack.c.b16 %v469, %v460
  %v758 = vunpack.c.l.b16 %v95
  %v759 = vunpack.c.l.b16 %v96
  %v760 = vunpack.c.l.b16 %v97
  %v761 = vunpack.c.l.b16 %v98
  %v762 = vunpack.c.l.b16 %v99
  %v763 = vunpack.c.l.b16 %v100
  %v764 = vunpack.c.l.b16 %v101
  %v765 = vunpack.c.l.b16 %v102
  %v766 = vunpack.c.l.b16 %v103
  %v767 = vunpack.c.l.b16 %v104
  %v768 = vunpack.c.l.b16 %v105
  %v769 = vunpack.c.l.b16 %v106
  %v770 = vunpack.c.l.b16 %v107
  %v771 = vunpack.c.l.b16 %v108
  %v772 = vunpack.c.l.b16 %v109
  %v773 = vunpack.c.l.b16 %v110
  %v774 = vunpack.c.l.b16 %v111
  %v775 = vunpack.c.l.b16 %v112
  %v776 = vunpack.c.l.b16 %v113
  %v777 = vunpack.c.l.b16 %v114
  %v778 = vunpack.c.l.b16 %v115
  %v779 = vunpack.c.l.b16 %v116
  %v780 = vunpack.c.l.b16 %v117
  %v781 = vunpack.c.l.b16 %v118
  %v782 = vunpack.c.l.b16 %v119
  %v783 = vunpack.c.l.b16 %v120
  %v784 = vunpack.c.l.b16 %v121
  %v785 = vunpack.c.l.b16 %v122
  %v786 = vunpack.c.l.b16 %v123
  %v787 = vunpack.c.l.b16 %v124
  %v788 = vunpack.c.l.b16 %v125
  %v789 = vunpack.c.l.b16 %v126
  %v790 = vunpack.c.l.b16 %v127
  %v791 = vunpack.c.l.b16 %v128
  %v792 = vunpack.c.l.b16 %v129
  %v793 = vunpack.c.l.b16 %v130
  %v794 = vunpack.c.l.b16 %v131
  %v795 = vunpack.c.l.b16 %v132
  %v796 = vunpack.c.l.b16 %v133
  %v797 = vunpack.c.l.b16 %v134
  %v798 = vunpack.c.l.b16 %v135
  %v799 = vunpack.c.l.b16 %v136
  %v800 = vunpack.c.l.b16 %v137
  %v801 = vunpack.c.l.b16 %v138
  %v802 = vunpack.c.l.b16 %v139
  %v803 = vunpack.c.l.b16 %v140
  %v804 = vunpack.c.l.b16 %v141
  %v805 = vunpack.c.l.b16 %v142
  %v806 = vunpack.c.l.b16 %v143
  %v807 = vunpack.c.l.b16 %v144
  %v808 = vunpack.c.l.b16 %v145
  %v809 = vunpack.c.l.b16 %v146
  %v810 = vunpack.c.l.b16 %v147
  %v811 = vunpack.c.l.b16 %v148
  %v812 = vunpack.c.l.b16 %v149
  %v813 = vunpack.c.l.b16 %v150
  %v814 = vunpack.c.l.b16 %v151
  %v815 = vunpack.c.l.b16 %v152
  %v816 = vunpack.c.l.b16 %v153
  %v817 = vunpack.c.l.b16 %v154
  %v818 = vunpack.c.l.b16 %v155
  %v819 = vunpack.c.l.b16 %v156
  %v820 = vunpack.c.l.b16 %v157
  %v821 = vunpack.c.l.b16 %v158
  %v822 = vunpack.c.l.b16 %v159
  %v823 = vunpack.c.l.b16 %v160
  %v824 = vunpack.c.l.b16 %v161
  %v825 = vunpack.c.l.b16 %v162
  %v826 = vunpack.c.l.b16 %v163
  %v827 = vunpack.c.l.b16 %v164
  %v828 = vunpack.c.l.b16 %v165
  %v829 = vunpack.c.l.b16 %v166
  %v830 = vunpack.c.l.b16 %v167
  %v831 = vunpack.c.l.b16 %v168
  %v832 = vunpack.c.l.b16 %v169
  %v833 = vunpack.c.l.b16 %v170
  %v834 = vunpack.c.l.b16 %v171
  %v835 = vunpack.c.l.b16 %v172
  %v836 = vunpack.c.l.b16 %v173
  %v837 = vunpack.c.l.b16 %v174
  %v838 = vunpack.c.l.b16 %v175
  %v839 = vunpack.c.l.b16 %v176
  %v840 = vunpack.c.l.b16 %v177
  %v841 = vunpack.c.l.b16 %v178
  %v842 = vunpack.c.l.b16 %v179
  %v843 = vunpack.c.l.b16 %v180
  %v844 = vunpack.c.l.b16 %v181
  %v845 = vunpack.c.l.b16 %v182
  %v846 = vunpack.c.l.b16 %v183
  %v847 = vunpack.c.l.b16 %v184
  %v848 = vunpack.c.l.b16 %v185
  %v849 = vunpack.c.l.b16 %v186
  %v850 = vunpack.c.l.b16 %v187
  %v851 = vunpack.c.l.b16 %v188
  %v852 = vunpack.c.l.b16 %v189
  %v853 = vunpack.c.l.b16 %v190
  %v854 = vunpack.c.l.b16 %v191
  %v855 = vunpack.c.l.b16 %v192
  %v856 = vunpack.c.l.b16 %v193
  %v857 = vunpack.c.l.b16 %v194
  %v858 = vunpack.c.l.b16 %v195
  %v859 = vunpack.c.l.b16 %v196
  %v860 = vunpack.c.l.b16 %v197
  %v861 = vunpack.c.l.b16 %v198
  %v862 = vunpack.c.l.b16 %v199
  %v863 = vunpack.c.l.b16 %v200
  %v864 = vunpack.c.l.b16 %v201
  %v865 = vunpack.c.l.b16 %v202
  %v866 = vunpack.c.l.b16 %v203
  %v867 = vunpack.c.l.b16 %v204
  %v868 = vunpack.c.l.b16 %v205
  %v869 = vunpack.c.l.b16 %v206
  %v870 = vunpack.c.l.b16 %v207
  %v871 = vunpack.c.l.b16 %v208
  %v872 = vunpack.c.l.b16 %v209
  %v873 = vunpack.c.l.b16 %v210
  %v874 = vunpack.c.l.b16 %v211
  %v875 = vunpack.c.l.b16 %v212
  %v876 = vunpack.c.l.b16 %v213
  %v877 = vunpack.c.l.b16 %v214
  %v878 = vunpack.c.l.b16 %v215
  %v879 = vunpack.c.l.b16 %v216
  %v880 = vunpack.c.l.b16 %v217
  %v881 = vunpack.c.l.b16 %v218
  %v882 = vunpack.c.l.b16 %v219
  %v883 = vunpack.c.l.b16 %v220
  %v884 = vunpack.c.l.b16 %v221
  %v885 = vunpack.c.l.b16 %v222
  %v886 = vunpack.c.l.b16 %v223
  %v887 = vunpack.c.l.b16 %v224
  %v888 = vunpack.c.l.b16 %v225
  %v889 = vunpack.c.l.b16 %v226
  %v890 = vunpack.c.l.b16 %v227
  %v891 = vunpack.c.l.b16 %v228
  %v892 = vunpack.c.l.b16 %v229
  %v893 = vunpack.c.l.b16 %v230
  %v894 = vunpack.c.l.b16 %v231
  %v895 = vunpack.c.l.b16 %v232
  %v896 = vunpack.c.l.b16 %v233
  %v897 = vunpack.c.l.b16 %v234
  %v898 = vunpack.c.l.b16 %v235
  %v899 = vunpack.c.l.b16 %v236
  %v900 = vunpack.c.l.b16 %v237
  %v901 = vunpack.c.l.b16 %v238
  %v902 = vpack.c.b16 %v759, %v758
  %v903 = vpack.c.b16 %v761, %v760
  %v904 = vpack.c.b16 %v763, %v762
  %v905 = vpack.c.b16 %v765, %v764
  %v906 = vpack.c.b16 %v767, %v766
  %v907 = vpack.c.b16 %v769, %v768
  %v908 = vpack.c.b16 %v771, %v770
  %v909 = vpack.c.b16 %v773, %v772
  %v910 = vpack.c.b16 %v775, %v774
  %v911 = vpack.c.b16 %v777, %v776
  %v912 = vpack.c.b16 %v779, %v778
  %v913 = vpack.c.b16 %v781, %v780
  %v914 = vpack.c.b16 %v783, %v782
  %v915 = vpack.c.b16 %v785, %v784
  %v916 = vpack.c.b16 %v787, %v786
  %v917 = vpack.c.b16 %v789, %v788
  %v918 = vpack.c.b16 %v791, %v790
  %v919 = vpack.c.b16 %v793, %v792
  %v920 = vpack.c.b16 %v795, %v794
  %v921 = vpack.c.b16 %v797, %v796
  %v922 = vpack.c.b16 %v799, %v798
  %v923 = vpack.c.b16 %v801, %v800
  %v924 = vpack.c.b16 %v803, %v802
  %v925 = vpack.c.b16 %v805, %v804
  %v926 = vpack.c.b16 %v807, %v806
  %v927 = vpack.c.b16 %v809, %v808
  %v928 = vpack.c.b16 %v811, %v810
  %v929 = vpack.c.b16 %v813, %v812
  %v930 = vpack.c.b16 %v815, %v814
  %v931 = vpack.c.b16 %v817, %v816
  %v932 = vpack.c.b16 %v819, %v818
  %v933 = vpack.c.b16 %v821, %v820
  %v934 = vpack.c.b16 %v823, %v822
  %v935 = vpack.c.b16 %v825, %v824
  %v936 = vpack.c.b16 %v827, %v826
  %v937 = vpack.c.b16 %v829, %v828
  %v938 = vpack.c.b16 %v831, %v830
  %v939 = vpack.c.b16 %v833, %v832
  %v940 = vpack.c.b16 %v835, %v834
  %v941 = vpack.c.b16 %v837, %v836
  %v942 = vpack.c.b16 %v839, %v838
  %v943 = vpack.c.b16 %v841, %v840
  %v944 = vpack.c.b16 %v843, %v842
  %v945 = vpack.c.b16 %v845, %v844
  %v946 = vpack.c.b16 %v847, %v846
  %v947 = vpack.c.b16 %v849, %v848
  %v948 = vpack.c.b16 %v851, %v850
  %v949 = vpack.c.b16 %v853, %v852
  %v950 = vpack.c.b16 %v855, %v854
  %v951 = vpack.c.b16 %v857, %v856
  %v952 = vpack.c.b16 %v859, %v858
  %v953 = vpack.c.b16 %v861, %v860
  %v954 = vpack.c.b16 %v863, %v862
  %v955 = vpack.c.b16 %v865, %v864
  %v956 = vpack.c.b16 %v867, %v866
  %v957 = vpack.c.b16 %v869, %v868
  %v958 = vpack.c.b16 %v871, %v870
  %v959 = vpack.c.b16 %v873, %v872
  %v960 = vpack.c.b16 %v875, %v874
  %v961 = vpack.c.b16 %v877, %v876
  %v962 = vpack.c.b16 %v879, %v878
  %v963 = vpack.c.b16 %v881, %v880
  %v964 = vpack.c.b16 %v883, %v882
  %v965 = vpack.c.b16 %v885, %v884
  %v966 = vpack.c.b16 %v887, %v886
  %v967 = vpack.c.b16 %v889, %v888
  %v968 = vpack.c.b16 %v891, %v890
  %v969 = vpack.c.b16 %v893, %v892
  %v970 = vpack.c.b16 %v895, %v894
  %v971 = vpack.c.b16 %v897, %v896
  %v972 = vpack.c.b16 %v899, %v898
  %v973 = vpack.c.b16 %v901, %v900
  %1046 = vmatprep.subr.bf16.mxu0 0
  %1047 = vmatpush1.bf16.msra.mxu0 %v902
  %1048 = vmatprep.subr.bf16.mxu0 0
  %1049 = vmatpush1.bf16.msra.mxu0 %v903
  %1050 = vmatprep.subr.bf16.mxu0 0
  %1051 = vmatpush1.bf16.msra.mxu0 %v904
  %1052 = vmatprep.subr.bf16.mxu0 0
  %1053 = vmatpush1.bf16.msra.mxu0 %v905
  %1054 = vmatprep.subr.bf16.mxu0 0
  %1055 = vmatpush1.bf16.msra.mxu0 %v906
  %1056 = vmatprep.subr.bf16.mxu0 0
  %1057 = vmatpush1.bf16.msra.mxu0 %v907
  %1058 = vmatprep.subr.bf16.mxu0 0
  %1059 = vmatpush1.bf16.msra.mxu0 %v908
  %1060 = vmatprep.subr.bf16.mxu0 0
  %1061 = vmatpush1.bf16.msra.mxu0 %v909
  %1062 = vmatprep.subr.bf16.mxu0 0
  %1063 = vmatpush1.bf16.msra.mxu0 %v910
  %1064 = vmatprep.subr.bf16.mxu0 0
  %1065 = vmatpush1.bf16.msra.mxu0 %v911
  %1066 = vmatprep.subr.bf16.mxu0 0
  %1067 = vmatpush1.bf16.msra.mxu0 %v912
  %1068 = vmatprep.subr.bf16.mxu0 0
  %1069 = vmatpush1.bf16.msra.mxu0 %v913
  %1070 = vmatprep.subr.bf16.mxu0 0
  %1071 = vmatpush1.bf16.msra.mxu0 %v914
  %1072 = vmatprep.subr.bf16.mxu0 0
  %1073 = vmatpush1.bf16.msra.mxu0 %v915
  %1074 = vmatprep.subr.bf16.mxu0 0
  %1075 = vmatpush1.bf16.msra.mxu0 %v916
  %1076 = vmatprep.subr.bf16.mxu0 0
  %1077 = vmatpush1.bf16.msra.mxu0 %v917
  %1078 = vmatprep.mubr.bf16.mxu0 %v471
  %1079 = vmatmul.mubr.bf16.gmra.mrb[0].mxu0 %v470
  %v1080 = vpop.f32.mrb[0].mxu0
  %v1081 = vadd.f32 %v244, %v1080
  %v1082 = vpop.f32.mrb[0].mxu0
  %v1083 = vpop.f32.mrb[0].mxu0
  %v1084 = vadd.f32 %v244, %v1083
  %v1085 = vpop.f32.mrb[0].mxu0
  %1086 = vmatprep.mubr.bf16.mxu0 %v480
  %1087 = vmatmul.mubr.bf16.gmra.mrb[0].mxu0 %v479
  %v1088 = vpop.f32.mrb[0].mxu0
  %v1089 = vadd.f32 %v244, %v1088
  %v1090 = vpop.f32.mrb[0].mxu0
  %v1091 = vpop.f32.mrb[0].mxu0
  %v1092 = vadd.f32 %v244, %v1091
  %v1093 = vpop.f32.mrb[0].mxu0
  %1094 = vmatprep.mubr.bf16.mxu0 %v489
  %1095 = vmatmul.mubr.bf16.gmra.mrb[0].mxu0 %v488
  %v1096 = vpop.f32.mrb[0].mxu0
  %v1097 = vadd.f32 %v244, %v1096
  %v1098 = vpop.f32.mrb[0].mxu0
  %v1099 = vpop.f32.mrb[0].mxu0
  %v1100 = vadd.f32 %v244, %v1099
  %v1101 = vpop.f32.mrb[0].mxu0
  %1102 = vmatprep.mubr.bf16.mxu0 %v498
  %1103 = vmatmul.mubr.bf16.gmra.mrb[0].mxu0 %v497
  %v1104 = vpop.f32.mrb[0].mxu0
  %v1105 = vadd.f32 %v244, %v1104
  %v1106 = vpop.f32.mrb[0].mxu0
  %v1107 = vpop.f32.mrb[0].mxu0
  %v1108 = vadd.f32 %v244, %v1107
  %v1109 = vpop.f32.mrb[0].mxu0
  %1110 = vmatprep.mubr.bf16.mxu0 %v507
  %1111 = vmatmul.mubr.bf16.gmra.mrb[0].mxu0 %v506
  %v1112 = vpop.f32.mrb[0].mxu0
  %v1113 = vadd.f32 %v244, %v1112
  %v1114 = vpop.f32.mrb[0].mxu0
  %v1115 = vpop.f32.mrb[0].mxu0
  %v1116 = vadd.f32 %v244, %v1115
  %v1117 = vpop.f32.mrb[0].mxu0
  %1118 = vmatprep.mubr.bf16.mxu0 %v516
  %1119 = vmatmul.mubr.bf16.gmra.mrb[0].mxu0 %v515
  %v1120 = vpop.f32.mrb[0].mxu0
  %v1121 = vadd.f32 %v244, %v1120
  %v1122 = vpop.f32.mrb[0].mxu0
  %v1123 = vpop.f32.mrb[0].mxu0
  %v1124 = vadd.f32 %v244, %v1123
  %v1125 = vpop.f32.mrb[0].mxu0
  %1126 = vmatprep.mubr.bf16.mxu0 %v525
  %1127 = vmatmul.mubr.bf16.gmra.mrb[0].mxu0 %v524
  %v1128 = vpop.f32.mrb[0].mxu0
  %v1129 = vadd.f32 %v244, %v1128
  %v1130 = vpop.f32.mrb[0].mxu0
  %v1131 = vpop.f32.mrb[0].mxu0
  %v1132 = vadd.f32 %v244, %v1131
  %v1133 = vpop.f32.mrb[0].mxu0
  %1134 = vmatprep.mubr.bf16.mxu0 %v534
  %1135 = vmatmul.mubr.bf16.gmra.mrb[0].mxu0 %v533
  %v1136 = vpop.f32.mrb[0].mxu0
  %v1137 = vadd.f32 %v244, %v1136
  %v1138 = vpop.f32.mrb[0].mxu0
  %v1139 = vpop.f32.mrb[0].mxu0
  %v1140 = vadd.f32 %v244, %v1139
  %v1141 = vpop.f32.mrb[0].mxu0
  %1142 = vdwg.mxu0
  %1143 = vmatprep.subr.bf16.mxu0 0
  %1144 = vmatpush1.bf16.msra.mxu0 %v918
  %1145 = vmatprep.subr.bf16.mxu0 0
  %1146 = vmatpush1.bf16.msra.mxu0 %v919
  %1147 = vmatprep.subr.bf16.mxu0 0
  %1148 = vmatpush1.bf16.msra.mxu0 %v920
  %1149 = vmatprep.subr.bf16.mxu0 0
  %1150 = vmatpush1.bf16.msra.mxu0 %v921
  %1151 = vmatprep.subr.bf16.mxu0 0
  %1152 = vmatpush1.bf16.msra.mxu0 %v922
  %1153 = vmatprep.subr.bf16.mxu0 0
  %1154 = vmatpush1.bf16.msra.mxu0 %v923
  %1155 = vmatprep.subr.bf16.mxu0 0
  %1156 = vmatpush1.bf16.msra.mxu0 %v924
  %1157 = vmatprep.subr.bf16.mxu0 0
  %1158 = vmatpush1.bf16.msra.mxu0 %v925
  %1159 = vmatprep.subr.bf16.mxu0 0
  %1160 = vmatpush1.bf16.msra.mxu0 %v926
  %1161 = vmatprep.subr.bf16.mxu0 0
  %1162 = vmatpush1.bf16.msra.mxu0 %v927
  %1163 = vmatprep.subr.bf16.mxu0 0
  %1164 = vmatpush1.bf16.msra.mxu0 %v928
  %1165 = vmatprep.subr.bf16.mxu0 0
  %1166 = vmatpush1.bf16.msra.mxu0 %v929
  %1167 = vmatprep.subr.bf16.mxu0 0
  %1168 = vmatpush1.bf16.msra.mxu0 %v930
  %1169 = vmatprep.subr.bf16.mxu0 0
  %1170 = vmatpush1.bf16.msra.mxu0 %v931
  %1171 = vmatprep.subr.bf16.mxu0 0
  %1172 = vmatpush1.bf16.msra.mxu0 %v932
  %1173 = vmatprep.subr.bf16.mxu0 0
  %1174 = vmatpush1.bf16.msra.mxu0 %v933
  %1175 = vmatprep.mubr.bf16.mxu0 %v473
  %1176 = vmatmul.mubr.bf16.gmra.mrb[0].mxu0 %v472
  %v1177 = vpop.f32.mrb[0].mxu0
  %v1178 = vadd.f32 %v1081, %v1177
  %v1179 = vpop.f32.mrb[0].mxu0
  %v1180 = vpop.f32.mrb[0].mxu0
  %v1181 = vadd.f32 %v1084, %v1180
  %v1182 = vpop.f32.mrb[0].mxu0
  %1183 = vmatprep.mubr.bf16.mxu0 %v482
  %1184 = vmatmul.mubr.bf16.gmra.mrb[0].mxu0 %v481
  %v1185 = vpop.f32.mrb[0].mxu0
  %v1186 = vadd.f32 %v1089, %v1185
  %v1187 = vpop.f32.mrb[0].mxu0
  %v1188 = vpop.f32.mrb[0].mxu0
  %v1189 = vadd.f32 %v1092, %v1188
  %v1190 = vpop.f32.mrb[0].mxu0
  %1191 = vmatprep.mubr.bf16.mxu0 %v491
  %1192 = vmatmul.mubr.bf16.gmra.mrb[0].mxu0 %v490
  %v1193 = vpop.f32.mrb[0].mxu0
  %v1194 = vadd.f32 %v1097, %v1193
  %v1195 = vpop.f32.mrb[0].mxu0
  %v1196 = vpop.f32.mrb[0].mxu0
  %v1197 = vadd.f32 %v1100, %v1196
  %v1198 = vpop.f32.mrb[0].mxu0
  %1199 = vmatprep.mubr.bf16.mxu0 %v500
  %1200 = vmatmul.mubr.bf16.gmra.mrb[0].mxu0 %v499
  %v1201 = vpop.f32.mrb[0].mxu0
  %v1202 = vadd.f32 %v1105, %v1201
  %v1203 = vpop.f32.mrb[0].mxu0
  %v1204 = vpop.f32.mrb[0].mxu0
  %v1205 = vadd.f32 %v1108, %v1204
  %v1206 = vpop.f32.mrb[0].mxu0
  %1207 = vmatprep.mubr.bf16.mxu0 %v509
  %1208 = vmatmul.mubr.bf16.gmra.mrb[0].mxu0 %v508
  %v1209 = vpop.f32.mrb[0].mxu0
  %v1210 = vadd.f32 %v1113, %v1209
  %v1211 = vpop.f32.mrb[0].mxu0
  %v1212 = vpop.f32.mrb[0].mxu0
  %v1213 = vadd.f32 %v1116, %v1212
  %v1214 = vpop.f32.mrb[0].mxu0
  %1215 = vmatprep.mubr.bf16.mxu0 %v518
  %1216 = vmatmul.mubr.bf16.gmra.mrb[0].mxu0 %v517
  %v1217 = vpop.f32.mrb[0].mxu0
  %v1218 = vadd.f32 %v1121, %v1217
  %v1219 = vpop.f32.mrb[0].mxu0
  %v1220 = vpop.f32.mrb[0].mxu0
  %v1221 = vadd.f32 %v1124, %v1220
  %v1222 = vpop.f32.mrb[0].mxu0
  %1223 = vmatprep.mubr.bf16.mxu0 %v527
  %1224 = vmatmul.mubr.bf16.gmra.mrb[0].mxu0 %v526
  %v1225 = vpop.f32.mrb[0].mxu0
  %v1226 = vadd.f32 %v1129, %v1225
  %v1227 = vpop.f32.mrb[0].mxu0
  %v1228 = vpop.f32.mrb[0].mxu0
  %v1229 = vadd.f32 %v1132, %v1228
  %v1230 = vpop.f32.mrb[0].mxu0
  %1231 = vmatprep.mubr.bf16.mxu0 %v536
  %1232 = vmatmul.mubr.bf16.gmra.mrb[0].mxu0 %v535
  %v1233 = vpop.f32.mrb[0].mxu0
  %v1234 = vadd.f32 %v1137, %v1233
  %v1235 = vpop.f32.mrb[0].mxu0
  %v1236 = vpop.f32.mrb[0].mxu0
  %v1237 = vadd.f32 %v1140, %v1236
  %v1238 = vpop.f32.mrb[0].mxu0
  %1239 = vdwg.mxu0
  %1240 = vmatprep.subr.bf16.mxu0 0
  %1241 = vmatpush1.bf16.msra.mxu0 %v934
  %1242 = vmatprep.subr.bf16.mxu0 0
  %1243 = vmatpush1.bf16.msra.mxu0 %v935
  %1244 = vmatprep.subr.bf16.mxu0 0
  %1245 = vmatpush1.bf16.msra.mxu0 %v936
  %1246 = vmatprep.subr.bf16.mxu0 0
  %1247 = vmatpush1.bf16.msra.mxu0 %v937
  %1248 = vmatprep.subr.bf16.mxu0 0
  %1249 = vmatpush1.bf16.msra.mxu0 %v938
  %1250 = vmatprep.subr.bf16.mxu0 0
  %1251 = vmatpush1.bf16.msra.mxu0 %v939
  %1252 = vmatprep.subr.bf16.mxu0 0
  %1253 = vmatpush1.bf16.msra.mxu0 %v940
  %1254 = vmatprep.subr.bf16.mxu0 0
  %1255 = vmatpush1.bf16.msra.mxu0 %v941
  %1256 = vmatprep.subr.bf16.mxu0 0
  %1257 = vmatpush1.bf16.msra.mxu0 %v942
  %1258 = vmatprep.subr.bf16.mxu0 0
  %1259 = vmatpush1.bf16.msra.mxu0 %v943
  %1260 = vmatprep.subr.bf16.mxu0 0
  %1261 = vmatpush1.bf16.msra.mxu0 %v944
  %1262 = vmatprep.subr.bf16.mxu0 0
  %1263 = vmatpush1.bf16.msra.mxu0 %v945
  %1264 = vmatprep.subr.bf16.mxu0 0
  %1265 = vmatpush1.bf16.msra.mxu0 %v946
  %1266 = vmatprep.subr.bf16.mxu0 0
  %1267 = vmatpush1.bf16.msra.mxu0 %v947
  %1268 = vmatprep.subr.bf16.mxu0 0
  %1269 = vmatpush1.bf16.msra.mxu0 %v948
  %1270 = vmatprep.subr.bf16.mxu0 0
  %1271 = vmatpush1.bf16.msra.mxu0 %v949
  %1272 = vmatprep.mubr.bf16.mxu0 %v475
  %1273 = vmatmul.mubr.bf16.gmra.mrb[0].mxu0 %v474
  %v1274 = vpop.f32.mrb[0].mxu0
  %v1275 = vadd.f32 %v1178, %v1274
  %v1276 = vpop.f32.mrb[0].mxu0
  %v1277 = vpop.f32.mrb[0].mxu0
  %v1278 = vadd.f32 %v1181, %v1277
  %v1279 = vpop.f32.mrb[0].mxu0
  %1280 = vmatprep.mubr.bf16.mxu0 %v484
  %1281 = vmatmul.mubr.bf16.gmra.mrb[0].mxu0 %v483
  %v1282 = vpop.f32.mrb[0].mxu0
  %v1283 = vadd.f32 %v1186, %v1282
  %v1284 = vpop.f32.mrb[0].mxu0
  %v1285 = vpop.f32.mrb[0].mxu0
  %v1286 = vadd.f32 %v1189, %v1285
  %v1287 = vpop.f32.mrb[0].mxu0
  %1288 = vmatprep.mubr.bf16.mxu0 %v493
  %1289 = vmatmul.mubr.bf16.gmra.mrb[0].mxu0 %v492
  %v1290 = vpop.f32.mrb[0].mxu0
  %v1291 = vadd.f32 %v1194, %v1290
  %v1292 = vpop.f32.mrb[0].mxu0
  %v1293 = vpop.f32.mrb[0].mxu0
  %v1294 = vadd.f32 %v1197, %v1293
  %v1295 = vpop.f32.mrb[0].mxu0
  %1296 = vmatprep.mubr.bf16.mxu0 %v502
  %1297 = vmatmul.mubr.bf16.gmra.mrb[0].mxu0 %v501
  %v1298 = vpop.f32.mrb[0].mxu0
  %v1299 = vadd.f32 %v1202, %v1298
  %v1300 = vpop.f32.mrb[0].mxu0
  %v1301 = vpop.f32.mrb[0].mxu0
  %v1302 = vadd.f32 %v1205, %v1301
  %v1303 = vpop.f32.mrb[0].mxu0
  %1304 = vmatprep.mubr.bf16.mxu0 %v511
  %1305 = vmatmul.mubr.bf16.gmra.mrb[0].mxu0 %v510
  %v1306 = vpop.f32.mrb[0].mxu0
  %v1307 = vadd.f32 %v1210, %v1306
  %v1308 = vpop.f32.mrb[0].mxu0
  %v1309 = vpop.f32.mrb[0].mxu0
  %v1310 = vadd.f32 %v1213, %v1309
  %v1311 = vpop.f32.mrb[0].mxu0
  %1312 = vmatprep.mubr.bf16.mxu0 %v520
  %1313 = vmatmul.mubr.bf16.gmra.mrb[0].mxu0 %v519
  %v1314 = vpop.f32.mrb[0].mxu0
  %v1315 = vadd.f32 %v1218, %v1314
  %v1316 = vpop.f32.mrb[0].mxu0
  %v1317 = vpop.f32.mrb[0].mxu0
  %v1318 = vadd.f32 %v1221, %v1317
  %v1319 = vpop.f32.mrb[0].mxu0
  %1320 = vmatprep.mubr.bf16.mxu0 %v529
  %1321 = vmatmul.mubr.bf16.gmra.mrb[0].mxu0 %v528
  %v1322 = vpop.f32.mrb[0].mxu0
  %v1323 = vadd.f32 %v1226, %v1322
  %v1324 = vpop.f32.mrb[0].mxu0
  %v1325 = vpop.f32.mrb[0].mxu0
  %v1326 = vadd.f32 %v1229, %v1325
  %v1327 = vpop.f32.mrb[0].mxu0
  %1328 = vmatprep.mubr.bf16.mxu0 %v538
  %1329 = vmatmul.mubr.bf16.gmra.mrb[0].mxu0 %v537
  %v1330 = vpop.f32.mrb[0].mxu0
  %v1331 = vadd.f32 %v1234, %v1330
  %v1332 = vpop.f32.mrb[0].mxu0
  %v1333 = vpop.f32.mrb[0].mxu0
  %v1334 = vadd.f32 %v1237, %v1333
  %v1335 = vpop.f32.mrb[0].mxu0
  %1336 = vdwg.mxu0
  %1337 = vmatprep.subr.bf16.mxu0 0
  %1338 = vmatpush1.bf16.msra.mxu0 %v950
  %1339 = vmatprep.subr.bf16.mxu0 0
  %1340 = vmatpush1.bf16.msra.mxu0 %v951
  %1341 = vmatprep.subr.bf16.mxu0 0
  %1342 = vmatpush1.bf16.msra.mxu0 %v952
  %1343 = vmatprep.subr.bf16.mxu0 0
  %1344 = vmatpush1.bf16.msra.mxu0 %v953
  %1345 = vmatprep.subr.bf16.mxu0 0
  %1346 = vmatpush1.bf16.msra.mxu0 %v954
  %1347 = vmatprep.subr.bf16.mxu0 0
  %1348 = vmatpush1.bf16.msra.mxu0 %v955
  %1349 = vmatprep.subr.bf16.mxu0 0
  %1350 = vmatpush1.bf16.msra.mxu0 %v956
  %1351 = vmatprep.subr.bf16.mxu0 0
  %1352 = vmatpush1.bf16.msra.mxu0 %v957
  %1353 = vmatprep.subr.bf16.mxu0 0
  %1354 = vmatpush1.bf16.msra.mxu0 %v958
  %1355 = vmatprep.subr.bf16.mxu0 0
  %1356 = vmatpush1.bf16.msra.mxu0 %v959
  %1357 = vmatprep.subr.bf16.mxu0 0
  %1358 = vmatpush1.bf16.msra.mxu0 %v960
  %1359 = vmatprep.subr.bf16.mxu0 0
  %1360 = vmatpush1.bf16.msra.mxu0 %v961
  %1361 = vmatprep.subr.bf16.mxu0 0
  %1362 = vmatpush1.bf16.msra.mxu0 %v962
  %1363 = vmatprep.subr.bf16.mxu0 0
  %1364 = vmatpush1.bf16.msra.mxu0 %v963
  %1365 = vmatprep.subr.bf16.mxu0 0
  %1366 = vmatpush1.bf16.msra.mxu0 %v964
  %1367 = vmatprep.subr.bf16.mxu0 0
  %1368 = vmatpush1.bf16.msra.mxu0 %v965
  %1369 = vmatprep.mubr.bf16.mxu0 %v477
  %1370 = vmatmul.mubr.bf16.gmra.mrb[0].mxu0 %v476
  %v1371 = vpop.f32.mrb[0].mxu0
  %v1372 = vadd.f32 %v1275, %v1371
  %v1373 = vpop.f32.mrb[0].mxu0
  %v1374 = vpop.f32.mrb[0].mxu0
  %v1375 = vadd.f32 %v1278, %v1374
  %v1376 = vpop.f32.mrb[0].mxu0
  %1377 = vmatprep.mubr.bf16.mxu0 %v486
  %1378 = vmatmul.mubr.bf16.gmra.mrb[0].mxu0 %v485
  %v1379 = vpop.f32.mrb[0].mxu0
  %v1380 = vadd.f32 %v1283, %v1379
  %v1381 = vpop.f32.mrb[0].mxu0
  %v1382 = vpop.f32.mrb[0].mxu0
  %v1383 = vadd.f32 %v1286, %v1382
  %v1384 = vpop.f32.mrb[0].mxu0
  %1385 = vmatprep.mubr.bf16.mxu0 %v495
  %1386 = vmatmul.mubr.bf16.gmra.mrb[0].mxu0 %v494
  %v1387 = vpop.f32.mrb[0].mxu0
  %v1388 = vadd.f32 %v1291, %v1387
  %v1389 = vpop.f32.mrb[0].mxu0
  %v1390 = vpop.f32.mrb[0].mxu0
  %v1391 = vadd.f32 %v1294, %v1390
  %v1392 = vpop.f32.mrb[0].mxu0
  %1393 = vmatprep.mubr.bf16.mxu0 %v504
  %1394 = vmatmul.mubr.bf16.gmra.mrb[0].mxu0 %v503
  %v1395 = vpop.f32.mrb[0].mxu0
  %v1396 = vadd.f32 %v1299, %v1395
  %v1397 = vpop.f32.mrb[0].mxu0
  %v1398 = vpop.f32.mrb[0].mxu0
  %v1399 = vadd.f32 %v1302, %v1398
  %v1400 = vpop.f32.mrb[0].mxu0
  %1401 = vmatprep.mubr.bf16.mxu0 %v513
  %1402 = vmatmul.mubr.bf16.gmra.mrb[0].mxu0 %v512
  %v1403 = vpop.f32.mrb[0].mxu0
  %v1404 = vadd.f32 %v1307, %v1403
  %v1405 = vpop.f32.mrb[0].mxu0
  %v1406 = vpop.f32.mrb[0].mxu0
  %v1407 = vadd.f32 %v1310, %v1406
  %v1408 = vpop.f32.mrb[0].mxu0
  %1409 = vmatprep.mubr.bf16.mxu0 %v522
  %1410 = vmatmul.mubr.bf16.gmra.mrb[0].mxu0 %v521
  %v1411 = vpop.f32.mrb[0].mxu0
  %v1412 = vadd.f32 %v1315, %v1411
  %v1413 = vpop.f32.mrb[0].mxu0
  %v1414 = vpop.f32.mrb[0].mxu0
  %v1415 = vadd.f32 %v1318, %v1414
  %v1416 = vpop.f32.mrb[0].mxu0
  %1417 = vmatprep.mubr.bf16.mxu0 %v531
  %1418 = vmatmul.mubr.bf16.gmra.mrb[0].mxu0 %v530
  %v1419 = vpop.f32.mrb[0].mxu0
  %v1420 = vadd.f32 %v1323, %v1419
  %v1421 = vpop.f32.mrb[0].mxu0
  %v1422 = vpop.f32.mrb[0].mxu0
  %v1423 = vadd.f32 %v1326, %v1422
  %v1424 = vpop.f32.mrb[0].mxu0
  %1425 = vmatprep.mubr.bf16.mxu0 %v540
  %1426 = vmatmul.mubr.bf16.gmra.mrb[0].mxu0 %v539
  %v1427 = vpop.f32.mrb[0].mxu0
  %v1428 = vadd.f32 %v1331, %v1427
  %v1429 = vpop.f32.mrb[0].mxu0
  %v1430 = vpop.f32.mrb[0].mxu0
  %v1431 = vadd.f32 %v1334, %v1430
  %v1432 = vpop.f32.mrb[0].mxu0
  %1433 = vdwg.mxu0
  %1434 = vmatprep.subr.bf16.mxu0 0
  %1435 = vmatpush1.bf16.msra.mxu0 %v966
  %1436 = vmatprep.subr.bf16.mxu0 0
  %1437 = vmatpush1.bf16.msra.mxu0 %v967
  %1438 = vmatprep.subr.bf16.mxu0 0
  %1439 = vmatpush1.bf16.msra.mxu0 %v968
  %1440 = vmatprep.subr.bf16.mxu0 0
  %1441 = vmatpush1.bf16.msra.mxu0 %v969
  %1442 = vmatprep.subr.bf16.mxu0 0
  %1443 = vmatpush1.bf16.msra.mxu0 %v970
  %1444 = vmatprep.subr.bf16.mxu0 0
  %1445 = vmatpush1.bf16.msra.mxu0 %v971
  %1446 = vmatprep.subr.bf16.mxu0 0
  %1447 = vmatpush1.bf16.msra.mxu0 %v972
  %1448 = vmatprep.subr.bf16.mxu0 0
  %1449 = vmatpush1.bf16.msra.mxu0 %v973
  %1450 = vmatprep.subr.bf16.mxu0 0
  %1451 = vmatpush1.bf16.msra.mxu0 0
  %1452 = vmatprep.subr.bf16.mxu0 0
  %1453 = vmatpush1.bf16.msra.mxu0 0
  %1454 = vmatprep.subr.bf16.mxu0 0
  %1455 = vmatpush1.bf16.msra.mxu0 0
  %1456 = vmatprep.subr.bf16.mxu0 0
  %1457 = vmatpush1.bf16.msra.mxu0 0
  %1458 = vmatprep.subr.bf16.mxu0 0
  %1459 = vmatpush1.bf16.msra.mxu0 0
  %1460 = vmatprep.subr.bf16.mxu0 0
  %1461 = vmatpush1.bf16.msra.mxu0 0
  %1462 = vmatprep.subr.bf16.mxu0 0
  %1463 = vmatpush1.bf16.msra.mxu0 0
  %1464 = vmatprep.subr.bf16.mxu0 0
  %1465 = vmatpush1.bf16.msra.mxu0 0
  %1466 = vmatprep.mubr.bf16.mxu0 0
  %1467 = vmatmul.mubr.bf16.gmra.mrb[0].mxu0 %v478
  %v1468 = vpop.f32.mrb[0].mxu0
  %v1469 = vadd.f32 %v1372, %v1468
  %v1470 = vpop.f32.mrb[0].mxu0
  %v1471 = vpop.f32.mrb[0].mxu0
  %v1472 = vadd.f32 %v1375, %v1471
  %v1473 = vpop.f32.mrb[0].mxu0
  %1474 = vmatprep.mubr.bf16.mxu0 0
  %1475 = vmatmul.mubr.bf16.gmra.mrb[0].mxu0 %v487
  %v1476 = vpop.f32.mrb[0].mxu0
  %v1477 = vadd.f32 %v1380, %v1476
  %v1478 = vpop.f32.mrb[0].mxu0
  %v1479 = vpop.f32.mrb[0].mxu0
  %v1480 = vadd.f32 %v1383, %v1479
  %v1481 = vpop.f32.mrb[0].mxu0
  %1482 = vmatprep.mubr.bf16.mxu0 0
  %1483 = vmatmul.mubr.bf16.gmra.mrb[0].mxu0 %v496
  %v1484 = vpop.f32.mrb[0].mxu0
  %v1485 = vadd.f32 %v1388, %v1484
  %v1486 = vpop.f32.mrb[0].mxu0
  %v1487 = vpop.f32.mrb[0].mxu0
  %v1488 = vadd.f32 %v1391, %v1487
  %v1489 = vpop.f32.mrb[0].mxu0
  %1490 = vmatprep.mubr.bf16.mxu0 0
  %1491 = vmatmul.mubr.bf16.gmra.mrb[0].mxu0 %v505
  %v1492 = vpop.f32.mrb[0].mxu0
  %v1493 = vadd.f32 %v1396, %v1492
  %v1494 = vpop.f32.mrb[0].mxu0
  %v1495 = vpop.f32.mrb[0].mxu0
  %v1496 = vadd.f32 %v1399, %v1495
  %v1497 = vpop.f32.mrb[0].mxu0
  %1498 = vmatprep.mubr.bf16.mxu0 0
  %1499 = vmatmul.mubr.bf16.gmra.mrb[0].mxu0 %v514
  %v1500 = vpop.f32.mrb[0].mxu0
  %v1501 = vadd.f32 %v1404, %v1500
  %v1502 = vpop.f32.mrb[0].mxu0
  %v1503 = vpop.f32.mrb[0].mxu0
  %v1504 = vadd.f32 %v1407, %v1503
  %v1505 = vpop.f32.mrb[0].mxu0
  %1506 = vmatprep.mubr.bf16.mxu0 0
  %1507 = vmatmul.mubr.bf16.gmra.mrb[0].mxu0 %v523
  %v1508 = vpop.f32.mrb[0].mxu0
  %v1509 = vadd.f32 %v1412, %v1508
  %v1510 = vpop.f32.mrb[0].mxu0
  %v1511 = vpop.f32.mrb[0].mxu0
  %v1512 = vadd.f32 %v1415, %v1511
  %v1513 = vpop.f32.mrb[0].mxu0
  %1514 = vmatprep.mubr.bf16.mxu0 0
  %1515 = vmatmul.mubr.bf16.gmra.mrb[0].mxu0 %v532
  %v1516 = vpop.f32.mrb[0].mxu0
  %v1517 = vadd.f32 %v1420, %v1516
  %v1518 = vpop.f32.mrb[0].mxu0
  %v1519 = vpop.f32.mrb[0].mxu0
  %v1520 = vadd.f32 %v1423, %v1519
  %v1521 = vpop.f32.mrb[0].mxu0
  %1522 = vmatprep.mubr.bf16.mxu0 0
  %1523 = vmatmul.mubr.bf16.gmra.mrb[0].mxu0 %v541
  %v1524 = vpop.f32.mrb[0].mxu0
  %v1525 = vadd.f32 %v1428, %v1524
  %v1526 = vpop.f32.mrb[0].mxu0
  %v1527 = vpop.f32.mrb[0].mxu0
  %v1528 = vadd.f32 %v1431, %v1527
  %v1529 = vpop.f32.mrb[0].mxu0
  %1530 = vdwg.mxu0
  %1531 = vst [vmem:[%s3] sm:$0xff] %v1469
  %1532 = vst [vmem:[%s3 + $0x8] sm:$0xff] %v1472
  %1533 = vst [vmem:[%s3 + $0x10] sm:$0xff] %v1477
  %1534 = vst [vmem:[%s3 + $0x18] sm:$0xff] %v1480
  %1535 = vst [vmem:[%s3 + $0x20] sm:$0xff] %v1485
  %1536 = vst [vmem:[%s3 + $0x28] sm:$0xff] %v1488
  %1537 = vst [vmem:[%s3 + $0x30] sm:$0xff] %v1493
  %1538 = vst [vmem:[%s3 + $0x38] sm:$0xff] %v1496
  %1539 = vst [vmem:[%s3 + $0x40] sm:$0xff] %v1501
  %1540 = vst [vmem:[%s3 + $0x48] sm:$0xff] %v1504
  %1541 = vst [vmem:[%s3 + $0x50] sm:$0xff] %v1509
  %1542 = vst [vmem:[%s3 + $0x58] sm:$0xff] %v1512
  %1543 = vst [vmem:[%s3 + $0x60] sm:$0xff] %v1517
  %1544 = vst [vmem:[%s3 + $0x68] sm:$0xff] %v1520
  %1545 = vst [vmem:[%s3 + $0x70] sm:$0xff] %v1525
  %1546 = vst [vmem:[%s3 + $0x78] sm:$0xff] %v1528
  // Predicated region
  $region14: #{transnet_forward.57} parent=0 // pred_check
    _
  $region15: #{transnet_forward.57} parent=0 // pred_check_branch
    %1548 = sbr.rel (0) target = $region17
  $region16: #{transnet_forward.57} parent=0 // pred_region
    _
  $region17: #{transnet_forward.57} parent=0 // pred_fallthru
    _
  // Predicated region
  $region18: #{transnet_forward.57} parent=0 // pred_check
    _
  $region19: #{transnet_forward.57} parent=0 // pred_check_branch
    %1550 = sbr.rel (0) target = $region21
  $region20: #{transnet_forward.57} parent=0 // pred_region
    _
  $region21: #{transnet_forward.57} parent=0 // pred_fallthru
    _

// kernel: transnet_forward.59
$region0: #{transnet_forward.59}
  #allocation0 [shape = 'u32[]', space=smem, size = 0x4, offset = 0x4, fixed_abs, tag = 'smem constant byte address 0x4 - core index']
  #allocation1 [shape = 'u32[144,128]{1,0:T(1,128)}', space=vmem, size = 0x12000, scoped, tag = 'internal scratch']
  %s0 = inlined_call_operand.vmem [shape: bf16[512,640], index: 0, kind: input, shape index: {}]
  %s1 = inlined_call_operand.vmem [shape: bf16[640,128], index: 1, kind: input, shape index: {}]
  %s2 = inlined_call_operand.vmem [shape: f32[1,128], index: 2, kind: input, shape index: {}]
  %s3 = inlined_call_operand.vmem [shape: f32[512,128], index: 3, kind: output, shape index: {}]
  %s4 = sld [smem:[#allocation0]]
  $region45: #{transnet_forward.59} parent=0
    _
  %s6 = ssub.s32 1, %s4
  %s7 = scalar_select 0, %s6, %s4
  loop: start=0, step=1, limit=4
  $region2: #{transnet_forward.59} parent=0 // loop_pre_header
    _
  $region3: #{transnet_forward.59} parent=0 // loop_header
    %s9 = sphi 0, %s13
    %p10 = scmp.ge.s32.totalorder %s9, 4
    %s19 = sphi 0, %s21
    %s22 = sphi 0, %s19
    %s23 = sphi 0, %s22
    %s39 = sphi 0, %s23
    %s43 = sphi 0, %s43
    %s45 = sphi 0, %s43
    %s46 = sphi 0, %s45
    %s60 = sphi 0, %s46
    %s64 = sphi 0, %s64
    %s66 = sphi 0, %s64
    %s67 = sphi 0, %s66
    %s81 = sphi 0, %s67
    %s87 = sphi 0, %s89
    %s90 = sphi 0, %s87
    %s91 = sphi 0, %s90
    %s107 = sphi 0, %s91
  $region4: #{transnet_forward.59} parent=0 // loop_header_branch
    %12 = sbr.rel (%p10) target = $region8
  $region5: #{transnet_forward.59} parent=0 // loop_body
    %s14 = ssub.s32 %s9, 1
    %s15 = ssub.s32 %s9, 2
    %s16 = sadd.s32 %s9, 1
    %s17 = ssub.s32 %s9, %s16
    %p18 = scmp.eq.s32.totalorder %s17, 0
    %s20 = sadd.s32 %s19, 1
    %s21 = scalar_select %p18, %s19, %s20
    %p24 = pneg %p18
    %p25 = scmp.eq.s32.totalorder %s9, 1
    %p26 = por %p24, %p25
    %p27 = scmp.ne.s32.totalorder %s19, %s22
    %p28 = scmp.eq.s32.totalorder %s9, 0
    %p29 = por %p27, %p28
    %p30 = scmp.ne.s32.totalorder %s19, %s22
    %p31 = scmp.eq.s32.totalorder %s14, 1
    %p32 = por %p30, %p31
    %p33 = scmp.ne.s32.totalorder %s22, %s23
    %p34 = scmp.eq.s32.totalorder %s14, 0
    %p35 = por %p33, %p34
    %p36 = scmp.ne.s32.totalorder %s22, %s23
    %p37 = scmp.eq.s32.totalorder %s15, 1
    %p38 = por %p36, %p37
    %p40 = scmp.ne.s32.totalorder %s23, %s39
    %p41 = scmp.eq.s32.totalorder %s15, 0
    %p42 = por %p40, %p41
    %s44 = sadd.s32 %s43, 1
    %p47 = scmp.eq.s32.totalorder %s9, 1
    %p48 = scmp.ne.s32.totalorder %s43, %s45
    %p49 = scmp.eq.s32.totalorder %s9, 0
    %p50 = por %p48, %p49
    %p51 = scmp.ne.s32.totalorder %s43, %s45
    %p52 = scmp.eq.s32.totalorder %s14, 1
    %p53 = por %p51, %p52
    %p54 = scmp.ne.s32.totalorder %s45, %s46
    %p55 = scmp.eq.s32.totalorder %s14, 0
    %p56 = por %p54, %p55
    %p57 = scmp.ne.s32.totalorder %s45, %s46
    %p58 = scmp.eq.s32.totalorder %s15, 1
    %p59 = por %p57, %p58
    %p61 = scmp.ne.s32.totalorder %s46, %s60
    %p62 = scmp.eq.s32.totalorder %s15, 0
    %p63 = por %p61, %p62
    %s65 = sadd.s32 %s64, 1
    %p68 = scmp.eq.s32.totalorder %s9, 1
    %p69 = scmp.ne.s32.totalorder %s64, %s66
    %p70 = scmp.eq.s32.totalorder %s9, 0
    %p71 = por %p69, %p70
    %p72 = scmp.ne.s32.totalorder %s64, %s66
    %p73 = scmp.eq.s32.totalorder %s14, 1
    %p74 = por %p72, %p73
    %p75 = scmp.ne.s32.totalorder %s66, %s67
    %p76 = scmp.eq.s32.totalorder %s14, 0
    %p77 = por %p75, %p76
    %p78 = scmp.ne.s32.totalorder %s66, %s67
    %p79 = scmp.eq.s32.totalorder %s15, 1
    %p80 = por %p78, %p79
    %p82 = scmp.ne.s32.totalorder %s67, %s81
    %p83 = scmp.eq.s32.totalorder %s15, 0
    %p84 = por %p82, %p83
    %s85 = ssub.s32 %s9, %s16
    %p86 = scmp.eq.s32.totalorder %s85, 0
    %s88 = sadd.s32 %s87, 1
    %s89 = scalar_select %p86, %s87, %s88
    %p92 = pneg %p86
    %p93 = scmp.eq.s32.totalorder %s9, 1
    %p94 = por %p92, %p93
    %p95 = scmp.ne.s32.totalorder %s87, %s90
    %p96 = scmp.eq.s32.totalorder %s9, 0
    %p97 = por %p95, %p96
    %p98 = scmp.ne.s32.totalorder %s87, %s90
    %p99 = scmp.eq.s32.totalorder %s14, 1
    %p100 = por %p98, %p99
    %p101 = scmp.ne.s32.totalorder %s90, %s91
    %p102 = scmp.eq.s32.totalorder %s14, 0
    %p103 = por %p101, %p102
    %p104 = scmp.ne.s32.totalorder %s90, %s91
    %p105 = scmp.eq.s32.totalorder %s15, 1
    %p106 = por %p104, %p105
    %p108 = scmp.ne.s32.totalorder %s91, %s107
    %p109 = scmp.eq.s32.totalorder %s15, 0
    %p110 = por %p108, %p109
    %p111 = scmp.le.s32.totalorder 1, %s9
    %p112 = scmp.lt.s32.totalorder %s9, 3
    %p113 = pnand %p111, %p112
    %p114 = pneg %p113
    // Predicated region
    $region9: #{transnet_forward.59} parent=5 // pred_check
      _
    $region10: #{transnet_forward.59} parent=5 // pred_check_branch
      %116 = sbr.rel (%p113) target = $region12
    $region11: #{transnet_forward.59} parent=5 // pred_region
      %s117 = ssub.s32 %s9, 1
      // Predicated region
      $region13: #{transnet_forward.59} parent=11 // pred_check
        %p118 = pneg %p56
      $region14: #{transnet_forward.59} parent=11 // pred_check_branch
        %120 = sbr.rel (%p118) target = $region16
      $region15: #{transnet_forward.59} parent=11 // pred_region
        _
      $region16: #{transnet_forward.59} parent=11 // pred_fallthru
        _
      // Predicated region
      $region17: #{transnet_forward.59} parent=11 // pred_check
        %p121 = pneg %p77
      $region18: #{transnet_forward.59} parent=11 // pred_check_branch
        %123 = sbr.rel (%p121) target = $region20
      $region19: #{transnet_forward.59} parent=11 // pred_region
        _
      $region20: #{transnet_forward.59} parent=11 // pred_fallthru
        _
    $region12: #{transnet_forward.59} parent=5 // pred_fallthru
      _
    %p124 = scmp.lt.s32.totalorder %s9, 2
    // Predicated region
    $region21: #{transnet_forward.59} parent=5 // pred_check
      %p125 = pneg %p124
    $region22: #{transnet_forward.59} parent=5 // pred_check_branch
      %127 = sbr.rel (%p125) target = $region24
    $region23: #{transnet_forward.59} parent=5 // pred_region
      // Predicated region
      $region25: #{transnet_forward.59} parent=23 // pred_check
        %p128 = pneg %p29
      $region26: #{transnet_forward.59} parent=23 // pred_check_branch
        %130 = sbr.rel (%p128) target = $region28
      $region27: #{transnet_forward.59} parent=23 // pred_region
        %s131 = smul.u32 32, %s9
        %p132 = scmp.lt.s32.totalorder %s131, 63
        %s133 = scalar_select %p132, %s131, 63
        %s134 = smul.addr %s133, 5
        %s135 = smul.addr %s134, 4
        %s136 = scalar_lea.vmem %s0, %s135
        %s137 = smul.u32 32, %s9
      $region28: #{transnet_forward.59} parent=23 // pred_fallthru
        _
    $region24: #{transnet_forward.59} parent=5 // pred_fallthru
      _
    %p138 = scmp.le.s32.totalorder 1, %s9
    %p139 = scmp.lt.s32.totalorder %s9, 3
    %p140 = pnand %p138, %p139
    %p141 = pneg %p140
    // Predicated region
    $region29: #{transnet_forward.59} parent=5 // pred_check
      _
    $region30: #{transnet_forward.59} parent=5 // pred_check_branch
      %143 = sbr.rel (%p140) target = $region32
    $region31: #{transnet_forward.59} parent=5 // pred_region
      %s144 = ssub.s32 %s9, 1
      %s145 = smul.u32 32, %s14
      %p146 = scmp.lt.s32.totalorder %s145, 63
      %s147 = scalar_select %p146, %s145, 63
      %s148 = smul.addr %s147, 5
      %s149 = smul.addr %s148, 4
      %s150 = scalar_lea.vmem %s0, %s149
      %p151 = pneg %p35
      %p152 = pneg %p32
      %p153 = pneg %p56
      %p154 = pneg %p53
      %p155 = pneg %p77
      %p156 = pneg %p74
      %p157 = pneg %p103
      %p158 = pneg %p100
      %s159 = smul.u32 32, %s14
      %p160 = scmp.lt.s32.totalorder %s159, 63
      %s161 = scalar_select %p160, %s159, 63
      %s162 = smul.addr %s161, 8
      %s163 = scalar_lea.vmem %s3, %s162
      %s164 = smul.u32 32, %s14
      %p165 = scmp.lt.s32.totalorder %s164, 63
      %s166 = scalar_select %p165, %s164, 63
      %s167 = smul.addr %s166, 5
      %s168 = smul.addr %s167, 4
      %s169 = scalar_lea.vmem %s0, %s168
      %s170 = smul.u32 32, %s14
      %s171 = smul.u32 32, %s14
      %p172 = scmp.lt.s32.totalorder %s171, 63
      %s173 = scalar_select %p172, %s171, 63
      %s174 = smul.addr %s173, 8
      %s175 = scalar_lea.vmem %s3, %s174
      %s176 = smul.u32 32, %s14
      %v178 = vld [vmem:[%s169] sm:$0xff]
      %v179 = vld [vmem:[%s169 + $0x8] sm:$0xff]
      %v180 = vld [vmem:[%s169 + $0x10] sm:$0xf]
      %v181 = vld [vmem:[%s169 + $0x14] sm:$0xff]
      %v182 = vld [vmem:[%s169 + $0x1c] sm:$0xff]
      %v183 = vld [vmem:[%s169 + $0x24] sm:$0xf]
      %v184 = vld [vmem:[%s169 + $0x28] sm:$0xff]
      %v185 = vld [vmem:[%s169 + $0x30] sm:$0xff]
      %v186 = vld [vmem:[%s169 + $0x38] sm:$0xf]
      %v187 = vld [vmem:[%s169 + $0x3c] sm:$0xff]
      %v188 = vld [vmem:[%s169 + $0x44] sm:$0xff]
      %v189 = vld [vmem:[%s169 + $0x4c] sm:$0xf]
      %v190 = vld [vmem:[%s169 + $0x50] sm:$0xff]
      %v191 = vld [vmem:[%s169 + $0x58] sm:$0xff]
      %v192 = vld [vmem:[%s169 + $0x60] sm:$0xf]
      %v193 = vld [vmem:[%s169 + $0x64] sm:$0xff]
      %v194 = vld [vmem:[%s169 + $0x6c] sm:$0xff]
      %v195 = vld [vmem:[%s169 + $0x74] sm:$0xf]
      %v196 = vld [vmem:[%s169 + $0x78] sm:$0xff]
      %v197 = vld [vmem:[%s169 + $0x80] sm:$0xff]
      %v198 = vld [vmem:[%s169 + $0x88] sm:$0xf]
      %v199 = vld [vmem:[%s169 + $0x8c] sm:$0xff]
      %v200 = vld [vmem:[%s169 + $0x94] sm:$0xff]
      %v201 = vld [vmem:[%s169 + $0x9c] sm:$0xf]
      %v202 = vld [vmem:[%s169 + $0xa0] sm:$0xff]
      %v203 = vld [vmem:[%s169 + $0xa8] sm:$0xff]
      %v204 = vld [vmem:[%s169 + $0xb0] sm:$0xf]
      %v205 = vld [vmem:[%s169 + $0xb4] sm:$0xff]
      %v206 = vld [vmem:[%s169 + $0xbc] sm:$0xff]
      %v207 = vld [vmem:[%s169 + $0xc4] sm:$0xf]
      %v208 = vld [vmem:[%s169 + $0xc8] sm:$0xff]
      %v209 = vld [vmem:[%s169 + $0xd0] sm:$0xff]
      %v210 = vld [vmem:[%s169 + $0xd8] sm:$0xf]
      %v211 = vld [vmem:[%s169 + $0xdc] sm:$0xff]
      %v212 = vld [vmem:[%s169 + $0xe4] sm:$0xff]
      %v213 = vld [vmem:[%s169 + $0xec] sm:$0xf]
      %v214 = vld [vmem:[%s169 + $0xf0] sm:$0xff]
      %v215 = vld [vmem:[%s169 + $0xf8] sm:$0xff]
      %v216 = vld [vmem:[%s169 + $0x100] sm:$0xf]
      %v217 = vld [vmem:[%s169 + $0x104] sm:$0xff]
      %v218 = vld [vmem:[%s169 + $0x10c] sm:$0xff]
      %v219 = vld [vmem:[%s169 + $0x114] sm:$0xf]
      %v220 = vld [vmem:[%s169 + $0x118] sm:$0xff]
      %v221 = vld [vmem:[%s169 + $0x120] sm:$0xff]
      %v222 = vld [vmem:[%s169 + $0x128] sm:$0xf]
      %v223 = vld [vmem:[%s169 + $0x12c] sm:$0xff]
      %v224 = vld [vmem:[%s169 + $0x134] sm:$0xff]
      %v225 = vld [vmem:[%s169 + $0x13c] sm:$0xf]
      %v226 = vld [vmem:[%s169 + $0x140] sm:$0xff]
      %v227 = vld [vmem:[%s169 + $0x148] sm:$0xff]
      %v228 = vld [vmem:[%s169 + $0x150] sm:$0xf]
      %v229 = vld [vmem:[%s169 + $0x154] sm:$0xff]
      %v230 = vld [vmem:[%s169 + $0x15c] sm:$0xff]
      %v231 = vld [vmem:[%s169 + $0x164] sm:$0xf]
      %v232 = vld [vmem:[%s169 + $0x168] sm:$0xff]
      %v233 = vld [vmem:[%s169 + $0x170] sm:$0xff]
      %v234 = vld [vmem:[%s169 + $0x178] sm:$0xf]
      %v235 = vld [vmem:[%s169 + $0x17c] sm:$0xff]
      %v236 = vld [vmem:[%s169 + $0x184] sm:$0xff]
      %v237 = vld [vmem:[%s169 + $0x18c] sm:$0xf]
      %v238 = vld [vmem:[%s169 + $0x190] sm:$0xff]
      %v239 = vld [vmem:[%s169 + $0x198] sm:$0xff]
      %v240 = vld [vmem:[%s169 + $0x1a0] sm:$0xf]
      %v241 = vld [vmem:[%s169 + $0x1a4] sm:$0xff]
      %v242 = vld [vmem:[%s169 + $0x1ac] sm:$0xff]
      %v243 = vld [vmem:[%s169 + $0x1b4] sm:$0xf]
      %v244 = vld [vmem:[%s169 + $0x1b8] sm:$0xff]
      %v245 = vld [vmem:[%s169 + $0x1c0] sm:$0xff]
      %v246 = vld [vmem:[%s169 + $0x1c8] sm:$0xf]
      %v247 = vld [vmem:[%s169 + $0x1cc] sm:$0xff]
      %v248 = vld [vmem:[%s169 + $0x1d4] sm:$0xff]
      %v249 = vld [vmem:[%s169 + $0x1dc] sm:$0xf]
      %v250 = vld [vmem:[%s169 + $0x1e0] sm:$0xff]
      %v251 = vld [vmem:[%s169 + $0x1e8] sm:$0xff]
      %v252 = vld [vmem:[%s169 + $0x1f0] sm:$0xf]
      %v253 = vld [vmem:[%s169 + $0x1f4] sm:$0xff]
      %v254 = vld [vmem:[%s169 + $0x1fc] sm:$0xff]
      %v255 = vld [vmem:[%s169 + $0x204] sm:$0xf]
      %v256 = vld [vmem:[%s169 + $0x208] sm:$0xff]
      %v257 = vld [vmem:[%s169 + $0x210] sm:$0xff]
      %v258 = vld [vmem:[%s169 + $0x218] sm:$0xf]
      %v259 = vld [vmem:[%s169 + $0x21c] sm:$0xff]
      %v260 = vld [vmem:[%s169 + $0x224] sm:$0xff]
      %v261 = vld [vmem:[%s169 + $0x22c] sm:$0xf]
      %v262 = vld [vmem:[%s169 + $0x230] sm:$0xff]
      %v263 = vld [vmem:[%s169 + $0x238] sm:$0xff]
      %v264 = vld [vmem:[%s169 + $0x240] sm:$0xf]
      %v265 = vld [vmem:[%s169 + $0x244] sm:$0xff]
      %v266 = vld [vmem:[%s169 + $0x24c] sm:$0xff]
      %v267 = vld [vmem:[%s169 + $0x254] sm:$0xf]
      %v268 = vld [vmem:[%s169 + $0x258] sm:$0xff]
      %v269 = vld [vmem:[%s169 + $0x260] sm:$0xff]
      %v270 = vld [vmem:[%s169 + $0x268] sm:$0xf]
      %v271 = vld [vmem:[%s169 + $0x26c] sm:$0xff]
      %v272 = vld [vmem:[%s169 + $0x274] sm:$0xff]
      %v273 = vld [vmem:[%s169 + $0x27c] sm:$0xf]
      %v274 = vld [vmem:[%s1] sm:$0xf]
      %v275 = vld [vmem:[%s1 + $0x4] sm:$0xf]
      %v276 = vld [vmem:[%s1 + $0x8] sm:$0xf]
      %v277 = vld [vmem:[%s1 + $0xc] sm:$0xf]
      %v278 = vld [vmem:[%s1 + $0x10] sm:$0xf]
      %v279 = vld [vmem:[%s1 + $0x14] sm:$0xf]
      %v280 = vld [vmem:[%s1 + $0x18] sm:$0xf]
      %v281 = vld [vmem:[%s1 + $0x1c] sm:$0xf]
      %v282 = vld [vmem:[%s1 + $0x20] sm:$0xf]
      %v283 = vld [vmem:[%s1 + $0x24] sm:$0xf]
      %v284 = vld [vmem:[%s1 + $0x28] sm:$0xf]
      %v285 = vld [vmem:[%s1 + $0x2c] sm:$0xf]
      %v286 = vld [vmem:[%s1 + $0x30] sm:$0xf]
      %v287 = vld [vmem:[%s1 + $0x34] sm:$0xf]
      %v288 = vld [vmem:[%s1 + $0x38] sm:$0xf]
      %v289 = vld [vmem:[%s1 + $0x3c] sm:$0xf]
      %v290 = vld [vmem:[%s1 + $0x40] sm:$0xf]
      %v291 = vld [vmem:[%s1 + $0x44] sm:$0xf]
      %v292 = vld [vmem:[%s1 + $0x48] sm:$0xf]
      %v293 = vld [vmem:[%s1 + $0x4c] sm:$0xf]
      %v294 = vld [vmem:[%s1 + $0x50] sm:$0xf]
      %v295 = vld [vmem:[%s1 + $0x54] sm:$0xf]
      %v296 = vld [vmem:[%s1 + $0x58] sm:$0xf]
      %v297 = vld [vmem:[%s1 + $0x5c] sm:$0xf]
      %v298 = vld [vmem:[%s1 + $0x60] sm:$0xf]
      %v299 = vld [vmem:[%s1 + $0x64] sm:$0xf]
      %v300 = vld [vmem:[%s1 + $0x68] sm:$0xf]
      %v301 = vld [vmem:[%s1 + $0x6c] sm:$0xf]
      %v302 = vld [vmem:[%s1 + $0x70] sm:$0xf]
      %v303 = vld [vmem:[%s1 + $0x74] sm:$0xf]
      %v304 = vld [vmem:[%s1 + $0x78] sm:$0xf]
      %v305 = vld [vmem:[%s1 + $0x7c] sm:$0xf]
      %v306 = vld [vmem:[%s1 + $0x80] sm:$0xf]
      %v307 = vld [vmem:[%s1 + $0x84] sm:$0xf]
      %v308 = vld [vmem:[%s1 + $0x88] sm:$0xf]
      %v309 = vld [vmem:[%s1 + $0x8c] sm:$0xf]
      %v310 = vld [vmem:[%s1 + $0x90] sm:$0xf]
      %v311 = vld [vmem:[%s1 + $0x94] sm:$0xf]
      %v312 = vld [vmem:[%s1 + $0x98] sm:$0xf]
      %v313 = vld [vmem:[%s1 + $0x9c] sm:$0xf]
      %v314 = vld [vmem:[%s1 + $0xa0] sm:$0xf]
      %v315 = vld [vmem:[%s1 + $0xa4] sm:$0xf]
      %v316 = vld [vmem:[%s1 + $0xa8] sm:$0xf]
      %v317 = vld [vmem:[%s1 + $0xac] sm:$0xf]
      %v318 = vld [vmem:[%s1 + $0xb0] sm:$0xf]
      %v319 = vld [vmem:[%s1 + $0xb4] sm:$0xf]
      %v320 = vld [vmem:[%s1 + $0xb8] sm:$0xf]
      %v321 = vld [vmem:[%s1 + $0xbc] sm:$0xf]
      %v322 = vld [vmem:[%s1 + $0xc0] sm:$0xf]
      %v323 = vld [vmem:[%s1 + $0xc4] sm:$0xf]
      %v324 = vld [vmem:[%s1 + $0xc8] sm:$0xf]
      %v325 = vld [vmem:[%s1 + $0xcc] sm:$0xf]
      %v326 = vld [vmem:[%s1 + $0xd0] sm:$0xf]
      %v327 = vld [vmem:[%s1 + $0xd4] sm:$0xf]
      %v328 = vld [vmem:[%s1 + $0xd8] sm:$0xf]
      %v329 = vld [vmem:[%s1 + $0xdc] sm:$0xf]
      %v330 = vld [vmem:[%s1 + $0xe0] sm:$0xf]
      %v331 = vld [vmem:[%s1 + $0xe4] sm:$0xf]
      %v332 = vld [vmem:[%s1 + $0xe8] sm:$0xf]
      %v333 = vld [vmem:[%s1 + $0xec] sm:$0xf]
      %v334 = vld [vmem:[%s1 + $0xf0] sm:$0xf]
      %v335 = vld [vmem:[%s1 + $0xf4] sm:$0xf]
      %v336 = vld [vmem:[%s1 + $0xf8] sm:$0xf]
      %v337 = vld [vmem:[%s1 + $0xfc] sm:$0xf]
      %v338 = vld [vmem:[%s1 + $0x100] sm:$0xf]
      %v339 = vld [vmem:[%s1 + $0x104] sm:$0xf]
      %v340 = vld [vmem:[%s1 + $0x108] sm:$0xf]
      %v341 = vld [vmem:[%s1 + $0x10c] sm:$0xf]
      %v342 = vld [vmem:[%s1 + $0x110] sm:$0xf]
      %v343 = vld [vmem:[%s1 + $0x114] sm:$0xf]
      %v344 = vld [vmem:[%s1 + $0x118] sm:$0xf]
      %v345 = vld [vmem:[%s1 + $0x11c] sm:$0xf]
      %v346 = vld [vmem:[%s1 + $0x120] sm:$0xf]
      %v347 = vld [vmem:[%s1 + $0x124] sm:$0xf]
      %v348 = vld [vmem:[%s1 + $0x128] sm:$0xf]
      %v349 = vld [vmem:[%s1 + $0x12c] sm:$0xf]
      %v350 = vld [vmem:[%s1 + $0x130] sm:$0xf]
      %v351 = vld [vmem:[%s1 + $0x134] sm:$0xf]
      %v352 = vld [vmem:[%s1 + $0x138] sm:$0xf]
      %v353 = vld [vmem:[%s1 + $0x13c] sm:$0xf]
      %v354 = vld [vmem:[%s2] sm:$0x1]
      %v356 = vlaneseq
      %v357 = vshrl.u32 %v356, 7
      %v358 = vsub.s32 0, %v357
      %v359 = vrot.slane %v354, %v358
      %v457 = vunpack.c.l.b16 %v178
      %v458 = vunpack.c.h.b16 %v178
      %v459 = vunpack.c.l.b16 %v179
      %v460 = vunpack.c.h.b16 %v179
      %v461 = vunpack.c.l.b16 %v180
      %v462 = vunpack.c.l.b16 %v181
      %v463 = vunpack.c.h.b16 %v181
      %v464 = vunpack.c.l.b16 %v182
      %v465 = vunpack.c.h.b16 %v182
      %v466 = vunpack.c.l.b16 %v183
      %v467 = vunpack.c.l.b16 %v184
      %v468 = vunpack.c.h.b16 %v184
      %v469 = vunpack.c.l.b16 %v185
      %v470 = vunpack.c.h.b16 %v185
      %v471 = vunpack.c.l.b16 %v186
      %v472 = vunpack.c.l.b16 %v187
      %v473 = vunpack.c.h.b16 %v187
      %v474 = vunpack.c.l.b16 %v188
      %v475 = vunpack.c.h.b16 %v188
      %v476 = vunpack.c.l.b16 %v189
      %v477 = vunpack.c.l.b16 %v190
      %v478 = vunpack.c.h.b16 %v190
      %v479 = vunpack.c.l.b16 %v191
      %v480 = vunpack.c.h.b16 %v191
      %v481 = vunpack.c.l.b16 %v192
      %v482 = vunpack.c.l.b16 %v193
      %v483 = vunpack.c.h.b16 %v193
      %v484 = vunpack.c.l.b16 %v194
      %v485 = vunpack.c.h.b16 %v194
      %v486 = vunpack.c.l.b16 %v195
      %v487 = vunpack.c.l.b16 %v196
      %v488 = vunpack.c.h.b16 %v196
      %v489 = vunpack.c.l.b16 %v197
      %v490 = vunpack.c.h.b16 %v197
      %v491 = vunpack.c.l.b16 %v198
      %v492 = vunpack.c.l.b16 %v199
      %v493 = vunpack.c.h.b16 %v199
      %v494 = vunpack.c.l.b16 %v200
      %v495 = vunpack.c.h.b16 %v200
      %v496 = vunpack.c.l.b16 %v201
      %v497 = vunpack.c.l.b16 %v202
      %v498 = vunpack.c.h.b16 %v202
      %v499 = vunpack.c.l.b16 %v203
      %v500 = vunpack.c.h.b16 %v203
      %v501 = vunpack.c.l.b16 %v204
      %v502 = vunpack.c.l.b16 %v205
      %v503 = vunpack.c.h.b16 %v205
      %v504 = vunpack.c.l.b16 %v206
      %v505 = vunpack.c.h.b16 %v206
      %v506 = vunpack.c.l.b16 %v207
      %v507 = vunpack.c.l.b16 %v208
      %v508 = vunpack.c.h.b16 %v208
      %v509 = vunpack.c.l.b16 %v209
      %v510 = vunpack.c.h.b16 %v209
      %v511 = vunpack.c.l.b16 %v210
      %v512 = vunpack.c.l.b16 %v211
      %v513 = vunpack.c.h.b16 %v211
      %v514 = vunpack.c.l.b16 %v212
      %v515 = vunpack.c.h.b16 %v212
      %v516 = vunpack.c.l.b16 %v213
      %v517 = vunpack.c.l.b16 %v214
      %v518 = vunpack.c.h.b16 %v214
      %v519 = vunpack.c.l.b16 %v215
      %v520 = vunpack.c.h.b16 %v215
      %v521 = vunpack.c.l.b16 %v216
      %v522 = vunpack.c.l.b16 %v217
      %v523 = vunpack.c.h.b16 %v217
      %v524 = vunpack.c.l.b16 %v218
      %v525 = vunpack.c.h.b16 %v218
      %v526 = vunpack.c.l.b16 %v219
      %v527 = vunpack.c.l.b16 %v220
      %v528 = vunpack.c.h.b16 %v220
      %v529 = vunpack.c.l.b16 %v221
      %v530 = vunpack.c.h.b16 %v221
      %v531 = vunpack.c.l.b16 %v222
      %v532 = vunpack.c.l.b16 %v223
      %v533 = vunpack.c.h.b16 %v223
      %v534 = vunpack.c.l.b16 %v224
      %v535 = vunpack.c.h.b16 %v224
      %v536 = vunpack.c.l.b16 %v225
      %v537 = vunpack.c.l.b16 %v226
      %v538 = vunpack.c.h.b16 %v226
      %v539 = vunpack.c.l.b16 %v227
      %v540 = vunpack.c.h.b16 %v227
      %v541 = vunpack.c.l.b16 %v228
      %v542 = vunpack.c.l.b16 %v229
      %v543 = vunpack.c.h.b16 %v229
      %v544 = vunpack.c.l.b16 %v230
      %v545 = vunpack.c.h.b16 %v230
      %v546 = vunpack.c.l.b16 %v231
      %v547 = vunpack.c.l.b16 %v232
      %v548 = vunpack.c.h.b16 %v232
      %v549 = vunpack.c.l.b16 %v233
      %v550 = vunpack.c.h.b16 %v233
      %v551 = vunpack.c.l.b16 %v234
      %v552 = vunpack.c.l.b16 %v235
      %v553 = vunpack.c.h.b16 %v235
      %v554 = vunpack.c.l.b16 %v236
      %v555 = vunpack.c.h.b16 %v236
      %v556 = vunpack.c.l.b16 %v237
      %v557 = vunpack.c.l.b16 %v238
      %v558 = vunpack.c.h.b16 %v238
      %v559 = vunpack.c.l.b16 %v239
      %v560 = vunpack.c.h.b16 %v239
      %v561 = vunpack.c.l.b16 %v240
      %v562 = vunpack.c.l.b16 %v241
      %v563 = vunpack.c.h.b16 %v241
      %v564 = vunpack.c.l.b16 %v242
      %v565 = vunpack.c.h.b16 %v242
      %v566 = vunpack.c.l.b16 %v243
      %v567 = vunpack.c.l.b16 %v244
      %v568 = vunpack.c.h.b16 %v244
      %v569 = vunpack.c.l.b16 %v245
      %v570 = vunpack.c.h.b16 %v245
      %v571 = vunpack.c.l.b16 %v246
      %v572 = vunpack.c.l.b16 %v247
      %v573 = vunpack.c.h.b16 %v247
      %v574 = vunpack.c.l.b16 %v248
      %v575 = vunpack.c.h.b16 %v248
      %v576 = vunpack.c.l.b16 %v249
      %v577 = vunpack.c.l.b16 %v250
      %v578 = vunpack.c.h.b16 %v250
      %v579 = vunpack.c.l.b16 %v251
      %v580 = vunpack.c.h.b16 %v251
      %v581 = vunpack.c.l.b16 %v252
      %v582 = vunpack.c.l.b16 %v253
      %v583 = vunpack.c.h.b16 %v253
      %v584 = vunpack.c.l.b16 %v254
      %v585 = vunpack.c.h.b16 %v254
      %v586 = vunpack.c.l.b16 %v255
      %v587 = vunpack.c.l.b16 %v256
      %v588 = vunpack.c.h.b16 %v256
      %v589 = vunpack.c.l.b16 %v257
      %v590 = vunpack.c.h.b16 %v257
      %v591 = vunpack.c.l.b16 %v258
      %v592 = vunpack.c.l.b16 %v259
      %v593 = vunpack.c.h.b16 %v259
      %v594 = vunpack.c.l.b16 %v260
      %v595 = vunpack.c.h.b16 %v260
      %v596 = vunpack.c.l.b16 %v261
      %v597 = vunpack.c.l.b16 %v262
      %v598 = vunpack.c.h.b16 %v262
      %v599 = vunpack.c.l.b16 %v263
      %v600 = vunpack.c.h.b16 %v263
      %v601 = vunpack.c.l.b16 %v264
      %v602 = vunpack.c.l.b16 %v265
      %v603 = vunpack.c.h.b16 %v265
      %v604 = vunpack.c.l.b16 %v266
      %v605 = vunpack.c.h.b16 %v266
      %v606 = vunpack.c.l.b16 %v267
      %v607 = vunpack.c.l.b16 %v268
      %v608 = vunpack.c.h.b16 %v268
      %v609 = vunpack.c.l.b16 %v269
      %v610 = vunpack.c.h.b16 %v269
      %v611 = vunpack.c.l.b16 %v270
      %v612 = vunpack.c.l.b16 %v271
      %v613 = vunpack.c.h.b16 %v271
      %v614 = vunpack.c.l.b16 %v272
      %v615 = vunpack.c.h.b16 %v272
      %v616 = vunpack.c.l.b16 %v273
      %v617 = vpack.c.b16 %v462, %v457
      %v618 = vpack.c.b16 %v463, %v458
      %v619 = vpack.c.b16 %v464, %v459
      %v620 = vpack.c.b16 %v465, %v460
      %v621 = vpack.c.b16 %v466, %v461
      %v622 = vpack.c.b16 %v472, %v467
      %v623 = vpack.c.b16 %v473, %v468
      %v624 = vpack.c.b16 %v474, %v469
      %v625 = vpack.c.b16 %v475, %v470
      %v626 = vpack.c.b16 %v476, %v471
      %v627 = vpack.c.b16 %v482, %v477
      %v628 = vpack.c.b16 %v483, %v478
      %v629 = vpack.c.b16 %v484, %v479
      %v630 = vpack.c.b16 %v485, %v480
      %v631 = vpack.c.b16 %v486, %v481
      %v632 = vpack.c.b16 %v492, %v487
      %v633 = vpack.c.b16 %v493, %v488
      %v634 = vpack.c.b16 %v494, %v489
      %v635 = vpack.c.b16 %v495, %v490
      %v636 = vpack.c.b16 %v496, %v491
      %v637 = vpack.c.b16 %v502, %v497
      %v638 = vpack.c.b16 %v503, %v498
      %v639 = vpack.c.b16 %v504, %v499
      %v640 = vpack.c.b16 %v505, %v500
      %v641 = vpack.c.b16 %v506, %v501
      %v642 = vpack.c.b16 %v512, %v507
      %v643 = vpack.c.b16 %v513, %v508
      %v644 = vpack.c.b16 %v514, %v509
      %v645 = vpack.c.b16 %v515, %v510
      %v646 = vpack.c.b16 %v516, %v511
      %v647 = vpack.c.b16 %v522, %v517
      %v648 = vpack.c.b16 %v523, %v518
      %v649 = vpack.c.b16 %v524, %v519
      %v650 = vpack.c.b16 %v525, %v520
      %v651 = vpack.c.b16 %v526, %v521
      %v652 = vpack.c.b16 %v532, %v527
      %v653 = vpack.c.b16 %v533, %v528
      %v654 = vpack.c.b16 %v534, %v529
      %v655 = vpack.c.b16 %v535, %v530
      %v656 = vpack.c.b16 %v536, %v531
      %v657 = vpack.c.b16 %v542, %v537
      %v658 = vpack.c.b16 %v543, %v538
      %v659 = vpack.c.b16 %v544, %v539
      %v660 = vpack.c.b16 %v545, %v540
      %v661 = vpack.c.b16 %v546, %v541
      %v662 = vpack.c.b16 %v552, %v547
      %v663 = vpack.c.b16 %v553, %v548
      %v664 = vpack.c.b16 %v554, %v549
      %v665 = vpack.c.b16 %v555, %v550
      %v666 = vpack.c.b16 %v556, %v551
      %v667 = vpack.c.b16 %v562, %v557
      %v668 = vpack.c.b16 %v563, %v558
      %v669 = vpack.c.b16 %v564, %v559
      %v670 = vpack.c.b16 %v565, %v560
      %v671 = vpack.c.b16 %v566, %v561
      %v672 = vpack.c.b16 %v572, %v567
      %v673 = vpack.c.b16 %v573, %v568
      %v674 = vpack.c.b16 %v574, %v569
      %v675 = vpack.c.b16 %v575, %v570
      %v676 = vpack.c.b16 %v576, %v571
      %v677 = vpack.c.b16 %v582, %v577
      %v678 = vpack.c.b16 %v583, %v578
      %v679 = vpack.c.b16 %v584, %v579
      %v680 = vpack.c.b16 %v585, %v580
      %v681 = vpack.c.b16 %v586, %v581
      %v682 = vpack.c.b16 %v592, %v587
      %v683 = vpack.c.b16 %v593, %v588
      %v684 = vpack.c.b16 %v594, %v589
      %v685 = vpack.c.b16 %v595, %v590
      %v686 = vpack.c.b16 %v596, %v591
      %v687 = vpack.c.b16 %v602, %v597
      %v688 = vpack.c.b16 %v603, %v598
      %v689 = vpack.c.b16 %v604, %v599
      %v690 = vpack.c.b16 %v605, %v600
      %v691 = vpack.c.b16 %v606, %v601
      %v692 = vpack.c.b16 %v612, %v607
      %v693 = vpack.c.b16 %v613, %v608
      %v694 = vpack.c.b16 %v614, %v609
      %v695 = vpack.c.b16 %v615, %v610
      %v696 = vpack.c.b16 %v616, %v611
      %v857 = vunpack.c.l.b16 %v274
      %v858 = vunpack.c.l.b16 %v275
      %v859 = vunpack.c.l.b16 %v276
      %v860 = vunpack.c.l.b16 %v277
      %v861 = vunpack.c.l.b16 %v278
      %v862 = vunpack.c.l.b16 %v279
      %v863 = vunpack.c.l.b16 %v280
      %v864 = vunpack.c.l.b16 %v281
      %v865 = vunpack.c.l.b16 %v282
      %v866 = vunpack.c.l.b16 %v283
      %v867 = vunpack.c.l.b16 %v284
      %v868 = vunpack.c.l.b16 %v285
      %v869 = vunpack.c.l.b16 %v286
      %v870 = vunpack.c.l.b16 %v287
      %v871 = vunpack.c.l.b16 %v288
      %v872 = vunpack.c.l.b16 %v289
      %v873 = vunpack.c.l.b16 %v290
      %v874 = vunpack.c.l.b16 %v291
      %v875 = vunpack.c.l.b16 %v292
      %v876 = vunpack.c.l.b16 %v293
      %v877 = vunpack.c.l.b16 %v294
      %v878 = vunpack.c.l.b16 %v295
      %v879 = vunpack.c.l.b16 %v296
      %v880 = vunpack.c.l.b16 %v297
      %v881 = vunpack.c.l.b16 %v298
      %v882 = vunpack.c.l.b16 %v299
      %v883 = vunpack.c.l.b16 %v300
      %v884 = vunpack.c.l.b16 %v301
      %v885 = vunpack.c.l.b16 %v302
      %v886 = vunpack.c.l.b16 %v303
      %v887 = vunpack.c.l.b16 %v304
      %v888 = vunpack.c.l.b16 %v305
      %v889 = vunpack.c.l.b16 %v306
      %v890 = vunpack.c.l.b16 %v307
      %v891 = vunpack.c.l.b16 %v308
      %v892 = vunpack.c.l.b16 %v309
      %v893 = vunpack.c.l.b16 %v310
      %v894 = vunpack.c.l.b16 %v311
      %v895 = vunpack.c.l.b16 %v312
      %v896 = vunpack.c.l.b16 %v313
      %v897 = vunpack.c.l.b16 %v314
      %v898 = vunpack.c.l.b16 %v315
      %v899 = vunpack.c.l.b16 %v316
      %v900 = vunpack.c.l.b16 %v317
      %v901 = vunpack.c.l.b16 %v318
      %v902 = vunpack.c.l.b16 %v319
      %v903 = vunpack.c.l.b16 %v320
      %v904 = vunpack.c.l.b16 %v321
      %v905 = vunpack.c.l.b16 %v322
      %v906 = vunpack.c.l.b16 %v323
      %v907 = vunpack.c.l.b16 %v324
      %v908 = vunpack.c.l.b16 %v325
      %v909 = vunpack.c.l.b16 %v326
      %v910 = vunpack.c.l.b16 %v327
      %v911 = vunpack.c.l.b16 %v328
      %v912 = vunpack.c.l.b16 %v329
      %v913 = vunpack.c.l.b16 %v330
      %v914 = vunpack.c.l.b16 %v331
      %v915 = vunpack.c.l.b16 %v332
      %v916 = vunpack.c.l.b16 %v333
      %v917 = vunpack.c.l.b16 %v334
      %v918 = vunpack.c.l.b16 %v335
      %v919 = vunpack.c.l.b16 %v336
      %v920 = vunpack.c.l.b16 %v337
      %v921 = vunpack.c.l.b16 %v338
      %v922 = vunpack.c.l.b16 %v339
      %v923 = vunpack.c.l.b16 %v340
      %v924 = vunpack.c.l.b16 %v341
      %v925 = vunpack.c.l.b16 %v342
      %v926 = vunpack.c.l.b16 %v343
      %v927 = vunpack.c.l.b16 %v344
      %v928 = vunpack.c.l.b16 %v345
      %v929 = vunpack.c.l.b16 %v346
      %v930 = vunpack.c.l.b16 %v347
      %v931 = vunpack.c.l.b16 %v348
      %v932 = vunpack.c.l.b16 %v349
      %v933 = vunpack.c.l.b16 %v350
      %v934 = vunpack.c.l.b16 %v351
      %v935 = vunpack.c.l.b16 %v352
      %v936 = vunpack.c.l.b16 %v353
      %v937 = vpack.c.b16 %v858, %v857
      %v938 = vpack.c.b16 %v860, %v859
      %v939 = vpack.c.b16 %v862, %v861
      %v940 = vpack.c.b16 %v864, %v863
      %v941 = vpack.c.b16 %v866, %v865
      %v942 = vpack.c.b16 %v868, %v867
      %v943 = vpack.c.b16 %v870, %v869
      %v944 = vpack.c.b16 %v872, %v871
      %v945 = vpack.c.b16 %v874, %v873
      %v946 = vpack.c.b16 %v876, %v875
      %v947 = vpack.c.b16 %v878, %v877
      %v948 = vpack.c.b16 %v880, %v879
      %v949 = vpack.c.b16 %v882, %v881
      %v950 = vpack.c.b16 %v884, %v883
      %v951 = vpack.c.b16 %v886, %v885
      %v952 = vpack.c.b16 %v888, %v887
      %v953 = vpack.c.b16 %v890, %v889
      %v954 = vpack.c.b16 %v892, %v891
      %v955 = vpack.c.b16 %v894, %v893
      %v956 = vpack.c.b16 %v896, %v895
      %v957 = vpack.c.b16 %v898, %v897
      %v958 = vpack.c.b16 %v900, %v899
      %v959 = vpack.c.b16 %v902, %v901
      %v960 = vpack.c.b16 %v904, %v903
      %v961 = vpack.c.b16 %v906, %v905
      %v962 = vpack.c.b16 %v908, %v907
      %v963 = vpack.c.b16 %v910, %v909
      %v964 = vpack.c.b16 %v912, %v911
      %v965 = vpack.c.b16 %v914, %v913
      %v966 = vpack.c.b16 %v916, %v915
      %v967 = vpack.c.b16 %v918, %v917
      %v968 = vpack.c.b16 %v920, %v919
      %v969 = vpack.c.b16 %v922, %v921
      %v970 = vpack.c.b16 %v924, %v923
      %v971 = vpack.c.b16 %v926, %v925
      %v972 = vpack.c.b16 %v928, %v927
      %v973 = vpack.c.b16 %v930, %v929
      %v974 = vpack.c.b16 %v932, %v931
      %v975 = vpack.c.b16 %v934, %v933
      %v976 = vpack.c.b16 %v936, %v935
      %1017 = vmatprep.subr.bf16.mxu0 0
      %1018 = vmatpush1.bf16.msra.mxu0 %v937
      %1019 = vmatprep.subr.bf16.mxu0 0
      %1020 = vmatpush1.bf16.msra.mxu0 %v938
      %1021 = vmatprep.subr.bf16.mxu0 0
      %1022 = vmatpush1.bf16.msra.mxu0 %v939
      %1023 = vmatprep.subr.bf16.mxu0 0
      %1024 = vmatpush1.bf16.msra.mxu0 %v940
      %1025 = vmatprep.subr.bf16.mxu0 0
      %1026 = vmatpush1.bf16.msra.mxu0 %v941
      %1027 = vmatprep.subr.bf16.mxu0 0
      %1028 = vmatpush1.bf16.msra.mxu0 %v942
      %1029 = vmatprep.subr.bf16.mxu0 0
      %1030 = vmatpush1.bf16.msra.mxu0 %v943
      %1031 = vmatprep.subr.bf16.mxu0 0
      %1032 = vmatpush1.bf16.msra.mxu0 %v944
      %1033 = vmatprep.subr.bf16.mxu0 0
      %1034 = vmatpush1.bf16.msra.mxu0 %v945
      %1035 = vmatprep.subr.bf16.mxu0 0
      %1036 = vmatpush1.bf16.msra.mxu0 %v946
      %1037 = vmatprep.subr.bf16.mxu0 0
      %1038 = vmatpush1.bf16.msra.mxu0 %v947
      %1039 = vmatprep.subr.bf16.mxu0 0
      %1040 = vmatpush1.bf16.msra.mxu0 %v948
      %1041 = vmatprep.subr.bf16.mxu0 0
      %1042 = vmatpush1.bf16.msra.mxu0 %v949
      %1043 = vmatprep.subr.bf16.mxu0 0
      %1044 = vmatpush1.bf16.msra.mxu0 %v950
      %1045 = vmatprep.subr.bf16.mxu0 0
      %1046 = vmatpush1.bf16.msra.mxu0 %v951
      %1047 = vmatprep.subr.bf16.mxu0 0
      %1048 = vmatpush1.bf16.msra.mxu0 %v952
      %1049 = vmatprep.mubr.bf16.mxu0 %v618
      %1050 = vmatmul.mubr.bf16.gmra.mrb[0].mxu0 %v617
      %v1051 = vpop.f32.mrb[0].mxu0
      %v1052 = vadd.f32 %v359, %v1051
      %v1053 = vpop.f32.mrb[0].mxu0
      %v1054 = vpop.f32.mrb[0].mxu0
      %v1055 = vadd.f32 %v359, %v1054
      %v1056 = vpop.f32.mrb[0].mxu0
      %1057 = vmatprep.mubr.bf16.mxu0 %v623
      %1058 = vmatmul.mubr.bf16.gmra.mrb[0].mxu0 %v622
      %v1059 = vpop.f32.mrb[0].mxu0
      %v1060 = vadd.f32 %v359, %v1059
      %v1061 = vpop.f32.mrb[0].mxu0
      %v1062 = vpop.f32.mrb[0].mxu0
      %v1063 = vadd.f32 %v359, %v1062
      %v1064 = vpop.f32.mrb[0].mxu0
      %1065 = vmatprep.mubr.bf16.mxu0 %v628
      %1066 = vmatmul.mubr.bf16.gmra.mrb[0].mxu0 %v627
      %v1067 = vpop.f32.mrb[0].mxu0
      %v1068 = vadd.f32 %v359, %v1067
      %v1069 = vpop.f32.mrb[0].mxu0
      %v1070 = vpop.f32.mrb[0].mxu0
      %v1071 = vadd.f32 %v359, %v1070
      %v1072 = vpop.f32.mrb[0].mxu0
      %1073 = vmatprep.mubr.bf16.mxu0 %v633
      %1074 = vmatmul.mubr.bf16.gmra.mrb[0].mxu0 %v632
      %v1075 = vpop.f32.mrb[0].mxu0
      %v1076 = vadd.f32 %v359, %v1075
      %v1077 = vpop.f32.mrb[0].mxu0
      %v1078 = vpop.f32.mrb[0].mxu0
      %v1079 = vadd.f32 %v359, %v1078
      %v1080 = vpop.f32.mrb[0].mxu0
      %1081 = vmatprep.mubr.bf16.mxu0 %v638
      %1082 = vmatmul.mubr.bf16.gmra.mrb[0].mxu0 %v637
      %v1083 = vpop.f32.mrb[0].mxu0
      %v1084 = vadd.f32 %v359, %v1083
      %v1085 = vpop.f32.mrb[0].mxu0
      %v1086 = vpop.f32.mrb[0].mxu0
      %v1087 = vadd.f32 %v359, %v1086
      %v1088 = vpop.f32.mrb[0].mxu0
      %1089 = vmatprep.mubr.bf16.mxu0 %v643
      %1090 = vmatmul.mubr.bf16.gmra.mrb[0].mxu0 %v642
      %v1091 = vpop.f32.mrb[0].mxu0
      %v1092 = vadd.f32 %v359, %v1091
      %v1093 = vpop.f32.mrb[0].mxu0
      %v1094 = vpop.f32.mrb[0].mxu0
      %v1095 = vadd.f32 %v359, %v1094
      %v1096 = vpop.f32.mrb[0].mxu0
      %1097 = vmatprep.mubr.bf16.mxu0 %v648
      %1098 = vmatmul.mubr.bf16.gmra.mrb[0].mxu0 %v647
      %v1099 = vpop.f32.mrb[0].mxu0
      %v1100 = vadd.f32 %v359, %v1099
      %v1101 = vpop.f32.mrb[0].mxu0
      %v1102 = vpop.f32.mrb[0].mxu0
      %v1103 = vadd.f32 %v359, %v1102
      %v1104 = vpop.f32.mrb[0].mxu0
      %1105 = vmatprep.mubr.bf16.mxu0 %v653
      %1106 = vmatmul.mubr.bf16.gmra.mrb[0].mxu0 %v652
      %v1107 = vpop.f32.mrb[0].mxu0
      %v1108 = vadd.f32 %v359, %v1107
      %v1109 = vpop.f32.mrb[0].mxu0
      %v1110 = vpop.f32.mrb[0].mxu0
      %v1111 = vadd.f32 %v359, %v1110
      %v1112 = vpop.f32.mrb[0].mxu0
      %1113 = vmatprep.mubr.bf16.mxu0 %v658
      %1114 = vmatmul.mubr.bf16.gmra.mrb[0].mxu0 %v657
      %v1115 = vpop.f32.mrb[0].mxu0
      %v1116 = vadd.f32 %v359, %v1115
      %v1117 = vpop.f32.mrb[0].mxu0
      %v1118 = vpop.f32.mrb[0].mxu0
      %v1119 = vadd.f32 %v359, %v1118
      %v1120 = vpop.f32.mrb[0].mxu0
      %1121 = vmatprep.mubr.bf16.mxu0 %v663
      %1122 = vmatmul.mubr.bf16.gmra.mrb[0].mxu0 %v662
      %v1123 = vpop.f32.mrb[0].mxu0
      %v1124 = vadd.f32 %v359, %v1123
      %v1125 = vpop.f32.mrb[0].mxu0
      %v1126 = vpop.f32.mrb[0].mxu0
      %v1127 = vadd.f32 %v359, %v1126
      %v1128 = vpop.f32.mrb[0].mxu0
      %1129 = vmatprep.mubr.bf16.mxu0 %v668
      %1130 = vmatmul.mubr.bf16.gmra.mrb[0].mxu0 %v667
      %v1131 = vpop.f32.mrb[0].mxu0
      %v1132 = vadd.f32 %v359, %v1131
      %v1133 = vpop.f32.mrb[0].mxu0
      %v1134 = vpop.f32.mrb[0].mxu0
      %v1135 = vadd.f32 %v359, %v1134
      %v1136 = vpop.f32.mrb[0].mxu0
      %1137 = vmatprep.mubr.bf16.mxu0 %v673
      %1138 = vmatmul.mubr.bf16.gmra.mrb[0].mxu0 %v672
      %v1139 = vpop.f32.mrb[0].mxu0
      %v1140 = vadd.f32 %v359, %v1139
      %v1141 = vpop.f32.mrb[0].mxu0
      %v1142 = vpop.f32.mrb[0].mxu0
      %v1143 = vadd.f32 %v359, %v1142
      %v1144 = vpop.f32.mrb[0].mxu0
      %1145 = vmatprep.mubr.bf16.mxu0 %v678
      %1146 = vmatmul.mubr.bf16.gmra.mrb[0].mxu0 %v677
      %v1147 = vpop.f32.mrb[0].mxu0
      %v1148 = vadd.f32 %v359, %v1147
      %v1149 = vpop.f32.mrb[0].mxu0
      %v1150 = vpop.f32.mrb[0].mxu0
      %v1151 = vadd.f32 %v359, %v1150
      %v1152 = vpop.f32.mrb[0].mxu0
      %1153 = vmatprep.mubr.bf16.mxu0 %v683
      %1154 = vmatmul.mubr.bf16.gmra.mrb[0].mxu0 %v682
      %v1155 = vpop.f32.mrb[0].mxu0
      %v1156 = vadd.f32 %v359, %v1155
      %v1157 = vpop.f32.mrb[0].mxu0
      %v1158 = vpop.f32.mrb[0].mxu0
      %v1159 = vadd.f32 %v359, %v1158
      %v1160 = vpop.f32.mrb[0].mxu0
      %1161 = vmatprep.mubr.bf16.mxu0 %v688
      %1162 = vmatmul.mubr.bf16.gmra.mrb[0].mxu0 %v687
      %v1163 = vpop.f32.mrb[0].mxu0
      %v1164 = vadd.f32 %v359, %v1163
      %v1165 = vpop.f32.mrb[0].mxu0
      %v1166 = vpop.f32.mrb[0].mxu0
      %v1167 = vadd.f32 %v359, %v1166
      %v1168 = vpop.f32.mrb[0].mxu0
      %1169 = vmatprep.mubr.bf16.mxu0 %v693
      %1170 = vmatmul.mubr.bf16.gmra.mrb[0].mxu0 %v692
      %v1171 = vpop.f32.mrb[0].mxu0
      %v1172 = vadd.f32 %v359, %v1171
      %v1173 = vpop.f32.mrb[0].mxu0
      %v1174 = vpop.f32.mrb[0].mxu0
      %v1175 = vadd.f32 %v359, %v1174
      %v1176 = vpop.f32.mrb[0].mxu0
      %1177 = vdwg.mxu0
      %1178 = vmatprep.subr.bf16.mxu0 0
      %1179 = vmatpush1.bf16.msra.mxu0 %v953
      %1180 = vmatprep.subr.bf16.mxu0 0
      %1181 = vmatpush1.bf16.msra.mxu0 %v954
      %1182 = vmatprep.subr.bf16.mxu0 0
      %1183 = vmatpush1.bf16.msra.mxu0 %v955
      %1184 = vmatprep.subr.bf16.mxu0 0
      %1185 = vmatpush1.bf16.msra.mxu0 %v956
      %1186 = vmatprep.subr.bf16.mxu0 0
      %1187 = vmatpush1.bf16.msra.mxu0 %v957
      %1188 = vmatprep.subr.bf16.mxu0 0
      %1189 = vmatpush1.bf16.msra.mxu0 %v958
      %1190 = vmatprep.subr.bf16.mxu0 0
      %1191 = vmatpush1.bf16.msra.mxu0 %v959
      %1192 = vmatprep.subr.bf16.mxu0 0
      %1193 = vmatpush1.bf16.msra.mxu0 %v960
      %1194 = vmatprep.subr.bf16.mxu0 0
      %1195 = vmatpush1.bf16.msra.mxu0 %v961
      %1196 = vmatprep.subr.bf16.mxu0 0
      %1197 = vmatpush1.bf16.msra.mxu0 %v962
      %1198 = vmatprep.subr.bf16.mxu0 0
      %1199 = vmatpush1.bf16.msra.mxu0 %v963
      %1200 = vmatprep.subr.bf16.mxu0 0
      %1201 = vmatpush1.bf16.msra.mxu0 %v964
      %1202 = vmatprep.subr.bf16.mxu0 0
      %1203 = vmatpush1.bf16.msra.mxu0 %v965
      %1204 = vmatprep.subr.bf16.mxu0 0
      %1205 = vmatpush1.bf16.msra.mxu0 %v966
      %1206 = vmatprep.subr.bf16.mxu0 0
      %1207 = vmatpush1.bf16.msra.mxu0 %v967
      %1208 = vmatprep.subr.bf16.mxu0 0
      %1209 = vmatpush1.bf16.msra.mxu0 %v968
      %1210 = vmatprep.mubr.bf16.mxu0 %v620
      %1211 = vmatmul.mubr.bf16.gmra.mrb[0].mxu0 %v619
      %v1212 = vpop.f32.mrb[0].mxu0
      %v1213 = vadd.f32 %v1052, %v1212
      %v1214 = vpop.f32.mrb[0].mxu0
      %v1215 = vpop.f32.mrb[0].mxu0
      %v1216 = vadd.f32 %v1055, %v1215
      %v1217 = vpop.f32.mrb[0].mxu0
      %1218 = vmatprep.mubr.bf16.mxu0 %v625
      %1219 = vmatmul.mubr.bf16.gmra.mrb[0].mxu0 %v624
      %v1220 = vpop.f32.mrb[0].mxu0
      %v1221 = vadd.f32 %v1060, %v1220
      %v1222 = vpop.f32.mrb[0].mxu0
      %v1223 = vpop.f32.mrb[0].mxu0
      %v1224 = vadd.f32 %v1063, %v1223
      %v1225 = vpop.f32.mrb[0].mxu0
      %1226 = vmatprep.mubr.bf16.mxu0 %v630
      %1227 = vmatmul.mubr.bf16.gmra.mrb[0].mxu0 %v629
      %v1228 = vpop.f32.mrb[0].mxu0
      %v1229 = vadd.f32 %v1068, %v1228
      %v1230 = vpop.f32.mrb[0].mxu0
      %v1231 = vpop.f32.mrb[0].mxu0
      %v1232 = vadd.f32 %v1071, %v1231
      %v1233 = vpop.f32.mrb[0].mxu0
      %1234 = vmatprep.mubr.bf16.mxu0 %v635
      %1235 = vmatmul.mubr.bf16.gmra.mrb[0].mxu0 %v634
      %v1236 = vpop.f32.mrb[0].mxu0
      %v1237 = vadd.f32 %v1076, %v1236
      %v1238 = vpop.f32.mrb[0].mxu0
      %v1239 = vpop.f32.mrb[0].mxu0
      %v1240 = vadd.f32 %v1079, %v1239
      %v1241 = vpop.f32.mrb[0].mxu0
      %1242 = vmatprep.mubr.bf16.mxu0 %v640
      %1243 = vmatmul.mubr.bf16.gmra.mrb[0].mxu0 %v639
      %v1244 = vpop.f32.mrb[0].mxu0
      %v1245 = vadd.f32 %v1084, %v1244
      %v1246 = vpop.f32.mrb[0].mxu0
      %v1247 = vpop.f32.mrb[0].mxu0
      %v1248 = vadd.f32 %v1087, %v1247
      %v1249 = vpop.f32.mrb[0].mxu0
      %1250 = vmatprep.mubr.bf16.mxu0 %v645
      %1251 = vmatmul.mubr.bf16.gmra.mrb[0].mxu0 %v644
      %v1252 = vpop.f32.mrb[0].mxu0
      %v1253 = vadd.f32 %v1092, %v1252
      %v1254 = vpop.f32.mrb[0].mxu0
      %v1255 = vpop.f32.mrb[0].mxu0
      %v1256 = vadd.f32 %v1095, %v1255
      %v1257 = vpop.f32.mrb[0].mxu0
      %1258 = vmatprep.mubr.bf16.mxu0 %v650
      %1259 = vmatmul.mubr.bf16.gmra.mrb[0].mxu0 %v649
      %v1260 = vpop.f32.mrb[0].mxu0
      %v1261 = vadd.f32 %v1100, %v1260
      %v1262 = vpop.f32.mrb[0].mxu0
      %v1263 = vpop.f32.mrb[0].mxu0
      %v1264 = vadd.f32 %v1103, %v1263
      %v1265 = vpop.f32.mrb[0].mxu0
      %1266 = vmatprep.mubr.bf16.mxu0 %v655
      %1267 = vmatmul.mubr.bf16.gmra.mrb[0].mxu0 %v654
      %v1268 = vpop.f32.mrb[0].mxu0
      %v1269 = vadd.f32 %v1108, %v1268
      %v1270 = vpop.f32.mrb[0].mxu0
      %v1271 = vpop.f32.mrb[0].mxu0
      %v1272 = vadd.f32 %v1111, %v1271
      %v1273 = vpop.f32.mrb[0].mxu0
      %1274 = vmatprep.mubr.bf16.mxu0 %v660
      %1275 = vmatmul.mubr.bf16.gmra.mrb[0].mxu0 %v659
      %v1276 = vpop.f32.mrb[0].mxu0
      %v1277 = vadd.f32 %v1116, %v1276
      %v1278 = vpop.f32.mrb[0].mxu0
      %v1279 = vpop.f32.mrb[0].mxu0
      %v1280 = vadd.f32 %v1119, %v1279
      %v1281 = vpop.f32.mrb[0].mxu0
      %1282 = vmatprep.mubr.bf16.mxu0 %v665
      %1283 = vmatmul.mubr.bf16.gmra.mrb[0].mxu0 %v664
      %v1284 = vpop.f32.mrb[0].mxu0
      %v1285 = vadd.f32 %v1124, %v1284
      %v1286 = vpop.f32.mrb[0].mxu0
      %v1287 = vpop.f32.mrb[0].mxu0
      %v1288 = vadd.f32 %v1127, %v1287
      %v1289 = vpop.f32.mrb[0].mxu0
      %1290 = vmatprep.mubr.bf16.mxu0 %v670
      %1291 = vmatmul.mubr.bf16.gmra.mrb[0].mxu0 %v669
      %v1292 = vpop.f32.mrb[0].mxu0
      %v1293 = vadd.f32 %v1132, %v1292
      %v1294 = vpop.f32.mrb[0].mxu0
      %v1295 = vpop.f32.mrb[0].mxu0
      %v1296 = vadd.f32 %v1135, %v1295
      %v1297 = vpop.f32.mrb[0].mxu0
      %1298 = vmatprep.mubr.bf16.mxu0 %v675
      %1299 = vmatmul.mubr.bf16.gmra.mrb[0].mxu0 %v674
      %v1300 = vpop.f32.mrb[0].mxu0
      %v1301 = vadd.f32 %v1140, %v1300
      %v1302 = vpop.f32.mrb[0].mxu0
      %v1303 = vpop.f32.mrb[0].mxu0
      %v1304 = vadd.f32 %v1143, %v1303
      %v1305 = vpop.f32.mrb[0].mxu0
      %1306 = vmatprep.mubr.bf16.mxu0 %v680
      %1307 = vmatmul.mubr.bf16.gmra.mrb[0].mxu0 %v679
      %v1308 = vpop.f32.mrb[0].mxu0
      %v1309 = vadd.f32 %v1148, %v1308
      %v1310 = vpop.f32.mrb[0].mxu0
      %v1311 = vpop.f32.mrb[0].mxu0
      %v1312 = vadd.f32 %v1151, %v1311
      %v1313 = vpop.f32.mrb[0].mxu0
      %1314 = vmatprep.mubr.bf16.mxu0 %v685
      %1315 = vmatmul.mubr.bf16.gmra.mrb[0].mxu0 %v684
      %v1316 = vpop.f32.mrb[0].mxu0
      %v1317 = vadd.f32 %v1156, %v1316
      %v1318 = vpop.f32.mrb[0].mxu0
      %v1319 = vpop.f32.mrb[0].mxu0
      %v1320 = vadd.f32 %v1159, %v1319
      %v1321 = vpop.f32.mrb[0].mxu0
      %1322 = vmatprep.mubr.bf16.mxu0 %v690
      %1323 = vmatmul.mubr.bf16.gmra.mrb[0].mxu0 %v689
      %v1324 = vpop.f32.mrb[0].mxu0
      %v1325 = vadd.f32 %v1164, %v1324
      %v1326 = vpop.f32.mrb[0].mxu0
      %v1327 = vpop.f32.mrb[0].mxu0
      %v1328 = vadd.f32 %v1167, %v1327
      %v1329 = vpop.f32.mrb[0].mxu0
      %1330 = vmatprep.mubr.bf16.mxu0 %v695
      %1331 = vmatmul.mubr.bf16.gmra.mrb[0].mxu0 %v694
      %v1332 = vpop.f32.mrb[0].mxu0
      %v1333 = vadd.f32 %v1172, %v1332
      %v1334 = vpop.f32.mrb[0].mxu0
      %v1335 = vpop.f32.mrb[0].mxu0
      %v1336 = vadd.f32 %v1175, %v1335
      %v1337 = vpop.f32.mrb[0].mxu0
      %1338 = vdwg.mxu0
      %1339 = vmatprep.subr.bf16.mxu0 0
      %1340 = vmatpush1.bf16.msra.mxu0 %v969
      %1341 = vmatprep.subr.bf16.mxu0 0
      %1342 = vmatpush1.bf16.msra.mxu0 %v970
      %1343 = vmatprep.subr.bf16.mxu0 0
      %1344 = vmatpush1.bf16.msra.mxu0 %v971
      %1345 = vmatprep.subr.bf16.mxu0 0
      %1346 = vmatpush1.bf16.msra.mxu0 %v972
      %1347 = vmatprep.subr.bf16.mxu0 0
      %1348 = vmatpush1.bf16.msra.mxu0 %v973
      %1349 = vmatprep.subr.bf16.mxu0 0
      %1350 = vmatpush1.bf16.msra.mxu0 %v974
      %1351 = vmatprep.subr.bf16.mxu0 0
      %1352 = vmatpush1.bf16.msra.mxu0 %v975
      %1353 = vmatprep.subr.bf16.mxu0 0
      %1354 = vmatpush1.bf16.msra.mxu0 %v976
      %1355 = vmatprep.subr.bf16.mxu0 0
      %1356 = vmatpush1.bf16.msra.mxu0 0
      %1357 = vmatprep.subr.bf16.mxu0 0
      %1358 = vmatpush1.bf16.msra.mxu0 0
      %1359 = vmatprep.subr.bf16.mxu0 0
      %1360 = vmatpush1.bf16.msra.mxu0 0
      %1361 = vmatprep.subr.bf16.mxu0 0
      %1362 = vmatpush1.bf16.msra.mxu0 0
      %1363 = vmatprep.subr.bf16.mxu0 0
      %1364 = vmatpush1.bf16.msra.mxu0 0
      %1365 = vmatprep.subr.bf16.mxu0 0
      %1366 = vmatpush1.bf16.msra.mxu0 0
      %1367 = vmatprep.subr.bf16.mxu0 0
      %1368 = vmatpush1.bf16.msra.mxu0 0
      %1369 = vmatprep.subr.bf16.mxu0 0
      %1370 = vmatpush1.bf16.msra.mxu0 0
      %1371 = vmatprep.mubr.bf16.mxu0 0
      %1372 = vmatmul.mubr.bf16.gmra.mrb[0].mxu0 %v621
      %v1373 = vpop.f32.mrb[0].mxu0
      %v1374 = vadd.f32 %v1213, %v1373
      %v1375 = vpop.f32.mrb[0].mxu0
      %v1376 = vpop.f32.mrb[0].mxu0
      %v1377 = vadd.f32 %v1216, %v1376
      %v1378 = vpop.f32.mrb[0].mxu0
      %1379 = vmatprep.mubr.bf16.mxu0 0
      %1380 = vmatmul.mubr.bf16.gmra.mrb[0].mxu0 %v626
      %v1381 = vpop.f32.mrb[0].mxu0
      %v1382 = vadd.f32 %v1221, %v1381
      %v1383 = vpop.f32.mrb[0].mxu0
      %v1384 = vpop.f32.mrb[0].mxu0
      %v1385 = vadd.f32 %v1224, %v1384
      %v1386 = vpop.f32.mrb[0].mxu0
      %1387 = vmatprep.mubr.bf16.mxu0 0
      %1388 = vmatmul.mubr.bf16.gmra.mrb[0].mxu0 %v631
      %v1389 = vpop.f32.mrb[0].mxu0
      %v1390 = vadd.f32 %v1229, %v1389
      %v1391 = vpop.f32.mrb[0].mxu0
      %v1392 = vpop.f32.mrb[0].mxu0
      %v1393 = vadd.f32 %v1232, %v1392
      %v1394 = vpop.f32.mrb[0].mxu0
      %1395 = vmatprep.mubr.bf16.mxu0 0
      %1396 = vmatmul.mubr.bf16.gmra.mrb[0].mxu0 %v636
      %v1397 = vpop.f32.mrb[0].mxu0
      %v1398 = vadd.f32 %v1237, %v1397
      %v1399 = vpop.f32.mrb[0].mxu0
      %v1400 = vpop.f32.mrb[0].mxu0
      %v1401 = vadd.f32 %v1240, %v1400
      %v1402 = vpop.f32.mrb[0].mxu0
      %1403 = vmatprep.mubr.bf16.mxu0 0
      %1404 = vmatmul.mubr.bf16.gmra.mrb[0].mxu0 %v641
      %v1405 = vpop.f32.mrb[0].mxu0
      %v1406 = vadd.f32 %v1245, %v1405
      %v1407 = vpop.f32.mrb[0].mxu0
      %v1408 = vpop.f32.mrb[0].mxu0
      %v1409 = vadd.f32 %v1248, %v1408
      %v1410 = vpop.f32.mrb[0].mxu0
      %1411 = vmatprep.mubr.bf16.mxu0 0
      %1412 = vmatmul.mubr.bf16.gmra.mrb[0].mxu0 %v646
      %v1413 = vpop.f32.mrb[0].mxu0
      %v1414 = vadd.f32 %v1253, %v1413
      %v1415 = vpop.f32.mrb[0].mxu0
      %v1416 = vpop.f32.mrb[0].mxu0
      %v1417 = vadd.f32 %v1256, %v1416
      %v1418 = vpop.f32.mrb[0].mxu0
      %1419 = vmatprep.mubr.bf16.mxu0 0
      %1420 = vmatmul.mubr.bf16.gmra.mrb[0].mxu0 %v651
      %v1421 = vpop.f32.mrb[0].mxu0
      %v1422 = vadd.f32 %v1261, %v1421
      %v1423 = vpop.f32.mrb[0].mxu0
      %v1424 = vpop.f32.mrb[0].mxu0
      %v1425 = vadd.f32 %v1264, %v1424
      %v1426 = vpop.f32.mrb[0].mxu0
      %1427 = vmatprep.mubr.bf16.mxu0 0
      %1428 = vmatmul.mubr.bf16.gmra.mrb[0].mxu0 %v656
      %v1429 = vpop.f32.mrb[0].mxu0
      %v1430 = vadd.f32 %v1269, %v1429
      %v1431 = vpop.f32.mrb[0].mxu0
      %v1432 = vpop.f32.mrb[0].mxu0
      %v1433 = vadd.f32 %v1272, %v1432
      %v1434 = vpop.f32.mrb[0].mxu0
      %1435 = vmatprep.mubr.bf16.mxu0 0
      %1436 = vmatmul.mubr.bf16.gmra.mrb[0].mxu0 %v661
      %v1437 = vpop.f32.mrb[0].mxu0
      %v1438 = vadd.f32 %v1277, %v1437
      %v1439 = vpop.f32.mrb[0].mxu0
      %v1440 = vpop.f32.mrb[0].mxu0
      %v1441 = vadd.f32 %v1280, %v1440
      %v1442 = vpop.f32.mrb[0].mxu0
      %1443 = vmatprep.mubr.bf16.mxu0 0
      %1444 = vmatmul.mubr.bf16.gmra.mrb[0].mxu0 %v666
      %v1445 = vpop.f32.mrb[0].mxu0
      %v1446 = vadd.f32 %v1285, %v1445
      %v1447 = vpop.f32.mrb[0].mxu0
      %v1448 = vpop.f32.mrb[0].mxu0
      %v1449 = vadd.f32 %v1288, %v1448
      %v1450 = vpop.f32.mrb[0].mxu0
      %1451 = vmatprep.mubr.bf16.mxu0 0
      %1452 = vmatmul.mubr.bf16.gmra.mrb[0].mxu0 %v671
      %v1453 = vpop.f32.mrb[0].mxu0
      %v1454 = vadd.f32 %v1293, %v1453
      %v1455 = vpop.f32.mrb[0].mxu0
      %v1456 = vpop.f32.mrb[0].mxu0
      %v1457 = vadd.f32 %v1296, %v1456
      %v1458 = vpop.f32.mrb[0].mxu0
      %1459 = vmatprep.mubr.bf16.mxu0 0
      %1460 = vmatmul.mubr.bf16.gmra.mrb[0].mxu0 %v676
      %v1461 = vpop.f32.mrb[0].mxu0
      %v1462 = vadd.f32 %v1301, %v1461
      %v1463 = vpop.f32.mrb[0].mxu0
      %v1464 = vpop.f32.mrb[0].mxu0
      %v1465 = vadd.f32 %v1304, %v1464
      %v1466 = vpop.f32.mrb[0].mxu0
      %1467 = vmatprep.mubr.bf16.mxu0 0
      %1468 = vmatmul.mubr.bf16.gmra.mrb[0].mxu0 %v681
      %v1469 = vpop.f32.mrb[0].mxu0
      %v1470 = vadd.f32 %v1309, %v1469
      %v1471 = vpop.f32.mrb[0].mxu0
      %v1472 = vpop.f32.mrb[0].mxu0
      %v1473 = vadd.f32 %v1312, %v1472
      %v1474 = vpop.f32.mrb[0].mxu0
      %1475 = vmatprep.mubr.bf16.mxu0 0
      %1476 = vmatmul.mubr.bf16.gmra.mrb[0].mxu0 %v686
      %v1477 = vpop.f32.mrb[0].mxu0
      %v1478 = vadd.f32 %v1317, %v1477
      %v1479 = vpop.f32.mrb[0].mxu0
      %v1480 = vpop.f32.mrb[0].mxu0
      %v1481 = vadd.f32 %v1320, %v1480
      %v1482 = vpop.f32.mrb[0].mxu0
      %1483 = vmatprep.mubr.bf16.mxu0 0
      %1484 = vmatmul.mubr.bf16.gmra.mrb[0].mxu0 %v691
      %v1485 = vpop.f32.mrb[0].mxu0
      %v1486 = vadd.f32 %v1325, %v1485
      %v1487 = vpop.f32.mrb[0].mxu0
      %v1488 = vpop.f32.mrb[0].mxu0
      %v1489 = vadd.f32 %v1328, %v1488
      %v1490 = vpop.f32.mrb[0].mxu0
      %1491 = vmatprep.mubr.bf16.mxu0 0
      %1492 = vmatmul.mubr.bf16.gmra.mrb[0].mxu0 %v696
      %v1493 = vpop.f32.mrb[0].mxu0
      %v1494 = vadd.f32 %v1333, %v1493
      %v1495 = vpop.f32.mrb[0].mxu0
      %v1496 = vpop.f32.mrb[0].mxu0
      %v1497 = vadd.f32 %v1336, %v1496
      %v1498 = vpop.f32.mrb[0].mxu0
      %1499 = vdwg.mxu0
      %1500 = vst [vmem:[%s175] sm:$0xff] %v1374
      %1501 = vst [vmem:[%s175 + $0x8] sm:$0xff] %v1377
      %1502 = vst [vmem:[%s175 + $0x10] sm:$0xff] %v1382
      %1503 = vst [vmem:[%s175 + $0x18] sm:$0xff] %v1385
      %1504 = vst [vmem:[%s175 + $0x20] sm:$0xff] %v1390
      %1505 = vst [vmem:[%s175 + $0x28] sm:$0xff] %v1393
      %1506 = vst [vmem:[%s175 + $0x30] sm:$0xff] %v1398
      %1507 = vst [vmem:[%s175 + $0x38] sm:$0xff] %v1401
      %1508 = vst [vmem:[%s175 + $0x40] sm:$0xff] %v1406
      %1509 = vst [vmem:[%s175 + $0x48] sm:$0xff] %v1409
      %1510 = vst [vmem:[%s175 + $0x50] sm:$0xff] %v1414
      %1511 = vst [vmem:[%s175 + $0x58] sm:$0xff] %v1417
      %1512 = vst [vmem:[%s175 + $0x60] sm:$0xff] %v1422
      %1513 = vst [vmem:[%s175 + $0x68] sm:$0xff] %v1425
      %1514 = vst [vmem:[%s175 + $0x70] sm:$0xff] %v1430
      %1515 = vst [vmem:[%s175 + $0x78] sm:$0xff] %v1433
      %1516 = vst [vmem:[%s175 + $0x80] sm:$0xff] %v1438
      %1517 = vst [vmem:[%s175 + $0x88] sm:$0xff] %v1441
      %1518 = vst [vmem:[%s175 + $0x90] sm:$0xff] %v1446
      %1519 = vst [vmem:[%s175 + $0x98] sm:$0xff] %v1449
      %1520 = vst [vmem:[%s175 + $0xa0] sm:$0xff] %v1454
      %1521 = vst [vmem:[%s175 + $0xa8] sm:$0xff] %v1457
      %1522 = vst [vmem:[%s175 + $0xb0] sm:$0xff] %v1462
      %1523 = vst [vmem:[%s175 + $0xb8] sm:$0xff] %v1465
      %1524 = vst [vmem:[%s175 + $0xc0] sm:$0xff] %v1470
      %1525 = vst [vmem:[%s175 + $0xc8] sm:$0xff] %v1473
      %1526 = vst [vmem:[%s175 + $0xd0] sm:$0xff] %v1478
      %1527 = vst [vmem:[%s175 + $0xd8] sm:$0xff] %v1481
      %1528 = vst [vmem:[%s175 + $0xe0] sm:$0xff] %v1486
      %1529 = vst [vmem:[%s175 + $0xe8] sm:$0xff] %v1489
      %1530 = vst [vmem:[%s175 + $0xf0] sm:$0xff] %v1494
      %1531 = vst [vmem:[%s175 + $0xf8] sm:$0xff] %v1497
      %s1532 = smul.u32 32, %s14
      %p1533 = scmp.lt.s32.totalorder %s1532, 63
      %s1534 = scalar_select %p1533, %s1532, 63
      %s1535 = smul.addr %s1534, 8
      %s1536 = scalar_lea.vmem %s3, %s1535
      // Predicated region
      $region33: #{transnet_forward.59} parent=31 // pred_check
        %p1537 = pneg %p100
      $region34: #{transnet_forward.59} parent=31 // pred_check_branch
        %1539 = sbr.rel (%p1537) target = $region36
      $region35: #{transnet_forward.59} parent=31 // pred_region
        %s1540 = smul.u32 32, %s14
      $region36: #{transnet_forward.59} parent=31 // pred_fallthru
        _
    $region32: #{transnet_forward.59} parent=5 // pred_fallthru
      _
    %p1541 = scmp.le.s32.totalorder 2, %s9
    // Predicated region
    $region37: #{transnet_forward.59} parent=5 // pred_check
      %p1542 = pneg %p1541
    $region38: #{transnet_forward.59} parent=5 // pred_check_branch
      %1544 = sbr.rel (%p1542) target = $region40
    $region39: #{transnet_forward.59} parent=5 // pred_region
      %s1545 = ssub.s32 %s9, 2
      // Predicated region
      $region41: #{transnet_forward.59} parent=39 // pred_check
        %p1546 = pneg %p106
      $region42: #{transnet_forward.59} parent=39 // pred_check_branch
        %1548 = sbr.rel (%p1546) target = $region44
      $region43: #{transnet_forward.59} parent=39 // pred_region
        %s1549 = smul.u32 32, %s15
        %p1550 = scmp.lt.s32.totalorder %s1549, 63
        %s1551 = scalar_select %p1550, %s1549, 63
        %s1552 = smul.addr %s1551, 8
        %s1553 = scalar_lea.vmem %s3, %s1552
      $region44: #{transnet_forward.59} parent=39 // pred_fallthru
        _
    $region40: #{transnet_forward.59} parent=5 // pred_fallthru
      _
  $region6: #{transnet_forward.59} parent=0 // loop_footer
    %s13 = sadd.s32 1, %s9
  $region7: #{transnet_forward.59} parent=0 // loop_footer_branch
    %8 = sbr.rel target = $region3
  $region8: #{transnet_forward.59} parent=0 // loop_exit
    _

// kernel: transnet_forward.61
$region0: #{transnet_forward.61}
  #allocation0 [shape = 'u32[]', space=smem, size = 0x4, offset = 0x4, fixed_abs, tag = 'smem constant byte address 0x4 - core index']
  #allocation1 [shape = 'u32[144,128]{1,0:T(1,128)}', space=vmem, size = 0x12000, scoped, tag = 'internal scratch']
  %s0 = inlined_call_operand.vmem [shape: bf16[512,2688], index: 0, kind: input, shape index: {}]
  %s1 = inlined_call_operand.vmem [shape: bf16[2688,128], index: 1, kind: input, shape index: {}]
  %s2 = inlined_call_operand.vmem [shape: f32[1,128], index: 2, kind: input, shape index: {}]
  %s3 = inlined_call_operand.vmem [shape: f32[512,128], index: 3, kind: output, shape index: {}]
  %s4 = sld [smem:[#allocation0]]
  $region45: #{transnet_forward.61} parent=0
    _
  %s6 = ssub.s32 1, %s4
  %s7 = scalar_select 0, %s6, %s4
  loop: start=0, step=1, limit=4
  $region2: #{transnet_forward.61} parent=0 // loop_pre_header
    _
  $region3: #{transnet_forward.61} parent=0 // loop_header
    %s9 = sphi 0, %s13
    %p10 = scmp.ge.s32.totalorder %s9, 4
    %s19 = sphi 0, %s21
    %s22 = sphi 0, %s19
    %s23 = sphi 0, %s22
    %s39 = sphi 0, %s23
    %s43 = sphi 0, %s43
    %s45 = sphi 0, %s43
    %s46 = sphi 0, %s45
    %s60 = sphi 0, %s46
    %s64 = sphi 0, %s64
    %s66 = sphi 0, %s64
    %s67 = sphi 0, %s66
    %s81 = sphi 0, %s67
    %s87 = sphi 0, %s89
    %s90 = sphi 0, %s87
    %s91 = sphi 0, %s90
    %s107 = sphi 0, %s91
  $region4: #{transnet_forward.61} parent=0 // loop_header_branch
    %12 = sbr.rel (%p10) target = $region8
  $region5: #{transnet_forward.61} parent=0 // loop_body
    %s14 = ssub.s32 %s9, 1
    %s15 = ssub.s32 %s9, 2
    %s16 = sadd.s32 %s9, 1
    %s17 = ssub.s32 %s9, %s16
    %p18 = scmp.eq.s32.totalorder %s17, 0
    %s20 = sadd.s32 %s19, 1
    %s21 = scalar_select %p18, %s19, %s20
    %p24 = pneg %p18
    %p25 = scmp.eq.s32.totalorder %s9, 1
    %p26 = por %p24, %p25
    %p27 = scmp.ne.s32.totalorder %s19, %s22
    %p28 = scmp.eq.s32.totalorder %s9, 0
    %p29 = por %p27, %p28
    %p30 = scmp.ne.s32.totalorder %s19, %s22
    %p31 = scmp.eq.s32.totalorder %s14, 1
    %p32 = por %p30, %p31
    %p33 = scmp.ne.s32.totalorder %s22, %s23
    %p34 = scmp.eq.s32.totalorder %s14, 0
    %p35 = por %p33, %p34
    %p36 = scmp.ne.s32.totalorder %s22, %s23
    %p37 = scmp.eq.s32.totalorder %s15, 1
    %p38 = por %p36, %p37
    %p40 = scmp.ne.s32.totalorder %s23, %s39
    %p41 = scmp.eq.s32.totalorder %s15, 0
    %p42 = por %p40, %p41
    %s44 = sadd.s32 %s43, 1
    %p47 = scmp.eq.s32.totalorder %s9, 1
    %p48 = scmp.ne.s32.totalorder %s43, %s45
    %p49 = scmp.eq.s32.totalorder %s9, 0
    %p50 = por %p48, %p49
    %p51 = scmp.ne.s32.totalorder %s43, %s45
    %p52 = scmp.eq.s32.totalorder %s14, 1
    %p53 = por %p51, %p52
    %p54 = scmp.ne.s32.totalorder %s45, %s46
    %p55 = scmp.eq.s32.totalorder %s14, 0
    %p56 = por %p54, %p55
    %p57 = scmp.ne.s32.totalorder %s45, %s46
    %p58 = scmp.eq.s32.totalorder %s15, 1
    %p59 = por %p57, %p58
    %p61 = scmp.ne.s32.totalorder %s46, %s60
    %p62 = scmp.eq.s32.totalorder %s15, 0
    %p63 = por %p61, %p62
    %s65 = sadd.s32 %s64, 1
    %p68 = scmp.eq.s32.totalorder %s9, 1
    %p69 = scmp.ne.s32.totalorder %s64, %s66
    %p70 = scmp.eq.s32.totalorder %s9, 0
    %p71 = por %p69, %p70
    %p72 = scmp.ne.s32.totalorder %s64, %s66
    %p73 = scmp.eq.s32.totalorder %s14, 1
    %p74 = por %p72, %p73
    %p75 = scmp.ne.s32.totalorder %s66, %s67
    %p76 = scmp.eq.s32.totalorder %s14, 0
    %p77 = por %p75, %p76
    %p78 = scmp.ne.s32.totalorder %s66, %s67
    %p79 = scmp.eq.s32.totalorder %s15, 1
    %p80 = por %p78, %p79
    %p82 = scmp.ne.s32.totalorder %s67, %s81
    %p83 = scmp.eq.s32.totalorder %s15, 0
    %p84 = por %p82, %p83
    %s85 = ssub.s32 %s9, %s16
    %p86 = scmp.eq.s32.totalorder %s85, 0
    %s88 = sadd.s32 %s87, 1
    %s89 = scalar_select %p86, %s87, %s88
    %p92 = pneg %p86
    %p93 = scmp.eq.s32.totalorder %s9, 1
    %p94 = por %p92, %p93
    %p95 = scmp.ne.s32.totalorder %s87, %s90
    %p96 = scmp.eq.s32.totalorder %s9, 0
    %p97 = por %p95, %p96
    %p98 = scmp.ne.s32.totalorder %s87, %s90
    %p99 = scmp.eq.s32.totalorder %s14, 1
    %p100 = por %p98, %p99
    %p101 = scmp.ne.s32.totalorder %s90, %s91
    %p102 = scmp.eq.s32.totalorder %s14, 0
    %p103 = por %p101, %p102
    %p104 = scmp.ne.s32.totalorder %s90, %s91
    %p105 = scmp.eq.s32.totalorder %s15, 1
    %p106 = por %p104, %p105
    %p108 = scmp.ne.s32.totalorder %s91, %s107
    %p109 = scmp.eq.s32.totalorder %s15, 0
    %p110 = por %p108, %p109
    %p111 = scmp.le.s32.totalorder 1, %s9
    %p112 = scmp.lt.s32.totalorder %s9, 3
    %p113 = pnand %p111, %p112
    %p114 = pneg %p113
    // Predicated region
    $region9: #{transnet_forward.61} parent=5 // pred_check
      _
    $region10: #{transnet_forward.61} parent=5 // pred_check_branch
      %116 = sbr.rel (%p113) target = $region12
    $region11: #{transnet_forward.61} parent=5 // pred_region
      %s117 = ssub.s32 %s9, 1
      // Predicated region
      $region13: #{transnet_forward.61} parent=11 // pred_check
        %p118 = pneg %p56
      $region14: #{transnet_forward.61} parent=11 // pred_check_branch
        %120 = sbr.rel (%p118) target = $region16
      $region15: #{transnet_forward.61} parent=11 // pred_region
        _
      $region16: #{transnet_forward.61} parent=11 // pred_fallthru
        _
      // Predicated region
      $region17: #{transnet_forward.61} parent=11 // pred_check
        %p121 = pneg %p77
      $region18: #{transnet_forward.61} parent=11 // pred_check_branch
        %123 = sbr.rel (%p121) target = $region20
      $region19: #{transnet_forward.61} parent=11 // pred_region
        _
      $region20: #{transnet_forward.61} parent=11 // pred_fallthru
        _
    $region12: #{transnet_forward.61} parent=5 // pred_fallthru
      _
    %p124 = scmp.lt.s32.totalorder %s9, 2
    // Predicated region
    $region21: #{transnet_forward.61} parent=5 // pred_check
      %p125 = pneg %p124
    $region22: #{transnet_forward.61} parent=5 // pred_check_branch
      %127 = sbr.rel (%p125) target = $region24
    $region23: #{transnet_forward.61} parent=5 // pred_region
      // Predicated region
      $region25: #{transnet_forward.61} parent=23 // pred_check
        %p128 = pneg %p29
      $region26: #{transnet_forward.61} parent=23 // pred_check_branch
        %130 = sbr.rel (%p128) target = $region28
      $region27: #{transnet_forward.61} parent=23 // pred_region
        %s131 = smul.u32 32, %s9
        %p132 = scmp.lt.s32.totalorder %s131, 63
        %s133 = scalar_select %p132, %s131, 63
        %s134 = smul.addr %s133, 21
        %s135 = smul.addr %s134, 4
        %s136 = scalar_lea.vmem %s0, %s135
        %s137 = smul.u32 32, %s9
      $region28: #{transnet_forward.61} parent=23 // pred_fallthru
        _
    $region24: #{transnet_forward.61} parent=5 // pred_fallthru
      _
    %p138 = scmp.le.s32.totalorder 1, %s9
    %p139 = scmp.lt.s32.totalorder %s9, 3
    %p140 = pnand %p138, %p139
    %p141 = pneg %p140
    // Predicated region
    $region29: #{transnet_forward.61} parent=5 // pred_check
      _
    $region30: #{transnet_forward.61} parent=5 // pred_check_branch
      %143 = sbr.rel (%p140) target = $region32
    $region31: #{transnet_forward.61} parent=5 // pred_region
      %s144 = ssub.s32 %s9, 1
      %s145 = smul.u32 32, %s14
      %p146 = scmp.lt.s32.totalorder %s145, 63
      %s147 = scalar_select %p146, %s145, 63
      %s148 = smul.addr %s147, 21
      %s149 = smul.addr %s148, 4
      %s150 = scalar_lea.vmem %s0, %s149
      %p151 = pneg %p35
      %p152 = pneg %p32
      %p153 = pneg %p56
      %p154 = pneg %p53
      %p155 = pneg %p77
      %p156 = pneg %p74
      %p157 = pneg %p103
      %p158 = pneg %p100
      %s159 = smul.u32 32, %s14
      %p160 = scmp.lt.s32.totalorder %s159, 63
      %s161 = scalar_select %p160, %s159, 63
      %s162 = smul.addr %s161, 8
      %s163 = scalar_lea.vmem %s3, %s162
      %s164 = smul.u32 32, %s14
      %p165 = scmp.lt.s32.totalorder %s164, 63
      %s166 = scalar_select %p165, %s164, 63
      %s167 = smul.addr %s166, 21
      %s168 = smul.addr %s167, 4
      %s169 = scalar_lea.vmem %s0, %s168
      %s170 = smul.u32 32, %s14
      %s171 = smul.u32 32, %s14
      %p172 = scmp.lt.s32.totalorder %s171, 63
      %s173 = scalar_select %p172, %s171, 63
      %s174 = smul.addr %s173, 8
      %s175 = scalar_lea.vmem %s3, %s174
      %s176 = smul.u32 32, %s14
      %v178 = vld [vmem:[%s169] sm:$0xff]
      %v179 = vld [vmem:[%s169 + $0x8] sm:$0xff]
      %v180 = vld [vmem:[%s169 + $0x10] sm:$0xff]
      %v181 = vld [vmem:[%s169 + $0x18] sm:$0xff]
      %v182 = vld [vmem:[%s169 + $0x20] sm:$0xff]
      %v183 = vld [vmem:[%s169 + $0x28] sm:$0xff]
      %v184 = vld [vmem:[%s169 + $0x30] sm:$0xff]
      %v185 = vld [vmem:[%s169 + $0x38] sm:$0xff]
      %v186 = vld [vmem:[%s169 + $0x40] sm:$0xff]
      %v187 = vld [vmem:[%s169 + $0x48] sm:$0xff]
      %v188 = vld [vmem:[%s169 + $0x50] sm:$0xf]
      %v189 = vld [vmem:[%s169 + $0x54] sm:$0xff]
      %v190 = vld [vmem:[%s169 + $0x5c] sm:$0xff]
      %v191 = vld [vmem:[%s169 + $0x64] sm:$0xff]
      %v192 = vld [vmem:[%s169 + $0x6c] sm:$0xff]
      %v193 = vld [vmem:[%s169 + $0x74] sm:$0xff]
      %v194 = vld [vmem:[%s169 + $0x7c] sm:$0xff]
      %v195 = vld [vmem:[%s169 + $0x84] sm:$0xff]
      %v196 = vld [vmem:[%s169 + $0x8c] sm:$0xff]
      %v197 = vld [vmem:[%s169 + $0x94] sm:$0xff]
      %v198 = vld [vmem:[%s169 + $0x9c] sm:$0xff]
      %v199 = vld [vmem:[%s169 + $0xa4] sm:$0xf]
      %v200 = vld [vmem:[%s169 + $0xa8] sm:$0xff]
      %v201 = vld [vmem:[%s169 + $0xb0] sm:$0xff]
      %v202 = vld [vmem:[%s169 + $0xb8] sm:$0xff]
      %v203 = vld [vmem:[%s169 + $0xc0] sm:$0xff]
      %v204 = vld [vmem:[%s169 + $0xc8] sm:$0xff]
      %v205 = vld [vmem:[%s169 + $0xd0] sm:$0xff]
      %v206 = vld [vmem:[%s169 + $0xd8] sm:$0xff]
      %v207 = vld [vmem:[%s169 + $0xe0] sm:$0xff]
      %v208 = vld [vmem:[%s169 + $0xe8] sm:$0xff]
      %v209 = vld [vmem:[%s169 + $0xf0] sm:$0xff]
      %v210 = vld [vmem:[%s169 + $0xf8] sm:$0xf]
      %v211 = vld [vmem:[%s169 + $0xfc] sm:$0xff]
      %v212 = vld [vmem:[%s169 + $0x104] sm:$0xff]
      %v213 = vld [vmem:[%s169 + $0x10c] sm:$0xff]
      %v214 = vld [vmem:[%s169 + $0x114] sm:$0xff]
      %v215 = vld [vmem:[%s169 + $0x11c] sm:$0xff]
      %v216 = vld [vmem:[%s169 + $0x124] sm:$0xff]
      %v217 = vld [vmem:[%s169 + $0x12c] sm:$0xff]
      %v218 = vld [vmem:[%s169 + $0x134] sm:$0xff]
      %v219 = vld [vmem:[%s169 + $0x13c] sm:$0xff]
      %v220 = vld [vmem:[%s169 + $0x144] sm:$0xff]
      %v221 = vld [vmem:[%s169 + $0x14c] sm:$0xf]
      %v222 = vld [vmem:[%s169 + $0x150] sm:$0xff]
      %v223 = vld [vmem:[%s169 + $0x158] sm:$0xff]
      %v224 = vld [vmem:[%s169 + $0x160] sm:$0xff]
      %v225 = vld [vmem:[%s169 + $0x168] sm:$0xff]
      %v226 = vld [vmem:[%s169 + $0x170] sm:$0xff]
      %v227 = vld [vmem:[%s169 + $0x178] sm:$0xff]
      %v228 = vld [vmem:[%s169 + $0x180] sm:$0xff]
      %v229 = vld [vmem:[%s169 + $0x188] sm:$0xff]
      %v230 = vld [vmem:[%s169 + $0x190] sm:$0xff]
      %v231 = vld [vmem:[%s169 + $0x198] sm:$0xff]
      %v232 = vld [vmem:[%s169 + $0x1a0] sm:$0xf]
      %v233 = vld [vmem:[%s169 + $0x1a4] sm:$0xff]
      %v234 = vld [vmem:[%s169 + $0x1ac] sm:$0xff]
      %v235 = vld [vmem:[%s169 + $0x1b4] sm:$0xff]
      %v236 = vld [vmem:[%s169 + $0x1bc] sm:$0xff]
      %v237 = vld [vmem:[%s169 + $0x1c4] sm:$0xff]
      %v238 = vld [vmem:[%s169 + $0x1cc] sm:$0xff]
      %v239 = vld [vmem:[%s169 + $0x1d4] sm:$0xff]
      %v240 = vld [vmem:[%s169 + $0x1dc] sm:$0xff]
      %v241 = vld [vmem:[%s169 + $0x1e4] sm:$0xff]
      %v242 = vld [vmem:[%s169 + $0x1ec] sm:$0xff]
      %v243 = vld [vmem:[%s169 + $0x1f4] sm:$0xf]
      %v244 = vld [vmem:[%s169 + $0x1f8] sm:$0xff]
      %v245 = vld [vmem:[%s169 + $0x200] sm:$0xff]
      %v246 = vld [vmem:[%s169 + $0x208] sm:$0xff]
      %v247 = vld [vmem:[%s169 + $0x210] sm:$0xff]
      %v248 = vld [vmem:[%s169 + $0x218] sm:$0xff]
      %v249 = vld [vmem:[%s169 + $0x220] sm:$0xff]
      %v250 = vld [vmem:[%s169 + $0x228] sm:$0xff]
      %v251 = vld [vmem:[%s169 + $0x230] sm:$0xff]
      %v252 = vld [vmem:[%s169 + $0x238] sm:$0xff]
      %v253 = vld [vmem:[%s169 + $0x240] sm:$0xff]
      %v254 = vld [vmem:[%s169 + $0x248] sm:$0xf]
      %v255 = vld [vmem:[%s169 + $0x24c] sm:$0xff]
      %v256 = vld [vmem:[%s169 + $0x254] sm:$0xff]
      %v257 = vld [vmem:[%s169 + $0x25c] sm:$0xff]
      %v258 = vld [vmem:[%s169 + $0x264] sm:$0xff]
      %v259 = vld [vmem:[%s169 + $0x26c] sm:$0xff]
      %v260 = vld [vmem:[%s169 + $0x274] sm:$0xff]
      %v261 = vld [vmem:[%s169 + $0x27c] sm:$0xff]
      %v262 = vld [vmem:[%s169 + $0x284] sm:$0xff]
      %v263 = vld [vmem:[%s169 + $0x28c] sm:$0xff]
      %v264 = vld [vmem:[%s169 + $0x294] sm:$0xff]
      %v265 = vld [vmem:[%s169 + $0x29c] sm:$0xf]
      %v266 = vld [vmem:[%s169 + $0x2a0] sm:$0xff]
      %v267 = vld [vmem:[%s169 + $0x2a8] sm:$0xff]
      %v268 = vld [vmem:[%s169 + $0x2b0] sm:$0xff]
      %v269 = vld [vmem:[%s169 + $0x2b8] sm:$0xff]
      %v270 = vld [vmem:[%s169 + $0x2c0] sm:$0xff]
      %v271 = vld [vmem:[%s169 + $0x2c8] sm:$0xff]
      %v272 = vld [vmem:[%s169 + $0x2d0] sm:$0xff]
      %v273 = vld [vmem:[%s169 + $0x2d8] sm:$0xff]
      %v274 = vld [vmem:[%s169 + $0x2e0] sm:$0xff]
      %v275 = vld [vmem:[%s169 + $0x2e8] sm:$0xff]
      %v276 = vld [vmem:[%s169 + $0x2f0] sm:$0xf]
      %v277 = vld [vmem:[%s169 + $0x2f4] sm:$0xff]
      %v278 = vld [vmem:[%s169 + $0x2fc] sm:$0xff]
      %v279 = vld [vmem:[%s169 + $0x304] sm:$0xff]
      %v280 = vld [vmem:[%s169 + $0x30c] sm:$0xff]
      %v281 = vld [vmem:[%s169 + $0x314] sm:$0xff]
      %v282 = vld [vmem:[%s169 + $0x31c] sm:$0xff]
      %v283 = vld [vmem:[%s169 + $0x324] sm:$0xff]
      %v284 = vld [vmem:[%s169 + $0x32c] sm:$0xff]
      %v285 = vld [vmem:[%s169 + $0x334] sm:$0xff]
      %v286 = vld [vmem:[%s169 + $0x33c] sm:$0xff]
      %v287 = vld [vmem:[%s169 + $0x344] sm:$0xf]
      %v288 = vld [vmem:[%s169 + $0x348] sm:$0xff]
      %v289 = vld [vmem:[%s169 + $0x350] sm:$0xff]
      %v290 = vld [vmem:[%s169 + $0x358] sm:$0xff]
      %v291 = vld [vmem:[%s169 + $0x360] sm:$0xff]
      %v292 = vld [vmem:[%s169 + $0x368] sm:$0xff]
      %v293 = vld [vmem:[%s169 + $0x370] sm:$0xff]
      %v294 = vld [vmem:[%s169 + $0x378] sm:$0xff]
      %v295 = vld [vmem:[%s169 + $0x380] sm:$0xff]
      %v296 = vld [vmem:[%s169 + $0x388] sm:$0xff]
      %v297 = vld [vmem:[%s169 + $0x390] sm:$0xff]
      %v298 = vld [vmem:[%s169 + $0x398] sm:$0xf]
      %v299 = vld [vmem:[%s169 + $0x39c] sm:$0xff]
      %v300 = vld [vmem:[%s169 + $0x3a4] sm:$0xff]
      %v301 = vld [vmem:[%s169 + $0x3ac] sm:$0xff]
      %v302 = vld [vmem:[%s169 + $0x3b4] sm:$0xff]
      %v303 = vld [vmem:[%s169 + $0x3bc] sm:$0xff]
      %v304 = vld [vmem:[%s169 + $0x3c4] sm:$0xff]
      %v305 = vld [vmem:[%s169 + $0x3cc] sm:$0xff]
      %v306 = vld [vmem:[%s169 + $0x3d4] sm:$0xff]
      %v307 = vld [vmem:[%s169 + $0x3dc] sm:$0xff]
      %v308 = vld [vmem:[%s169 + $0x3e4] sm:$0xff]
      %v309 = vld [vmem:[%s169 + $0x3ec] sm:$0xf]
      %v310 = vld [vmem:[%s169 + $0x3f0] sm:$0xff]
      %v311 = vld [vmem:[%s169 + $0x3f8] sm:$0xff]
      %v312 = vld [vmem:[%s169 + $0x400] sm:$0xff]
      %v313 = vld [vmem:[%s169 + $0x408] sm:$0xff]
      %v314 = vld [vmem:[%s169 + $0x410] sm:$0xff]
      %v315 = vld [vmem:[%s169 + $0x418] sm:$0xff]
      %v316 = vld [vmem:[%s169 + $0x420] sm:$0xff]
      %v317 = vld [vmem:[%s169 + $0x428] sm:$0xff]
      %v318 = vld [vmem:[%s169 + $0x430] sm:$0xff]
      %v319 = vld [vmem:[%s169 + $0x438] sm:$0xff]
      %v320 = vld [vmem:[%s169 + $0x440] sm:$0xf]
      %v321 = vld [vmem:[%s169 + $0x444] sm:$0xff]
      %v322 = vld [vmem:[%s169 + $0x44c] sm:$0xff]
      %v323 = vld [vmem:[%s169 + $0x454] sm:$0xff]
      %v324 = vld [vmem:[%s169 + $0x45c] sm:$0xff]
      %v325 = vld [vmem:[%s169 + $0x464] sm:$0xff]
      %v326 = vld [vmem:[%s169 + $0x46c] sm:$0xff]
      %v327 = vld [vmem:[%s169 + $0x474] sm:$0xff]
      %v328 = vld [vmem:[%s169 + $0x47c] sm:$0xff]
      %v329 = vld [vmem:[%s169 + $0x484] sm:$0xff]
      %v330 = vld [vmem:[%s169 + $0x48c] sm:$0xff]
      %v331 = vld [vmem:[%s169 + $0x494] sm:$0xf]
      %v332 = vld [vmem:[%s169 + $0x498] sm:$0xff]
      %v333 = vld [vmem:[%s169 + $0x4a0] sm:$0xff]
      %v334 = vld [vmem:[%s169 + $0x4a8] sm:$0xff]
      %v335 = vld [vmem:[%s169 + $0x4b0] sm:$0xff]
      %v336 = vld [vmem:[%s169 + $0x4b8] sm:$0xff]
      %v337 = vld [vmem:[%s169 + $0x4c0] sm:$0xff]
      %v338 = vld [vmem:[%s169 + $0x4c8] sm:$0xff]
      %v339 = vld [vmem:[%s169 + $0x4d0] sm:$0xff]
      %v340 = vld [vmem:[%s169 + $0x4d8] sm:$0xff]
      %v341 = vld [vmem:[%s169 + $0x4e0] sm:$0xff]
      %v342 = vld [vmem:[%s169 + $0x4e8] sm:$0xf]
      %v343 = vld [vmem:[%s169 + $0x4ec] sm:$0xff]
      %v344 = vld [vmem:[%s169 + $0x4f4] sm:$0xff]
      %v345 = vld [vmem:[%s169 + $0x4fc] sm:$0xff]
      %v346 = vld [vmem:[%s169 + $0x504] sm:$0xff]
      %v347 = vld [vmem:[%s169 + $0x50c] sm:$0xff]
      %v348 = vld [vmem:[%s169 + $0x514] sm:$0xff]
      %v349 = vld [vmem:[%s169 + $0x51c] sm:$0xff]
      %v350 = vld [vmem:[%s169 + $0x524] sm:$0xff]
      %v351 = vld [vmem:[%s169 + $0x52c] sm:$0xff]
      %v352 = vld [vmem:[%s169 + $0x534] sm:$0xff]
      %v353 = vld [vmem:[%s169 + $0x53c] sm:$0xf]
      %v354 = vld [vmem:[%s169 + $0x540] sm:$0xff]
      %v355 = vld [vmem:[%s169 + $0x548] sm:$0xff]
      %v356 = vld [vmem:[%s169 + $0x550] sm:$0xff]
      %v357 = vld [vmem:[%s169 + $0x558] sm:$0xff]
      %v358 = vld [vmem:[%s169 + $0x560] sm:$0xff]
      %v359 = vld [vmem:[%s169 + $0x568] sm:$0xff]
      %v360 = vld [vmem:[%s169 + $0x570] sm:$0xff]
      %v361 = vld [vmem:[%s169 + $0x578] sm:$0xff]
      %v362 = vld [vmem:[%s169 + $0x580] sm:$0xff]
      %v363 = vld [vmem:[%s169 + $0x588] sm:$0xff]
      %v364 = vld [vmem:[%s169 + $0x590] sm:$0xf]
      %v365 = vld [vmem:[%s169 + $0x594] sm:$0xff]
      %v366 = vld [vmem:[%s169 + $0x59c] sm:$0xff]
      %v367 = vld [vmem:[%s169 + $0x5a4] sm:$0xff]
      %v368 = vld [vmem:[%s169 + $0x5ac] sm:$0xff]
      %v369 = vld [vmem:[%s169 + $0x5b4] sm:$0xff]
      %v370 = vld [vmem:[%s169 + $0x5bc] sm:$0xff]
      %v371 = vld [vmem:[%s169 + $0x5c4] sm:$0xff]
      %v372 = vld [vmem:[%s169 + $0x5cc] sm:$0xff]
      %v373 = vld [vmem:[%s169 + $0x5d4] sm:$0xff]
      %v374 = vld [vmem:[%s169 + $0x5dc] sm:$0xff]
      %v375 = vld [vmem:[%s169 + $0x5e4] sm:$0xf]
      %v376 = vld [vmem:[%s169 + $0x5e8] sm:$0xff]
      %v377 = vld [vmem:[%s169 + $0x5f0] sm:$0xff]
      %v378 = vld [vmem:[%s169 + $0x5f8] sm:$0xff]
      %v379 = vld [vmem:[%s169 + $0x600] sm:$0xff]
      %v380 = vld [vmem:[%s169 + $0x608] sm:$0xff]
      %v381 = vld [vmem:[%s169 + $0x610] sm:$0xff]
      %v382 = vld [vmem:[%s169 + $0x618] sm:$0xff]
      %v383 = vld [vmem:[%s169 + $0x620] sm:$0xff]
      %v384 = vld [vmem:[%s169 + $0x628] sm:$0xff]
      %v385 = vld [vmem:[%s169 + $0x630] sm:$0xff]
      %v386 = vld [vmem:[%s169 + $0x638] sm:$0xf]
      %v387 = vld [vmem:[%s169 + $0x63c] sm:$0xff]
      %v388 = vld [vmem:[%s169 + $0x644] sm:$0xff]
      %v389 = vld [vmem:[%s169 + $0x64c] sm:$0xff]
      %v390 = vld [vmem:[%s169 + $0x654] sm:$0xff]
      %v391 = vld [vmem:[%s169 + $0x65c] sm:$0xff]
      %v392 = vld [vmem:[%s169 + $0x664] sm:$0xff]
      %v393 = vld [vmem:[%s169 + $0x66c] sm:$0xff]
      %v394 = vld [vmem:[%s169 + $0x674] sm:$0xff]
      %v395 = vld [vmem:[%s169 + $0x67c] sm:$0xff]
      %v396 = vld [vmem:[%s169 + $0x684] sm:$0xff]
      %v397 = vld [vmem:[%s169 + $0x68c] sm:$0xf]
      %v398 = vld [vmem:[%s169 + $0x690] sm:$0xff]
      %v399 = vld [vmem:[%s169 + $0x698] sm:$0xff]
      %v400 = vld [vmem:[%s169 + $0x6a0] sm:$0xff]
      %v401 = vld [vmem:[%s169 + $0x6a8] sm:$0xff]
      %v402 = vld [vmem:[%s169 + $0x6b0] sm:$0xff]
      %v403 = vld [vmem:[%s169 + $0x6b8] sm:$0xff]
      %v404 = vld [vmem:[%s169 + $0x6c0] sm:$0xff]
      %v405 = vld [vmem:[%s169 + $0x6c8] sm:$0xff]
      %v406 = vld [vmem:[%s169 + $0x6d0] sm:$0xff]
      %v407 = vld [vmem:[%s169 + $0x6d8] sm:$0xff]
      %v408 = vld [vmem:[%s169 + $0x6e0] sm:$0xf]
      %v409 = vld [vmem:[%s169 + $0x6e4] sm:$0xff]
      %v410 = vld [vmem:[%s169 + $0x6ec] sm:$0xff]
      %v411 = vld [vmem:[%s169 + $0x6f4] sm:$0xff]
      %v412 = vld [vmem:[%s169 + $0x6fc] sm:$0xff]
      %v413 = vld [vmem:[%s169 + $0x704] sm:$0xff]
      %v414 = vld [vmem:[%s169 + $0x70c] sm:$0xff]
      %v415 = vld [vmem:[%s169 + $0x714] sm:$0xff]
      %v416 = vld [vmem:[%s169 + $0x71c] sm:$0xff]
      %v417 = vld [vmem:[%s169 + $0x724] sm:$0xff]
      %v418 = vld [vmem:[%s169 + $0x72c] sm:$0xff]
      %v419 = vld [vmem:[%s169 + $0x734] sm:$0xf]
      %v420 = vld [vmem:[%s169 + $0x738] sm:$0xff]
      %v421 = vld [vmem:[%s169 + $0x740] sm:$0xff]
      %v422 = vld [vmem:[%s169 + $0x748] sm:$0xff]
      %v423 = vld [vmem:[%s169 + $0x750] sm:$0xff]
      %v424 = vld [vmem:[%s169 + $0x758] sm:$0xff]
      %v425 = vld [vmem:[%s169 + $0x760] sm:$0xff]
      %v426 = vld [vmem:[%s169 + $0x768] sm:$0xff]
      %v427 = vld [vmem:[%s169 + $0x770] sm:$0xff]
      %v428 = vld [vmem:[%s169 + $0x778] sm:$0xff]
      %v429 = vld [vmem:[%s169 + $0x780] sm:$0xff]
      %v430 = vld [vmem:[%s169 + $0x788] sm:$0xf]
      %v431 = vld [vmem:[%s169 + $0x78c] sm:$0xff]
      %v432 = vld [vmem:[%s169 + $0x794] sm:$0xff]
      %v433 = vld [vmem:[%s169 + $0x79c] sm:$0xff]
      %v434 = vld [vmem:[%s169 + $0x7a4] sm:$0xff]
      %v435 = vld [vmem:[%s169 + $0x7ac] sm:$0xff]
      %v436 = vld [vmem:[%s169 + $0x7b4] sm:$0xff]
      %v437 = vld [vmem:[%s169 + $0x7bc] sm:$0xff]
      %v438 = vld [vmem:[%s169 + $0x7c4] sm:$0xff]
      %v439 = vld [vmem:[%s169 + $0x7cc] sm:$0xff]
      %v440 = vld [vmem:[%s169 + $0x7d4] sm:$0xff]
      %v441 = vld [vmem:[%s169 + $0x7dc] sm:$0xf]
      %v442 = vld [vmem:[%s169 + $0x7e0] sm:$0xff]
      %v443 = vld [vmem:[%s169 + $0x7e8] sm:$0xff]
      %v444 = vld [vmem:[%s169 + $0x7f0] sm:$0xff]
      %v445 = vld [vmem:[%s169 + $0x7f8] sm:$0xff]
      %v446 = vld [vmem:[%s169 + $0x800] sm:$0xff]
      %v447 = vld [vmem:[%s169 + $0x808] sm:$0xff]
      %v448 = vld [vmem:[%s169 + $0x810] sm:$0xff]
      %v449 = vld [vmem:[%s169 + $0x818] sm:$0xff]
      %v450 = vld [vmem:[%s169 + $0x820] sm:$0xff]
      %v451 = vld [vmem:[%s169 + $0x828] sm:$0xff]
      %v452 = vld [vmem:[%s169 + $0x830] sm:$0xf]
      %v453 = vld [vmem:[%s169 + $0x834] sm:$0xff]
      %v454 = vld [vmem:[%s169 + $0x83c] sm:$0xff]
      %v455 = vld [vmem:[%s169 + $0x844] sm:$0xff]
      %v456 = vld [vmem:[%s169 + $0x84c] sm:$0xff]
      %v457 = vld [vmem:[%s169 + $0x854] sm:$0xff]
      %v458 = vld [vmem:[%s169 + $0x85c] sm:$0xff]
      %v459 = vld [vmem:[%s169 + $0x864] sm:$0xff]
      %v460 = vld [vmem:[%s169 + $0x86c] sm:$0xff]
      %v461 = vld [vmem:[%s169 + $0x874] sm:$0xff]
      %v462 = vld [vmem:[%s169 + $0x87c] sm:$0xff]
      %v463 = vld [vmem:[%s169 + $0x884] sm:$0xf]
      %v464 = vld [vmem:[%s169 + $0x888] sm:$0xff]
      %v465 = vld [vmem:[%s169 + $0x890] sm:$0xff]
      %v466 = vld [vmem:[%s169 + $0x898] sm:$0xff]
      %v467 = vld [vmem:[%s169 + $0x8a0] sm:$0xff]
      %v468 = vld [vmem:[%s169 + $0x8a8] sm:$0xff]
      %v469 = vld [vmem:[%s169 + $0x8b0] sm:$0xff]
      %v470 = vld [vmem:[%s169 + $0x8b8] sm:$0xff]
      %v471 = vld [vmem:[%s169 + $0x8c0] sm:$0xff]
      %v472 = vld [vmem:[%s169 + $0x8c8] sm:$0xff]
      %v473 = vld [vmem:[%s169 + $0x8d0] sm:$0xff]
      %v474 = vld [vmem:[%s169 + $0x8d8] sm:$0xf]
      %v475 = vld [vmem:[%s169 + $0x8dc] sm:$0xff]
      %v476 = vld [vmem:[%s169 + $0x8e4] sm:$0xff]
      %v477 = vld [vmem:[%s169 + $0x8ec] sm:$0xff]
      %v478 = vld [vmem:[%s169 + $0x8f4] sm:$0xff]
      %v479 = vld [vmem:[%s169 + $0x8fc] sm:$0xff]
      %v480 = vld [vmem:[%s169 + $0x904] sm:$0xff]
      %v481 = vld [vmem:[%s169 + $0x90c] sm:$0xff]
      %v482 = vld [vmem:[%s169 + $0x914] sm:$0xff]
      %v483 = vld [vmem:[%s169 + $0x91c] sm:$0xff]
      %v484 = vld [vmem:[%s169 + $0x924] sm:$0xff]
      %v485 = vld [vmem:[%s169 + $0x92c] sm:$0xf]
      %v486 = vld [vmem:[%s169 + $0x930] sm:$0xff]
      %v487 = vld [vmem:[%s169 + $0x938] sm:$0xff]
      %v488 = vld [vmem:[%s169 + $0x940] sm:$0xff]
      %v489 = vld [vmem:[%s169 + $0x948] sm:$0xff]
      %v490 = vld [vmem:[%s169 + $0x950] sm:$0xff]
      %v491 = vld [vmem:[%s169 + $0x958] sm:$0xff]
      %v492 = vld [vmem:[%s169 + $0x960] sm:$0xff]
      %v493 = vld [vmem:[%s169 + $0x968] sm:$0xff]
      %v494 = vld [vmem:[%s169 + $0x970] sm:$0xff]
      %v495 = vld [vmem:[%s169 + $0x978] sm:$0xff]
      %v496 = vld [vmem:[%s169 + $0x980] sm:$0xf]
      %v497 = vld [vmem:[%s169 + $0x984] sm:$0xff]
      %v498 = vld [vmem:[%s169 + $0x98c] sm:$0xff]
      %v499 = vld [vmem:[%s169 + $0x994] sm:$0xff]
      %v500 = vld [vmem:[%s169 + $0x99c] sm:$0xff]
      %v501 = vld [vmem:[%s169 + $0x9a4] sm:$0xff]
      %v502 = vld [vmem:[%s169 + $0x9ac] sm:$0xff]
      %v503 = vld [vmem:[%s169 + $0x9b4] sm:$0xff]
      %v504 = vld [vmem:[%s169 + $0x9bc] sm:$0xff]
      %v505 = vld [vmem:[%s169 + $0x9c4] sm:$0xff]
      %v506 = vld [vmem:[%s169 + $0x9cc] sm:$0xff]
      %v507 = vld [vmem:[%s169 + $0x9d4] sm:$0xf]
      %v508 = vld [vmem:[%s169 + $0x9d8] sm:$0xff]
      %v509 = vld [vmem:[%s169 + $0x9e0] sm:$0xff]
      %v510 = vld [vmem:[%s169 + $0x9e8] sm:$0xff]
      %v511 = vld [vmem:[%s169 + $0x9f0] sm:$0xff]
      %v512 = vld [vmem:[%s169 + $0x9f8] sm:$0xff]
      %v513 = vld [vmem:[%s169 + $0xa00] sm:$0xff]
      %v514 = vld [vmem:[%s169 + $0xa08] sm:$0xff]
      %v515 = vld [vmem:[%s169 + $0xa10] sm:$0xff]
      %v516 = vld [vmem:[%s169 + $0xa18] sm:$0xff]
      %v517 = vld [vmem:[%s169 + $0xa20] sm:$0xff]
      %v518 = vld [vmem:[%s169 + $0xa28] sm:$0xf]
      %v519 = vld [vmem:[%s169 + $0xa2c] sm:$0xff]
      %v520 = vld [vmem:[%s169 + $0xa34] sm:$0xff]
      %v521 = vld [vmem:[%s169 + $0xa3c] sm:$0xff]
      %v522 = vld [vmem:[%s169 + $0xa44] sm:$0xff]
      %v523 = vld [vmem:[%s169 + $0xa4c] sm:$0xff]
      %v524 = vld [vmem:[%s169 + $0xa54] sm:$0xff]
      %v525 = vld [vmem:[%s169 + $0xa5c] sm:$0xff]
      %v526 = vld [vmem:[%s169 + $0xa64] sm:$0xff]
      %v527 = vld [vmem:[%s169 + $0xa6c] sm:$0xff]
      %v528 = vld [vmem:[%s169 + $0xa74] sm:$0xff]
      %v529 = vld [vmem:[%s169 + $0xa7c] sm:$0xf]
      %v530 = vld [vmem:[%s1] sm:$0xf]
      %v531 = vld [vmem:[%s1 + $0x4] sm:$0xf]
      %v532 = vld [vmem:[%s1 + $0x8] sm:$0xf]
      %v533 = vld [vmem:[%s1 + $0xc] sm:$0xf]
      %v534 = vld [vmem:[%s1 + $0x10] sm:$0xf]
      %v535 = vld [vmem:[%s1 + $0x14] sm:$0xf]
      %v536 = vld [vmem:[%s1 + $0x18] sm:$0xf]
      %v537 = vld [vmem:[%s1 + $0x1c] sm:$0xf]
      %v538 = vld [vmem:[%s1 + $0x20] sm:$0xf]
      %v539 = vld [vmem:[%s1 + $0x24] sm:$0xf]
      %v540 = vld [vmem:[%s1 + $0x28] sm:$0xf]
      %v541 = vld [vmem:[%s1 + $0x2c] sm:$0xf]
      %v542 = vld [vmem:[%s1 + $0x30] sm:$0xf]
      %v543 = vld [vmem:[%s1 + $0x34] sm:$0xf]
      %v544 = vld [vmem:[%s1 + $0x38] sm:$0xf]
      %v545 = vld [vmem:[%s1 + $0x3c] sm:$0xf]
      %v546 = vld [vmem:[%s1 + $0x40] sm:$0xf]
      %v547 = vld [vmem:[%s1 + $0x44] sm:$0xf]
      %v548 = vld [vmem:[%s1 + $0x48] sm:$0xf]
      %v549 = vld [vmem:[%s1 + $0x4c] sm:$0xf]
      %v550 = vld [vmem:[%s1 + $0x50] sm:$0xf]
      %v551 = vld [vmem:[%s1 + $0x54] sm:$0xf]
      %v552 = vld [vmem:[%s1 + $0x58] sm:$0xf]
      %v553 = vld [vmem:[%s1 + $0x5c] sm:$0xf]
      %v554 = vld [vmem:[%s1 + $0x60] sm:$0xf]
      %v555 = vld [vmem:[%s1 + $0x64] sm:$0xf]
      %v556 = vld [vmem:[%s1 + $0x68] sm:$0xf]
      %v557 = vld [vmem:[%s1 + $0x6c] sm:$0xf]
      %v558 = vld [vmem:[%s1 + $0x70] sm:$0xf]
      %v559 = vld [vmem:[%s1 + $0x74] sm:$0xf]
      %v560 = vld [vmem:[%s1 + $0x78] sm:$0xf]
      %v561 = vld [vmem:[%s1 + $0x7c] sm:$0xf]
      %v562 = vld [vmem:[%s1 + $0x80] sm:$0xf]
      %v563 = vld [vmem:[%s1 + $0x84] sm:$0xf]
      %v564 = vld [vmem:[%s1 + $0x88] sm:$0xf]
      %v565 = vld [vmem:[%s1 + $0x8c] sm:$0xf]
      %v566 = vld [vmem:[%s1 + $0x90] sm:$0xf]
      %v567 = vld [vmem:[%s1 + $0x94] sm:$0xf]
      %v568 = vld [vmem:[%s1 + $0x98] sm:$0xf]
      %v569 = vld [vmem:[%s1 + $0x9c] sm:$0xf]
      %v570 = vld [vmem:[%s1 + $0xa0] sm:$0xf]
      %v571 = vld [vmem:[%s1 + $0xa4] sm:$0xf]
      %v572 = vld [vmem:[%s1 + $0xa8] sm:$0xf]
      %v573 = vld [vmem:[%s1 + $0xac] sm:$0xf]
      %v574 = vld [vmem:[%s1 + $0xb0] sm:$0xf]
      %v575 = vld [vmem:[%s1 + $0xb4] sm:$0xf]
      %v576 = vld [vmem:[%s1 + $0xb8] sm:$0xf]
      %v577 = vld [vmem:[%s1 + $0xbc] sm:$0xf]
      %v578 = vld [vmem:[%s1 + $0xc0] sm:$0xf]
      %v579 = vld [vmem:[%s1 + $0xc4] sm:$0xf]
      %v580 = vld [vmem:[%s1 + $0xc8] sm:$0xf]
      %v581 = vld [vmem:[%s1 + $0xcc] sm:$0xf]
      %v582 = vld [vmem:[%s1 + $0xd0] sm:$0xf]
      %v583 = vld [vmem:[%s1 + $0xd4] sm:$0xf]
      %v584 = vld [vmem:[%s1 + $0xd8] sm:$0xf]
      %v585 = vld [vmem:[%s1 + $0xdc] sm:$0xf]
      %v586 = vld [vmem:[%s1 + $0xe0] sm:$0xf]
      %v587 = vld [vmem:[%s1 + $0xe4] sm:$0xf]
      %v588 = vld [vmem:[%s1 + $0xe8] sm:$0xf]
      %v589 = vld [vmem:[%s1 + $0xec] sm:$0xf]
      %v590 = vld [vmem:[%s1 + $0xf0] sm:$0xf]
      %v591 = vld [vmem:[%s1 + $0xf4] sm:$0xf]
      %v592 = vld [vmem:[%s1 + $0xf8] sm:$0xf]
      %v593 = vld [vmem:[%s1 + $0xfc] sm:$0xf]
      %v594 = vld [vmem:[%s1 + $0x100] sm:$0xf]
      %v595 = vld [vmem:[%s1 + $0x104] sm:$0xf]
      %v596 = vld [vmem:[%s1 + $0x108] sm:$0xf]
      %v597 = vld [vmem:[%s1 + $0x10c] sm:$0xf]
      %v598 = vld [vmem:[%s1 + $0x110] sm:$0xf]
      %v599 = vld [vmem:[%s1 + $0x114] sm:$0xf]
      %v600 = vld [vmem:[%s1 + $0x118] sm:$0xf]
      %v601 = vld [vmem:[%s1 + $0x11c] sm:$0xf]
      %v602 = vld [vmem:[%s1 + $0x120] sm:$0xf]
      %v603 = vld [vmem:[%s1 + $0x124] sm:$0xf]
      %v604 = vld [vmem:[%s1 + $0x128] sm:$0xf]
      %v605 = vld [vmem:[%s1 + $0x12c] sm:$0xf]
      %v606 = vld [vmem:[%s1 + $0x130] sm:$0xf]
      %v607 = vld [vmem:[%s1 + $0x134] sm:$0xf]
      %v608 = vld [vmem:[%s1 + $0x138] sm:$0xf]
      %v609 = vld [vmem:[%s1 + $0x13c] sm:$0xf]
      %v610 = vld [vmem:[%s1 + $0x140] sm:$0xf]
      %v611 = vld [vmem:[%s1 + $0x144] sm:$0xf]
      %v612 = vld [vmem:[%s1 + $0x148] sm:$0xf]
      %v613 = vld [vmem:[%s1 + $0x14c] sm:$0xf]
      %v614 = vld [vmem:[%s1 + $0x150] sm:$0xf]
      %v615 = vld [vmem:[%s1 + $0x154] sm:$0xf]
      %v616 = vld [vmem:[%s1 + $0x158] sm:$0xf]
      %v617 = vld [vmem:[%s1 + $0x15c] sm:$0xf]
      %v618 = vld [vmem:[%s1 + $0x160] sm:$0xf]
      %v619 = vld [vmem:[%s1 + $0x164] sm:$0xf]
      %v620 = vld [vmem:[%s1 + $0x168] sm:$0xf]
      %v621 = vld [vmem:[%s1 + $0x16c] sm:$0xf]
      %v622 = vld [vmem:[%s1 + $0x170] sm:$0xf]
      %v623 = vld [vmem:[%s1 + $0x174] sm:$0xf]
      %v624 = vld [vmem:[%s1 + $0x178] sm:$0xf]
      %v625 = vld [vmem:[%s1 + $0x17c] sm:$0xf]
      %v626 = vld [vmem:[%s1 + $0x180] sm:$0xf]
      %v627 = vld [vmem:[%s1 + $0x184] sm:$0xf]
      %v628 = vld [vmem:[%s1 + $0x188] sm:$0xf]
      %v629 = vld [vmem:[%s1 + $0x18c] sm:$0xf]
      %v630 = vld [vmem:[%s1 + $0x190] sm:$0xf]
      %v631 = vld [vmem:[%s1 + $0x194] sm:$0xf]
      %v632 = vld [vmem:[%s1 + $0x198] sm:$0xf]
      %v633 = vld [vmem:[%s1 + $0x19c] sm:$0xf]
      %v634 = vld [vmem:[%s1 + $0x1a0] sm:$0xf]
      %v635 = vld [vmem:[%s1 + $0x1a4] sm:$0xf]
      %v636 = vld [vmem:[%s1 + $0x1a8] sm:$0xf]
      %v637 = vld [vmem:[%s1 + $0x1ac] sm:$0xf]
      %v638 = vld [vmem:[%s1 + $0x1b0] sm:$0xf]
      %v639 = vld [vmem:[%s1 + $0x1b4] sm:$0xf]
      %v640 = vld [vmem:[%s1 + $0x1b8] sm:$0xf]
      %v641 = vld [vmem:[%s1 + $0x1bc] sm:$0xf]
      %v642 = vld [vmem:[%s1 + $0x1c0] sm:$0xf]
      %v643 = vld [vmem:[%s1 + $0x1c4] sm:$0xf]
      %v644 = vld [vmem:[%s1 + $0x1c8] sm:$0xf]
      %v645 = vld [vmem:[%s1 + $0x1cc] sm:$0xf]
      %v646 = vld [vmem:[%s1 + $0x1d0] sm:$0xf]
      %v647 = vld [vmem:[%s1 + $0x1d4] sm:$0xf]
      %v648 = vld [vmem:[%s1 + $0x1d8] sm:$0xf]
      %v649 = vld [vmem:[%s1 + $0x1dc] sm:$0xf]
      %v650 = vld [vmem:[%s1 + $0x1e0] sm:$0xf]
      %v651 = vld [vmem:[%s1 + $0x1e4] sm:$0xf]
      %v652 = vld [vmem:[%s1 + $0x1e8] sm:$0xf]
      %v653 = vld [vmem:[%s1 + $0x1ec] sm:$0xf]
      %v654 = vld [vmem:[%s1 + $0x1f0] sm:$0xf]
      %v655 = vld [vmem:[%s1 + $0x1f4] sm:$0xf]
      %v656 = vld [vmem:[%s1 + $0x1f8] sm:$0xf]
      %v657 = vld [vmem:[%s1 + $0x1fc] sm:$0xf]
      %v658 = vld [vmem:[%s1 + $0x200] sm:$0xf]
      %v659 = vld [vmem:[%s1 + $0x204] sm:$0xf]
      %v660 = vld [vmem:[%s1 + $0x208] sm:$0xf]
      %v661 = vld [vmem:[%s1 + $0x20c] sm:$0xf]
      %v662 = vld [vmem:[%s1 + $0x210] sm:$0xf]
      %v663 = vld [vmem:[%s1 + $0x214] sm:$0xf]
      %v664 = vld [vmem:[%s1 + $0x218] sm:$0xf]
      %v665 = vld [vmem:[%s1 + $0x21c] sm:$0xf]
      %v666 = vld [vmem:[%s1 + $0x220] sm:$0xf]
      %v667 = vld [vmem:[%s1 + $0x224] sm:$0xf]
      %v668 = vld [vmem:[%s1 + $0x228] sm:$0xf]
      %v669 = vld [vmem:[%s1 + $0x22c] sm:$0xf]
      %v670 = vld [vmem:[%s1 + $0x230] sm:$0xf]
      %v671 = vld [vmem:[%s1 + $0x234] sm:$0xf]
      %v672 = vld [vmem:[%s1 + $0x238] sm:$0xf]
      %v673 = vld [vmem:[%s1 + $0x23c] sm:$0xf]
      %v674 = vld [vmem:[%s1 + $0x240] sm:$0xf]
      %v675 = vld [vmem:[%s1 + $0x244] sm:$0xf]
      %v676 = vld [vmem:[%s1 + $0x248] sm:$0xf]
      %v677 = vld [vmem:[%s1 + $0x24c] sm:$0xf]
      %v678 = vld [vmem:[%s1 + $0x250] sm:$0xf]
      %v679 = vld [vmem:[%s1 + $0x254] sm:$0xf]
      %v680 = vld [vmem:[%s1 + $0x258] sm:$0xf]
      %v681 = vld [vmem:[%s1 + $0x25c] sm:$0xf]
      %v682 = vld [vmem:[%s1 + $0x260] sm:$0xf]
      %v683 = vld [vmem:[%s1 + $0x264] sm:$0xf]
      %v684 = vld [vmem:[%s1 + $0x268] sm:$0xf]
      %v685 = vld [vmem:[%s1 + $0x26c] sm:$0xf]
      %v686 = vld [vmem:[%s1 + $0x270] sm:$0xf]
      %v687 = vld [vmem:[%s1 + $0x274] sm:$0xf]
      %v688 = vld [vmem:[%s1 + $0x278] sm:$0xf]
      %v689 = vld [vmem:[%s1 + $0x27c] sm:$0xf]
      %v690 = vld [vmem:[%s1 + $0x280] sm:$0xf]
      %v691 = vld [vmem:[%s1 + $0x284] sm:$0xf]
      %v692 = vld [vmem:[%s1 + $0x288] sm:$0xf]
      %v693 = vld [vmem:[%s1 + $0x28c] sm:$0xf]
      %v694 = vld [vmem:[%s1 + $0x290] sm:$0xf]
      %v695 = vld [vmem:[%s1 + $0x294] sm:$0xf]
      %v696 = vld [vmem:[%s1 + $0x298] sm:$0xf]
      %v697 = vld [vmem:[%s1 + $0x29c] sm:$0xf]
      %v698 = vld [vmem:[%s1 + $0x2a0] sm:$0xf]
      %v699 = vld [vmem:[%s1 + $0x2a4] sm:$0xf]
      %v700 = vld [vmem:[%s1 + $0x2a8] sm:$0xf]
      %v701 = vld [vmem:[%s1 + $0x2ac] sm:$0xf]
      %v702 = vld [vmem:[%s1 + $0x2b0] sm:$0xf]
      %v703 = vld [vmem:[%s1 + $0x2b4] sm:$0xf]
      %v704 = vld [vmem:[%s1 + $0x2b8] sm:$0xf]
      %v705 = vld [vmem:[%s1 + $0x2bc] sm:$0xf]
      %v706 = vld [vmem:[%s1 + $0x2c0] sm:$0xf]
      %v707 = vld [vmem:[%s1 + $0x2c4] sm:$0xf]
      %v708 = vld [vmem:[%s1 + $0x2c8] sm:$0xf]
      %v709 = vld [vmem:[%s1 + $0x2cc] sm:$0xf]
      %v710 = vld [vmem:[%s1 + $0x2d0] sm:$0xf]
      %v711 = vld [vmem:[%s1 + $0x2d4] sm:$0xf]
      %v712 = vld [vmem:[%s1 + $0x2d8] sm:$0xf]
      %v713 = vld [vmem:[%s1 + $0x2dc] sm:$0xf]
      %v714 = vld [vmem:[%s1 + $0x2e0] sm:$0xf]
      %v715 = vld [vmem:[%s1 + $0x2e4] sm:$0xf]
      %v716 = vld [vmem:[%s1 + $0x2e8] sm:$0xf]
      %v717 = vld [vmem:[%s1 + $0x2ec] sm:$0xf]
      %v718 = vld [vmem:[%s1 + $0x2f0] sm:$0xf]
      %v719 = vld [vmem:[%s1 + $0x2f4] sm:$0xf]
      %v720 = vld [vmem:[%s1 + $0x2f8] sm:$0xf]
      %v721 = vld [vmem:[%s1 + $0x2fc] sm:$0xf]
      %v722 = vld [vmem:[%s1 + $0x300] sm:$0xf]
      %v723 = vld [vmem:[%s1 + $0x304] sm:$0xf]
      %v724 = vld [vmem:[%s1 + $0x308] sm:$0xf]
      %v725 = vld [vmem:[%s1 + $0x30c] sm:$0xf]
      %v726 = vld [vmem:[%s1 + $0x310] sm:$0xf]
      %v727 = vld [vmem:[%s1 + $0x314] sm:$0xf]
      %v728 = vld [vmem:[%s1 + $0x318] sm:$0xf]
      %v729 = vld [vmem:[%s1 + $0x31c] sm:$0xf]
      %v730 = vld [vmem:[%s1 + $0x320] sm:$0xf]
      %v731 = vld [vmem:[%s1 + $0x324] sm:$0xf]
      %v732 = vld [vmem:[%s1 + $0x328] sm:$0xf]
      %v733 = vld [vmem:[%s1 + $0x32c] sm:$0xf]
      %v734 = vld [vmem:[%s1 + $0x330] sm:$0xf]
      %v735 = vld [vmem:[%s1 + $0x334] sm:$0xf]
      %v736 = vld [vmem:[%s1 + $0x338] sm:$0xf]
      %v737 = vld [vmem:[%s1 + $0x33c] sm:$0xf]
      %v738 = vld [vmem:[%s1 + $0x340] sm:$0xf]
      %v739 = vld [vmem:[%s1 + $0x344] sm:$0xf]
      %v740 = vld [vmem:[%s1 + $0x348] sm:$0xf]
      %v741 = vld [vmem:[%s1 + $0x34c] sm:$0xf]
      %v742 = vld [vmem:[%s1 + $0x350] sm:$0xf]
      %v743 = vld [vmem:[%s1 + $0x354] sm:$0xf]
      %v744 = vld [vmem:[%s1 + $0x358] sm:$0xf]
      %v745 = vld [vmem:[%s1 + $0x35c] sm:$0xf]
      %v746 = vld [vmem:[%s1 + $0x360] sm:$0xf]
      %v747 = vld [vmem:[%s1 + $0x364] sm:$0xf]
      %v748 = vld [vmem:[%s1 + $0x368] sm:$0xf]
      %v749 = vld [vmem:[%s1 + $0x36c] sm:$0xf]
      %v750 = vld [vmem:[%s1 + $0x370] sm:$0xf]
      %v751 = vld [vmem:[%s1 + $0x374] sm:$0xf]
      %v752 = vld [vmem:[%s1 + $0x378] sm:$0xf]
      %v753 = vld [vmem:[%s1 + $0x37c] sm:$0xf]
      %v754 = vld [vmem:[%s1 + $0x380] sm:$0xf]
      %v755 = vld [vmem:[%s1 + $0x384] sm:$0xf]
      %v756 = vld [vmem:[%s1 + $0x388] sm:$0xf]
      %v757 = vld [vmem:[%s1 + $0x38c] sm:$0xf]
      %v758 = vld [vmem:[%s1 + $0x390] sm:$0xf]
      %v759 = vld [vmem:[%s1 + $0x394] sm:$0xf]
      %v760 = vld [vmem:[%s1 + $0x398] sm:$0xf]
      %v761 = vld [vmem:[%s1 + $0x39c] sm:$0xf]
      %v762 = vld [vmem:[%s1 + $0x3a0] sm:$0xf]
      %v763 = vld [vmem:[%s1 + $0x3a4] sm:$0xf]
      %v764 = vld [vmem:[%s1 + $0x3a8] sm:$0xf]
      %v765 = vld [vmem:[%s1 + $0x3ac] sm:$0xf]
      %v766 = vld [vmem:[%s1 + $0x3b0] sm:$0xf]
      %v767 = vld [vmem:[%s1 + $0x3b4] sm:$0xf]
      %v768 = vld [vmem:[%s1 + $0x3b8] sm:$0xf]
      %v769 = vld [vmem:[%s1 + $0x3bc] sm:$0xf]
      %v770 = vld [vmem:[%s1 + $0x3c0] sm:$0xf]
      %v771 = vld [vmem:[%s1 + $0x3c4] sm:$0xf]
      %v772 = vld [vmem:[%s1 + $0x3c8] sm:$0xf]
      %v773 = vld [vmem:[%s1 + $0x3cc] sm:$0xf]
      %v774 = vld [vmem:[%s1 + $0x3d0] sm:$0xf]
      %v775 = vld [vmem:[%s1 + $0x3d4] sm:$0xf]
      %v776 = vld [vmem:[%s1 + $0x3d8] sm:$0xf]
      %v777 = vld [vmem:[%s1 + $0x3dc] sm:$0xf]
      %v778 = vld [vmem:[%s1 + $0x3e0] sm:$0xf]
      %v779 = vld [vmem:[%s1 + $0x3e4] sm:$0xf]
      %v780 = vld [vmem:[%s1 + $0x3e8] sm:$0xf]
      %v781 = vld [vmem:[%s1 + $0x3ec] sm:$0xf]
      %v782 = vld [vmem:[%s1 + $0x3f0] sm:$0xf]
      %v783 = vld [vmem:[%s1 + $0x3f4] sm:$0xf]
      %v784 = vld [vmem:[%s1 + $0x3f8] sm:$0xf]
      %v785 = vld [vmem:[%s1 + $0x3fc] sm:$0xf]
      %v786 = vld [vmem:[%s1 + $0x400] sm:$0xf]
      %v787 = vld [vmem:[%s1 + $0x404] sm:$0xf]
      %v788 = vld [vmem:[%s1 + $0x408] sm:$0xf]
      %v789 = vld [vmem:[%s1 + $0x40c] sm:$0xf]
      %v790 = vld [vmem:[%s1 + $0x410] sm:$0xf]
      %v791 = vld [vmem:[%s1 + $0x414] sm:$0xf]
      %v792 = vld [vmem:[%s1 + $0x418] sm:$0xf]
      %v793 = vld [vmem:[%s1 + $0x41c] sm:$0xf]
      %v794 = vld [vmem:[%s1 + $0x420] sm:$0xf]
      %v795 = vld [vmem:[%s1 + $0x424] sm:$0xf]
      %v796 = vld [vmem:[%s1 + $0x428] sm:$0xf]
      %v797 = vld [vmem:[%s1 + $0x42c] sm:$0xf]
      %v798 = vld [vmem:[%s1 + $0x430] sm:$0xf]
      %v799 = vld [vmem:[%s1 + $0x434] sm:$0xf]
      %v800 = vld [vmem:[%s1 + $0x438] sm:$0xf]
      %v801 = vld [vmem:[%s1 + $0x43c] sm:$0xf]
      %v802 = vld [vmem:[%s1 + $0x440] sm:$0xf]
      %v803 = vld [vmem:[%s1 + $0x444] sm:$0xf]
      %v804 = vld [vmem:[%s1 + $0x448] sm:$0xf]
      %v805 = vld [vmem:[%s1 + $0x44c] sm:$0xf]
      %v806 = vld [vmem:[%s1 + $0x450] sm:$0xf]
      %v807 = vld [vmem:[%s1 + $0x454] sm:$0xf]
      %v808 = vld [vmem:[%s1 + $0x458] sm:$0xf]
      %v809 = vld [vmem:[%s1 + $0x45c] sm:$0xf]
      %v810 = vld [vmem:[%s1 + $0x460] sm:$0xf]
      %v811 = vld [vmem:[%s1 + $0x464] sm:$0xf]
      %v812 = vld [vmem:[%s1 + $0x468] sm:$0xf]
      %v813 = vld [vmem:[%s1 + $0x46c] sm:$0xf]
      %v814 = vld [vmem:[%s1 + $0x470] sm:$0xf]
      %v815 = vld [vmem:[%s1 + $0x474] sm:$0xf]
      %v816 = vld [vmem:[%s1 + $0x478] sm:$0xf]
      %v817 = vld [vmem:[%s1 + $0x47c] sm:$0xf]
      %v818 = vld [vmem:[%s1 + $0x480] sm:$0xf]
      %v819 = vld [vmem:[%s1 + $0x484] sm:$0xf]
      %v820 = vld [vmem:[%s1 + $0x488] sm:$0xf]
      %v821 = vld [vmem:[%s1 + $0x48c] sm:$0xf]
      %v822 = vld [vmem:[%s1 + $0x490] sm:$0xf]
      %v823 = vld [vmem:[%s1 + $0x494] sm:$0xf]
      %v824 = vld [vmem:[%s1 + $0x498] sm:$0xf]
      %v825 = vld [vmem:[%s1 + $0x49c] sm:$0xf]
      %v826 = vld [vmem:[%s1 + $0x4a0] sm:$0xf]
      %v827 = vld [vmem:[%s1 + $0x4a4] sm:$0xf]
      %v828 = vld [vmem:[%s1 + $0x4a8] sm:$0xf]
      %v829 = vld [vmem:[%s1 + $0x4ac] sm:$0xf]
      %v830 = vld [vmem:[%s1 + $0x4b0] sm:$0xf]
      %v831 = vld [vmem:[%s1 + $0x4b4] sm:$0xf]
      %v832 = vld [vmem:[%s1 + $0x4b8] sm:$0xf]
      %v833 = vld [vmem:[%s1 + $0x4bc] sm:$0xf]
      %v834 = vld [vmem:[%s1 + $0x4c0] sm:$0xf]
      %v835 = vld [vmem:[%s1 + $0x4c4] sm:$0xf]
      %v836 = vld [vmem:[%s1 + $0x4c8] sm:$0xf]
      %v837 = vld [vmem:[%s1 + $0x4cc] sm:$0xf]
      %v838 = vld [vmem:[%s1 + $0x4d0] sm:$0xf]
      %v839 = vld [vmem:[%s1 + $0x4d4] sm:$0xf]
      %v840 = vld [vmem:[%s1 + $0x4d8] sm:$0xf]
      %v841 = vld [vmem:[%s1 + $0x4dc] sm:$0xf]
      %v842 = vld [vmem:[%s1 + $0x4e0] sm:$0xf]
      %v843 = vld [vmem:[%s1 + $0x4e4] sm:$0xf]
      %v844 = vld [vmem:[%s1 + $0x4e8] sm:$0xf]
      %v845 = vld [vmem:[%s1 + $0x4ec] sm:$0xf]
      %v846 = vld [vmem:[%s1 + $0x4f0] sm:$0xf]
      %v847 = vld [vmem:[%s1 + $0x4f4] sm:$0xf]
      %v848 = vld [vmem:[%s1 + $0x4f8] sm:$0xf]
      %v849 = vld [vmem:[%s1 + $0x4fc] sm:$0xf]
      %v850 = vld [vmem:[%s1 + $0x500] sm:$0xf]
      %v851 = vld [vmem:[%s1 + $0x504] sm:$0xf]
      %v852 = vld [vmem:[%s1 + $0x508] sm:$0xf]
      %v853 = vld [vmem:[%s1 + $0x50c] sm:$0xf]
      %v854 = vld [vmem:[%s1 + $0x510] sm:$0xf]
      %v855 = vld [vmem:[%s1 + $0x514] sm:$0xf]
      %v856 = vld [vmem:[%s1 + $0x518] sm:$0xf]
      %v857 = vld [vmem:[%s1 + $0x51c] sm:$0xf]
      %v858 = vld [vmem:[%s1 + $0x520] sm:$0xf]
      %v859 = vld [vmem:[%s1 + $0x524] sm:$0xf]
      %v860 = vld [vmem:[%s1 + $0x528] sm:$0xf]
      %v861 = vld [vmem:[%s1 + $0x52c] sm:$0xf]
      %v862 = vld [vmem:[%s1 + $0x530] sm:$0xf]
      %v863 = vld [vmem:[%s1 + $0x534] sm:$0xf]
      %v864 = vld [vmem:[%s1 + $0x538] sm:$0xf]
      %v865 = vld [vmem:[%s1 + $0x53c] sm:$0xf]
      %v866 = vld [vmem:[%s2] sm:$0x1]
      %v868 = vlaneseq
      %v869 = vshrl.u32 %v868, 7
      %v870 = vsub.s32 0, %v869
      %v871 = vrot.slane %v866, %v870
      %v1225 = vunpack.c.l.b16 %v178
      %v1226 = vunpack.c.h.b16 %v178
      %v1227 = vunpack.c.l.b16 %v179
      %v1228 = vunpack.c.h.b16 %v179
      %v1229 = vunpack.c.l.b16 %v180
      %v1230 = vunpack.c.h.b16 %v180
      %v1231 = vunpack.c.l.b16 %v181
      %v1232 = vunpack.c.h.b16 %v181
      %v1233 = vunpack.c.l.b16 %v182
      %v1234 = vunpack.c.h.b16 %v182
      %v1235 = vunpack.c.l.b16 %v183
      %v1236 = vunpack.c.h.b16 %v183
      %v1237 = vunpack.c.l.b16 %v184
      %v1238 = vunpack.c.h.b16 %v184
      %v1239 = vunpack.c.l.b16 %v185
      %v1240 = vunpack.c.h.b16 %v185
      %v1241 = vunpack.c.l.b16 %v186
      %v1242 = vunpack.c.h.b16 %v186
      %v1243 = vunpack.c.l.b16 %v187
      %v1244 = vunpack.c.h.b16 %v187
      %v1245 = vunpack.c.l.b16 %v188
      %v1246 = vunpack.c.l.b16 %v189
      %v1247 = vunpack.c.h.b16 %v189
      %v1248 = vunpack.c.l.b16 %v190
      %v1249 = vunpack.c.h.b16 %v190
      %v1250 = vunpack.c.l.b16 %v191
      %v1251 = vunpack.c.h.b16 %v191
      %v1252 = vunpack.c.l.b16 %v192
      %v1253 = vunpack.c.h.b16 %v192
      %v1254 = vunpack.c.l.b16 %v193
      %v1255 = vunpack.c.h.b16 %v193
      %v1256 = vunpack.c.l.b16 %v194
      %v1257 = vunpack.c.h.b16 %v194
      %v1258 = vunpack.c.l.b16 %v195
      %v1259 = vunpack.c.h.b16 %v195
      %v1260 = vunpack.c.l.b16 %v196
      %v1261 = vunpack.c.h.b16 %v196
      %v1262 = vunpack.c.l.b16 %v197
      %v1263 = vunpack.c.h.b16 %v197
      %v1264 = vunpack.c.l.b16 %v198
      %v1265 = vunpack.c.h.b16 %v198
      %v1266 = vunpack.c.l.b16 %v199
      %v1267 = vunpack.c.l.b16 %v200
      %v1268 = vunpack.c.h.b16 %v200
      %v1269 = vunpack.c.l.b16 %v201
      %v1270 = vunpack.c.h.b16 %v201
      %v1271 = vunpack.c.l.b16 %v202
      %v1272 = vunpack.c.h.b16 %v202
      %v1273 = vunpack.c.l.b16 %v203
      %v1274 = vunpack.c.h.b16 %v203
      %v1275 = vunpack.c.l.b16 %v204
      %v1276 = vunpack.c.h.b16 %v204
      %v1277 = vunpack.c.l.b16 %v205
      %v1278 = vunpack.c.h.b16 %v205
      %v1279 = vunpack.c.l.b16 %v206
      %v1280 = vunpack.c.h.b16 %v206
      %v1281 = vunpack.c.l.b16 %v207
      %v1282 = vunpack.c.h.b16 %v207
      %v1283 = vunpack.c.l.b16 %v208
      %v1284 = vunpack.c.h.b16 %v208
      %v1285 = vunpack.c.l.b16 %v209
      %v1286 = vunpack.c.h.b16 %v209
      %v1287 = vunpack.c.l.b16 %v210
      %v1288 = vunpack.c.l.b16 %v211
      %v1289 = vunpack.c.h.b16 %v211
      %v1290 = vunpack.c.l.b16 %v212
      %v1291 = vunpack.c.h.b16 %v212
      %v1292 = vunpack.c.l.b16 %v213
      %v1293 = vunpack.c.h.b16 %v213
      %v1294 = vunpack.c.l.b16 %v214
      %v1295 = vunpack.c.h.b16 %v214
      %v1296 = vunpack.c.l.b16 %v215
      %v1297 = vunpack.c.h.b16 %v215
      %v1298 = vunpack.c.l.b16 %v216
      %v1299 = vunpack.c.h.b16 %v216
      %v1300 = vunpack.c.l.b16 %v217
      %v1301 = vunpack.c.h.b16 %v217
      %v1302 = vunpack.c.l.b16 %v218
      %v1303 = vunpack.c.h.b16 %v218
      %v1304 = vunpack.c.l.b16 %v219
      %v1305 = vunpack.c.h.b16 %v219
      %v1306 = vunpack.c.l.b16 %v220
      %v1307 = vunpack.c.h.b16 %v220
      %v1308 = vunpack.c.l.b16 %v221
      %v1309 = vunpack.c.l.b16 %v222
      %v1310 = vunpack.c.h.b16 %v222
      %v1311 = vunpack.c.l.b16 %v223
      %v1312 = vunpack.c.h.b16 %v223
      %v1313 = vunpack.c.l.b16 %v224
      %v1314 = vunpack.c.h.b16 %v224
      %v1315 = vunpack.c.l.b16 %v225
      %v1316 = vunpack.c.h.b16 %v225
      %v1317 = vunpack.c.l.b16 %v226
      %v1318 = vunpack.c.h.b16 %v226
      %v1319 = vunpack.c.l.b16 %v227
      %v1320 = vunpack.c.h.b16 %v227
      %v1321 = vunpack.c.l.b16 %v228
      %v1322 = vunpack.c.h.b16 %v228
      %v1323 = vunpack.c.l.b16 %v229
      %v1324 = vunpack.c.h.b16 %v229
      %v1325 = vunpack.c.l.b16 %v230
      %v1326 = vunpack.c.h.b16 %v230
      %v1327 = vunpack.c.l.b16 %v231
      %v1328 = vunpack.c.h.b16 %v231
      %v1329 = vunpack.c.l.b16 %v232
      %v1330 = vunpack.c.l.b16 %v233
      %v1331 = vunpack.c.h.b16 %v233
      %v1332 = vunpack.c.l.b16 %v234
      %v1333 = vunpack.c.h.b16 %v234
      %v1334 = vunpack.c.l.b16 %v235
      %v1335 = vunpack.c.h.b16 %v235
      %v1336 = vunpack.c.l.b16 %v236
      %v1337 = vunpack.c.h.b16 %v236
      %v1338 = vunpack.c.l.b16 %v237
      %v1339 = vunpack.c.h.b16 %v237
      %v1340 = vunpack.c.l.b16 %v238
      %v1341 = vunpack.c.h.b16 %v238
      %v1342 = vunpack.c.l.b16 %v239
      %v1343 = vunpack.c.h.b16 %v239
      %v1344 = vunpack.c.l.b16 %v240
      %v1345 = vunpack.c.h.b16 %v240
      %v1346 = vunpack.c.l.b16 %v241
      %v1347 = vunpack.c.h.b16 %v241
      %v1348 = vunpack.c.l.b16 %v242
      %v1349 = vunpack.c.h.b16 %v242
      %v1350 = vunpack.c.l.b16 %v243
      %v1351 = vunpack.c.l.b16 %v244
      %v1352 = vunpack.c.h.b16 %v244
      %v1353 = vunpack.c.l.b16 %v245
      %v1354 = vunpack.c.h.b16 %v245
      %v1355 = vunpack.c.l.b16 %v246
      %v1356 = vunpack.c.h.b16 %v246
      %v1357 = vunpack.c.l.b16 %v247
      %v1358 = vunpack.c.h.b16 %v247
      %v1359 = vunpack.c.l.b16 %v248
      %v1360 = vunpack.c.h.b16 %v248
      %v1361 = vunpack.c.l.b16 %v249
      %v1362 = vunpack.c.h.b16 %v249
      %v1363 = vunpack.c.l.b16 %v250
      %v1364 = vunpack.c.h.b16 %v250
      %v1365 = vunpack.c.l.b16 %v251
      %v1366 = vunpack.c.h.b16 %v251
      %v1367 = vunpack.c.l.b16 %v252
      %v1368 = vunpack.c.h.b16 %v252
      %v1369 = vunpack.c.l.b16 %v253
      %v1370 = vunpack.c.h.b16 %v253
      %v1371 = vunpack.c.l.b16 %v254
      %v1372 = vunpack.c.l.b16 %v255
      %v1373 = vunpack.c.h.b16 %v255
      %v1374 = vunpack.c.l.b16 %v256
      %v1375 = vunpack.c.h.b16 %v256
      %v1376 = vunpack.c.l.b16 %v257
      %v1377 = vunpack.c.h.b16 %v257
      %v1378 = vunpack.c.l.b16 %v258
      %v1379 = vunpack.c.h.b16 %v258
      %v1380 = vunpack.c.l.b16 %v259
      %v1381 = vunpack.c.h.b16 %v259
      %v1382 = vunpack.c.l.b16 %v260
      %v1383 = vunpack.c.h.b16 %v260
      %v1384 = vunpack.c.l.b16 %v261
      %v1385 = vunpack.c.h.b16 %v261
      %v1386 = vunpack.c.l.b16 %v262
      %v1387 = vunpack.c.h.b16 %v262
      %v1388 = vunpack.c.l.b16 %v263
      %v1389 = vunpack.c.h.b16 %v263
      %v1390 = vunpack.c.l.b16 %v264
      %v1391 = vunpack.c.h.b16 %v264
      %v1392 = vunpack.c.l.b16 %v265
      %v1393 = vunpack.c.l.b16 %v266
      %v1394 = vunpack.c.h.b16 %v266
      %v1395 = vunpack.c.l.b16 %v267
      %v1396 = vunpack.c.h.b16 %v267
      %v1397 = vunpack.c.l.b16 %v268
      %v1398 = vunpack.c.h.b16 %v268
      %v1399 = vunpack.c.l.b16 %v269
      %v1400 = vunpack.c.h.b16 %v269
      %v1401 = vunpack.c.l.b16 %v270
      %v1402 = vunpack.c.h.b16 %v270
      %v1403 = vunpack.c.l.b16 %v271
      %v1404 = vunpack.c.h.b16 %v271
      %v1405 = vunpack.c.l.b16 %v272
      %v1406 = vunpack.c.h.b16 %v272
      %v1407 = vunpack.c.l.b16 %v273
      %v1408 = vunpack.c.h.b16 %v273
      %v1409 = vunpack.c.l.b16 %v274
      %v1410 = vunpack.c.h.b16 %v274
      %v1411 = vunpack.c.l.b16 %v275
      %v1412 = vunpack.c.h.b16 %v275
      %v1413 = vunpack.c.l.b16 %v276
      %v1414 = vunpack.c.l.b16 %v277
      %v1415 = vunpack.c.h.b16 %v277
      %v1416 = vunpack.c.l.b16 %v278
      %v1417 = vunpack.c.h.b16 %v278
      %v1418 = vunpack.c.l.b16 %v279
      %v1419 = vunpack.c.h.b16 %v279
      %v1420 = vunpack.c.l.b16 %v280
      %v1421 = vunpack.c.h.b16 %v280
      %v1422 = vunpack.c.l.b16 %v281
      %v1423 = vunpack.c.h.b16 %v281
      %v1424 = vunpack.c.l.b16 %v282
      %v1425 = vunpack.c.h.b16 %v282
      %v1426 = vunpack.c.l.b16 %v283
      %v1427 = vunpack.c.h.b16 %v283
      %v1428 = vunpack.c.l.b16 %v284
      %v1429 = vunpack.c.h.b16 %v284
      %v1430 = vunpack.c.l.b16 %v285
      %v1431 = vunpack.c.h.b16 %v285
      %v1432 = vunpack.c.l.b16 %v286
      %v1433 = vunpack.c.h.b16 %v286
      %v1434 = vunpack.c.l.b16 %v287
      %v1435 = vunpack.c.l.b16 %v288
      %v1436 = vunpack.c.h.b16 %v288
      %v1437 = vunpack.c.l.b16 %v289
      %v1438 = vunpack.c.h.b16 %v289
      %v1439 = vunpack.c.l.b16 %v290
      %v1440 = vunpack.c.h.b16 %v290
      %v1441 = vunpack.c.l.b16 %v291
      %v1442 = vunpack.c.h.b16 %v291
      %v1443 = vunpack.c.l.b16 %v292
      %v1444 = vunpack.c.h.b16 %v292
      %v1445 = vunpack.c.l.b16 %v293
      %v1446 = vunpack.c.h.b16 %v293
      %v1447 = vunpack.c.l.b16 %v294
      %v1448 = vunpack.c.h.b16 %v294
      %v1449 = vunpack.c.l.b16 %v295
      %v1450 = vunpack.c.h.b16 %v295
      %v1451 = vunpack.c.l.b16 %v296
      %v1452 = vunpack.c.h.b16 %v296
      %v1453 = vunpack.c.l.b16 %v297
      %v1454 = vunpack.c.h.b16 %v297
      %v1455 = vunpack.c.l.b16 %v298
      %v1456 = vunpack.c.l.b16 %v299
      %v1457 = vunpack.c.h.b16 %v299
      %v1458 = vunpack.c.l.b16 %v300
      %v1459 = vunpack.c.h.b16 %v300
      %v1460 = vunpack.c.l.b16 %v301
      %v1461 = vunpack.c.h.b16 %v301
      %v1462 = vunpack.c.l.b16 %v302
      %v1463 = vunpack.c.h.b16 %v302
      %v1464 = vunpack.c.l.b16 %v303
      %v1465 = vunpack.c.h.b16 %v303
      %v1466 = vunpack.c.l.b16 %v304
      %v1467 = vunpack.c.h.b16 %v304
      %v1468 = vunpack.c.l.b16 %v305
      %v1469 = vunpack.c.h.b16 %v305
      %v1470 = vunpack.c.l.b16 %v306
      %v1471 = vunpack.c.h.b16 %v306
      %v1472 = vunpack.c.l.b16 %v307
      %v1473 = vunpack.c.h.b16 %v307
      %v1474 = vunpack.c.l.b16 %v308
      %v1475 = vunpack.c.h.b16 %v308
      %v1476 = vunpack.c.l.b16 %v309
      %v1477 = vunpack.c.l.b16 %v310
      %v1478 = vunpack.c.h.b16 %v310
      %v1479 = vunpack.c.l.b16 %v311
      %v1480 = vunpack.c.h.b16 %v311
      %v1481 = vunpack.c.l.b16 %v312
      %v1482 = vunpack.c.h.b16 %v312
      %v1483 = vunpack.c.l.b16 %v313
      %v1484 = vunpack.c.h.b16 %v313
      %v1485 = vunpack.c.l.b16 %v314
      %v1486 = vunpack.c.h.b16 %v314
      %v1487 = vunpack.c.l.b16 %v315
      %v1488 = vunpack.c.h.b16 %v315
      %v1489 = vunpack.c.l.b16 %v316
      %v1490 = vunpack.c.h.b16 %v316
      %v1491 = vunpack.c.l.b16 %v317
      %v1492 = vunpack.c.h.b16 %v317
      %v1493 = vunpack.c.l.b16 %v318
      %v1494 = vunpack.c.h.b16 %v318
      %v1495 = vunpack.c.l.b16 %v319
      %v1496 = vunpack.c.h.b16 %v319
      %v1497 = vunpack.c.l.b16 %v320
      %v1498 = vunpack.c.l.b16 %v321
      %v1499 = vunpack.c.h.b16 %v321
      %v1500 = vunpack.c.l.b16 %v322
      %v1501 = vunpack.c.h.b16 %v322
      %v1502 = vunpack.c.l.b16 %v323
      %v1503 = vunpack.c.h.b16 %v323
      %v1504 = vunpack.c.l.b16 %v324
      %v1505 = vunpack.c.h.b16 %v324
      %v1506 = vunpack.c.l.b16 %v325
      %v1507 = vunpack.c.h.b16 %v325
      %v1508 = vunpack.c.l.b16 %v326
      %v1509 = vunpack.c.h.b16 %v326
      %v1510 = vunpack.c.l.b16 %v327
      %v1511 = vunpack.c.h.b16 %v327
      %v1512 = vunpack.c.l.b16 %v328
      %v1513 = vunpack.c.h.b16 %v328
      %v1514 = vunpack.c.l.b16 %v329
      %v1515 = vunpack.c.h.b16 %v329
      %v1516 = vunpack.c.l.b16 %v330
      %v1517 = vunpack.c.h.b16 %v330
      %v1518 = vunpack.c.l.b16 %v331
      %v1519 = vunpack.c.l.b16 %v332
      %v1520 = vunpack.c.h.b16 %v332
      %v1521 = vunpack.c.l.b16 %v333
      %v1522 = vunpack.c.h.b16 %v333
      %v1523 = vunpack.c.l.b16 %v334
      %v1524 = vunpack.c.h.b16 %v334
      %v1525 = vunpack.c.l.b16 %v335
      %v1526 = vunpack.c.h.b16 %v335
      %v1527 = vunpack.c.l.b16 %v336
      %v1528 = vunpack.c.h.b16 %v336
      %v1529 = vunpack.c.l.b16 %v337
      %v1530 = vunpack.c.h.b16 %v337
      %v1531 = vunpack.c.l.b16 %v338
      %v1532 = vunpack.c.h.b16 %v338
      %v1533 = vunpack.c.l.b16 %v339
      %v1534 = vunpack.c.h.b16 %v339
      %v1535 = vunpack.c.l.b16 %v340
      %v1536 = vunpack.c.h.b16 %v340
      %v1537 = vunpack.c.l.b16 %v341
      %v1538 = vunpack.c.h.b16 %v341
      %v1539 = vunpack.c.l.b16 %v342
      %v1540 = vunpack.c.l.b16 %v343
      %v1541 = vunpack.c.h.b16 %v343
      %v1542 = vunpack.c.l.b16 %v344
      %v1543 = vunpack.c.h.b16 %v344
      %v1544 = vunpack.c.l.b16 %v345
      %v1545 = vunpack.c.h.b16 %v345
      %v1546 = vunpack.c.l.b16 %v346
      %v1547 = vunpack.c.h.b16 %v346
      %v1548 = vunpack.c.l.b16 %v347
      %v1549 = vunpack.c.h.b16 %v347
      %v1550 = vunpack.c.l.b16 %v348
      %v1551 = vunpack.c.h.b16 %v348
      %v1552 = vunpack.c.l.b16 %v349
      %v1553 = vunpack.c.h.b16 %v349
      %v1554 = vunpack.c.l.b16 %v350
      %v1555 = vunpack.c.h.b16 %v350
      %v1556 = vunpack.c.l.b16 %v351
      %v1557 = vunpack.c.h.b16 %v351
      %v1558 = vunpack.c.l.b16 %v352
      %v1559 = vunpack.c.h.b16 %v352
      %v1560 = vunpack.c.l.b16 %v353
      %v1561 = vunpack.c.l.b16 %v354
      %v1562 = vunpack.c.h.b16 %v354
      %v1563 = vunpack.c.l.b16 %v355
      %v1564 = vunpack.c.h.b16 %v355
      %v1565 = vunpack.c.l.b16 %v356
      %v1566 = vunpack.c.h.b16 %v356
      %v1567 = vunpack.c.l.b16 %v357
      %v1568 = vunpack.c.h.b16 %v357
      %v1569 = vunpack.c.l.b16 %v358
      %v1570 = vunpack.c.h.b16 %v358
      %v1571 = vunpack.c.l.b16 %v359
      %v1572 = vunpack.c.h.b16 %v359
      %v1573 = vunpack.c.l.b16 %v360
      %v1574 = vunpack.c.h.b16 %v360
      %v1575 = vunpack.c.l.b16 %v361
      %v1576 = vunpack.c.h.b16 %v361
      %v1577 = vunpack.c.l.b16 %v362
      %v1578 = vunpack.c.h.b16 %v362
      %v1579 = vunpack.c.l.b16 %v363
      %v1580 = vunpack.c.h.b16 %v363
      %v1581 = vunpack.c.l.b16 %v364
      %v1582 = vunpack.c.l.b16 %v365
      %v1583 = vunpack.c.h.b16 %v365
      %v1584 = vunpack.c.l.b16 %v366
      %v1585 = vunpack.c.h.b16 %v366
      %v1586 = vunpack.c.l.b16 %v367
      %v1587 = vunpack.c.h.b16 %v367
      %v1588 = vunpack.c.l.b16 %v368
      %v1589 = vunpack.c.h.b16 %v368
      %v1590 = vunpack.c.l.b16 %v369
      %v1591 = vunpack.c.h.b16 %v369
      %v1592 = vunpack.c.l.b16 %v370
      %v1593 = vunpack.c.h.b16 %v370
      %v1594 = vunpack.c.l.b16 %v371
      %v1595 = vunpack.c.h.b16 %v371
      %v1596 = vunpack.c.l.b16 %v372
      %v1597 = vunpack.c.h.b16 %v372
      %v1598 = vunpack.c.l.b16 %v373
      %v1599 = vunpack.c.h.b16 %v373
      %v1600 = vunpack.c.l.b16 %v374
      %v1601 = vunpack.c.h.b16 %v374
      %v1602 = vunpack.c.l.b16 %v375
      %v1603 = vunpack.c.l.b16 %v376
      %v1604 = vunpack.c.h.b16 %v376
      %v1605 = vunpack.c.l.b16 %v377
      %v1606 = vunpack.c.h.b16 %v377
      %v1607 = vunpack.c.l.b16 %v378
      %v1608 = vunpack.c.h.b16 %v378
      %v1609 = vunpack.c.l.b16 %v379
      %v1610 = vunpack.c.h.b16 %v379
      %v1611 = vunpack.c.l.b16 %v380
      %v1612 = vunpack.c.h.b16 %v380
      %v1613 = vunpack.c.l.b16 %v381
      %v1614 = vunpack.c.h.b16 %v381
      %v1615 = vunpack.c.l.b16 %v382
      %v1616 = vunpack.c.h.b16 %v382
      %v1617 = vunpack.c.l.b16 %v383
      %v1618 = vunpack.c.h.b16 %v383
      %v1619 = vunpack.c.l.b16 %v384
      %v1620 = vunpack.c.h.b16 %v384
      %v1621 = vunpack.c.l.b16 %v385
      %v1622 = vunpack.c.h.b16 %v385
      %v1623 = vunpack.c.l.b16 %v386
      %v1624 = vunpack.c.l.b16 %v387
      %v1625 = vunpack.c.h.b16 %v387
      %v1626 = vunpack.c.l.b16 %v388
      %v1627 = vunpack.c.h.b16 %v388
      %v1628 = vunpack.c.l.b16 %v389
      %v1629 = vunpack.c.h.b16 %v389
      %v1630 = vunpack.c.l.b16 %v390
      %v1631 = vunpack.c.h.b16 %v390
      %v1632 = vunpack.c.l.b16 %v391
      %v1633 = vunpack.c.h.b16 %v391
      %v1634 = vunpack.c.l.b16 %v392
      %v1635 = vunpack.c.h.b16 %v392
      %v1636 = vunpack.c.l.b16 %v393
      %v1637 = vunpack.c.h.b16 %v393
      %v1638 = vunpack.c.l.b16 %v394
      %v1639 = vunpack.c.h.b16 %v394
      %v1640 = vunpack.c.l.b16 %v395
      %v1641 = vunpack.c.h.b16 %v395
      %v1642 = vunpack.c.l.b16 %v396
      %v1643 = vunpack.c.h.b16 %v396
      %v1644 = vunpack.c.l.b16 %v397
      %v1645 = vunpack.c.l.b16 %v398
      %v1646 = vunpack.c.h.b16 %v398
      %v1647 = vunpack.c.l.b16 %v399
      %v1648 = vunpack.c.h.b16 %v399
      %v1649 = vunpack.c.l.b16 %v400
      %v1650 = vunpack.c.h.b16 %v400
      %v1651 = vunpack.c.l.b16 %v401
      %v1652 = vunpack.c.h.b16 %v401
      %v1653 = vunpack.c.l.b16 %v402
      %v1654 = vunpack.c.h.b16 %v402
      %v1655 = vunpack.c.l.b16 %v403
      %v1656 = vunpack.c.h.b16 %v403
      %v1657 = vunpack.c.l.b16 %v404
      %v1658 = vunpack.c.h.b16 %v404
      %v1659 = vunpack.c.l.b16 %v405
      %v1660 = vunpack.c.h.b16 %v405
      %v1661 = vunpack.c.l.b16 %v406
      %v1662 = vunpack.c.h.b16 %v406
      %v1663 = vunpack.c.l.b16 %v407
      %v1664 = vunpack.c.h.b16 %v407
      %v1665 = vunpack.c.l.b16 %v408
      %v1666 = vunpack.c.l.b16 %v409
      %v1667 = vunpack.c.h.b16 %v409
      %v1668 = vunpack.c.l.b16 %v410
      %v1669 = vunpack.c.h.b16 %v410
      %v1670 = vunpack.c.l.b16 %v411
      %v1671 = vunpack.c.h.b16 %v411
      %v1672 = vunpack.c.l.b16 %v412
      %v1673 = vunpack.c.h.b16 %v412
      %v1674 = vunpack.c.l.b16 %v413
      %v1675 = vunpack.c.h.b16 %v413
      %v1676 = vunpack.c.l.b16 %v414
      %v1677 = vunpack.c.h.b16 %v414
      %v1678 = vunpack.c.l.b16 %v415
      %v1679 = vunpack.c.h.b16 %v415
      %v1680 = vunpack.c.l.b16 %v416
      %v1681 = vunpack.c.h.b16 %v416
      %v1682 = vunpack.c.l.b16 %v417
      %v1683 = vunpack.c.h.b16 %v417
      %v1684 = vunpack.c.l.b16 %v418
      %v1685 = vunpack.c.h.b16 %v418
      %v1686 = vunpack.c.l.b16 %v419
      %v1687 = vunpack.c.l.b16 %v420
      %v1688 = vunpack.c.h.b16 %v420
      %v1689 = vunpack.c.l.b16 %v421
      %v1690 = vunpack.c.h.b16 %v421
      %v1691 = vunpack.c.l.b16 %v422
      %v1692 = vunpack.c.h.b16 %v422
      %v1693 = vunpack.c.l.b16 %v423
      %v1694 = vunpack.c.h.b16 %v423
      %v1695 = vunpack.c.l.b16 %v424
      %v1696 = vunpack.c.h.b16 %v424
      %v1697 = vunpack.c.l.b16 %v425
      %v1698 = vunpack.c.h.b16 %v425
      %v1699 = vunpack.c.l.b16 %v426
      %v1700 = vunpack.c.h.b16 %v426
      %v1701 = vunpack.c.l.b16 %v427
      %v1702 = vunpack.c.h.b16 %v427
      %v1703 = vunpack.c.l.b16 %v428
      %v1704 = vunpack.c.h.b16 %v428
      %v1705 = vunpack.c.l.b16 %v429
      %v1706 = vunpack.c.h.b16 %v429
      %v1707 = vunpack.c.l.b16 %v430
      %v1708 = vunpack.c.l.b16 %v431
      %v1709 = vunpack.c.h.b16 %v431
      %v1710 = vunpack.c.l.b16 %v432
      %v1711 = vunpack.c.h.b16 %v432
      %v1712 = vunpack.c.l.b16 %v433
      %v1713 = vunpack.c.h.b16 %v433
      %v1714 = vunpack.c.l.b16 %v434
      %v1715 = vunpack.c.h.b16 %v434
      %v1716 = vunpack.c.l.b16 %v435
      %v1717 = vunpack.c.h.b16 %v435
      %v1718 = vunpack.c.l.b16 %v436
      %v1719 = vunpack.c.h.b16 %v436
      %v1720 = vunpack.c.l.b16 %v437
      %v1721 = vunpack.c.h.b16 %v437
      %v1722 = vunpack.c.l.b16 %v438
      %v1723 = vunpack.c.h.b16 %v438
      %v1724 = vunpack.c.l.b16 %v439
      %v1725 = vunpack.c.h.b16 %v439
      %v1726 = vunpack.c.l.b16 %v440
      %v1727 = vunpack.c.h.b16 %v440
      %v1728 = vunpack.c.l.b16 %v441
      %v1729 = vunpack.c.l.b16 %v442
      %v1730 = vunpack.c.h.b16 %v442
      %v1731 = vunpack.c.l.b16 %v443
      %v1732 = vunpack.c.h.b16 %v443
      %v1733 = vunpack.c.l.b16 %v444
      %v1734 = vunpack.c.h.b16 %v444
      %v1735 = vunpack.c.l.b16 %v445
      %v1736 = vunpack.c.h.b16 %v445
      %v1737 = vunpack.c.l.b16 %v446
      %v1738 = vunpack.c.h.b16 %v446
      %v1739 = vunpack.c.l.b16 %v447
      %v1740 = vunpack.c.h.b16 %v447
      %v1741 = vunpack.c.l.b16 %v448
      %v1742 = vunpack.c.h.b16 %v448
      %v1743 = vunpack.c.l.b16 %v449
      %v1744 = vunpack.c.h.b16 %v449
      %v1745 = vunpack.c.l.b16 %v450
      %v1746 = vunpack.c.h.b16 %v450
      %v1747 = vunpack.c.l.b16 %v451
      %v1748 = vunpack.c.h.b16 %v451
      %v1749 = vunpack.c.l.b16 %v452
      %v1750 = vunpack.c.l.b16 %v453
      %v1751 = vunpack.c.h.b16 %v453
      %v1752 = vunpack.c.l.b16 %v454
      %v1753 = vunpack.c.h.b16 %v454
      %v1754 = vunpack.c.l.b16 %v455
      %v1755 = vunpack.c.h.b16 %v455
      %v1756 = vunpack.c.l.b16 %v456
      %v1757 = vunpack.c.h.b16 %v456
      %v1758 = vunpack.c.l.b16 %v457
      %v1759 = vunpack.c.h.b16 %v457
      %v1760 = vunpack.c.l.b16 %v458
      %v1761 = vunpack.c.h.b16 %v458
      %v1762 = vunpack.c.l.b16 %v459
      %v1763 = vunpack.c.h.b16 %v459
      %v1764 = vunpack.c.l.b16 %v460
      %v1765 = vunpack.c.h.b16 %v460
      %v1766 = vunpack.c.l.b16 %v461
      %v1767 = vunpack.c.h.b16 %v461
      %v1768 = vunpack.c.l.b16 %v462
      %v1769 = vunpack.c.h.b16 %v462
      %v1770 = vunpack.c.l.b16 %v463
      %v1771 = vunpack.c.l.b16 %v464
      %v1772 = vunpack.c.h.b16 %v464
      %v1773 = vunpack.c.l.b16 %v465
      %v1774 = vunpack.c.h.b16 %v465
      %v1775 = vunpack.c.l.b16 %v466
      %v1776 = vunpack.c.h.b16 %v466
      %v1777 = vunpack.c.l.b16 %v467
      %v1778 = vunpack.c.h.b16 %v467
      %v1779 = vunpack.c.l.b16 %v468
      %v1780 = vunpack.c.h.b16 %v468
      %v1781 = vunpack.c.l.b16 %v469
      %v1782 = vunpack.c.h.b16 %v469
      %v1783 = vunpack.c.l.b16 %v470
      %v1784 = vunpack.c.h.b16 %v470
      %v1785 = vunpack.c.l.b16 %v471
      %v1786 = vunpack.c.h.b16 %v471
      %v1787 = vunpack.c.l.b16 %v472
      %v1788 = vunpack.c.h.b16 %v472
      %v1789 = vunpack.c.l.b16 %v473
      %v1790 = vunpack.c.h.b16 %v473
      %v1791 = vunpack.c.l.b16 %v474
      %v1792 = vunpack.c.l.b16 %v475
      %v1793 = vunpack.c.h.b16 %v475
      %v1794 = vunpack.c.l.b16 %v476
      %v1795 = vunpack.c.h.b16 %v476
      %v1796 = vunpack.c.l.b16 %v477
      %v1797 = vunpack.c.h.b16 %v477
      %v1798 = vunpack.c.l.b16 %v478
      %v1799 = vunpack.c.h.b16 %v478
      %v1800 = vunpack.c.l.b16 %v479
      %v1801 = vunpack.c.h.b16 %v479
      %v1802 = vunpack.c.l.b16 %v480
      %v1803 = vunpack.c.h.b16 %v480
      %v1804 = vunpack.c.l.b16 %v481
      %v1805 = vunpack.c.h.b16 %v481
      %v1806 = vunpack.c.l.b16 %v482
      %v1807 = vunpack.c.h.b16 %v482
      %v1808 = vunpack.c.l.b16 %v483
      %v1809 = vunpack.c.h.b16 %v483
      %v1810 = vunpack.c.l.b16 %v484
      %v1811 = vunpack.c.h.b16 %v484
      %v1812 = vunpack.c.l.b16 %v485
      %v1813 = vunpack.c.l.b16 %v486
      %v1814 = vunpack.c.h.b16 %v486
      %v1815 = vunpack.c.l.b16 %v487
      %v1816 = vunpack.c.h.b16 %v487
      %v1817 = vunpack.c.l.b16 %v488
      %v1818 = vunpack.c.h.b16 %v488
      %v1819 = vunpack.c.l.b16 %v489
      %v1820 = vunpack.c.h.b16 %v489
      %v1821 = vunpack.c.l.b16 %v490
      %v1822 = vunpack.c.h.b16 %v490
      %v1823 = vunpack.c.l.b16 %v491
      %v1824 = vunpack.c.h.b16 %v491
      %v1825 = vunpack.c.l.b16 %v492
      %v1826 = vunpack.c.h.b16 %v492
      %v1827 = vunpack.c.l.b16 %v493
      %v1828 = vunpack.c.h.b16 %v493
      %v1829 = vunpack.c.l.b16 %v494
      %v1830 = vunpack.c.h.b16 %v494
      %v1831 = vunpack.c.l.b16 %v495
      %v1832 = vunpack.c.h.b16 %v495
      %v1833 = vunpack.c.l.b16 %v496
      %v1834 = vunpack.c.l.b16 %v497
      %v1835 = vunpack.c.h.b16 %v497
      %v1836 = vunpack.c.l.b16 %v498
      %v1837 = vunpack.c.h.b16 %v498
      %v1838 = vunpack.c.l.b16 %v499
      %v1839 = vunpack.c.h.b16 %v499
      %v1840 = vunpack.c.l.b16 %v500
      %v1841 = vunpack.c.h.b16 %v500
      %v1842 = vunpack.c.l.b16 %v501
      %v1843 = vunpack.c.h.b16 %v501
      %v1844 = vunpack.c.l.b16 %v502
      %v1845 = vunpack.c.h.b16 %v502
      %v1846 = vunpack.c.l.b16 %v503
      %v1847 = vunpack.c.h.b16 %v503
      %v1848 = vunpack.c.l.b16 %v504
      %v1849 = vunpack.c.h.b16 %v504
      %v1850 = vunpack.c.l.b16 %v505
      %v1851 = vunpack.c.h.b16 %v505
      %v1852 = vunpack.c.l.b16 %v506
      %v1853 = vunpack.c.h.b16 %v506
      %v1854 = vunpack.c.l.b16 %v507
      %v1855 = vunpack.c.l.b16 %v508
      %v1856 = vunpack.c.h.b16 %v508
      %v1857 = vunpack.c.l.b16 %v509
      %v1858 = vunpack.c.h.b16 %v509
      %v1859 = vunpack.c.l.b16 %v510
      %v1860 = vunpack.c.h.b16 %v510
      %v1861 = vunpack.c.l.b16 %v511
      %v1862 = vunpack.c.h.b16 %v511
      %v1863 = vunpack.c.l.b16 %v512
      %v1864 = vunpack.c.h.b16 %v512
      %v1865 = vunpack.c.l.b16 %v513
      %v1866 = vunpack.c.h.b16 %v513
      %v1867 = vunpack.c.l.b16 %v514
      %v1868 = vunpack.c.h.b16 %v514
      %v1869 = vunpack.c.l.b16 %v515
      %v1870 = vunpack.c.h.b16 %v515
      %v1871 = vunpack.c.l.b16 %v516
      %v1872 = vunpack.c.h.b16 %v516
      %v1873 = vunpack.c.l.b16 %v517
      %v1874 = vunpack.c.h.b16 %v517
      %v1875 = vunpack.c.l.b16 %v518
      %v1876 = vunpack.c.l.b16 %v519
      %v1877 = vunpack.c.h.b16 %v519
      %v1878 = vunpack.c.l.b16 %v520
      %v1879 = vunpack.c.h.b16 %v520
      %v1880 = vunpack.c.l.b16 %v521
      %v1881 = vunpack.c.h.b16 %v521
      %v1882 = vunpack.c.l.b16 %v522
      %v1883 = vunpack.c.h.b16 %v522
      %v1884 = vunpack.c.l.b16 %v523
      %v1885 = vunpack.c.h.b16 %v523
      %v1886 = vunpack.c.l.b16 %v524
      %v1887 = vunpack.c.h.b16 %v524
      %v1888 = vunpack.c.l.b16 %v525
      %v1889 = vunpack.c.h.b16 %v525
      %v1890 = vunpack.c.l.b16 %v526
      %v1891 = vunpack.c.h.b16 %v526
      %v1892 = vunpack.c.l.b16 %v527
      %v1893 = vunpack.c.h.b16 %v527
      %v1894 = vunpack.c.l.b16 %v528
      %v1895 = vunpack.c.h.b16 %v528
      %v1896 = vunpack.c.l.b16 %v529
      %v1897 = vpack.c.b16 %v1246, %v1225
      %v1898 = vpack.c.b16 %v1247, %v1226
      %v1899 = vpack.c.b16 %v1248, %v1227
      %v1900 = vpack.c.b16 %v1249, %v1228
      %v1901 = vpack.c.b16 %v1250, %v1229
      %v1902 = vpack.c.b16 %v1251, %v1230
      %v1903 = vpack.c.b16 %v1252, %v1231
      %v1904 = vpack.c.b16 %v1253, %v1232
      %v1905 = vpack.c.b16 %v1254, %v1233
      %v1906 = vpack.c.b16 %v1255, %v1234
      %v1907 = vpack.c.b16 %v1256, %v1235
      %v1908 = vpack.c.b16 %v1257, %v1236
      %v1909 = vpack.c.b16 %v1258, %v1237
      %v1910 = vpack.c.b16 %v1259, %v1238
      %v1911 = vpack.c.b16 %v1260, %v1239
      %v1912 = vpack.c.b16 %v1261, %v1240
      %v1913 = vpack.c.b16 %v1262, %v1241
      %v1914 = vpack.c.b16 %v1263, %v1242
      %v1915 = vpack.c.b16 %v1264, %v1243
      %v1916 = vpack.c.b16 %v1265, %v1244
      %v1917 = vpack.c.b16 %v1266, %v1245
      %v1918 = vpack.c.b16 %v1288, %v1267
      %v1919 = vpack.c.b16 %v1289, %v1268
      %v1920 = vpack.c.b16 %v1290, %v1269
      %v1921 = vpack.c.b16 %v1291, %v1270
      %v1922 = vpack.c.b16 %v1292, %v1271
      %v1923 = vpack.c.b16 %v1293, %v1272
      %v1924 = vpack.c.b16 %v1294, %v1273
      %v1925 = vpack.c.b16 %v1295, %v1274
      %v1926 = vpack.c.b16 %v1296, %v1275
      %v1927 = vpack.c.b16 %v1297, %v1276
      %v1928 = vpack.c.b16 %v1298, %v1277
      %v1929 = vpack.c.b16 %v1299, %v1278
      %v1930 = vpack.c.b16 %v1300, %v1279
      %v1931 = vpack.c.b16 %v1301, %v1280
      %v1932 = vpack.c.b16 %v1302, %v1281
      %v1933 = vpack.c.b16 %v1303, %v1282
      %v1934 = vpack.c.b16 %v1304, %v1283
      %v1935 = vpack.c.b16 %v1305, %v1284
      %v1936 = vpack.c.b16 %v1306, %v1285
      %v1937 = vpack.c.b16 %v1307, %v1286
      %v1938 = vpack.c.b16 %v1308, %v1287
      %v1939 = vpack.c.b16 %v1330, %v1309
      %v1940 = vpack.c.b16 %v1331, %v1310
      %v1941 = vpack.c.b16 %v1332, %v1311
      %v1942 = vpack.c.b16 %v1333, %v1312
      %v1943 = vpack.c.b16 %v1334, %v1313
      %v1944 = vpack.c.b16 %v1335, %v1314
      %v1945 = vpack.c.b16 %v1336, %v1315
      %v1946 = vpack.c.b16 %v1337, %v1316
      %v1947 = vpack.c.b16 %v1338, %v1317
      %v1948 = vpack.c.b16 %v1339, %v1318
      %v1949 = vpack.c.b16 %v1340, %v1319
      %v1950 = vpack.c.b16 %v1341, %v1320
      %v1951 = vpack.c.b16 %v1342, %v1321
      %v1952 = vpack.c.b16 %v1343, %v1322
      %v1953 = vpack.c.b16 %v1344, %v1323
      %v1954 = vpack.c.b16 %v1345, %v1324
      %v1955 = vpack.c.b16 %v1346, %v1325
      %v1956 = vpack.c.b16 %v1347, %v1326
      %v1957 = vpack.c.b16 %v1348, %v1327
      %v1958 = vpack.c.b16 %v1349, %v1328
      %v1959 = vpack.c.b16 %v1350, %v1329
      %v1960 = vpack.c.b16 %v1372, %v1351
      %v1961 = vpack.c.b16 %v1373, %v1352
      %v1962 = vpack.c.b16 %v1374, %v1353
      %v1963 = vpack.c.b16 %v1375, %v1354
      %v1964 = vpack.c.b16 %v1376, %v1355
      %v1965 = vpack.c.b16 %v1377, %v1356
      %v1966 = vpack.c.b16 %v1378, %v1357
      %v1967 = vpack.c.b16 %v1379, %v1358
      %v1968 = vpack.c.b16 %v1380, %v1359
      %v1969 = vpack.c.b16 %v1381, %v1360
      %v1970 = vpack.c.b16 %v1382, %v1361
      %v1971 = vpack.c.b16 %v1383, %v1362
      %v1972 = vpack.c.b16 %v1384, %v1363
      %v1973 = vpack.c.b16 %v1385, %v1364
      %v1974 = vpack.c.b16 %v1386, %v1365
      %v1975 = vpack.c.b16 %v1387, %v1366
      %v1976 = vpack.c.b16 %v1388, %v1367
      %v1977 = vpack.c.b16 %v1389, %v1368
      %v1978 = vpack.c.b16 %v1390, %v1369
      %v1979 = vpack.c.b16 %v1391, %v1370
      %v1980 = vpack.c.b16 %v1392, %v1371
      %v1981 = vpack.c.b16 %v1414, %v1393
      %v1982 = vpack.c.b16 %v1415, %v1394
      %v1983 = vpack.c.b16 %v1416, %v1395
      %v1984 = vpack.c.b16 %v1417, %v1396
      %v1985 = vpack.c.b16 %v1418, %v1397
      %v1986 = vpack.c.b16 %v1419, %v1398
      %v1987 = vpack.c.b16 %v1420, %v1399
      %v1988 = vpack.c.b16 %v1421, %v1400
      %v1989 = vpack.c.b16 %v1422, %v1401
      %v1990 = vpack.c.b16 %v1423, %v1402
      %v1991 = vpack.c.b16 %v1424, %v1403
      %v1992 = vpack.c.b16 %v1425, %v1404
      %v1993 = vpack.c.b16 %v1426, %v1405
      %v1994 = vpack.c.b16 %v1427, %v1406
      %v1995 = vpack.c.b16 %v1428, %v1407
      %v1996 = vpack.c.b16 %v1429, %v1408
      %v1997 = vpack.c.b16 %v1430, %v1409
      %v1998 = vpack.c.b16 %v1431, %v1410
      %v1999 = vpack.c.b16 %v1432, %v1411
      %v2000 = vpack.c.b16 %v1433, %v1412
      %v2001 = vpack.c.b16 %v1434, %v1413
      %v2002 = vpack.c.b16 %v1456, %v1435
      %v2003 = vpack.c.b16 %v1457, %v1436
      %v2004 = vpack.c.b16 %v1458, %v1437
      %v2005 = vpack.c.b16 %v1459, %v1438
      %v2006 = vpack.c.b16 %v1460, %v1439
      %v2007 = vpack.c.b16 %v1461, %v1440
      %v2008 = vpack.c.b16 %v1462, %v1441
      %v2009 = vpack.c.b16 %v1463, %v1442
      %v2010 = vpack.c.b16 %v1464, %v1443
      %v2011 = vpack.c.b16 %v1465, %v1444
      %v2012 = vpack.c.b16 %v1466, %v1445
      %v2013 = vpack.c.b16 %v1467, %v1446
      %v2014 = vpack.c.b16 %v1468, %v1447
      %v2015 = vpack.c.b16 %v1469, %v1448
      %v2016 = vpack.c.b16 %v1470, %v1449
      %v2017 = vpack.c.b16 %v1471, %v1450
      %v2018 = vpack.c.b16 %v1472, %v1451
      %v2019 = vpack.c.b16 %v1473, %v1452
      %v2020 = vpack.c.b16 %v1474, %v1453
      %v2021 = vpack.c.b16 %v1475, %v1454
      %v2022 = vpack.c.b16 %v1476, %v1455
      %v2023 = vpack.c.b16 %v1498, %v1477
      %v2024 = vpack.c.b16 %v1499, %v1478
      %v2025 = vpack.c.b16 %v1500, %v1479
      %v2026 = vpack.c.b16 %v1501, %v1480
      %v2027 = vpack.c.b16 %v1502, %v1481
      %v2028 = vpack.c.b16 %v1503, %v1482
      %v2029 = vpack.c.b16 %v1504, %v1483
      %v2030 = vpack.c.b16 %v1505, %v1484
      %v2031 = vpack.c.b16 %v1506, %v1485
      %v2032 = vpack.c.b16 %v1507, %v1486
      %v2033 = vpack.c.b16 %v1508, %v1487
      %v2034 = vpack.c.b16 %v1509, %v1488
      %v2035 = vpack.c.b16 %v1510, %v1489
      %v2036 = vpack.c.b16 %v1511, %v1490
      %v2037 = vpack.c.b16 %v1512, %v1491
      %v2038 = vpack.c.b16 %v1513, %v1492
      %v2039 = vpack.c.b16 %v1514, %v1493
      %v2040 = vpack.c.b16 %v1515, %v1494
      %v2041 = vpack.c.b16 %v1516, %v1495
      %v2042 = vpack.c.b16 %v1517, %v1496
      %v2043 = vpack.c.b16 %v1518, %v1497
      %v2044 = vpack.c.b16 %v1540, %v1519
      %v2045 = vpack.c.b16 %v1541, %v1520
      %v2046 = vpack.c.b16 %v1542, %v1521
      %v2047 = vpack.c.b16 %v1543, %v1522
      %v2048 = vpack.c.b16 %v1544, %v1523
      %v2049 = vpack.c.b16 %v1545, %v1524
      %v2050 = vpack.c.b16 %v1546, %v1525
      %v2051 = vpack.c.b16 %v1547, %v1526
      %v2052 = vpack.c.b16 %v1548, %v1527
      %v2053 = vpack.c.b16 %v1549, %v1528
      %v2054 = vpack.c.b16 %v1550, %v1529
      %v2055 = vpack.c.b16 %v1551, %v1530
      %v2056 = vpack.c.b16 %v1552, %v1531
      %v2057 = vpack.c.b16 %v1553, %v1532
      %v2058 = vpack.c.b16 %v1554, %v1533
      %v2059 = vpack.c.b16 %v1555, %v1534
      %v2060 = vpack.c.b16 %v1556, %v1535
      %v2061 = vpack.c.b16 %v1557, %v1536
      %v2062 = vpack.c.b16 %v1558, %v1537
      %v2063 = vpack.c.b16 %v1559, %v1538
      %v2064 = vpack.c.b16 %v1560, %v1539
      %v2065 = vpack.c.b16 %v1582, %v1561
      %v2066 = vpack.c.b16 %v1583, %v1562
      %v2067 = vpack.c.b16 %v1584, %v1563
      %v2068 = vpack.c.b16 %v1585, %v1564
      %v2069 = vpack.c.b16 %v1586, %v1565
      %v2070 = vpack.c.b16 %v1587, %v1566
      %v2071 = vpack.c.b16 %v1588, %v1567
      %v2072 = vpack.c.b16 %v1589, %v1568
      %v2073 = vpack.c.b16 %v1590, %v1569
      %v2074 = vpack.c.b16 %v1591, %v1570
      %v2075 = vpack.c.b16 %v1592, %v1571
      %v2076 = vpack.c.b16 %v1593, %v1572
      %v2077 = vpack.c.b16 %v1594, %v1573
      %v2078 = vpack.c.b16 %v1595, %v1574
      %v2079 = vpack.c.b16 %v1596, %v1575
      %v2080 = vpack.c.b16 %v1597, %v1576
      %v2081 = vpack.c.b16 %v1598, %v1577
      %v2082 = vpack.c.b16 %v1599, %v1578
      %v2083 = vpack.c.b16 %v1600, %v1579
      %v2084 = vpack.c.b16 %v1601, %v1580
      %v2085 = vpack.c.b16 %v1602, %v1581
      %v2086 = vpack.c.b16 %v1624, %v1603
      %v2087 = vpack.c.b16 %v1625, %v1604
      %v2088 = vpack.c.b16 %v1626, %v1605
      %v2089 = vpack.c.b16 %v1627, %v1606
      %v2090 = vpack.c.b16 %v1628, %v1607
      %v2091 = vpack.c.b16 %v1629, %v1608
      %v2092 = vpack.c.b16 %v1630, %v1609
      %v2093 = vpack.c.b16 %v1631, %v1610
      %v2094 = vpack.c.b16 %v1632, %v1611
      %v2095 = vpack.c.b16 %v1633, %v1612
      %v2096 = vpack.c.b16 %v1634, %v1613
      %v2097 = vpack.c.b16 %v1635, %v1614
      %v2098 = vpack.c.b16 %v1636, %v1615
      %v2099 = vpack.c.b16 %v1637, %v1616
      %v2100 = vpack.c.b16 %v1638, %v1617
      %v2101 = vpack.c.b16 %v1639, %v1618
      %v2102 = vpack.c.b16 %v1640, %v1619
      %v2103 = vpack.c.b16 %v1641, %v1620
      %v2104 = vpack.c.b16 %v1642, %v1621
      %v2105 = vpack.c.b16 %v1643, %v1622
      %v2106 = vpack.c.b16 %v1644, %v1623
      %v2107 = vpack.c.b16 %v1666, %v1645
      %v2108 = vpack.c.b16 %v1667, %v1646
      %v2109 = vpack.c.b16 %v1668, %v1647
      %v2110 = vpack.c.b16 %v1669, %v1648
      %v2111 = vpack.c.b16 %v1670, %v1649
      %v2112 = vpack.c.b16 %v1671, %v1650
      %v2113 = vpack.c.b16 %v1672, %v1651
      %v2114 = vpack.c.b16 %v1673, %v1652
      %v2115 = vpack.c.b16 %v1674, %v1653
      %v2116 = vpack.c.b16 %v1675, %v1654
      %v2117 = vpack.c.b16 %v1676, %v1655
      %v2118 = vpack.c.b16 %v1677, %v1656
      %v2119 = vpack.c.b16 %v1678, %v1657
      %v2120 = vpack.c.b16 %v1679, %v1658
      %v2121 = vpack.c.b16 %v1680, %v1659
      %v2122 = vpack.c.b16 %v1681, %v1660
      %v2123 = vpack.c.b16 %v1682, %v1661
      %v2124 = vpack.c.b16 %v1683, %v1662
      %v2125 = vpack.c.b16 %v1684, %v1663
      %v2126 = vpack.c.b16 %v1685, %v1664
      %v2127 = vpack.c.b16 %v1686, %v1665
      %v2128 = vpack.c.b16 %v1708, %v1687
      %v2129 = vpack.c.b16 %v1709, %v1688
      %v2130 = vpack.c.b16 %v1710, %v1689
      %v2131 = vpack.c.b16 %v1711, %v1690
      %v2132 = vpack.c.b16 %v1712, %v1691
      %v2133 = vpack.c.b16 %v1713, %v1692
      %v2134 = vpack.c.b16 %v1714, %v1693
      %v2135 = vpack.c.b16 %v1715, %v1694
      %v2136 = vpack.c.b16 %v1716, %v1695
      %v2137 = vpack.c.b16 %v1717, %v1696
      %v2138 = vpack.c.b16 %v1718, %v1697
      %v2139 = vpack.c.b16 %v1719, %v1698
      %v2140 = vpack.c.b16 %v1720, %v1699
      %v2141 = vpack.c.b16 %v1721, %v1700
      %v2142 = vpack.c.b16 %v1722, %v1701
      %v2143 = vpack.c.b16 %v1723, %v1702
      %v2144 = vpack.c.b16 %v1724, %v1703
      %v2145 = vpack.c.b16 %v1725, %v1704
      %v2146 = vpack.c.b16 %v1726, %v1705
      %v2147 = vpack.c.b16 %v1727, %v1706
      %v2148 = vpack.c.b16 %v1728, %v1707
      %v2149 = vpack.c.b16 %v1750, %v1729
      %v2150 = vpack.c.b16 %v1751, %v1730
      %v2151 = vpack.c.b16 %v1752, %v1731
      %v2152 = vpack.c.b16 %v1753, %v1732
      %v2153 = vpack.c.b16 %v1754, %v1733
      %v2154 = vpack.c.b16 %v1755, %v1734
      %v2155 = vpack.c.b16 %v1756, %v1735
      %v2156 = vpack.c.b16 %v1757, %v1736
      %v2157 = vpack.c.b16 %v1758, %v1737
      %v2158 = vpack.c.b16 %v1759, %v1738
      %v2159 = vpack.c.b16 %v1760, %v1739
      %v2160 = vpack.c.b16 %v1761, %v1740
      %v2161 = vpack.c.b16 %v1762, %v1741
      %v2162 = vpack.c.b16 %v1763, %v1742
      %v2163 = vpack.c.b16 %v1764, %v1743
      %v2164 = vpack.c.b16 %v1765, %v1744
      %v2165 = vpack.c.b16 %v1766, %v1745
      %v2166 = vpack.c.b16 %v1767, %v1746
      %v2167 = vpack.c.b16 %v1768, %v1747
      %v2168 = vpack.c.b16 %v1769, %v1748
      %v2169 = vpack.c.b16 %v1770, %v1749
      %v2170 = vpack.c.b16 %v1792, %v1771
      %v2171 = vpack.c.b16 %v1793, %v1772
      %v2172 = vpack.c.b16 %v1794, %v1773
      %v2173 = vpack.c.b16 %v1795, %v1774
      %v2174 = vpack.c.b16 %v1796, %v1775
      %v2175 = vpack.c.b16 %v1797, %v1776
      %v2176 = vpack.c.b16 %v1798, %v1777
      %v2177 = vpack.c.b16 %v1799, %v1778
      %v2178 = vpack.c.b16 %v1800, %v1779
      %v2179 = vpack.c.b16 %v1801, %v1780
      %v2180 = vpack.c.b16 %v1802, %v1781
      %v2181 = vpack.c.b16 %v1803, %v1782
      %v2182 = vpack.c.b16 %v1804, %v1783
      %v2183 = vpack.c.b16 %v1805, %v1784
      %v2184 = vpack.c.b16 %v1806, %v1785
      %v2185 = vpack.c.b16 %v1807, %v1786
      %v2186 = vpack.c.b16 %v1808, %v1787
      %v2187 = vpack.c.b16 %v1809, %v1788
      %v2188 = vpack.c.b16 %v1810, %v1789
      %v2189 = vpack.c.b16 %v1811, %v1790
      %v2190 = vpack.c.b16 %v1812, %v1791
      %v2191 = vpack.c.b16 %v1834, %v1813
      %v2192 = vpack.c.b16 %v1835, %v1814
      %v2193 = vpack.c.b16 %v1836, %v1815
      %v2194 = vpack.c.b16 %v1837, %v1816
      %v2195 = vpack.c.b16 %v1838, %v1817
      %v2196 = vpack.c.b16 %v1839, %v1818
      %v2197 = vpack.c.b16 %v1840, %v1819
      %v2198 = vpack.c.b16 %v1841, %v1820
      %v2199 = vpack.c.b16 %v1842, %v1821
      %v2200 = vpack.c.b16 %v1843, %v1822
      %v2201 = vpack.c.b16 %v1844, %v1823
      %v2202 = vpack.c.b16 %v1845, %v1824
      %v2203 = vpack.c.b16 %v1846, %v1825
      %v2204 = vpack.c.b16 %v1847, %v1826
      %v2205 = vpack.c.b16 %v1848, %v1827
      %v2206 = vpack.c.b16 %v1849, %v1828
      %v2207 = vpack.c.b16 %v1850, %v1829
      %v2208 = vpack.c.b16 %v1851, %v1830
      %v2209 = vpack.c.b16 %v1852, %v1831
      %v2210 = vpack.c.b16 %v1853, %v1832
      %v2211 = vpack.c.b16 %v1854, %v1833
      %v2212 = vpack.c.b16 %v1876, %v1855
      %v2213 = vpack.c.b16 %v1877, %v1856
      %v2214 = vpack.c.b16 %v1878, %v1857
      %v2215 = vpack.c.b16 %v1879, %v1858
      %v2216 = vpack.c.b16 %v1880, %v1859
      %v2217 = vpack.c.b16 %v1881, %v1860
      %v2218 = vpack.c.b16 %v1882, %v1861
      %v2219 = vpack.c.b16 %v1883, %v1862
      %v2220 = vpack.c.b16 %v1884, %v1863
      %v2221 = vpack.c.b16 %v1885, %v1864
      %v2222 = vpack.c.b16 %v1886, %v1865
      %v2223 = vpack.c.b16 %v1887, %v1866
      %v2224 = vpack.c.b16 %v1888, %v1867
      %v2225 = vpack.c.b16 %v1889, %v1868
      %v2226 = vpack.c.b16 %v1890, %v1869
      %v2227 = vpack.c.b16 %v1891, %v1870
      %v2228 = vpack.c.b16 %v1892, %v1871
      %v2229 = vpack.c.b16 %v1893, %v1872
      %v2230 = vpack.c.b16 %v1894, %v1873
      %v2231 = vpack.c.b16 %v1895, %v1874
      %v2232 = vpack.c.b16 %v1896, %v1875
      %v2905 = vunpack.c.l.b16 %v530
      %v2906 = vunpack.c.l.b16 %v531
      %v2907 = vunpack.c.l.b16 %v532
      %v2908 = vunpack.c.l.b16 %v533
      %v2909 = vunpack.c.l.b16 %v534
      %v2910 = vunpack.c.l.b16 %v535
      %v2911 = vunpack.c.l.b16 %v536
      %v2912 = vunpack.c.l.b16 %v537
      %v2913 = vunpack.c.l.b16 %v538
      %v2914 = vunpack.c.l.b16 %v539
      %v2915 = vunpack.c.l.b16 %v540
      %v2916 = vunpack.c.l.b16 %v541
      %v2917 = vunpack.c.l.b16 %v542
      %v2918 = vunpack.c.l.b16 %v543
      %v2919 = vunpack.c.l.b16 %v544
      %v2920 = vunpack.c.l.b16 %v545
      %v2921 = vunpack.c.l.b16 %v546
      %v2922 = vunpack.c.l.b16 %v547
      %v2923 = vunpack.c.l.b16 %v548
      %v2924 = vunpack.c.l.b16 %v549
      %v2925 = vunpack.c.l.b16 %v550
      %v2926 = vunpack.c.l.b16 %v551
      %v2927 = vunpack.c.l.b16 %v552
      %v2928 = vunpack.c.l.b16 %v553
      %v2929 = vunpack.c.l.b16 %v554
      %v2930 = vunpack.c.l.b16 %v555
      %v2931 = vunpack.c.l.b16 %v556
      %v2932 = vunpack.c.l.b16 %v557
      %v2933 = vunpack.c.l.b16 %v558
      %v2934 = vunpack.c.l.b16 %v559
      %v2935 = vunpack.c.l.b16 %v560
      %v2936 = vunpack.c.l.b16 %v561
      %v2937 = vunpack.c.l.b16 %v562
      %v2938 = vunpack.c.l.b16 %v563
      %v2939 = vunpack.c.l.b16 %v564
      %v2940 = vunpack.c.l.b16 %v565
      %v2941 = vunpack.c.l.b16 %v566
      %v2942 = vunpack.c.l.b16 %v567
      %v2943 = vunpack.c.l.b16 %v568
      %v2944 = vunpack.c.l.b16 %v569
      %v2945 = vunpack.c.l.b16 %v570
      %v2946 = vunpack.c.l.b16 %v571
      %v2947 = vunpack.c.l.b16 %v572
      %v2948 = vunpack.c.l.b16 %v573
      %v2949 = vunpack.c.l.b16 %v574
      %v2950 = vunpack.c.l.b16 %v575
      %v2951 = vunpack.c.l.b16 %v576
      %v2952 = vunpack.c.l.b16 %v577
      %v2953 = vunpack.c.l.b16 %v578
      %v2954 = vunpack.c.l.b16 %v579
      %v2955 = vunpack.c.l.b16 %v580
      %v2956 = vunpack.c.l.b16 %v581
      %v2957 = vunpack.c.l.b16 %v582
      %v2958 = vunpack.c.l.b16 %v583
      %v2959 = vunpack.c.l.b16 %v584
      %v2960 = vunpack.c.l.b16 %v585
      %v2961 = vunpack.c.l.b16 %v586
      %v2962 = vunpack.c.l.b16 %v587
      %v2963 = vunpack.c.l.b16 %v588
      %v2964 = vunpack.c.l.b16 %v589
      %v2965 = vunpack.c.l.b16 %v590
      %v2966 = vunpack.c.l.b16 %v591
      %v2967 = vunpack.c.l.b16 %v592
      %v2968 = vunpack.c.l.b16 %v593
      %v2969 = vunpack.c.l.b16 %v594
      %v2970 = vunpack.c.l.b16 %v595
      %v2971 = vunpack.c.l.b16 %v596
      %v2972 = vunpack.c.l.b16 %v597
      %v2973 = vunpack.c.l.b16 %v598
      %v2974 = vunpack.c.l.b16 %v599
      %v2975 = vunpack.c.l.b16 %v600
      %v2976 = vunpack.c.l.b16 %v601
      %v2977 = vunpack.c.l.b16 %v602
      %v2978 = vunpack.c.l.b16 %v603
      %v2979 = vunpack.c.l.b16 %v604
      %v2980 = vunpack.c.l.b16 %v605
      %v2981 = vunpack.c.l.b16 %v606
      %v2982 = vunpack.c.l.b16 %v607
      %v2983 = vunpack.c.l.b16 %v608
      %v2984 = vunpack.c.l.b16 %v609
      %v2985 = vunpack.c.l.b16 %v610
      %v2986 = vunpack.c.l.b16 %v611
      %v2987 = vunpack.c.l.b16 %v612
      %v2988 = vunpack.c.l.b16 %v613
      %v2989 = vunpack.c.l.b16 %v614
      %v2990 = vunpack.c.l.b16 %v615
      %v2991 = vunpack.c.l.b16 %v616
      %v2992 = vunpack.c.l.b16 %v617
      %v2993 = vunpack.c.l.b16 %v618
      %v2994 = vunpack.c.l.b16 %v619
      %v2995 = vunpack.c.l.b16 %v620
      %v2996 = vunpack.c.l.b16 %v621
      %v2997 = vunpack.c.l.b16 %v622
      %v2998 = vunpack.c.l.b16 %v623
      %v2999 = vunpack.c.l.b16 %v624
      %v3000 = vunpack.c.l.b16 %v625
      %v3001 = vunpack.c.l.b16 %v626
      %v3002 = vunpack.c.l.b16 %v627
      %v3003 = vunpack.c.l.b16 %v628
      %v3004 = vunpack.c.l.b16 %v629
      %v3005 = vunpack.c.l.b16 %v630
      %v3006 = vunpack.c.l.b16 %v631
      %v3007 = vunpack.c.l.b16 %v632
      %v3008 = vunpack.c.l.b16 %v633
      %v3009 = vunpack.c.l.b16 %v634
      %v3010 = vunpack.c.l.b16 %v635
      %v3011 = vunpack.c.l.b16 %v636
      %v3012 = vunpack.c.l.b16 %v637
      %v3013 = vunpack.c.l.b16 %v638
      %v3014 = vunpack.c.l.b16 %v639
      %v3015 = vunpack.c.l.b16 %v640
      %v3016 = vunpack.c.l.b16 %v641
      %v3017 = vunpack.c.l.b16 %v642
      %v3018 = vunpack.c.l.b16 %v643
      %v3019 = vunpack.c.l.b16 %v644
      %v3020 = vunpack.c.l.b16 %v645
      %v3021 = vunpack.c.l.b16 %v646
      %v3022 = vunpack.c.l.b16 %v647
      %v3023 = vunpack.c.l.b16 %v648
      %v3024 = vunpack.c.l.b16 %v649
      %v3025 = vunpack.c.l.b16 %v650
      %v3026 = vunpack.c.l.b16 %v651
      %v3027 = vunpack.c.l.b16 %v652
      %v3028 = vunpack.c.l.b16 %v653
      %v3029 = vunpack.c.l.b16 %v654
      %v3030 = vunpack.c.l.b16 %v655
      %v3031 = vunpack.c.l.b16 %v656
      %v3032 = vunpack.c.l.b16 %v657
      %v3033 = vunpack.c.l.b16 %v658
      %v3034 = vunpack.c.l.b16 %v659
      %v3035 = vunpack.c.l.b16 %v660
      %v3036 = vunpack.c.l.b16 %v661
      %v3037 = vunpack.c.l.b16 %v662
      %v3038 = vunpack.c.l.b16 %v663
      %v3039 = vunpack.c.l.b16 %v664
      %v3040 = vunpack.c.l.b16 %v665
      %v3041 = vunpack.c.l.b16 %v666
      %v3042 = vunpack.c.l.b16 %v667
      %v3043 = vunpack.c.l.b16 %v668
      %v3044 = vunpack.c.l.b16 %v669
      %v3045 = vunpack.c.l.b16 %v670
      %v3046 = vunpack.c.l.b16 %v671
      %v3047 = vunpack.c.l.b16 %v672
      %v3048 = vunpack.c.l.b16 %v673
      %v3049 = vunpack.c.l.b16 %v674
      %v3050 = vunpack.c.l.b16 %v675
      %v3051 = vunpack.c.l.b16 %v676
      %v3052 = vunpack.c.l.b16 %v677
      %v3053 = vunpack.c.l.b16 %v678
      %v3054 = vunpack.c.l.b16 %v679
      %v3055 = vunpack.c.l.b16 %v680
      %v3056 = vunpack.c.l.b16 %v681
      %v3057 = vunpack.c.l.b16 %v682
      %v3058 = vunpack.c.l.b16 %v683
      %v3059 = vunpack.c.l.b16 %v684
      %v3060 = vunpack.c.l.b16 %v685
      %v3061 = vunpack.c.l.b16 %v686
      %v3062 = vunpack.c.l.b16 %v687
      %v3063 = vunpack.c.l.b16 %v688
      %v3064 = vunpack.c.l.b16 %v689
      %v3065 = vunpack.c.l.b16 %v690
      %v3066 = vunpack.c.l.b16 %v691
      %v3067 = vunpack.c.l.b16 %v692
      %v3068 = vunpack.c.l.b16 %v693
      %v3069 = vunpack.c.l.b16 %v694
      %v3070 = vunpack.c.l.b16 %v695
      %v3071 = vunpack.c.l.b16 %v696
      %v3072 = vunpack.c.l.b16 %v697
      %v3073 = vunpack.c.l.b16 %v698
      %v3074 = vunpack.c.l.b16 %v699
      %v3075 = vunpack.c.l.b16 %v700
      %v3076 = vunpack.c.l.b16 %v701
      %v3077 = vunpack.c.l.b16 %v702
      %v3078 = vunpack.c.l.b16 %v703
      %v3079 = vunpack.c.l.b16 %v704
      %v3080 = vunpack.c.l.b16 %v705
      %v3081 = vunpack.c.l.b16 %v706
      %v3082 = vunpack.c.l.b16 %v707
      %v3083 = vunpack.c.l.b16 %v708
      %v3084 = vunpack.c.l.b16 %v709
      %v3085 = vunpack.c.l.b16 %v710
      %v3086 = vunpack.c.l.b16 %v711
      %v3087 = vunpack.c.l.b16 %v712
      %v3088 = vunpack.c.l.b16 %v713
      %v3089 = vunpack.c.l.b16 %v714
      %v3090 = vunpack.c.l.b16 %v715
      %v3091 = vunpack.c.l.b16 %v716
      %v3092 = vunpack.c.l.b16 %v717
      %v3093 = vunpack.c.l.b16 %v718
      %v3094 = vunpack.c.l.b16 %v719
      %v3095 = vunpack.c.l.b16 %v720
      %v3096 = vunpack.c.l.b16 %v721
      %v3097 = vunpack.c.l.b16 %v722
      %v3098 = vunpack.c.l.b16 %v723
      %v3099 = vunpack.c.l.b16 %v724
      %v3100 = vunpack.c.l.b16 %v725
      %v3101 = vunpack.c.l.b16 %v726
      %v3102 = vunpack.c.l.b16 %v727
      %v3103 = vunpack.c.l.b16 %v728
      %v3104 = vunpack.c.l.b16 %v729
      %v3105 = vunpack.c.l.b16 %v730
      %v3106 = vunpack.c.l.b16 %v731
      %v3107 = vunpack.c.l.b16 %v732
      %v3108 = vunpack.c.l.b16 %v733
      %v3109 = vunpack.c.l.b16 %v734
      %v3110 = vunpack.c.l.b16 %v735
      %v3111 = vunpack.c.l.b16 %v736
      %v3112 = vunpack.c.l.b16 %v737
      %v3113 = vunpack.c.l.b16 %v738
      %v3114 = vunpack.c.l.b16 %v739
      %v3115 = vunpack.c.l.b16 %v740
      %v3116 = vunpack.c.l.b16 %v741
      %v3117 = vunpack.c.l.b16 %v742
      %v3118 = vunpack.c.l.b16 %v743
      %v3119 = vunpack.c.l.b16 %v744
      %v3120 = vunpack.c.l.b16 %v745
      %v3121 = vunpack.c.l.b16 %v746
      %v3122 = vunpack.c.l.b16 %v747
      %v3123 = vunpack.c.l.b16 %v748
      %v3124 = vunpack.c.l.b16 %v749
      %v3125 = vunpack.c.l.b16 %v750
      %v3126 = vunpack.c.l.b16 %v751
      %v3127 = vunpack.c.l.b16 %v752
      %v3128 = vunpack.c.l.b16 %v753
      %v3129 = vunpack.c.l.b16 %v754
      %v3130 = vunpack.c.l.b16 %v755
      %v3131 = vunpack.c.l.b16 %v756
      %v3132 = vunpack.c.l.b16 %v757
      %v3133 = vunpack.c.l.b16 %v758
      %v3134 = vunpack.c.l.b16 %v759
      %v3135 = vunpack.c.l.b16 %v760
      %v3136 = vunpack.c.l.b16 %v761
      %v3137 = vunpack.c.l.b16 %v762
      %v3138 = vunpack.c.l.b16 %v763
      %v3139 = vunpack.c.l.b16 %v764
      %v3140 = vunpack.c.l.b16 %v765
      %v3141 = vunpack.c.l.b16 %v766
      %v3142 = vunpack.c.l.b16 %v767
      %v3143 = vunpack.c.l.b16 %v768
      %v3144 = vunpack.c.l.b16 %v769
      %v3145 = vunpack.c.l.b16 %v770
      %v3146 = vunpack.c.l.b16 %v771
      %v3147 = vunpack.c.l.b16 %v772
      %v3148 = vunpack.c.l.b16 %v773
      %v3149 = vunpack.c.l.b16 %v774
      %v3150 = vunpack.c.l.b16 %v775
      %v3151 = vunpack.c.l.b16 %v776
      %v3152 = vunpack.c.l.b16 %v777
      %v3153 = vunpack.c.l.b16 %v778
      %v3154 = vunpack.c.l.b16 %v779
      %v3155 = vunpack.c.l.b16 %v780
      %v3156 = vunpack.c.l.b16 %v781
      %v3157 = vunpack.c.l.b16 %v782
      %v3158 = vunpack.c.l.b16 %v783
      %v3159 = vunpack.c.l.b16 %v784
      %v3160 = vunpack.c.l.b16 %v785
      %v3161 = vunpack.c.l.b16 %v786
      %v3162 = vunpack.c.l.b16 %v787
      %v3163 = vunpack.c.l.b16 %v788
      %v3164 = vunpack.c.l.b16 %v789
      %v3165 = vunpack.c.l.b16 %v790
      %v3166 = vunpack.c.l.b16 %v791
      %v3167 = vunpack.c.l.b16 %v792
      %v3168 = vunpack.c.l.b16 %v793
      %v3169 = vunpack.c.l.b16 %v794
      %v3170 = vunpack.c.l.b16 %v795
      %v3171 = vunpack.c.l.b16 %v796
      %v3172 = vunpack.c.l.b16 %v797
      %v3173 = vunpack.c.l.b16 %v798
      %v3174 = vunpack.c.l.b16 %v799
      %v3175 = vunpack.c.l.b16 %v800
      %v3176 = vunpack.c.l.b16 %v801
      %v3177 = vunpack.c.l.b16 %v802
      %v3178 = vunpack.c.l.b16 %v803
      %v3179 = vunpack.c.l.b16 %v804
      %v3180 = vunpack.c.l.b16 %v805
      %v3181 = vunpack.c.l.b16 %v806
      %v3182 = vunpack.c.l.b16 %v807
      %v3183 = vunpack.c.l.b16 %v808
      %v3184 = vunpack.c.l.b16 %v809
      %v3185 = vunpack.c.l.b16 %v810
      %v3186 = vunpack.c.l.b16 %v811
      %v3187 = vunpack.c.l.b16 %v812
      %v3188 = vunpack.c.l.b16 %v813
      %v3189 = vunpack.c.l.b16 %v814
      %v3190 = vunpack.c.l.b16 %v815
      %v3191 = vunpack.c.l.b16 %v816
      %v3192 = vunpack.c.l.b16 %v817
      %v3193 = vunpack.c.l.b16 %v818
      %v3194 = vunpack.c.l.b16 %v819
      %v3195 = vunpack.c.l.b16 %v820
      %v3196 = vunpack.c.l.b16 %v821
      %v3197 = vunpack.c.l.b16 %v822
      %v3198 = vunpack.c.l.b16 %v823
      %v3199 = vunpack.c.l.b16 %v824
      %v3200 = vunpack.c.l.b16 %v825
      %v3201 = vunpack.c.l.b16 %v826
      %v3202 = vunpack.c.l.b16 %v827
      %v3203 = vunpack.c.l.b16 %v828
      %v3204 = vunpack.c.l.b16 %v829
      %v3205 = vunpack.c.l.b16 %v830
      %v3206 = vunpack.c.l.b16 %v831
      %v3207 = vunpack.c.l.b16 %v832
      %v3208 = vunpack.c.l.b16 %v833
      %v3209 = vunpack.c.l.b16 %v834
      %v3210 = vunpack.c.l.b16 %v835
      %v3211 = vunpack.c.l.b16 %v836
      %v3212 = vunpack.c.l.b16 %v837
      %v3213 = vunpack.c.l.b16 %v838
      %v3214 = vunpack.c.l.b16 %v839
      %v3215 = vunpack.c.l.b16 %v840
      %v3216 = vunpack.c.l.b16 %v841
      %v3217 = vunpack.c.l.b16 %v842
      %v3218 = vunpack.c.l.b16 %v843
      %v3219 = vunpack.c.l.b16 %v844
      %v3220 = vunpack.c.l.b16 %v845
      %v3221 = vunpack.c.l.b16 %v846
      %v3222 = vunpack.c.l.b16 %v847
      %v3223 = vunpack.c.l.b16 %v848
      %v3224 = vunpack.c.l.b16 %v849
      %v3225 = vunpack.c.l.b16 %v850
      %v3226 = vunpack.c.l.b16 %v851
      %v3227 = vunpack.c.l.b16 %v852
      %v3228 = vunpack.c.l.b16 %v853
      %v3229 = vunpack.c.l.b16 %v854
      %v3230 = vunpack.c.l.b16 %v855
      %v3231 = vunpack.c.l.b16 %v856
      %v3232 = vunpack.c.l.b16 %v857
      %v3233 = vunpack.c.l.b16 %v858
      %v3234 = vunpack.c.l.b16 %v859
      %v3235 = vunpack.c.l.b16 %v860
      %v3236 = vunpack.c.l.b16 %v861
      %v3237 = vunpack.c.l.b16 %v862
      %v3238 = vunpack.c.l.b16 %v863
      %v3239 = vunpack.c.l.b16 %v864
      %v3240 = vunpack.c.l.b16 %v865
      %v3241 = vpack.c.b16 %v2906, %v2905
      %v3242 = vpack.c.b16 %v2908, %v2907
      %v3243 = vpack.c.b16 %v2910, %v2909
      %v3244 = vpack.c.b16 %v2912, %v2911
      %v3245 = vpack.c.b16 %v2914, %v2913
      %v3246 = vpack.c.b16 %v2916, %v2915
      %v3247 = vpack.c.b16 %v2918, %v2917
      %v3248 = vpack.c.b16 %v2920, %v2919
      %v3249 = vpack.c.b16 %v2922, %v2921
      %v3250 = vpack.c.b16 %v2924, %v2923
      %v3251 = vpack.c.b16 %v2926, %v2925
      %v3252 = vpack.c.b16 %v2928, %v2927
      %v3253 = vpack.c.b16 %v2930, %v2929
      %v3254 = vpack.c.b16 %v2932, %v2931
      %v3255 = vpack.c.b16 %v2934, %v2933
      %v3256 = vpack.c.b16 %v2936, %v2935
      %v3257 = vpack.c.b16 %v2938, %v2937
      %v3258 = vpack.c.b16 %v2940, %v2939
      %v3259 = vpack.c.b16 %v2942, %v2941
      %v3260 = vpack.c.b16 %v2944, %v2943
      %v3261 = vpack.c.b16 %v2946, %v2945
      %v3262 = vpack.c.b16 %v2948, %v2947
      %v3263 = vpack.c.b16 %v2950, %v2949
      %v3264 = vpack.c.b16 %v2952, %v2951
      %v3265 = vpack.c.b16 %v2954, %v2953
      %v3266 = vpack.c.b16 %v2956, %v2955
      %v3267 = vpack.c.b16 %v2958, %v2957
      %v3268 = vpack.c.b16 %v2960, %v2959
      %v3269 = vpack.c.b16 %v2962, %v2961
      %v3270 = vpack.c.b16 %v2964, %v2963
      %v3271 = vpack.c.b16 %v2966, %v2965
      %v3272 = vpack.c.b16 %v2968, %v2967
      %v3273 = vpack.c.b16 %v2970, %v2969
      %v3274 = vpack.c.b16 %v2972, %v2971
      %v3275 = vpack.c.b16 %v2974, %v2973
      %v3276 = vpack.c.b16 %v2976, %v2975
      %v3277 = vpack.c.b16 %v2978, %v2977
      %v3278 = vpack.c.b16 %v2980, %v2979
      %v3279 = vpack.c.b16 %v2982, %v2981
      %v3280 = vpack.c.b16 %v2984, %v2983
      %v3281 = vpack.c.b16 %v2986, %v2985
      %v3282 = vpack.c.b16 %v2988, %v2987
      %v3283 = vpack.c.b16 %v2990, %v2989
      %v3284 = vpack.c.b16 %v2992, %v2991
      %v3285 = vpack.c.b16 %v2994, %v2993
      %v3286 = vpack.c.b16 %v2996, %v2995
      %v3287 = vpack.c.b16 %v2998, %v2997
      %v3288 = vpack.c.b16 %v3000, %v2999
      %v3289 = vpack.c.b16 %v3002, %v3001
      %v3290 = vpack.c.b16 %v3004, %v3003
      %v3291 = vpack.c.b16 %v3006, %v3005
      %v3292 = vpack.c.b16 %v3008, %v3007
      %v3293 = vpack.c.b16 %v3010, %v3009
      %v3294 = vpack.c.b16 %v3012, %v3011
      %v3295 = vpack.c.b16 %v3014, %v3013
      %v3296 = vpack.c.b16 %v3016, %v3015
      %v3297 = vpack.c.b16 %v3018, %v3017
      %v3298 = vpack.c.b16 %v3020, %v3019
      %v3299 = vpack.c.b16 %v3022, %v3021
      %v3300 = vpack.c.b16 %v3024, %v3023
      %v3301 = vpack.c.b16 %v3026, %v3025
      %v3302 = vpack.c.b16 %v3028, %v3027
      %v3303 = vpack.c.b16 %v3030, %v3029
      %v3304 = vpack.c.b16 %v3032, %v3031
      %v3305 = vpack.c.b16 %v3034, %v3033
      %v3306 = vpack.c.b16 %v3036, %v3035
      %v3307 = vpack.c.b16 %v3038, %v3037
      %v3308 = vpack.c.b16 %v3040, %v3039
      %v3309 = vpack.c.b16 %v3042, %v3041
      %v3310 = vpack.c.b16 %v3044, %v3043
      %v3311 = vpack.c.b16 %v3046, %v3045
      %v3312 = vpack.c.b16 %v3048, %v3047
      %v3313 = vpack.c.b16 %v3050, %v3049
      %v3314 = vpack.c.b16 %v3052, %v3051
      %v3315 = vpack.c.b16 %v3054, %v3053
      %v3316 = vpack.c.b16 %v3056, %v3055
      %v3317 = vpack.c.b16 %v3058, %v3057
      %v3318 = vpack.c.b16 %v3060, %v3059
      %v3319 = vpack.c.b16 %v3062, %v3061
      %v3320 = vpack.c.b16 %v3064, %v3063
      %v3321 = vpack.c.b16 %v3066, %v3065
      %v3322 = vpack.c.b16 %v3068, %v3067
      %v3323 = vpack.c.b16 %v3070, %v3069
      %v3324 = vpack.c.b16 %v3072, %v3071
      %v3325 = vpack.c.b16 %v3074, %v3073
      %v3326 = vpack.c.b16 %v3076, %v3075
      %v3327 = vpack.c.b16 %v3078, %v3077
      %v3328 = vpack.c.b16 %v3080, %v3079
      %v3329 = vpack.c.b16 %v3082, %v3081
      %v3330 = vpack.c.b16 %v3084, %v3083
      %v3331 = vpack.c.b16 %v3086, %v3085
      %v3332 = vpack.c.b16 %v3088, %v3087
      %v3333 = vpack.c.b16 %v3090, %v3089
      %v3334 = vpack.c.b16 %v3092, %v3091
      %v3335 = vpack.c.b16 %v3094, %v3093
      %v3336 = vpack.c.b16 %v3096, %v3095
      %v3337 = vpack.c.b16 %v3098, %v3097
      %v3338 = vpack.c.b16 %v3100, %v3099
      %v3339 = vpack.c.b16 %v3102, %v3101
      %v3340 = vpack.c.b16 %v3104, %v3103
      %v3341 = vpack.c.b16 %v3106, %v3105
      %v3342 = vpack.c.b16 %v3108, %v3107
      %v3343 = vpack.c.b16 %v3110, %v3109
      %v3344 = vpack.c.b16 %v3112, %v3111
      %v3345 = vpack.c.b16 %v3114, %v3113
      %v3346 = vpack.c.b16 %v3116, %v3115
      %v3347 = vpack.c.b16 %v3118, %v3117
      %v3348 = vpack.c.b16 %v3120, %v3119
      %v3349 = vpack.c.b16 %v3122, %v3121
      %v3350 = vpack.c.b16 %v3124, %v3123
      %v3351 = vpack.c.b16 %v3126, %v3125
      %v3352 = vpack.c.b16 %v3128, %v3127
      %v3353 = vpack.c.b16 %v3130, %v3129
      %v3354 = vpack.c.b16 %v3132, %v3131
      %v3355 = vpack.c.b16 %v3134, %v3133
      %v3356 = vpack.c.b16 %v3136, %v3135
      %v3357 = vpack.c.b16 %v3138, %v3137
      %v3358 = vpack.c.b16 %v3140, %v3139
      %v3359 = vpack.c.b16 %v3142, %v3141
      %v3360 = vpack.c.b16 %v3144, %v3143
      %v3361 = vpack.c.b16 %v3146, %v3145
      %v3362 = vpack.c.b16 %v3148, %v3147
      %v3363 = vpack.c.b16 %v3150, %v3149
      %v3364 = vpack.c.b16 %v3152, %v3151
      %v3365 = vpack.c.b16 %v3154, %v3153
      %v3366 = vpack.c.b16 %v3156, %v3155
      %v3367 = vpack.c.b16 %v3158, %v3157
      %v3368 = vpack.c.b16 %v3160, %v3159
      %v3369 = vpack.c.b16 %v3162, %v3161
      %v3370 = vpack.c.b16 %v3164, %v3163
      %v3371 = vpack.c.b16 %v3166, %v3165
      %v3372 = vpack.c.b16 %v3168, %v3167
      %v3373 = vpack.c.b16 %v3170, %v3169
      %v3374 = vpack.c.b16 %v3172, %v3171
      %v3375 = vpack.c.b16 %v3174, %v3173
      %v3376 = vpack.c.b16 %v3176, %v3175
      %v3377 = vpack.c.b16 %v3178, %v3177
      %v3378 = vpack.c.b16 %v3180, %v3179
      %v3379 = vpack.c.b16 %v3182, %v3181
      %v3380 = vpack.c.b16 %v3184, %v3183
      %v3381 = vpack.c.b16 %v3186, %v3185
      %v3382 = vpack.c.b16 %v3188, %v3187
      %v3383 = vpack.c.b16 %v3190, %v3189
      %v3384 = vpack.c.b16 %v3192, %v3191
      %v3385 = vpack.c.b16 %v3194, %v3193
      %v3386 = vpack.c.b16 %v3196, %v3195
      %v3387 = vpack.c.b16 %v3198, %v3197
      %v3388 = vpack.c.b16 %v3200, %v3199
      %v3389 = vpack.c.b16 %v3202, %v3201
      %v3390 = vpack.c.b16 %v3204, %v3203
      %v3391 = vpack.c.b16 %v3206, %v3205
      %v3392 = vpack.c.b16 %v3208, %v3207
      %v3393 = vpack.c.b16 %v3210, %v3209
      %v3394 = vpack.c.b16 %v3212, %v3211
      %v3395 = vpack.c.b16 %v3214, %v3213
      %v3396 = vpack.c.b16 %v3216, %v3215
      %v3397 = vpack.c.b16 %v3218, %v3217
      %v3398 = vpack.c.b16 %v3220, %v3219
      %v3399 = vpack.c.b16 %v3222, %v3221
      %v3400 = vpack.c.b16 %v3224, %v3223
      %v3401 = vpack.c.b16 %v3226, %v3225
      %v3402 = vpack.c.b16 %v3228, %v3227
      %v3403 = vpack.c.b16 %v3230, %v3229
      %v3404 = vpack.c.b16 %v3232, %v3231
      %v3405 = vpack.c.b16 %v3234, %v3233
      %v3406 = vpack.c.b16 %v3236, %v3235
      %v3407 = vpack.c.b16 %v3238, %v3237
      %v3408 = vpack.c.b16 %v3240, %v3239
      %3577 = vmatprep.subr.bf16.mxu0 0
      %3578 = vmatpush1.bf16.msra.mxu0 %v3241
      %3579 = vmatprep.subr.bf16.mxu0 0
      %3580 = vmatpush1.bf16.msra.mxu0 %v3242
      %3581 = vmatprep.subr.bf16.mxu0 0
      %3582 = vmatpush1.bf16.msra.mxu0 %v3243
      %3583 = vmatprep.subr.bf16.mxu0 0
      %3584 = vmatpush1.bf16.msra.mxu0 %v3244
      %3585 = vmatprep.subr.bf16.mxu0 0
      %3586 = vmatpush1.bf16.msra.mxu0 %v3245
      %3587 = vmatprep.subr.bf16.mxu0 0
      %3588 = vmatpush1.bf16.msra.mxu0 %v3246
      %3589 = vmatprep.subr.bf16.mxu0 0
      %3590 = vmatpush1.bf16.msra.mxu0 %v3247
      %3591 = vmatprep.subr.bf16.mxu0 0
      %3592 = vmatpush1.bf16.msra.mxu0 %v3248
      %3593 = vmatprep.subr.bf16.mxu0 0
      %3594 = vmatpush1.bf16.msra.mxu0 %v3249
      %3595 = vmatprep.subr.bf16.mxu0 0
      %3596 = vmatpush1.bf16.msra.mxu0 %v3250
      %3597 = vmatprep.subr.bf16.mxu0 0
      %3598 = vmatpush1.bf16.msra.mxu0 %v3251
      %3599 = vmatprep.subr.bf16.mxu0 0
      %3600 = vmatpush1.bf16.msra.mxu0 %v3252
      %3601 = vmatprep.subr.bf16.mxu0 0
      %3602 = vmatpush1.bf16.msra.mxu0 %v3253
      %3603 = vmatprep.subr.bf16.mxu0 0
      %3604 = vmatpush1.bf16.msra.mxu0 %v3254
      %3605 = vmatprep.subr.bf16.mxu0 0
      %3606 = vmatpush1.bf16.msra.mxu0 %v3255
      %3607 = vmatprep.subr.bf16.mxu0 0
      %3608 = vmatpush1.bf16.msra.mxu0 %v3256
      %3609 = vmatprep.mubr.bf16.mxu0 %v1898
      %3610 = vmatmul.mubr.bf16.gmra.mrb[0].mxu0 %v1897
      %v3611 = vpop.f32.mrb[0].mxu0
      %v3612 = vadd.f32 %v871, %v3611
      %v3613 = vpop.f32.mrb[0].mxu0
      %v3614 = vpop.f32.mrb[0].mxu0
      %v3615 = vadd.f32 %v871, %v3614
      %v3616 = vpop.f32.mrb[0].mxu0
      %3617 = vmatprep.mubr.bf16.mxu0 %v1919
      %3618 = vmatmul.mubr.bf16.gmra.mrb[0].mxu0 %v1918
      %v3619 = vpop.f32.mrb[0].mxu0
      %v3620 = vadd.f32 %v871, %v3619
      %v3621 = vpop.f32.mrb[0].mxu0
      %v3622 = vpop.f32.mrb[0].mxu0
      %v3623 = vadd.f32 %v871, %v3622
      %v3624 = vpop.f32.mrb[0].mxu0
      %3625 = vmatprep.mubr.bf16.mxu0 %v1940
      %3626 = vmatmul.mubr.bf16.gmra.mrb[0].mxu0 %v1939
      %v3627 = vpop.f32.mrb[0].mxu0
      %v3628 = vadd.f32 %v871, %v3627
      %v3629 = vpop.f32.mrb[0].mxu0
      %v3630 = vpop.f32.mrb[0].mxu0
      %v3631 = vadd.f32 %v871, %v3630
      %v3632 = vpop.f32.mrb[0].mxu0
      %3633 = vmatprep.mubr.bf16.mxu0 %v1961
      %3634 = vmatmul.mubr.bf16.gmra.mrb[0].mxu0 %v1960
      %v3635 = vpop.f32.mrb[0].mxu0
      %v3636 = vadd.f32 %v871, %v3635
      %v3637 = vpop.f32.mrb[0].mxu0
      %v3638 = vpop.f32.mrb[0].mxu0
      %v3639 = vadd.f32 %v871, %v3638
      %v3640 = vpop.f32.mrb[0].mxu0
      %3641 = vmatprep.mubr.bf16.mxu0 %v1982
      %3642 = vmatmul.mubr.bf16.gmra.mrb[0].mxu0 %v1981
      %v3643 = vpop.f32.mrb[0].mxu0
      %v3644 = vadd.f32 %v871, %v3643
      %v3645 = vpop.f32.mrb[0].mxu0
      %v3646 = vpop.f32.mrb[0].mxu0
      %v3647 = vadd.f32 %v871, %v3646
      %v3648 = vpop.f32.mrb[0].mxu0
      %3649 = vmatprep.mubr.bf16.mxu0 %v2003
      %3650 = vmatmul.mubr.bf16.gmra.mrb[0].mxu0 %v2002
      %v3651 = vpop.f32.mrb[0].mxu0
      %v3652 = vadd.f32 %v871, %v3651
      %v3653 = vpop.f32.mrb[0].mxu0
      %v3654 = vpop.f32.mrb[0].mxu0
      %v3655 = vadd.f32 %v871, %v3654
      %v3656 = vpop.f32.mrb[0].mxu0
      %3657 = vmatprep.mubr.bf16.mxu0 %v2024
      %3658 = vmatmul.mubr.bf16.gmra.mrb[0].mxu0 %v2023
      %v3659 = vpop.f32.mrb[0].mxu0
      %v3660 = vadd.f32 %v871, %v3659
      %v3661 = vpop.f32.mrb[0].mxu0
      %v3662 = vpop.f32.mrb[0].mxu0
      %v3663 = vadd.f32 %v871, %v3662
      %v3664 = vpop.f32.mrb[0].mxu0
      %3665 = vmatprep.mubr.bf16.mxu0 %v2045
      %3666 = vmatmul.mubr.bf16.gmra.mrb[0].mxu0 %v2044
      %v3667 = vpop.f32.mrb[0].mxu0
      %v3668 = vadd.f32 %v871, %v3667
      %v3669 = vpop.f32.mrb[0].mxu0
      %v3670 = vpop.f32.mrb[0].mxu0
      %v3671 = vadd.f32 %v871, %v3670
      %v3672 = vpop.f32.mrb[0].mxu0
      %3673 = vmatprep.mubr.bf16.mxu0 %v2066
      %3674 = vmatmul.mubr.bf16.gmra.mrb[0].mxu0 %v2065
      %v3675 = vpop.f32.mrb[0].mxu0
      %v3676 = vadd.f32 %v871, %v3675
      %v3677 = vpop.f32.mrb[0].mxu0
      %v3678 = vpop.f32.mrb[0].mxu0
      %v3679 = vadd.f32 %v871, %v3678
      %v3680 = vpop.f32.mrb[0].mxu0
      %3681 = vmatprep.mubr.bf16.mxu0 %v2087
      %3682 = vmatmul.mubr.bf16.gmra.mrb[0].mxu0 %v2086
      %v3683 = vpop.f32.mrb[0].mxu0
      %v3684 = vadd.f32 %v871, %v3683
      %v3685 = vpop.f32.mrb[0].mxu0
      %v3686 = vpop.f32.mrb[0].mxu0
      %v3687 = vadd.f32 %v871, %v3686
      %v3688 = vpop.f32.mrb[0].mxu0
      %3689 = vmatprep.mubr.bf16.mxu0 %v2108
      %3690 = vmatmul.mubr.bf16.gmra.mrb[0].mxu0 %v2107
      %v3691 = vpop.f32.mrb[0].mxu0
      %v3692 = vadd.f32 %v871, %v3691
      %v3693 = vpop.f32.mrb[0].mxu0
      %v3694 = vpop.f32.mrb[0].mxu0
      %v3695 = vadd.f32 %v871, %v3694
      %v3696 = vpop.f32.mrb[0].mxu0
      %3697 = vmatprep.mubr.bf16.mxu0 %v2129
      %3698 = vmatmul.mubr.bf16.gmra.mrb[0].mxu0 %v2128
      %v3699 = vpop.f32.mrb[0].mxu0
      %v3700 = vadd.f32 %v871, %v3699
      %v3701 = vpop.f32.mrb[0].mxu0
      %v3702 = vpop.f32.mrb[0].mxu0
      %v3703 = vadd.f32 %v871, %v3702
      %v3704 = vpop.f32.mrb[0].mxu0
      %3705 = vmatprep.mubr.bf16.mxu0 %v2150
      %3706 = vmatmul.mubr.bf16.gmra.mrb[0].mxu0 %v2149
      %v3707 = vpop.f32.mrb[0].mxu0
      %v3708 = vadd.f32 %v871, %v3707
      %v3709 = vpop.f32.mrb[0].mxu0
      %v3710 = vpop.f32.mrb[0].mxu0
      %v3711 = vadd.f32 %v871, %v3710
      %v3712 = vpop.f32.mrb[0].mxu0
      %3713 = vmatprep.mubr.bf16.mxu0 %v2171
      %3714 = vmatmul.mubr.bf16.gmra.mrb[0].mxu0 %v2170
      %v3715 = vpop.f32.mrb[0].mxu0
      %v3716 = vadd.f32 %v871, %v3715
      %v3717 = vpop.f32.mrb[0].mxu0
      %v3718 = vpop.f32.mrb[0].mxu0
      %v3719 = vadd.f32 %v871, %v3718
      %v3720 = vpop.f32.mrb[0].mxu0
      %3721 = vmatprep.mubr.bf16.mxu0 %v2192
      %3722 = vmatmul.mubr.bf16.gmra.mrb[0].mxu0 %v2191
      %v3723 = vpop.f32.mrb[0].mxu0
      %v3724 = vadd.f32 %v871, %v3723
      %v3725 = vpop.f32.mrb[0].mxu0
      %v3726 = vpop.f32.mrb[0].mxu0
      %v3727 = vadd.f32 %v871, %v3726
      %v3728 = vpop.f32.mrb[0].mxu0
      %3729 = vmatprep.mubr.bf16.mxu0 %v2213
      %3730 = vmatmul.mubr.bf16.gmra.mrb[0].mxu0 %v2212
      %v3731 = vpop.f32.mrb[0].mxu0
      %v3732 = vadd.f32 %v871, %v3731
      %v3733 = vpop.f32.mrb[0].mxu0
      %v3734 = vpop.f32.mrb[0].mxu0
      %v3735 = vadd.f32 %v871, %v3734
      %v3736 = vpop.f32.mrb[0].mxu0
      %3737 = vdwg.mxu0
      %3738 = vmatprep.subr.bf16.mxu0 0
      %3739 = vmatpush1.bf16.msra.mxu0 %v3257
      %3740 = vmatprep.subr.bf16.mxu0 0
      %3741 = vmatpush1.bf16.msra.mxu0 %v3258
      %3742 = vmatprep.subr.bf16.mxu0 0
      %3743 = vmatpush1.bf16.msra.mxu0 %v3259
      %3744 = vmatprep.subr.bf16.mxu0 0
      %3745 = vmatpush1.bf16.msra.mxu0 %v3260
      %3746 = vmatprep.subr.bf16.mxu0 0
      %3747 = vmatpush1.bf16.msra.mxu0 %v3261
      %3748 = vmatprep.subr.bf16.mxu0 0
      %3749 = vmatpush1.bf16.msra.mxu0 %v3262
      %3750 = vmatprep.subr.bf16.mxu0 0
      %3751 = vmatpush1.bf16.msra.mxu0 %v3263
      %3752 = vmatprep.subr.bf16.mxu0 0
      %3753 = vmatpush1.bf16.msra.mxu0 %v3264
      %3754 = vmatprep.subr.bf16.mxu0 0
      %3755 = vmatpush1.bf16.msra.mxu0 %v3265
      %3756 = vmatprep.subr.bf16.mxu0 0
      %3757 = vmatpush1.bf16.msra.mxu0 %v3266
      %3758 = vmatprep.subr.bf16.mxu0 0
      %3759 = vmatpush1.bf16.msra.mxu0 %v3267
      %3760 = vmatprep.subr.bf16.mxu0 0
      %3761 = vmatpush1.bf16.msra.mxu0 %v3268
      %3762 = vmatprep.subr.bf16.mxu0 0
      %3763 = vmatpush1.bf16.msra.mxu0 %v3269
      %3764 = vmatprep.subr.bf16.mxu0 0
      %3765 = vmatpush1.bf16.msra.mxu0 %v3270
      %3766 = vmatprep.subr.bf16.mxu0 0
      %3767 = vmatpush1.bf16.msra.mxu0 %v3271
      %3768 = vmatprep.subr.bf16.mxu0 0
      %3769 = vmatpush1.bf16.msra.mxu0 %v3272
      %3770 = vmatprep.mubr.bf16.mxu0 %v1900
      %3771 = vmatmul.mubr.bf16.gmra.mrb[0].mxu0 %v1899
      %v3772 = vpop.f32.mrb[0].mxu0
      %v3773 = vadd.f32 %v3612, %v3772
      %v3774 = vpop.f32.mrb[0].mxu0
      %v3775 = vpop.f32.mrb[0].mxu0
      %v3776 = vadd.f32 %v3615, %v3775
      %v3777 = vpop.f32.mrb[0].mxu0
      %3778 = vmatprep.mubr.bf16.mxu0 %v1921
      %3779 = vmatmul.mubr.bf16.gmra.mrb[0].mxu0 %v1920
      %v3780 = vpop.f32.mrb[0].mxu0
      %v3781 = vadd.f32 %v3620, %v3780
      %v3782 = vpop.f32.mrb[0].mxu0
      %v3783 = vpop.f32.mrb[0].mxu0
      %v3784 = vadd.f32 %v3623, %v3783
      %v3785 = vpop.f32.mrb[0].mxu0
      %3786 = vmatprep.mubr.bf16.mxu0 %v1942
      %3787 = vmatmul.mubr.bf16.gmra.mrb[0].mxu0 %v1941
      %v3788 = vpop.f32.mrb[0].mxu0
      %v3789 = vadd.f32 %v3628, %v3788
      %v3790 = vpop.f32.mrb[0].mxu0
      %v3791 = vpop.f32.mrb[0].mxu0
      %v3792 = vadd.f32 %v3631, %v3791
      %v3793 = vpop.f32.mrb[0].mxu0
      %3794 = vmatprep.mubr.bf16.mxu0 %v1963
      %3795 = vmatmul.mubr.bf16.gmra.mrb[0].mxu0 %v1962
      %v3796 = vpop.f32.mrb[0].mxu0
      %v3797 = vadd.f32 %v3636, %v3796
      %v3798 = vpop.f32.mrb[0].mxu0
      %v3799 = vpop.f32.mrb[0].mxu0
      %v3800 = vadd.f32 %v3639, %v3799
      %v3801 = vpop.f32.mrb[0].mxu0
      %3802 = vmatprep.mubr.bf16.mxu0 %v1984
      %3803 = vmatmul.mubr.bf16.gmra.mrb[0].mxu0 %v1983
      %v3804 = vpop.f32.mrb[0].mxu0
      %v3805 = vadd.f32 %v3644, %v3804
      %v3806 = vpop.f32.mrb[0].mxu0
      %v3807 = vpop.f32.mrb[0].mxu0
      %v3808 = vadd.f32 %v3647, %v3807
      %v3809 = vpop.f32.mrb[0].mxu0
      %3810 = vmatprep.mubr.bf16.mxu0 %v2005
      %3811 = vmatmul.mubr.bf16.gmra.mrb[0].mxu0 %v2004
      %v3812 = vpop.f32.mrb[0].mxu0
      %v3813 = vadd.f32 %v3652, %v3812
      %v3814 = vpop.f32.mrb[0].mxu0
      %v3815 = vpop.f32.mrb[0].mxu0
      %v3816 = vadd.f32 %v3655, %v3815
      %v3817 = vpop.f32.mrb[0].mxu0
      %3818 = vmatprep.mubr.bf16.mxu0 %v2026
      %3819 = vmatmul.mubr.bf16.gmra.mrb[0].mxu0 %v2025
      %v3820 = vpop.f32.mrb[0].mxu0
      %v3821 = vadd.f32 %v3660, %v3820
      %v3822 = vpop.f32.mrb[0].mxu0
      %v3823 = vpop.f32.mrb[0].mxu0
      %v3824 = vadd.f32 %v3663, %v3823
      %v3825 = vpop.f32.mrb[0].mxu0
      %3826 = vmatprep.mubr.bf16.mxu0 %v2047
      %3827 = vmatmul.mubr.bf16.gmra.mrb[0].mxu0 %v2046
      %v3828 = vpop.f32.mrb[0].mxu0
      %v3829 = vadd.f32 %v3668, %v3828
      %v3830 = vpop.f32.mrb[0].mxu0
      %v3831 = vpop.f32.mrb[0].mxu0
      %v3832 = vadd.f32 %v3671, %v3831
      %v3833 = vpop.f32.mrb[0].mxu0
      %3834 = vmatprep.mubr.bf16.mxu0 %v2068
      %3835 = vmatmul.mubr.bf16.gmra.mrb[0].mxu0 %v2067
      %v3836 = vpop.f32.mrb[0].mxu0
      %v3837 = vadd.f32 %v3676, %v3836
      %v3838 = vpop.f32.mrb[0].mxu0
      %v3839 = vpop.f32.mrb[0].mxu0
      %v3840 = vadd.f32 %v3679, %v3839
      %v3841 = vpop.f32.mrb[0].mxu0
      %3842 = vmatprep.mubr.bf16.mxu0 %v2089
      %3843 = vmatmul.mubr.bf16.gmra.mrb[0].mxu0 %v2088
      %v3844 = vpop.f32.mrb[0].mxu0
      %v3845 = vadd.f32 %v3684, %v3844
      %v3846 = vpop.f32.mrb[0].mxu0
      %v3847 = vpop.f32.mrb[0].mxu0
      %v3848 = vadd.f32 %v3687, %v3847
      %v3849 = vpop.f32.mrb[0].mxu0
      %3850 = vmatprep.mubr.bf16.mxu0 %v2110
      %3851 = vmatmul.mubr.bf16.gmra.mrb[0].mxu0 %v2109
      %v3852 = vpop.f32.mrb[0].mxu0
      %v3853 = vadd.f32 %v3692, %v3852
      %v3854 = vpop.f32.mrb[0].mxu0
      %v3855 = vpop.f32.mrb[0].mxu0
      %v3856 = vadd.f32 %v3695, %v3855
      %v3857 = vpop.f32.mrb[0].mxu0
      %3858 = vmatprep.mubr.bf16.mxu0 %v2131
      %3859 = vmatmul.mubr.bf16.gmra.mrb[0].mxu0 %v2130
      %v3860 = vpop.f32.mrb[0].mxu0
      %v3861 = vadd.f32 %v3700, %v3860
      %v3862 = vpop.f32.mrb[0].mxu0
      %v3863 = vpop.f32.mrb[0].mxu0
      %v3864 = vadd.f32 %v3703, %v3863
      %v3865 = vpop.f32.mrb[0].mxu0
      %3866 = vmatprep.mubr.bf16.mxu0 %v2152
      %3867 = vmatmul.mubr.bf16.gmra.mrb[0].mxu0 %v2151
      %v3868 = vpop.f32.mrb[0].mxu0
      %v3869 = vadd.f32 %v3708, %v3868
      %v3870 = vpop.f32.mrb[0].mxu0
      %v3871 = vpop.f32.mrb[0].mxu0
      %v3872 = vadd.f32 %v3711, %v3871
      %v3873 = vpop.f32.mrb[0].mxu0
      %3874 = vmatprep.mubr.bf16.mxu0 %v2173
      %3875 = vmatmul.mubr.bf16.gmra.mrb[0].mxu0 %v2172
      %v3876 = vpop.f32.mrb[0].mxu0
      %v3877 = vadd.f32 %v3716, %v3876
      %v3878 = vpop.f32.mrb[0].mxu0
      %v3879 = vpop.f32.mrb[0].mxu0
      %v3880 = vadd.f32 %v3719, %v3879
      %v3881 = vpop.f32.mrb[0].mxu0
      %3882 = vmatprep.mubr.bf16.mxu0 %v2194
      %3883 = vmatmul.mubr.bf16.gmra.mrb[0].mxu0 %v2193
      %v3884 = vpop.f32.mrb[0].mxu0
      %v3885 = vadd.f32 %v3724, %v3884
      %v3886 = vpop.f32.mrb[0].mxu0
      %v3887 = vpop.f32.mrb[0].mxu0
      %v3888 = vadd.f32 %v3727, %v3887
      %v3889 = vpop.f32.mrb[0].mxu0
      %3890 = vmatprep.mubr.bf16.mxu0 %v2215
      %3891 = vmatmul.mubr.bf16.gmra.mrb[0].mxu0 %v2214
      %v3892 = vpop.f32.mrb[0].mxu0
      %v3893 = vadd.f32 %v3732, %v3892
      %v3894 = vpop.f32.mrb[0].mxu0
      %v3895 = vpop.f32.mrb[0].mxu0
      %v3896 = vadd.f32 %v3735, %v3895
      %v3897 = vpop.f32.mrb[0].mxu0
      %3898 = vdwg.mxu0
      %3899 = vmatprep.subr.bf16.mxu0 0
      %3900 = vmatpush1.bf16.msra.mxu0 %v3273
      %3901 = vmatprep.subr.bf16.mxu0 0
      %3902 = vmatpush1.bf16.msra.mxu0 %v3274
      %3903 = vmatprep.subr.bf16.mxu0 0
      %3904 = vmatpush1.bf16.msra.mxu0 %v3275
      %3905 = vmatprep.subr.bf16.mxu0 0
      %3906 = vmatpush1.bf16.msra.mxu0 %v3276
      %3907 = vmatprep.subr.bf16.mxu0 0
      %3908 = vmatpush1.bf16.msra.mxu0 %v3277
      %3909 = vmatprep.subr.bf16.mxu0 0
      %3910 = vmatpush1.bf16.msra.mxu0 %v3278
      %3911 = vmatprep.subr.bf16.mxu0 0
      %3912 = vmatpush1.bf16.msra.mxu0 %v3279
      %3913 = vmatprep.subr.bf16.mxu0 0
      %3914 = vmatpush1.bf16.msra.mxu0 %v3280
      %3915 = vmatprep.subr.bf16.mxu0 0
      %3916 = vmatpush1.bf16.msra.mxu0 %v3281
      %3917 = vmatprep.subr.bf16.mxu0 0
      %3918 = vmatpush1.bf16.msra.mxu0 %v3282
      %3919 = vmatprep.subr.bf16.mxu0 0
      %3920 = vmatpush1.bf16.msra.mxu0 %v3283
      %3921 = vmatprep.subr.bf16.mxu0 0
      %3922 = vmatpush1.bf16.msra.mxu0 %v3284
      %3923 = vmatprep.subr.bf16.mxu0 0
      %3924 = vmatpush1.bf16.msra.mxu0 %v3285
      %3925 = vmatprep.subr.bf16.mxu0 0
      %3926 = vmatpush1.bf16.msra.mxu0 %v3286
      %3927 = vmatprep.subr.bf16.mxu0 0
      %3928 = vmatpush1.bf16.msra.mxu0 %v3287
      %3929 = vmatprep.subr.bf16.mxu0 0
      %3930 = vmatpush1.bf16.msra.mxu0 %v3288
      %3931 = vmatprep.mubr.bf16.mxu0 %v1902
      %3932 = vmatmul.mubr.bf16.gmra.mrb[0].mxu0 %v1901
      %v3933 = vpop.f32.mrb[0].mxu0
      %v3934 = vadd.f32 %v3773, %v3933
      %v3935 = vpop.f32.mrb[0].mxu0
      %v3936 = vpop.f32.mrb[0].mxu0
      %v3937 = vadd.f32 %v3776, %v3936
      %v3938 = vpop.f32.mrb[0].mxu0
      %3939 = vmatprep.mubr.bf16.mxu0 %v1923
      %3940 = vmatmul.mubr.bf16.gmra.mrb[0].mxu0 %v1922
      %v3941 = vpop.f32.mrb[0].mxu0
      %v3942 = vadd.f32 %v3781, %v3941
      %v3943 = vpop.f32.mrb[0].mxu0
      %v3944 = vpop.f32.mrb[0].mxu0
      %v3945 = vadd.f32 %v3784, %v3944
      %v3946 = vpop.f32.mrb[0].mxu0
      %3947 = vmatprep.mubr.bf16.mxu0 %v1944
      %3948 = vmatmul.mubr.bf16.gmra.mrb[0].mxu0 %v1943
      %v3949 = vpop.f32.mrb[0].mxu0
      %v3950 = vadd.f32 %v3789, %v3949
      %v3951 = vpop.f32.mrb[0].mxu0
      %v3952 = vpop.f32.mrb[0].mxu0
      %v3953 = vadd.f32 %v3792, %v3952
      %v3954 = vpop.f32.mrb[0].mxu0
      %3955 = vmatprep.mubr.bf16.mxu0 %v1965
      %3956 = vmatmul.mubr.bf16.gmra.mrb[0].mxu0 %v1964
      %v3957 = vpop.f32.mrb[0].mxu0
      %v3958 = vadd.f32 %v3797, %v3957
      %v3959 = vpop.f32.mrb[0].mxu0
      %v3960 = vpop.f32.mrb[0].mxu0
      %v3961 = vadd.f32 %v3800, %v3960
      %v3962 = vpop.f32.mrb[0].mxu0
      %3963 = vmatprep.mubr.bf16.mxu0 %v1986
      %3964 = vmatmul.mubr.bf16.gmra.mrb[0].mxu0 %v1985
      %v3965 = vpop.f32.mrb[0].mxu0
      %v3966 = vadd.f32 %v3805, %v3965
      %v3967 = vpop.f32.mrb[0].mxu0
      %v3968 = vpop.f32.mrb[0].mxu0
      %v3969 = vadd.f32 %v3808, %v3968
      %v3970 = vpop.f32.mrb[0].mxu0
      %3971 = vmatprep.mubr.bf16.mxu0 %v2007
      %3972 = vmatmul.mubr.bf16.gmra.mrb[0].mxu0 %v2006
      %v3973 = vpop.f32.mrb[0].mxu0
      %v3974 = vadd.f32 %v3813, %v3973
      %v3975 = vpop.f32.mrb[0].mxu0
      %v3976 = vpop.f32.mrb[0].mxu0
      %v3977 = vadd.f32 %v3816, %v3976
      %v3978 = vpop.f32.mrb[0].mxu0
      %3979 = vmatprep.mubr.bf16.mxu0 %v2028
      %3980 = vmatmul.mubr.bf16.gmra.mrb[0].mxu0 %v2027
      %v3981 = vpop.f32.mrb[0].mxu0
      %v3982 = vadd.f32 %v3821, %v3981
      %v3983 = vpop.f32.mrb[0].mxu0
      %v3984 = vpop.f32.mrb[0].mxu0
      %v3985 = vadd.f32 %v3824, %v3984
      %v3986 = vpop.f32.mrb[0].mxu0
      %3987 = vmatprep.mubr.bf16.mxu0 %v2049
      %3988 = vmatmul.mubr.bf16.gmra.mrb[0].mxu0 %v2048
      %v3989 = vpop.f32.mrb[0].mxu0
      %v3990 = vadd.f32 %v3829, %v3989
      %v3991 = vpop.f32.mrb[0].mxu0
      %v3992 = vpop.f32.mrb[0].mxu0
      %v3993 = vadd.f32 %v3832, %v3992
      %v3994 = vpop.f32.mrb[0].mxu0
      %3995 = vmatprep.mubr.bf16.mxu0 %v2070
      %3996 = vmatmul.mubr.bf16.gmra.mrb[0].mxu0 %v2069
      %v3997 = vpop.f32.mrb[0].mxu0
      %v3998 = vadd.f32 %v3837, %v3997
      %v3999 = vpop.f32.mrb[0].mxu0
      %v4000 = vpop.f32.mrb[0].mxu0
      %v4001 = vadd.f32 %v3840, %v4000
      %v4002 = vpop.f32.mrb[0].mxu0
      %4003 = vmatprep.mubr.bf16.mxu0 %v2091
      %4004 = vmatmul.mubr.bf16.gmra.mrb[0].mxu0 %v2090
      %v4005 = vpop.f32.mrb[0].mxu0
      %v4006 = vadd.f32 %v3845, %v4005
      %v4007 = vpop.f32.mrb[0].mxu0
      %v4008 = vpop.f32.mrb[0].mxu0
      %v4009 = vadd.f32 %v3848, %v4008
      %v4010 = vpop.f32.mrb[0].mxu0
      %4011 = vmatprep.mubr.bf16.mxu0 %v2112
      %4012 = vmatmul.mubr.bf16.gmra.mrb[0].mxu0 %v2111
      %v4013 = vpop.f32.mrb[0].mxu0
      %v4014 = vadd.f32 %v3853, %v4013
      %v4015 = vpop.f32.mrb[0].mxu0
      %v4016 = vpop.f32.mrb[0].mxu0
      %v4017 = vadd.f32 %v3856, %v4016
      %v4018 = vpop.f32.mrb[0].mxu0
      %4019 = vmatprep.mubr.bf16.mxu0 %v2133
      %4020 = vmatmul.mubr.bf16.gmra.mrb[0].mxu0 %v2132
      %v4021 = vpop.f32.mrb[0].mxu0
      %v4022 = vadd.f32 %v3861, %v4021
      %v4023 = vpop.f32.mrb[0].mxu0
      %v4024 = vpop.f32.mrb[0].mxu0
      %v4025 = vadd.f32 %v3864, %v4024
      %v4026 = vpop.f32.mrb[0].mxu0
      %4027 = vmatprep.mubr.bf16.mxu0 %v2154
      %4028 = vmatmul.mubr.bf16.gmra.mrb[0].mxu0 %v2153
      %v4029 = vpop.f32.mrb[0].mxu0
      %v4030 = vadd.f32 %v3869, %v4029
      %v4031 = vpop.f32.mrb[0].mxu0
      %v4032 = vpop.f32.mrb[0].mxu0
      %v4033 = vadd.f32 %v3872, %v4032
      %v4034 = vpop.f32.mrb[0].mxu0
      %4035 = vmatprep.mubr.bf16.mxu0 %v2175
      %4036 = vmatmul.mubr.bf16.gmra.mrb[0].mxu0 %v2174
      %v4037 = vpop.f32.mrb[0].mxu0
      %v4038 = vadd.f32 %v3877, %v4037
      %v4039 = vpop.f32.mrb[0].mxu0
      %v4040 = vpop.f32.mrb[0].mxu0
      %v4041 = vadd.f32 %v3880, %v4040
      %v4042 = vpop.f32.mrb[0].mxu0
      %4043 = vmatprep.mubr.bf16.mxu0 %v2196
      %4044 = vmatmul.mubr.bf16.gmra.mrb[0].mxu0 %v2195
      %v4045 = vpop.f32.mrb[0].mxu0
      %v4046 = vadd.f32 %v3885, %v4045
      %v4047 = vpop.f32.mrb[0].mxu0
      %v4048 = vpop.f32.mrb[0].mxu0
      %v4049 = vadd.f32 %v3888, %v4048
      %v4050 = vpop.f32.mrb[0].mxu0
      %4051 = vmatprep.mubr.bf16.mxu0 %v2217
      %4052 = vmatmul.mubr.bf16.gmra.mrb[0].mxu0 %v2216
      %v4053 = vpop.f32.mrb[0].mxu0
      %v4054 = vadd.f32 %v3893, %v4053
      %v4055 = vpop.f32.mrb[0].mxu0
      %v4056 = vpop.f32.mrb[0].mxu0
      %v4057 = vadd.f32 %v3896, %v4056
      %v4058 = vpop.f32.mrb[0].mxu0
      %4059 = vdwg.mxu0
      %4060 = vmatprep.subr.bf16.mxu0 0
      %4061 = vmatpush1.bf16.msra.mxu0 %v3289
      %4062 = vmatprep.subr.bf16.mxu0 0
      %4063 = vmatpush1.bf16.msra.mxu0 %v3290
      %4064 = vmatprep.subr.bf16.mxu0 0
      %4065 = vmatpush1.bf16.msra.mxu0 %v3291
      %4066 = vmatprep.subr.bf16.mxu0 0
      %4067 = vmatpush1.bf16.msra.mxu0 %v3292
      %4068 = vmatprep.subr.bf16.mxu0 0
      %4069 = vmatpush1.bf16.msra.mxu0 %v3293
      %4070 = vmatprep.subr.bf16.mxu0 0
      %4071 = vmatpush1.bf16.msra.mxu0 %v3294
      %4072 = vmatprep.subr.bf16.mxu0 0
      %4073 = vmatpush1.bf16.msra.mxu0 %v3295
      %4074 = vmatprep.subr.bf16.mxu0 0
      %4075 = vmatpush1.bf16.msra.mxu0 %v3296
      %4076 = vmatprep.subr.bf16.mxu0 0
      %4077 = vmatpush1.bf16.msra.mxu0 %v3297
      %4078 = vmatprep.subr.bf16.mxu0 0
      %4079 = vmatpush1.bf16.msra.mxu0 %v3298
      %4080 = vmatprep.subr.bf16.mxu0 0
      %4081 = vmatpush1.bf16.msra.mxu0 %v3299
      %4082 = vmatprep.subr.bf16.mxu0 0
      %4083 = vmatpush1.bf16.msra.mxu0 %v3300
      %4084 = vmatprep.subr.bf16.mxu0 0
      %4085 = vmatpush1.bf16.msra.mxu0 %v3301
      %4086 = vmatprep.subr.bf16.mxu0 0
      %4087 = vmatpush1.bf16.msra.mxu0 %v3302
      %4088 = vmatprep.subr.bf16.mxu0 0
      %4089 = vmatpush1.bf16.msra.mxu0 %v3303
      %4090 = vmatprep.subr.bf16.mxu0 0
      %4091 = vmatpush1.bf16.msra.mxu0 %v3304
      %4092 = vmatprep.mubr.bf16.mxu0 %v1904
      %4093 = vmatmul.mubr.bf16.gmra.mrb[0].mxu0 %v1903
      %v4094 = vpop.f32.mrb[0].mxu0
      %v4095 = vadd.f32 %v3934, %v4094
      %v4096 = vpop.f32.mrb[0].mxu0
      %v4097 = vpop.f32.mrb[0].mxu0
      %v4098 = vadd.f32 %v3937, %v4097
      %v4099 = vpop.f32.mrb[0].mxu0
      %4100 = vmatprep.mubr.bf16.mxu0 %v1925
      %4101 = vmatmul.mubr.bf16.gmra.mrb[0].mxu0 %v1924
      %v4102 = vpop.f32.mrb[0].mxu0
      %v4103 = vadd.f32 %v3942, %v4102
      %v4104 = vpop.f32.mrb[0].mxu0
      %v4105 = vpop.f32.mrb[0].mxu0
      %v4106 = vadd.f32 %v3945, %v4105
      %v4107 = vpop.f32.mrb[0].mxu0
      %4108 = vmatprep.mubr.bf16.mxu0 %v1946
      %4109 = vmatmul.mubr.bf16.gmra.mrb[0].mxu0 %v1945
      %v4110 = vpop.f32.mrb[0].mxu0
      %v4111 = vadd.f32 %v3950, %v4110
      %v4112 = vpop.f32.mrb[0].mxu0
      %v4113 = vpop.f32.mrb[0].mxu0
      %v4114 = vadd.f32 %v3953, %v4113
      %v4115 = vpop.f32.mrb[0].mxu0
      %4116 = vmatprep.mubr.bf16.mxu0 %v1967
      %4117 = vmatmul.mubr.bf16.gmra.mrb[0].mxu0 %v1966
      %v4118 = vpop.f32.mrb[0].mxu0
      %v4119 = vadd.f32 %v3958, %v4118
      %v4120 = vpop.f32.mrb[0].mxu0
      %v4121 = vpop.f32.mrb[0].mxu0
      %v4122 = vadd.f32 %v3961, %v4121
      %v4123 = vpop.f32.mrb[0].mxu0
      %4124 = vmatprep.mubr.bf16.mxu0 %v1988
      %4125 = vmatmul.mubr.bf16.gmra.mrb[0].mxu0 %v1987
      %v4126 = vpop.f32.mrb[0].mxu0
      %v4127 = vadd.f32 %v3966, %v4126
      %v4128 = vpop.f32.mrb[0].mxu0
      %v4129 = vpop.f32.mrb[0].mxu0
      %v4130 = vadd.f32 %v3969, %v4129
      %v4131 = vpop.f32.mrb[0].mxu0
      %4132 = vmatprep.mubr.bf16.mxu0 %v2009
      %4133 = vmatmul.mubr.bf16.gmra.mrb[0].mxu0 %v2008
      %v4134 = vpop.f32.mrb[0].mxu0
      %v4135 = vadd.f32 %v3974, %v4134
      %v4136 = vpop.f32.mrb[0].mxu0
      %v4137 = vpop.f32.mrb[0].mxu0
      %v4138 = vadd.f32 %v3977, %v4137
      %v4139 = vpop.f32.mrb[0].mxu0
      %4140 = vmatprep.mubr.bf16.mxu0 %v2030
      %4141 = vmatmul.mubr.bf16.gmra.mrb[0].mxu0 %v2029
      %v4142 = vpop.f32.mrb[0].mxu0
      %v4143 = vadd.f32 %v3982, %v4142
      %v4144 = vpop.f32.mrb[0].mxu0
      %v4145 = vpop.f32.mrb[0].mxu0
      %v4146 = vadd.f32 %v3985, %v4145
      %v4147 = vpop.f32.mrb[0].mxu0
      %4148 = vmatprep.mubr.bf16.mxu0 %v2051
      %4149 = vmatmul.mubr.bf16.gmra.mrb[0].mxu0 %v2050
      %v4150 = vpop.f32.mrb[0].mxu0
      %v4151 = vadd.f32 %v3990, %v4150
      %v4152 = vpop.f32.mrb[0].mxu0
      %v4153 = vpop.f32.mrb[0].mxu0
      %v4154 = vadd.f32 %v3993, %v4153
      %v4155 = vpop.f32.mrb[0].mxu0
      %4156 = vmatprep.mubr.bf16.mxu0 %v2072
      %4157 = vmatmul.mubr.bf16.gmra.mrb[0].mxu0 %v2071
      %v4158 = vpop.f32.mrb[0].mxu0
      %v4159 = vadd.f32 %v3998, %v4158
      %v4160 = vpop.f32.mrb[0].mxu0
      %v4161 = vpop.f32.mrb[0].mxu0
      %v4162 = vadd.f32 %v4001, %v4161
      %v4163 = vpop.f32.mrb[0].mxu0
      %4164 = vmatprep.mubr.bf16.mxu0 %v2093
      %4165 = vmatmul.mubr.bf16.gmra.mrb[0].mxu0 %v2092
      %v4166 = vpop.f32.mrb[0].mxu0
      %v4167 = vadd.f32 %v4006, %v4166
      %v4168 = vpop.f32.mrb[0].mxu0
      %v4169 = vpop.f32.mrb[0].mxu0
      %v4170 = vadd.f32 %v4009, %v4169
      %v4171 = vpop.f32.mrb[0].mxu0
      %4172 = vmatprep.mubr.bf16.mxu0 %v2114
      %4173 = vmatmul.mubr.bf16.gmra.mrb[0].mxu0 %v2113
      %v4174 = vpop.f32.mrb[0].mxu0
      %v4175 = vadd.f32 %v4014, %v4174
      %v4176 = vpop.f32.mrb[0].mxu0
      %v4177 = vpop.f32.mrb[0].mxu0
      %v4178 = vadd.f32 %v4017, %v4177
      %v4179 = vpop.f32.mrb[0].mxu0
      %4180 = vmatprep.mubr.bf16.mxu0 %v2135
      %4181 = vmatmul.mubr.bf16.gmra.mrb[0].mxu0 %v2134
      %v4182 = vpop.f32.mrb[0].mxu0
      %v4183 = vadd.f32 %v4022, %v4182
      %v4184 = vpop.f32.mrb[0].mxu0
      %v4185 = vpop.f32.mrb[0].mxu0
      %v4186 = vadd.f32 %v4025, %v4185
      %v4187 = vpop.f32.mrb[0].mxu0
      %4188 = vmatprep.mubr.bf16.mxu0 %v2156
      %4189 = vmatmul.mubr.bf16.gmra.mrb[0].mxu0 %v2155
      %v4190 = vpop.f32.mrb[0].mxu0
      %v4191 = vadd.f32 %v4030, %v4190
      %v4192 = vpop.f32.mrb[0].mxu0
      %v4193 = vpop.f32.mrb[0].mxu0
      %v4194 = vadd.f32 %v4033, %v4193
      %v4195 = vpop.f32.mrb[0].mxu0
      %4196 = vmatprep.mubr.bf16.mxu0 %v2177
      %4197 = vmatmul.mubr.bf16.gmra.mrb[0].mxu0 %v2176
      %v4198 = vpop.f32.mrb[0].mxu0
      %v4199 = vadd.f32 %v4038, %v4198
      %v4200 = vpop.f32.mrb[0].mxu0
      %v4201 = vpop.f32.mrb[0].mxu0
      %v4202 = vadd.f32 %v4041, %v4201
      %v4203 = vpop.f32.mrb[0].mxu0
      %4204 = vmatprep.mubr.bf16.mxu0 %v2198
      %4205 = vmatmul.mubr.bf16.gmra.mrb[0].mxu0 %v2197
      %v4206 = vpop.f32.mrb[0].mxu0
      %v4207 = vadd.f32 %v4046, %v4206
      %v4208 = vpop.f32.mrb[0].mxu0
      %v4209 = vpop.f32.mrb[0].mxu0
      %v4210 = vadd.f32 %v4049, %v4209
      %v4211 = vpop.f32.mrb[0].mxu0
      %4212 = vmatprep.mubr.bf16.mxu0 %v2219
      %4213 = vmatmul.mubr.bf16.gmra.mrb[0].mxu0 %v2218
      %v4214 = vpop.f32.mrb[0].mxu0
      %v4215 = vadd.f32 %v4054, %v4214
      %v4216 = vpop.f32.mrb[0].mxu0
      %v4217 = vpop.f32.mrb[0].mxu0
      %v4218 = vadd.f32 %v4057, %v4217
      %v4219 = vpop.f32.mrb[0].mxu0
      %4220 = vdwg.mxu0
      %4221 = vmatprep.subr.bf16.mxu0 0
      %4222 = vmatpush1.bf16.msra.mxu0 %v3305
      %4223 = vmatprep.subr.bf16.mxu0 0
      %4224 = vmatpush1.bf16.msra.mxu0 %v3306
      %4225 = vmatprep.subr.bf16.mxu0 0
      %4226 = vmatpush1.bf16.msra.mxu0 %v3307
      %4227 = vmatprep.subr.bf16.mxu0 0
      %4228 = vmatpush1.bf16.msra.mxu0 %v3308
      %4229 = vmatprep.subr.bf16.mxu0 0
      %4230 = vmatpush1.bf16.msra.mxu0 %v3309
      %4231 = vmatprep.subr.bf16.mxu0 0
      %4232 = vmatpush1.bf16.msra.mxu0 %v3310
      %4233 = vmatprep.subr.bf16.mxu0 0
      %4234 = vmatpush1.bf16.msra.mxu0 %v3311
      %4235 = vmatprep.subr.bf16.mxu0 0
      %4236 = vmatpush1.bf16.msra.mxu0 %v3312
      %4237 = vmatprep.subr.bf16.mxu0 0
      %4238 = vmatpush1.bf16.msra.mxu0 %v3313
      %4239 = vmatprep.subr.bf16.mxu0 0
      %4240 = vmatpush1.bf16.msra.mxu0 %v3314
      %4241 = vmatprep.subr.bf16.mxu0 0
      %4242 = vmatpush1.bf16.msra.mxu0 %v3315
      %4243 = vmatprep.subr.bf16.mxu0 0
      %4244 = vmatpush1.bf16.msra.mxu0 %v3316
      %4245 = vmatprep.subr.bf16.mxu0 0
      %4246 = vmatpush1.bf16.msra.mxu0 %v3317
      %4247 = vmatprep.subr.bf16.mxu0 0
      %4248 = vmatpush1.bf16.msra.mxu0 %v3318
      %4249 = vmatprep.subr.bf16.mxu0 0
      %4250 = vmatpush1.bf16.msra.mxu0 %v3319
      %4251 = vmatprep.subr.bf16.mxu0 0
      %4252 = vmatpush1.bf16.msra.mxu0 %v3320
      %4253 = vmatprep.mubr.bf16.mxu0 %v1906
      %4254 = vmatmul.mubr.bf16.gmra.mrb[0].mxu0 %v1905
      %v4255 = vpop.f32.mrb[0].mxu0
      %v4256 = vadd.f32 %v4095, %v4255
      %v4257 = vpop.f32.mrb[0].mxu0
      %v4258 = vpop.f32.mrb[0].mxu0
      %v4259 = vadd.f32 %v4098, %v4258
      %v4260 = vpop.f32.mrb[0].mxu0
      %4261 = vmatprep.mubr.bf16.mxu0 %v1927
      %4262 = vmatmul.mubr.bf16.gmra.mrb[0].mxu0 %v1926
      %v4263 = vpop.f32.mrb[0].mxu0
      %v4264 = vadd.f32 %v4103, %v4263
      %v4265 = vpop.f32.mrb[0].mxu0
      %v4266 = vpop.f32.mrb[0].mxu0
      %v4267 = vadd.f32 %v4106, %v4266
      %v4268 = vpop.f32.mrb[0].mxu0
      %4269 = vmatprep.mubr.bf16.mxu0 %v1948
      %4270 = vmatmul.mubr.bf16.gmra.mrb[0].mxu0 %v1947
      %v4271 = vpop.f32.mrb[0].mxu0
      %v4272 = vadd.f32 %v4111, %v4271
      %v4273 = vpop.f32.mrb[0].mxu0
      %v4274 = vpop.f32.mrb[0].mxu0
      %v4275 = vadd.f32 %v4114, %v4274
      %v4276 = vpop.f32.mrb[0].mxu0
      %4277 = vmatprep.mubr.bf16.mxu0 %v1969
      %4278 = vmatmul.mubr.bf16.gmra.mrb[0].mxu0 %v1968
      %v4279 = vpop.f32.mrb[0].mxu0
      %v4280 = vadd.f32 %v4119, %v4279
      %v4281 = vpop.f32.mrb[0].mxu0
      %v4282 = vpop.f32.mrb[0].mxu0
      %v4283 = vadd.f32 %v4122, %v4282
      %v4284 = vpop.f32.mrb[0].mxu0
      %4285 = vmatprep.mubr.bf16.mxu0 %v1990
      %4286 = vmatmul.mubr.bf16.gmra.mrb[0].mxu0 %v1989
      %v4287 = vpop.f32.mrb[0].mxu0
      %v4288 = vadd.f32 %v4127, %v4287
      %v4289 = vpop.f32.mrb[0].mxu0
      %v4290 = vpop.f32.mrb[0].mxu0
      %v4291 = vadd.f32 %v4130, %v4290
      %v4292 = vpop.f32.mrb[0].mxu0
      %4293 = vmatprep.mubr.bf16.mxu0 %v2011
      %4294 = vmatmul.mubr.bf16.gmra.mrb[0].mxu0 %v2010
      %v4295 = vpop.f32.mrb[0].mxu0
      %v4296 = vadd.f32 %v4135, %v4295
      %v4297 = vpop.f32.mrb[0].mxu0
      %v4298 = vpop.f32.mrb[0].mxu0
      %v4299 = vadd.f32 %v4138, %v4298
      %v4300 = vpop.f32.mrb[0].mxu0
      %4301 = vmatprep.mubr.bf16.mxu0 %v2032
      %4302 = vmatmul.mubr.bf16.gmra.mrb[0].mxu0 %v2031
      %v4303 = vpop.f32.mrb[0].mxu0
      %v4304 = vadd.f32 %v4143, %v4303
      %v4305 = vpop.f32.mrb[0].mxu0
      %v4306 = vpop.f32.mrb[0].mxu0
      %v4307 = vadd.f32 %v4146, %v4306
      %v4308 = vpop.f32.mrb[0].mxu0
      %4309 = vmatprep.mubr.bf16.mxu0 %v2053
      %4310 = vmatmul.mubr.bf16.gmra.mrb[0].mxu0 %v2052
      %v4311 = vpop.f32.mrb[0].mxu0
      %v4312 = vadd.f32 %v4151, %v4311
      %v4313 = vpop.f32.mrb[0].mxu0
      %v4314 = vpop.f32.mrb[0].mxu0
      %v4315 = vadd.f32 %v4154, %v4314
      %v4316 = vpop.f32.mrb[0].mxu0
      %4317 = vmatprep.mubr.bf16.mxu0 %v2074
      %4318 = vmatmul.mubr.bf16.gmra.mrb[0].mxu0 %v2073
      %v4319 = vpop.f32.mrb[0].mxu0
      %v4320 = vadd.f32 %v4159, %v4319
      %v4321 = vpop.f32.mrb[0].mxu0
      %v4322 = vpop.f32.mrb[0].mxu0
      %v4323 = vadd.f32 %v4162, %v4322
      %v4324 = vpop.f32.mrb[0].mxu0
      %4325 = vmatprep.mubr.bf16.mxu0 %v2095
      %4326 = vmatmul.mubr.bf16.gmra.mrb[0].mxu0 %v2094
      %v4327 = vpop.f32.mrb[0].mxu0
      %v4328 = vadd.f32 %v4167, %v4327
      %v4329 = vpop.f32.mrb[0].mxu0
      %v4330 = vpop.f32.mrb[0].mxu0
      %v4331 = vadd.f32 %v4170, %v4330
      %v4332 = vpop.f32.mrb[0].mxu0
      %4333 = vmatprep.mubr.bf16.mxu0 %v2116
      %4334 = vmatmul.mubr.bf16.gmra.mrb[0].mxu0 %v2115
      %v4335 = vpop.f32.mrb[0].mxu0
      %v4336 = vadd.f32 %v4175, %v4335
      %v4337 = vpop.f32.mrb[0].mxu0
      %v4338 = vpop.f32.mrb[0].mxu0
      %v4339 = vadd.f32 %v4178, %v4338
      %v4340 = vpop.f32.mrb[0].mxu0
      %4341 = vmatprep.mubr.bf16.mxu0 %v2137
      %4342 = vmatmul.mubr.bf16.gmra.mrb[0].mxu0 %v2136
      %v4343 = vpop.f32.mrb[0].mxu0
      %v4344 = vadd.f32 %v4183, %v4343
      %v4345 = vpop.f32.mrb[0].mxu0
      %v4346 = vpop.f32.mrb[0].mxu0
      %v4347 = vadd.f32 %v4186, %v4346
      %v4348 = vpop.f32.mrb[0].mxu0
      %4349 = vmatprep.mubr.bf16.mxu0 %v2158
      %4350 = vmatmul.mubr.bf16.gmra.mrb[0].mxu0 %v2157
      %v4351 = vpop.f32.mrb[0].mxu0
      %v4352 = vadd.f32 %v4191, %v4351
      %v4353 = vpop.f32.mrb[0].mxu0
      %v4354 = vpop.f32.mrb[0].mxu0
      %v4355 = vadd.f32 %v4194, %v4354
      %v4356 = vpop.f32.mrb[0].mxu0
      %4357 = vmatprep.mubr.bf16.mxu0 %v2179
      %4358 = vmatmul.mubr.bf16.gmra.mrb[0].mxu0 %v2178
      %v4359 = vpop.f32.mrb[0].mxu0
      %v4360 = vadd.f32 %v4199, %v4359
      %v4361 = vpop.f32.mrb[0].mxu0
      %v4362 = vpop.f32.mrb[0].mxu0
      %v4363 = vadd.f32 %v4202, %v4362
      %v4364 = vpop.f32.mrb[0].mxu0
      %4365 = vmatprep.mubr.bf16.mxu0 %v2200
      %4366 = vmatmul.mubr.bf16.gmra.mrb[0].mxu0 %v2199
      %v4367 = vpop.f32.mrb[0].mxu0
      %v4368 = vadd.f32 %v4207, %v4367
      %v4369 = vpop.f32.mrb[0].mxu0
      %v4370 = vpop.f32.mrb[0].mxu0
      %v4371 = vadd.f32 %v4210, %v4370
      %v4372 = vpop.f32.mrb[0].mxu0
      %4373 = vmatprep.mubr.bf16.mxu0 %v2221
      %4374 = vmatmul.mubr.bf16.gmra.mrb[0].mxu0 %v2220
      %v4375 = vpop.f32.mrb[0].mxu0
      %v4376 = vadd.f32 %v4215, %v4375
      %v4377 = vpop.f32.mrb[0].mxu0
      %v4378 = vpop.f32.mrb[0].mxu0
      %v4379 = vadd.f32 %v4218, %v4378
      %v4380 = vpop.f32.mrb[0].mxu0
      %4381 = vdwg.mxu0
      %4382 = vmatprep.subr.bf16.mxu0 0
      %4383 = vmatpush1.bf16.msra.mxu0 %v3321
      %4384 = vmatprep.subr.bf16.mxu0 0
      %4385 = vmatpush1.bf16.msra.mxu0 %v3322
      %4386 = vmatprep.subr.bf16.mxu0 0
      %4387 = vmatpush1.bf16.msra.mxu0 %v3323
      %4388 = vmatprep.subr.bf16.mxu0 0
      %4389 = vmatpush1.bf16.msra.mxu0 %v3324
      %4390 = vmatprep.subr.bf16.mxu0 0
      %4391 = vmatpush1.bf16.msra.mxu0 %v3325
      %4392 = vmatprep.subr.bf16.mxu0 0
      %4393 = vmatpush1.bf16.msra.mxu0 %v3326
      %4394 = vmatprep.subr.bf16.mxu0 0
      %4395 = vmatpush1.bf16.msra.mxu0 %v3327
      %4396 = vmatprep.subr.bf16.mxu0 0
      %4397 = vmatpush1.bf16.msra.mxu0 %v3328
      %4398 = vmatprep.subr.bf16.mxu0 0
      %4399 = vmatpush1.bf16.msra.mxu0 %v3329
      %4400 = vmatprep.subr.bf16.mxu0 0
      %4401 = vmatpush1.bf16.msra.mxu0 %v3330
      %4402 = vmatprep.subr.bf16.mxu0 0
      %4403 = vmatpush1.bf16.msra.mxu0 %v3331
      %4404 = vmatprep.subr.bf16.mxu0 0
      %4405 = vmatpush1.bf16.msra.mxu0 %v3332
      %4406 = vmatprep.subr.bf16.mxu0 0
      %4407 = vmatpush1.bf16.msra.mxu0 %v3333
      %4408 = vmatprep.subr.bf16.mxu0 0
      %4409 = vmatpush1.bf16.msra.mxu0 %v3334
      %4410 = vmatprep.subr.bf16.mxu0 0
      %4411 = vmatpush1.bf16.msra.mxu0 %v3335
      %4412 = vmatprep.subr.bf16.mxu0 0
      %4413 = vmatpush1.bf16.msra.mxu0 %v3336
      %4414 = vmatprep.mubr.bf16.mxu0 %v1908
      %4415 = vmatmul.mubr.bf16.gmra.mrb[0].mxu0 %v1907
      %v4416 = vpop.f32.mrb[0].mxu0
      %v4417 = vadd.f32 %v4256, %v4416
      %v4418 = vpop.f32.mrb[0].mxu0
      %v4419 = vpop.f32.mrb[0].mxu0
      %v4420 = vadd.f32 %v4259, %v4419
      %v4421 = vpop.f32.mrb[0].mxu0
      %4422 = vmatprep.mubr.bf16.mxu0 %v1929
      %4423 = vmatmul.mubr.bf16.gmra.mrb[0].mxu0 %v1928
      %v4424 = vpop.f32.mrb[0].mxu0
      %v4425 = vadd.f32 %v4264, %v4424
      %v4426 = vpop.f32.mrb[0].mxu0
      %v4427 = vpop.f32.mrb[0].mxu0
      %v4428 = vadd.f32 %v4267, %v4427
      %v4429 = vpop.f32.mrb[0].mxu0
      %4430 = vmatprep.mubr.bf16.mxu0 %v1950
      %4431 = vmatmul.mubr.bf16.gmra.mrb[0].mxu0 %v1949
      %v4432 = vpop.f32.mrb[0].mxu0
      %v4433 = vadd.f32 %v4272, %v4432
      %v4434 = vpop.f32.mrb[0].mxu0
      %v4435 = vpop.f32.mrb[0].mxu0
      %v4436 = vadd.f32 %v4275, %v4435
      %v4437 = vpop.f32.mrb[0].mxu0
      %4438 = vmatprep.mubr.bf16.mxu0 %v1971
      %4439 = vmatmul.mubr.bf16.gmra.mrb[0].mxu0 %v1970
      %v4440 = vpop.f32.mrb[0].mxu0
      %v4441 = vadd.f32 %v4280, %v4440
      %v4442 = vpop.f32.mrb[0].mxu0
      %v4443 = vpop.f32.mrb[0].mxu0
      %v4444 = vadd.f32 %v4283, %v4443
      %v4445 = vpop.f32.mrb[0].mxu0
      %4446 = vmatprep.mubr.bf16.mxu0 %v1992
      %4447 = vmatmul.mubr.bf16.gmra.mrb[0].mxu0 %v1991
      %v4448 = vpop.f32.mrb[0].mxu0
      %v4449 = vadd.f32 %v4288, %v4448
      %v4450 = vpop.f32.mrb[0].mxu0
      %v4451 = vpop.f32.mrb[0].mxu0
      %v4452 = vadd.f32 %v4291, %v4451
      %v4453 = vpop.f32.mrb[0].mxu0
      %4454 = vmatprep.mubr.bf16.mxu0 %v2013
      %4455 = vmatmul.mubr.bf16.gmra.mrb[0].mxu0 %v2012
      %v4456 = vpop.f32.mrb[0].mxu0
      %v4457 = vadd.f32 %v4296, %v4456
      %v4458 = vpop.f32.mrb[0].mxu0
      %v4459 = vpop.f32.mrb[0].mxu0
      %v4460 = vadd.f32 %v4299, %v4459
      %v4461 = vpop.f32.mrb[0].mxu0
      %4462 = vmatprep.mubr.bf16.mxu0 %v2034
      %4463 = vmatmul.mubr.bf16.gmra.mrb[0].mxu0 %v2033
      %v4464 = vpop.f32.mrb[0].mxu0
      %v4465 = vadd.f32 %v4304, %v4464
      %v4466 = vpop.f32.mrb[0].mxu0
      %v4467 = vpop.f32.mrb[0].mxu0
      %v4468 = vadd.f32 %v4307, %v4467
      %v4469 = vpop.f32.mrb[0].mxu0
      %4470 = vmatprep.mubr.bf16.mxu0 %v2055
      %4471 = vmatmul.mubr.bf16.gmra.mrb[0].mxu0 %v2054
      %v4472 = vpop.f32.mrb[0].mxu0
      %v4473 = vadd.f32 %v4312, %v4472
      %v4474 = vpop.f32.mrb[0].mxu0
      %v4475 = vpop.f32.mrb[0].mxu0
      %v4476 = vadd.f32 %v4315, %v4475
      %v4477 = vpop.f32.mrb[0].mxu0
      %4478 = vmatprep.mubr.bf16.mxu0 %v2076
      %4479 = vmatmul.mubr.bf16.gmra.mrb[0].mxu0 %v2075
      %v4480 = vpop.f32.mrb[0].mxu0
      %v4481 = vadd.f32 %v4320, %v4480
      %v4482 = vpop.f32.mrb[0].mxu0
      %v4483 = vpop.f32.mrb[0].mxu0
      %v4484 = vadd.f32 %v4323, %v4483
      %v4485 = vpop.f32.mrb[0].mxu0
      %4486 = vmatprep.mubr.bf16.mxu0 %v2097
      %4487 = vmatmul.mubr.bf16.gmra.mrb[0].mxu0 %v2096
      %v4488 = vpop.f32.mrb[0].mxu0
      %v4489 = vadd.f32 %v4328, %v4488
      %v4490 = vpop.f32.mrb[0].mxu0
      %v4491 = vpop.f32.mrb[0].mxu0
      %v4492 = vadd.f32 %v4331, %v4491
      %v4493 = vpop.f32.mrb[0].mxu0
      %4494 = vmatprep.mubr.bf16.mxu0 %v2118
      %4495 = vmatmul.mubr.bf16.gmra.mrb[0].mxu0 %v2117
      %v4496 = vpop.f32.mrb[0].mxu0
      %v4497 = vadd.f32 %v4336, %v4496
      %v4498 = vpop.f32.mrb[0].mxu0
      %v4499 = vpop.f32.mrb[0].mxu0
      %v4500 = vadd.f32 %v4339, %v4499
      %v4501 = vpop.f32.mrb[0].mxu0
      %4502 = vmatprep.mubr.bf16.mxu0 %v2139
      %4503 = vmatmul.mubr.bf16.gmra.mrb[0].mxu0 %v2138
      %v4504 = vpop.f32.mrb[0].mxu0
      %v4505 = vadd.f32 %v4344, %v4504
      %v4506 = vpop.f32.mrb[0].mxu0
      %v4507 = vpop.f32.mrb[0].mxu0
      %v4508 = vadd.f32 %v4347, %v4507
      %v4509 = vpop.f32.mrb[0].mxu0
      %4510 = vmatprep.mubr.bf16.mxu0 %v2160
      %4511 = vmatmul.mubr.bf16.gmra.mrb[0].mxu0 %v2159
      %v4512 = vpop.f32.mrb[0].mxu0
      %v4513 = vadd.f32 %v4352, %v4512
      %v4514 = vpop.f32.mrb[0].mxu0
      %v4515 = vpop.f32.mrb[0].mxu0
      %v4516 = vadd.f32 %v4355, %v4515
      %v4517 = vpop.f32.mrb[0].mxu0
      %4518 = vmatprep.mubr.bf16.mxu0 %v2181
      %4519 = vmatmul.mubr.bf16.gmra.mrb[0].mxu0 %v2180
      %v4520 = vpop.f32.mrb[0].mxu0
      %v4521 = vadd.f32 %v4360, %v4520
      %v4522 = vpop.f32.mrb[0].mxu0
      %v4523 = vpop.f32.mrb[0].mxu0
      %v4524 = vadd.f32 %v4363, %v4523
      %v4525 = vpop.f32.mrb[0].mxu0
      %4526 = vmatprep.mubr.bf16.mxu0 %v2202
      %4527 = vmatmul.mubr.bf16.gmra.mrb[0].mxu0 %v2201
      %v4528 = vpop.f32.mrb[0].mxu0
      %v4529 = vadd.f32 %v4368, %v4528
      %v4530 = vpop.f32.mrb[0].mxu0
      %v4531 = vpop.f32.mrb[0].mxu0
      %v4532 = vadd.f32 %v4371, %v4531
      %v4533 = vpop.f32.mrb[0].mxu0
      %4534 = vmatprep.mubr.bf16.mxu0 %v2223
      %4535 = vmatmul.mubr.bf16.gmra.mrb[0].mxu0 %v2222
      %v4536 = vpop.f32.mrb[0].mxu0
      %v4537 = vadd.f32 %v4376, %v4536
      %v4538 = vpop.f32.mrb[0].mxu0
      %v4539 = vpop.f32.mrb[0].mxu0
      %v4540 = vadd.f32 %v4379, %v4539
      %v4541 = vpop.f32.mrb[0].mxu0
      %4542 = vdwg.mxu0
      %4543 = vmatprep.subr.bf16.mxu0 0
      %4544 = vmatpush1.bf16.msra.mxu0 %v3337
      %4545 = vmatprep.subr.bf16.mxu0 0
      %4546 = vmatpush1.bf16.msra.mxu0 %v3338
      %4547 = vmatprep.subr.bf16.mxu0 0
      %4548 = vmatpush1.bf16.msra.mxu0 %v3339
      %4549 = vmatprep.subr.bf16.mxu0 0
      %4550 = vmatpush1.bf16.msra.mxu0 %v3340
      %4551 = vmatprep.subr.bf16.mxu0 0
      %4552 = vmatpush1.bf16.msra.mxu0 %v3341
      %4553 = vmatprep.subr.bf16.mxu0 0
      %4554 = vmatpush1.bf16.msra.mxu0 %v3342
      %4555 = vmatprep.subr.bf16.mxu0 0
      %4556 = vmatpush1.bf16.msra.mxu0 %v3343
      %4557 = vmatprep.subr.bf16.mxu0 0
      %4558 = vmatpush1.bf16.msra.mxu0 %v3344
      %4559 = vmatprep.subr.bf16.mxu0 0
      %4560 = vmatpush1.bf16.msra.mxu0 %v3345
      %4561 = vmatprep.subr.bf16.mxu0 0
      %4562 = vmatpush1.bf16.msra.mxu0 %v3346
      %4563 = vmatprep.subr.bf16.mxu0 0
      %4564 = vmatpush1.bf16.msra.mxu0 %v3347
      %4565 = vmatprep.subr.bf16.mxu0 0
      %4566 = vmatpush1.bf16.msra.mxu0 %v3348
      %4567 = vmatprep.subr.bf16.mxu0 0
      %4568 = vmatpush1.bf16.msra.mxu0 %v3349
      %4569 = vmatprep.subr.bf16.mxu0 0
      %4570 = vmatpush1.bf16.msra.mxu0 %v3350
      %4571 = vmatprep.subr.bf16.mxu0 0
      %4572 = vmatpush1.bf16.msra.mxu0 %v3351
      %4573 = vmatprep.subr.bf16.mxu0 0
      %4574 = vmatpush1.bf16.msra.mxu0 %v3352
      %4575 = vmatprep.mubr.bf16.mxu0 %v1910
      %4576 = vmatmul.mubr.bf16.gmra.mrb[0].mxu0 %v1909
      %v4577 = vpop.f32.mrb[0].mxu0
      %v4578 = vadd.f32 %v4417, %v4577
      %v4579 = vpop.f32.mrb[0].mxu0
      %v4580 = vpop.f32.mrb[0].mxu0
      %v4581 = vadd.f32 %v4420, %v4580
      %v4582 = vpop.f32.mrb[0].mxu0
      %4583 = vmatprep.mubr.bf16.mxu0 %v1931
      %4584 = vmatmul.mubr.bf16.gmra.mrb[0].mxu0 %v1930
      %v4585 = vpop.f32.mrb[0].mxu0
      %v4586 = vadd.f32 %v4425, %v4585
      %v4587 = vpop.f32.mrb[0].mxu0
      %v4588 = vpop.f32.mrb[0].mxu0
      %v4589 = vadd.f32 %v4428, %v4588
      %v4590 = vpop.f32.mrb[0].mxu0
      %4591 = vmatprep.mubr.bf16.mxu0 %v1952
      %4592 = vmatmul.mubr.bf16.gmra.mrb[0].mxu0 %v1951
      %v4593 = vpop.f32.mrb[0].mxu0
      %v4594 = vadd.f32 %v4433, %v4593
      %v4595 = vpop.f32.mrb[0].mxu0
      %v4596 = vpop.f32.mrb[0].mxu0
      %v4597 = vadd.f32 %v4436, %v4596
      %v4598 = vpop.f32.mrb[0].mxu0
      %4599 = vmatprep.mubr.bf16.mxu0 %v1973
      %4600 = vmatmul.mubr.bf16.gmra.mrb[0].mxu0 %v1972
      %v4601 = vpop.f32.mrb[0].mxu0
      %v4602 = vadd.f32 %v4441, %v4601
      %v4603 = vpop.f32.mrb[0].mxu0
      %v4604 = vpop.f32.mrb[0].mxu0
      %v4605 = vadd.f32 %v4444, %v4604
      %v4606 = vpop.f32.mrb[0].mxu0
      %4607 = vmatprep.mubr.bf16.mxu0 %v1994
      %4608 = vmatmul.mubr.bf16.gmra.mrb[0].mxu0 %v1993
      %v4609 = vpop.f32.mrb[0].mxu0
      %v4610 = vadd.f32 %v4449, %v4609
      %v4611 = vpop.f32.mrb[0].mxu0
      %v4612 = vpop.f32.mrb[0].mxu0
      %v4613 = vadd.f32 %v4452, %v4612
      %v4614 = vpop.f32.mrb[0].mxu0
      %4615 = vmatprep.mubr.bf16.mxu0 %v2015
      %4616 = vmatmul.mubr.bf16.gmra.mrb[0].mxu0 %v2014
      %v4617 = vpop.f32.mrb[0].mxu0
      %v4618 = vadd.f32 %v4457, %v4617
      %v4619 = vpop.f32.mrb[0].mxu0
      %v4620 = vpop.f32.mrb[0].mxu0
      %v4621 = vadd.f32 %v4460, %v4620
      %v4622 = vpop.f32.mrb[0].mxu0
      %4623 = vmatprep.mubr.bf16.mxu0 %v2036
      %4624 = vmatmul.mubr.bf16.gmra.mrb[0].mxu0 %v2035
      %v4625 = vpop.f32.mrb[0].mxu0
      %v4626 = vadd.f32 %v4465, %v4625
      %v4627 = vpop.f32.mrb[0].mxu0
      %v4628 = vpop.f32.mrb[0].mxu0
      %v4629 = vadd.f32 %v4468, %v4628
      %v4630 = vpop.f32.mrb[0].mxu0
      %4631 = vmatprep.mubr.bf16.mxu0 %v2057
      %4632 = vmatmul.mubr.bf16.gmra.mrb[0].mxu0 %v2056
      %v4633 = vpop.f32.mrb[0].mxu0
      %v4634 = vadd.f32 %v4473, %v4633
      %v4635 = vpop.f32.mrb[0].mxu0
      %v4636 = vpop.f32.mrb[0].mxu0
      %v4637 = vadd.f32 %v4476, %v4636
      %v4638 = vpop.f32.mrb[0].mxu0
      %4639 = vmatprep.mubr.bf16.mxu0 %v2078
      %4640 = vmatmul.mubr.bf16.gmra.mrb[0].mxu0 %v2077
      %v4641 = vpop.f32.mrb[0].mxu0
      %v4642 = vadd.f32 %v4481, %v4641
      %v4643 = vpop.f32.mrb[0].mxu0
      %v4644 = vpop.f32.mrb[0].mxu0
      %v4645 = vadd.f32 %v4484, %v4644
      %v4646 = vpop.f32.mrb[0].mxu0
      %4647 = vmatprep.mubr.bf16.mxu0 %v2099
      %4648 = vmatmul.mubr.bf16.gmra.mrb[0].mxu0 %v2098
      %v4649 = vpop.f32.mrb[0].mxu0
      %v4650 = vadd.f32 %v4489, %v4649
      %v4651 = vpop.f32.mrb[0].mxu0
      %v4652 = vpop.f32.mrb[0].mxu0
      %v4653 = vadd.f32 %v4492, %v4652
      %v4654 = vpop.f32.mrb[0].mxu0
      %4655 = vmatprep.mubr.bf16.mxu0 %v2120
      %4656 = vmatmul.mubr.bf16.gmra.mrb[0].mxu0 %v2119
      %v4657 = vpop.f32.mrb[0].mxu0
      %v4658 = vadd.f32 %v4497, %v4657
      %v4659 = vpop.f32.mrb[0].mxu0
      %v4660 = vpop.f32.mrb[0].mxu0
      %v4661 = vadd.f32 %v4500, %v4660
      %v4662 = vpop.f32.mrb[0].mxu0
      %4663 = vmatprep.mubr.bf16.mxu0 %v2141
      %4664 = vmatmul.mubr.bf16.gmra.mrb[0].mxu0 %v2140
      %v4665 = vpop.f32.mrb[0].mxu0
      %v4666 = vadd.f32 %v4505, %v4665
      %v4667 = vpop.f32.mrb[0].mxu0
      %v4668 = vpop.f32.mrb[0].mxu0
      %v4669 = vadd.f32 %v4508, %v4668
      %v4670 = vpop.f32.mrb[0].mxu0
      %4671 = vmatprep.mubr.bf16.mxu0 %v2162
      %4672 = vmatmul.mubr.bf16.gmra.mrb[0].mxu0 %v2161
      %v4673 = vpop.f32.mrb[0].mxu0
      %v4674 = vadd.f32 %v4513, %v4673
      %v4675 = vpop.f32.mrb[0].mxu0
      %v4676 = vpop.f32.mrb[0].mxu0
      %v4677 = vadd.f32 %v4516, %v4676
      %v4678 = vpop.f32.mrb[0].mxu0
      %4679 = vmatprep.mubr.bf16.mxu0 %v2183
      %4680 = vmatmul.mubr.bf16.gmra.mrb[0].mxu0 %v2182
      %v4681 = vpop.f32.mrb[0].mxu0
      %v4682 = vadd.f32 %v4521, %v4681
      %v4683 = vpop.f32.mrb[0].mxu0
      %v4684 = vpop.f32.mrb[0].mxu0
      %v4685 = vadd.f32 %v4524, %v4684
      %v4686 = vpop.f32.mrb[0].mxu0
      %4687 = vmatprep.mubr.bf16.mxu0 %v2204
      %4688 = vmatmul.mubr.bf16.gmra.mrb[0].mxu0 %v2203
      %v4689 = vpop.f32.mrb[0].mxu0
      %v4690 = vadd.f32 %v4529, %v4689
      %v4691 = vpop.f32.mrb[0].mxu0
      %v4692 = vpop.f32.mrb[0].mxu0
      %v4693 = vadd.f32 %v4532, %v4692
      %v4694 = vpop.f32.mrb[0].mxu0
      %4695 = vmatprep.mubr.bf16.mxu0 %v2225
      %4696 = vmatmul.mubr.bf16.gmra.mrb[0].mxu0 %v2224
      %v4697 = vpop.f32.mrb[0].mxu0
      %v4698 = vadd.f32 %v4537, %v4697
      %v4699 = vpop.f32.mrb[0].mxu0
      %v4700 = vpop.f32.mrb[0].mxu0
      %v4701 = vadd.f32 %v4540, %v4700
      %v4702 = vpop.f32.mrb[0].mxu0
      %4703 = vdwg.mxu0
      %4704 = vmatprep.subr.bf16.mxu0 0
      %4705 = vmatpush1.bf16.msra.mxu0 %v3353
      %4706 = vmatprep.subr.bf16.mxu0 0
      %4707 = vmatpush1.bf16.msra.mxu0 %v3354
      %4708 = vmatprep.subr.bf16.mxu0 0
      %4709 = vmatpush1.bf16.msra.mxu0 %v3355
      %4710 = vmatprep.subr.bf16.mxu0 0
      %4711 = vmatpush1.bf16.msra.mxu0 %v3356
      %4712 = vmatprep.subr.bf16.mxu0 0
      %4713 = vmatpush1.bf16.msra.mxu0 %v3357
      %4714 = vmatprep.subr.bf16.mxu0 0
      %4715 = vmatpush1.bf16.msra.mxu0 %v3358
      %4716 = vmatprep.subr.bf16.mxu0 0
      %4717 = vmatpush1.bf16.msra.mxu0 %v3359
      %4718 = vmatprep.subr.bf16.mxu0 0
      %4719 = vmatpush1.bf16.msra.mxu0 %v3360
      %4720 = vmatprep.subr.bf16.mxu0 0
      %4721 = vmatpush1.bf16.msra.mxu0 %v3361
      %4722 = vmatprep.subr.bf16.mxu0 0
      %4723 = vmatpush1.bf16.msra.mxu0 %v3362
      %4724 = vmatprep.subr.bf16.mxu0 0
      %4725 = vmatpush1.bf16.msra.mxu0 %v3363
      %4726 = vmatprep.subr.bf16.mxu0 0
      %4727 = vmatpush1.bf16.msra.mxu0 %v3364
      %4728 = vmatprep.subr.bf16.mxu0 0
      %4729 = vmatpush1.bf16.msra.mxu0 %v3365
      %4730 = vmatprep.subr.bf16.mxu0 0
      %4731 = vmatpush1.bf16.msra.mxu0 %v3366
      %4732 = vmatprep.subr.bf16.mxu0 0
      %4733 = vmatpush1.bf16.msra.mxu0 %v3367
      %4734 = vmatprep.subr.bf16.mxu0 0
      %4735 = vmatpush1.bf16.msra.mxu0 %v3368
      %4736 = vmatprep.mubr.bf16.mxu0 %v1912
      %4737 = vmatmul.mubr.bf16.gmra.mrb[0].mxu0 %v1911
      %v4738 = vpop.f32.mrb[0].mxu0
      %v4739 = vadd.f32 %v4578, %v4738
      %v4740 = vpop.f32.mrb[0].mxu0
      %v4741 = vpop.f32.mrb[0].mxu0
      %v4742 = vadd.f32 %v4581, %v4741
      %v4743 = vpop.f32.mrb[0].mxu0
      %4744 = vmatprep.mubr.bf16.mxu0 %v1933
      %4745 = vmatmul.mubr.bf16.gmra.mrb[0].mxu0 %v1932
      %v4746 = vpop.f32.mrb[0].mxu0
      %v4747 = vadd.f32 %v4586, %v4746
      %v4748 = vpop.f32.mrb[0].mxu0
      %v4749 = vpop.f32.mrb[0].mxu0
      %v4750 = vadd.f32 %v4589, %v4749
      %v4751 = vpop.f32.mrb[0].mxu0
      %4752 = vmatprep.mubr.bf16.mxu0 %v1954
      %4753 = vmatmul.mubr.bf16.gmra.mrb[0].mxu0 %v1953
      %v4754 = vpop.f32.mrb[0].mxu0
      %v4755 = vadd.f32 %v4594, %v4754
      %v4756 = vpop.f32.mrb[0].mxu0
      %v4757 = vpop.f32.mrb[0].mxu0
      %v4758 = vadd.f32 %v4597, %v4757
      %v4759 = vpop.f32.mrb[0].mxu0
      %4760 = vmatprep.mubr.bf16.mxu0 %v1975
      %4761 = vmatmul.mubr.bf16.gmra.mrb[0].mxu0 %v1974
      %v4762 = vpop.f32.mrb[0].mxu0
      %v4763 = vadd.f32 %v4602, %v4762
      %v4764 = vpop.f32.mrb[0].mxu0
      %v4765 = vpop.f32.mrb[0].mxu0
      %v4766 = vadd.f32 %v4605, %v4765
      %v4767 = vpop.f32.mrb[0].mxu0
      %4768 = vmatprep.mubr.bf16.mxu0 %v1996
      %4769 = vmatmul.mubr.bf16.gmra.mrb[0].mxu0 %v1995
      %v4770 = vpop.f32.mrb[0].mxu0
      %v4771 = vadd.f32 %v4610, %v4770
      %v4772 = vpop.f32.mrb[0].mxu0
      %v4773 = vpop.f32.mrb[0].mxu0
      %v4774 = vadd.f32 %v4613, %v4773
      %v4775 = vpop.f32.mrb[0].mxu0
      %4776 = vmatprep.mubr.bf16.mxu0 %v2017
      %4777 = vmatmul.mubr.bf16.gmra.mrb[0].mxu0 %v2016
      %v4778 = vpop.f32.mrb[0].mxu0
      %v4779 = vadd.f32 %v4618, %v4778
      %v4780 = vpop.f32.mrb[0].mxu0
      %v4781 = vpop.f32.mrb[0].mxu0
      %v4782 = vadd.f32 %v4621, %v4781
      %v4783 = vpop.f32.mrb[0].mxu0
      %4784 = vmatprep.mubr.bf16.mxu0 %v2038
      %4785 = vmatmul.mubr.bf16.gmra.mrb[0].mxu0 %v2037
      %v4786 = vpop.f32.mrb[0].mxu0
      %v4787 = vadd.f32 %v4626, %v4786
      %v4788 = vpop.f32.mrb[0].mxu0
      %v4789 = vpop.f32.mrb[0].mxu0
      %v4790 = vadd.f32 %v4629, %v4789
      %v4791 = vpop.f32.mrb[0].mxu0
      %4792 = vmatprep.mubr.bf16.mxu0 %v2059
      %4793 = vmatmul.mubr.bf16.gmra.mrb[0].mxu0 %v2058
      %v4794 = vpop.f32.mrb[0].mxu0
      %v4795 = vadd.f32 %v4634, %v4794
      %v4796 = vpop.f32.mrb[0].mxu0
      %v4797 = vpop.f32.mrb[0].mxu0
      %v4798 = vadd.f32 %v4637, %v4797
      %v4799 = vpop.f32.mrb[0].mxu0
      %4800 = vmatprep.mubr.bf16.mxu0 %v2080
      %4801 = vmatmul.mubr.bf16.gmra.mrb[0].mxu0 %v2079
      %v4802 = vpop.f32.mrb[0].mxu0
      %v4803 = vadd.f32 %v4642, %v4802
      %v4804 = vpop.f32.mrb[0].mxu0
      %v4805 = vpop.f32.mrb[0].mxu0
      %v4806 = vadd.f32 %v4645, %v4805
      %v4807 = vpop.f32.mrb[0].mxu0
      %4808 = vmatprep.mubr.bf16.mxu0 %v2101
      %4809 = vmatmul.mubr.bf16.gmra.mrb[0].mxu0 %v2100
      %v4810 = vpop.f32.mrb[0].mxu0
      %v4811 = vadd.f32 %v4650, %v4810
      %v4812 = vpop.f32.mrb[0].mxu0
      %v4813 = vpop.f32.mrb[0].mxu0
      %v4814 = vadd.f32 %v4653, %v4813
      %v4815 = vpop.f32.mrb[0].mxu0
      %4816 = vmatprep.mubr.bf16.mxu0 %v2122
      %4817 = vmatmul.mubr.bf16.gmra.mrb[0].mxu0 %v2121
      %v4818 = vpop.f32.mrb[0].mxu0
      %v4819 = vadd.f32 %v4658, %v4818
      %v4820 = vpop.f32.mrb[0].mxu0
      %v4821 = vpop.f32.mrb[0].mxu0
      %v4822 = vadd.f32 %v4661, %v4821
      %v4823 = vpop.f32.mrb[0].mxu0
      %4824 = vmatprep.mubr.bf16.mxu0 %v2143
      %4825 = vmatmul.mubr.bf16.gmra.mrb[0].mxu0 %v2142
      %v4826 = vpop.f32.mrb[0].mxu0
      %v4827 = vadd.f32 %v4666, %v4826
      %v4828 = vpop.f32.mrb[0].mxu0
      %v4829 = vpop.f32.mrb[0].mxu0
      %v4830 = vadd.f32 %v4669, %v4829
      %v4831 = vpop.f32.mrb[0].mxu0
      %4832 = vmatprep.mubr.bf16.mxu0 %v2164
      %4833 = vmatmul.mubr.bf16.gmra.mrb[0].mxu0 %v2163
      %v4834 = vpop.f32.mrb[0].mxu0
      %v4835 = vadd.f32 %v4674, %v4834
      %v4836 = vpop.f32.mrb[0].mxu0
      %v4837 = vpop.f32.mrb[0].mxu0
      %v4838 = vadd.f32 %v4677, %v4837
      %v4839 = vpop.f32.mrb[0].mxu0
      %4840 = vmatprep.mubr.bf16.mxu0 %v2185
      %4841 = vmatmul.mubr.bf16.gmra.mrb[0].mxu0 %v2184
      %v4842 = vpop.f32.mrb[0].mxu0
      %v4843 = vadd.f32 %v4682, %v4842
      %v4844 = vpop.f32.mrb[0].mxu0
      %v4845 = vpop.f32.mrb[0].mxu0
      %v4846 = vadd.f32 %v4685, %v4845
      %v4847 = vpop.f32.mrb[0].mxu0
      %4848 = vmatprep.mubr.bf16.mxu0 %v2206
      %4849 = vmatmul.mubr.bf16.gmra.mrb[0].mxu0 %v2205
      %v4850 = vpop.f32.mrb[0].mxu0
      %v4851 = vadd.f32 %v4690, %v4850
      %v4852 = vpop.f32.mrb[0].mxu0
      %v4853 = vpop.f32.mrb[0].mxu0
      %v4854 = vadd.f32 %v4693, %v4853
      %v4855 = vpop.f32.mrb[0].mxu0
      %4856 = vmatprep.mubr.bf16.mxu0 %v2227
      %4857 = vmatmul.mubr.bf16.gmra.mrb[0].mxu0 %v2226
      %v4858 = vpop.f32.mrb[0].mxu0
      %v4859 = vadd.f32 %v4698, %v4858
      %v4860 = vpop.f32.mrb[0].mxu0
      %v4861 = vpop.f32.mrb[0].mxu0
      %v4862 = vadd.f32 %v4701, %v4861
      %v4863 = vpop.f32.mrb[0].mxu0
      %4864 = vdwg.mxu0
      %4865 = vmatprep.subr.bf16.mxu0 0
      %4866 = vmatpush1.bf16.msra.mxu0 %v3369
      %4867 = vmatprep.subr.bf16.mxu0 0
      %4868 = vmatpush1.bf16.msra.mxu0 %v3370
      %4869 = vmatprep.subr.bf16.mxu0 0
      %4870 = vmatpush1.bf16.msra.mxu0 %v3371
      %4871 = vmatprep.subr.bf16.mxu0 0
      %4872 = vmatpush1.bf16.msra.mxu0 %v3372
      %4873 = vmatprep.subr.bf16.mxu0 0
      %4874 = vmatpush1.bf16.msra.mxu0 %v3373
      %4875 = vmatprep.subr.bf16.mxu0 0
      %4876 = vmatpush1.bf16.msra.mxu0 %v3374
      %4877 = vmatprep.subr.bf16.mxu0 0
      %4878 = vmatpush1.bf16.msra.mxu0 %v3375
      %4879 = vmatprep.subr.bf16.mxu0 0
      %4880 = vmatpush1.bf16.msra.mxu0 %v3376
      %4881 = vmatprep.subr.bf16.mxu0 0
      %4882 = vmatpush1.bf16.msra.mxu0 %v3377
      %4883 = vmatprep.subr.bf16.mxu0 0
      %4884 = vmatpush1.bf16.msra.mxu0 %v3378
      %4885 = vmatprep.subr.bf16.mxu0 0
      %4886 = vmatpush1.bf16.msra.mxu0 %v3379
      %4887 = vmatprep.subr.bf16.mxu0 0
      %4888 = vmatpush1.bf16.msra.mxu0 %v3380
      %4889 = vmatprep.subr.bf16.mxu0 0
      %4890 = vmatpush1.bf16.msra.mxu0 %v3381
      %4891 = vmatprep.subr.bf16.mxu0 0
      %4892 = vmatpush1.bf16.msra.mxu0 %v3382
      %4893 = vmatprep.subr.bf16.mxu0 0
      %4894 = vmatpush1.bf16.msra.mxu0 %v3383
      %4895 = vmatprep.subr.bf16.mxu0 0
      %4896 = vmatpush1.bf16.msra.mxu0 %v3384
      %4897 = vmatprep.mubr.bf16.mxu0 %v1914
      %4898 = vmatmul.mubr.bf16.gmra.mrb[0].mxu0 %v1913
      %v4899 = vpop.f32.mrb[0].mxu0
      %v4900 = vadd.f32 %v4739, %v4899
      %v4901 = vpop.f32.mrb[0].mxu0
      %v4902 = vpop.f32.mrb[0].mxu0
      %v4903 = vadd.f32 %v4742, %v4902
      %v4904 = vpop.f32.mrb[0].mxu0
      %4905 = vmatprep.mubr.bf16.mxu0 %v1935
      %4906 = vmatmul.mubr.bf16.gmra.mrb[0].mxu0 %v1934
      %v4907 = vpop.f32.mrb[0].mxu0
      %v4908 = vadd.f32 %v4747, %v4907
      %v4909 = vpop.f32.mrb[0].mxu0
      %v4910 = vpop.f32.mrb[0].mxu0
      %v4911 = vadd.f32 %v4750, %v4910
      %v4912 = vpop.f32.mrb[0].mxu0
      %4913 = vmatprep.mubr.bf16.mxu0 %v1956
      %4914 = vmatmul.mubr.bf16.gmra.mrb[0].mxu0 %v1955
      %v4915 = vpop.f32.mrb[0].mxu0
      %v4916 = vadd.f32 %v4755, %v4915
      %v4917 = vpop.f32.mrb[0].mxu0
      %v4918 = vpop.f32.mrb[0].mxu0
      %v4919 = vadd.f32 %v4758, %v4918
      %v4920 = vpop.f32.mrb[0].mxu0
      %4921 = vmatprep.mubr.bf16.mxu0 %v1977
      %4922 = vmatmul.mubr.bf16.gmra.mrb[0].mxu0 %v1976
      %v4923 = vpop.f32.mrb[0].mxu0
      %v4924 = vadd.f32 %v4763, %v4923
      %v4925 = vpop.f32.mrb[0].mxu0
      %v4926 = vpop.f32.mrb[0].mxu0
      %v4927 = vadd.f32 %v4766, %v4926
      %v4928 = vpop.f32.mrb[0].mxu0
      %4929 = vmatprep.mubr.bf16.mxu0 %v1998
      %4930 = vmatmul.mubr.bf16.gmra.mrb[0].mxu0 %v1997
      %v4931 = vpop.f32.mrb[0].mxu0
      %v4932 = vadd.f32 %v4771, %v4931
      %v4933 = vpop.f32.mrb[0].mxu0
      %v4934 = vpop.f32.mrb[0].mxu0
      %v4935 = vadd.f32 %v4774, %v4934
      %v4936 = vpop.f32.mrb[0].mxu0
      %4937 = vmatprep.mubr.bf16.mxu0 %v2019
      %4938 = vmatmul.mubr.bf16.gmra.mrb[0].mxu0 %v2018
      %v4939 = vpop.f32.mrb[0].mxu0
      %v4940 = vadd.f32 %v4779, %v4939
      %v4941 = vpop.f32.mrb[0].mxu0
      %v4942 = vpop.f32.mrb[0].mxu0
      %v4943 = vadd.f32 %v4782, %v4942
      %v4944 = vpop.f32.mrb[0].mxu0
      %4945 = vmatprep.mubr.bf16.mxu0 %v2040
      %4946 = vmatmul.mubr.bf16.gmra.mrb[0].mxu0 %v2039
      %v4947 = vpop.f32.mrb[0].mxu0
      %v4948 = vadd.f32 %v4787, %v4947
      %v4949 = vpop.f32.mrb[0].mxu0
      %v4950 = vpop.f32.mrb[0].mxu0
      %v4951 = vadd.f32 %v4790, %v4950
      %v4952 = vpop.f32.mrb[0].mxu0
      %4953 = vmatprep.mubr.bf16.mxu0 %v2061
      %4954 = vmatmul.mubr.bf16.gmra.mrb[0].mxu0 %v2060
      %v4955 = vpop.f32.mrb[0].mxu0
      %v4956 = vadd.f32 %v4795, %v4955
      %v4957 = vpop.f32.mrb[0].mxu0
      %v4958 = vpop.f32.mrb[0].mxu0
      %v4959 = vadd.f32 %v4798, %v4958
      %v4960 = vpop.f32.mrb[0].mxu0
      %4961 = vmatprep.mubr.bf16.mxu0 %v2082
      %4962 = vmatmul.mubr.bf16.gmra.mrb[0].mxu0 %v2081
      %v4963 = vpop.f32.mrb[0].mxu0
      %v4964 = vadd.f32 %v4803, %v4963
      %v4965 = vpop.f32.mrb[0].mxu0
      %v4966 = vpop.f32.mrb[0].mxu0
      %v4967 = vadd.f32 %v4806, %v4966
      %v4968 = vpop.f32.mrb[0].mxu0
      %4969 = vmatprep.mubr.bf16.mxu0 %v2103
      %4970 = vmatmul.mubr.bf16.gmra.mrb[0].mxu0 %v2102
      %v4971 = vpop.f32.mrb[0].mxu0
      %v4972 = vadd.f32 %v4811, %v4971
      %v4973 = vpop.f32.mrb[0].mxu0
      %v4974 = vpop.f32.mrb[0].mxu0
      %v4975 = vadd.f32 %v4814, %v4974
      %v4976 = vpop.f32.mrb[0].mxu0
      %4977 = vmatprep.mubr.bf16.mxu0 %v2124
      %4978 = vmatmul.mubr.bf16.gmra.mrb[0].mxu0 %v2123
      %v4979 = vpop.f32.mrb[0].mxu0
      %v4980 = vadd.f32 %v4819, %v4979
      %v4981 = vpop.f32.mrb[0].mxu0
      %v4982 = vpop.f32.mrb[0].mxu0
      %v4983 = vadd.f32 %v4822, %v4982
      %v4984 = vpop.f32.mrb[0].mxu0
      %4985 = vmatprep.mubr.bf16.mxu0 %v2145
      %4986 = vmatmul.mubr.bf16.gmra.mrb[0].mxu0 %v2144
      %v4987 = vpop.f32.mrb[0].mxu0
      %v4988 = vadd.f32 %v4827, %v4987
      %v4989 = vpop.f32.mrb[0].mxu0
      %v4990 = vpop.f32.mrb[0].mxu0
      %v4991 = vadd.f32 %v4830, %v4990
      %v4992 = vpop.f32.mrb[0].mxu0
      %4993 = vmatprep.mubr.bf16.mxu0 %v2166
      %4994 = vmatmul.mubr.bf16.gmra.mrb[0].mxu0 %v2165
      %v4995 = vpop.f32.mrb[0].mxu0
      %v4996 = vadd.f32 %v4835, %v4995
      %v4997 = vpop.f32.mrb[0].mxu0
      %v4998 = vpop.f32.mrb[0].mxu0
      %v4999 = vadd.f32 %v4838, %v4998
      %v5000 = vpop.f32.mrb[0].mxu0
      %5001 = vmatprep.mubr.bf16.mxu0 %v2187
      %5002 = vmatmul.mubr.bf16.gmra.mrb[0].mxu0 %v2186
      %v5003 = vpop.f32.mrb[0].mxu0
      %v5004 = vadd.f32 %v4843, %v5003
      %v5005 = vpop.f32.mrb[0].mxu0
      %v5006 = vpop.f32.mrb[0].mxu0
      %v5007 = vadd.f32 %v4846, %v5006
      %v5008 = vpop.f32.mrb[0].mxu0
      %5009 = vmatprep.mubr.bf16.mxu0 %v2208
      %5010 = vmatmul.mubr.bf16.gmra.mrb[0].mxu0 %v2207
      %v5011 = vpop.f32.mrb[0].mxu0
      %v5012 = vadd.f32 %v4851, %v5011
      %v5013 = vpop.f32.mrb[0].mxu0
      %v5014 = vpop.f32.mrb[0].mxu0
      %v5015 = vadd.f32 %v4854, %v5014
      %v5016 = vpop.f32.mrb[0].mxu0
      %5017 = vmatprep.mubr.bf16.mxu0 %v2229
      %5018 = vmatmul.mubr.bf16.gmra.mrb[0].mxu0 %v2228
      %v5019 = vpop.f32.mrb[0].mxu0
      %v5020 = vadd.f32 %v4859, %v5019
      %v5021 = vpop.f32.mrb[0].mxu0
      %v5022 = vpop.f32.mrb[0].mxu0
      %v5023 = vadd.f32 %v4862, %v5022
      %v5024 = vpop.f32.mrb[0].mxu0
      %5025 = vdwg.mxu0
      %5026 = vmatprep.subr.bf16.mxu0 0
      %5027 = vmatpush1.bf16.msra.mxu0 %v3385
      %5028 = vmatprep.subr.bf16.mxu0 0
      %5029 = vmatpush1.bf16.msra.mxu0 %v3386
      %5030 = vmatprep.subr.bf16.mxu0 0
      %5031 = vmatpush1.bf16.msra.mxu0 %v3387
      %5032 = vmatprep.subr.bf16.mxu0 0
      %5033 = vmatpush1.bf16.msra.mxu0 %v3388
      %5034 = vmatprep.subr.bf16.mxu0 0
      %5035 = vmatpush1.bf16.msra.mxu0 %v3389
      %5036 = vmatprep.subr.bf16.mxu0 0
      %5037 = vmatpush1.bf16.msra.mxu0 %v3390
      %5038 = vmatprep.subr.bf16.mxu0 0
      %5039 = vmatpush1.bf16.msra.mxu0 %v3391
      %5040 = vmatprep.subr.bf16.mxu0 0
      %5041 = vmatpush1.bf16.msra.mxu0 %v3392
      %5042 = vmatprep.subr.bf16.mxu0 0
      %5043 = vmatpush1.bf16.msra.mxu0 %v3393
      %5044 = vmatprep.subr.bf16.mxu0 0
      %5045 = vmatpush1.bf16.msra.mxu0 %v3394
      %5046 = vmatprep.subr.bf16.mxu0 0
      %5047 = vmatpush1.bf16.msra.mxu0 %v3395
      %5048 = vmatprep.subr.bf16.mxu0 0
      %5049 = vmatpush1.bf16.msra.mxu0 %v3396
      %5050 = vmatprep.subr.bf16.mxu0 0
      %5051 = vmatpush1.bf16.msra.mxu0 %v3397
      %5052 = vmatprep.subr.bf16.mxu0 0
      %5053 = vmatpush1.bf16.msra.mxu0 %v3398
      %5054 = vmatprep.subr.bf16.mxu0 0
      %5055 = vmatpush1.bf16.msra.mxu0 %v3399
      %5056 = vmatprep.subr.bf16.mxu0 0
      %5057 = vmatpush1.bf16.msra.mxu0 %v3400
      %5058 = vmatprep.mubr.bf16.mxu0 %v1916
      %5059 = vmatmul.mubr.bf16.gmra.mrb[0].mxu0 %v1915
      %v5060 = vpop.f32.mrb[0].mxu0
      %v5061 = vadd.f32 %v4900, %v5060
      %v5062 = vpop.f32.mrb[0].mxu0
      %v5063 = vpop.f32.mrb[0].mxu0
      %v5064 = vadd.f32 %v4903, %v5063
      %v5065 = vpop.f32.mrb[0].mxu0
      %5066 = vmatprep.mubr.bf16.mxu0 %v1937
      %5067 = vmatmul.mubr.bf16.gmra.mrb[0].mxu0 %v1936
      %v5068 = vpop.f32.mrb[0].mxu0
      %v5069 = vadd.f32 %v4908, %v5068
      %v5070 = vpop.f32.mrb[0].mxu0
      %v5071 = vpop.f32.mrb[0].mxu0
      %v5072 = vadd.f32 %v4911, %v5071
      %v5073 = vpop.f32.mrb[0].mxu0
      %5074 = vmatprep.mubr.bf16.mxu0 %v1958
      %5075 = vmatmul.mubr.bf16.gmra.mrb[0].mxu0 %v1957
      %v5076 = vpop.f32.mrb[0].mxu0
      %v5077 = vadd.f32 %v4916, %v5076
      %v5078 = vpop.f32.mrb[0].mxu0
      %v5079 = vpop.f32.mrb[0].mxu0
      %v5080 = vadd.f32 %v4919, %v5079
      %v5081 = vpop.f32.mrb[0].mxu0
      %5082 = vmatprep.mubr.bf16.mxu0 %v1979
      %5083 = vmatmul.mubr.bf16.gmra.mrb[0].mxu0 %v1978
      %v5084 = vpop.f32.mrb[0].mxu0
      %v5085 = vadd.f32 %v4924, %v5084
      %v5086 = vpop.f32.mrb[0].mxu0
      %v5087 = vpop.f32.mrb[0].mxu0
      %v5088 = vadd.f32 %v4927, %v5087
      %v5089 = vpop.f32.mrb[0].mxu0
      %5090 = vmatprep.mubr.bf16.mxu0 %v2000
      %5091 = vmatmul.mubr.bf16.gmra.mrb[0].mxu0 %v1999
      %v5092 = vpop.f32.mrb[0].mxu0
      %v5093 = vadd.f32 %v4932, %v5092
      %v5094 = vpop.f32.mrb[0].mxu0
      %v5095 = vpop.f32.mrb[0].mxu0
      %v5096 = vadd.f32 %v4935, %v5095
      %v5097 = vpop.f32.mrb[0].mxu0
      %5098 = vmatprep.mubr.bf16.mxu0 %v2021
      %5099 = vmatmul.mubr.bf16.gmra.mrb[0].mxu0 %v2020
      %v5100 = vpop.f32.mrb[0].mxu0
      %v5101 = vadd.f32 %v4940, %v5100
      %v5102 = vpop.f32.mrb[0].mxu0
      %v5103 = vpop.f32.mrb[0].mxu0
      %v5104 = vadd.f32 %v4943, %v5103
      %v5105 = vpop.f32.mrb[0].mxu0
      %5106 = vmatprep.mubr.bf16.mxu0 %v2042
      %5107 = vmatmul.mubr.bf16.gmra.mrb[0].mxu0 %v2041
      %v5108 = vpop.f32.mrb[0].mxu0
      %v5109 = vadd.f32 %v4948, %v5108
      %v5110 = vpop.f32.mrb[0].mxu0
      %v5111 = vpop.f32.mrb[0].mxu0
      %v5112 = vadd.f32 %v4951, %v5111
      %v5113 = vpop.f32.mrb[0].mxu0
      %5114 = vmatprep.mubr.bf16.mxu0 %v2063
      %5115 = vmatmul.mubr.bf16.gmra.mrb[0].mxu0 %v2062
      %v5116 = vpop.f32.mrb[0].mxu0
      %v5117 = vadd.f32 %v4956, %v5116
      %v5118 = vpop.f32.mrb[0].mxu0
      %v5119 = vpop.f32.mrb[0].mxu0
      %v5120 = vadd.f32 %v4959, %v5119
      %v5121 = vpop.f32.mrb[0].mxu0
      %5122 = vmatprep.mubr.bf16.mxu0 %v2084
      %5123 = vmatmul.mubr.bf16.gmra.mrb[0].mxu0 %v2083
      %v5124 = vpop.f32.mrb[0].mxu0
      %v5125 = vadd.f32 %v4964, %v5124
      %v5126 = vpop.f32.mrb[0].mxu0
      %v5127 = vpop.f32.mrb[0].mxu0
      %v5128 = vadd.f32 %v4967, %v5127
      %v5129 = vpop.f32.mrb[0].mxu0
      %5130 = vmatprep.mubr.bf16.mxu0 %v2105
      %5131 = vmatmul.mubr.bf16.gmra.mrb[0].mxu0 %v2104
      %v5132 = vpop.f32.mrb[0].mxu0
      %v5133 = vadd.f32 %v4972, %v5132
      %v5134 = vpop.f32.mrb[0].mxu0
      %v5135 = vpop.f32.mrb[0].mxu0
      %v5136 = vadd.f32 %v4975, %v5135
      %v5137 = vpop.f32.mrb[0].mxu0
      %5138 = vmatprep.mubr.bf16.mxu0 %v2126
      %5139 = vmatmul.mubr.bf16.gmra.mrb[0].mxu0 %v2125
      %v5140 = vpop.f32.mrb[0].mxu0
      %v5141 = vadd.f32 %v4980, %v5140
      %v5142 = vpop.f32.mrb[0].mxu0
      %v5143 = vpop.f32.mrb[0].mxu0
      %v5144 = vadd.f32 %v4983, %v5143
      %v5145 = vpop.f32.mrb[0].mxu0
      %5146 = vmatprep.mubr.bf16.mxu0 %v2147
      %5147 = vmatmul.mubr.bf16.gmra.mrb[0].mxu0 %v2146
      %v5148 = vpop.f32.mrb[0].mxu0
      %v5149 = vadd.f32 %v4988, %v5148
      %v5150 = vpop.f32.mrb[0].mxu0
      %v5151 = vpop.f32.mrb[0].mxu0
      %v5152 = vadd.f32 %v4991, %v5151
      %v5153 = vpop.f32.mrb[0].mxu0
      %5154 = vmatprep.mubr.bf16.mxu0 %v2168
      %5155 = vmatmul.mubr.bf16.gmra.mrb[0].mxu0 %v2167
      %v5156 = vpop.f32.mrb[0].mxu0
      %v5157 = vadd.f32 %v4996, %v5156
      %v5158 = vpop.f32.mrb[0].mxu0
      %v5159 = vpop.f32.mrb[0].mxu0
      %v5160 = vadd.f32 %v4999, %v5159
      %v5161 = vpop.f32.mrb[0].mxu0
      %5162 = vmatprep.mubr.bf16.mxu0 %v2189
      %5163 = vmatmul.mubr.bf16.gmra.mrb[0].mxu0 %v2188
      %v5164 = vpop.f32.mrb[0].mxu0
      %v5165 = vadd.f32 %v5004, %v5164
      %v5166 = vpop.f32.mrb[0].mxu0
      %v5167 = vpop.f32.mrb[0].mxu0
      %v5168 = vadd.f32 %v5007, %v5167
      %v5169 = vpop.f32.mrb[0].mxu0
      %5170 = vmatprep.mubr.bf16.mxu0 %v2210
      %5171 = vmatmul.mubr.bf16.gmra.mrb[0].mxu0 %v2209
      %v5172 = vpop.f32.mrb[0].mxu0
      %v5173 = vadd.f32 %v5012, %v5172
      %v5174 = vpop.f32.mrb[0].mxu0
      %v5175 = vpop.f32.mrb[0].mxu0
      %v5176 = vadd.f32 %v5015, %v5175
      %v5177 = vpop.f32.mrb[0].mxu0
      %5178 = vmatprep.mubr.bf16.mxu0 %v2231
      %5179 = vmatmul.mubr.bf16.gmra.mrb[0].mxu0 %v2230
      %v5180 = vpop.f32.mrb[0].mxu0
      %v5181 = vadd.f32 %v5020, %v5180
      %v5182 = vpop.f32.mrb[0].mxu0
      %v5183 = vpop.f32.mrb[0].mxu0
      %v5184 = vadd.f32 %v5023, %v5183
      %v5185 = vpop.f32.mrb[0].mxu0
      %5186 = vdwg.mxu0
      %5187 = vmatprep.subr.bf16.mxu0 0
      %5188 = vmatpush1.bf16.msra.mxu0 %v3401
      %5189 = vmatprep.subr.bf16.mxu0 0
      %5190 = vmatpush1.bf16.msra.mxu0 %v3402
      %5191 = vmatprep.subr.bf16.mxu0 0
      %5192 = vmatpush1.bf16.msra.mxu0 %v3403
      %5193 = vmatprep.subr.bf16.mxu0 0
      %5194 = vmatpush1.bf16.msra.mxu0 %v3404
      %5195 = vmatprep.subr.bf16.mxu0 0
      %5196 = vmatpush1.bf16.msra.mxu0 %v3405
      %5197 = vmatprep.subr.bf16.mxu0 0
      %5198 = vmatpush1.bf16.msra.mxu0 %v3406
      %5199 = vmatprep.subr.bf16.mxu0 0
      %5200 = vmatpush1.bf16.msra.mxu0 %v3407
      %5201 = vmatprep.subr.bf16.mxu0 0
      %5202 = vmatpush1.bf16.msra.mxu0 %v3408
      %5203 = vmatprep.subr.bf16.mxu0 0
      %5204 = vmatpush1.bf16.msra.mxu0 0
      %5205 = vmatprep.subr.bf16.mxu0 0
      %5206 = vmatpush1.bf16.msra.mxu0 0
      %5207 = vmatprep.subr.bf16.mxu0 0
      %5208 = vmatpush1.bf16.msra.mxu0 0
      %5209 = vmatprep.subr.bf16.mxu0 0
      %5210 = vmatpush1.bf16.msra.mxu0 0
      %5211 = vmatprep.subr.bf16.mxu0 0
      %5212 = vmatpush1.bf16.msra.mxu0 0
      %5213 = vmatprep.subr.bf16.mxu0 0
      %5214 = vmatpush1.bf16.msra.mxu0 0
      %5215 = vmatprep.subr.bf16.mxu0 0
      %5216 = vmatpush1.bf16.msra.mxu0 0
      %5217 = vmatprep.subr.bf16.mxu0 0
      %5218 = vmatpush1.bf16.msra.mxu0 0
      %5219 = vmatprep.mubr.bf16.mxu0 0
      %5220 = vmatmul.mubr.bf16.gmra.mrb[0].mxu0 %v1917
      %v5221 = vpop.f32.mrb[0].mxu0
      %v5222 = vadd.f32 %v5061, %v5221
      %v5223 = vpop.f32.mrb[0].mxu0
      %v5224 = vpop.f32.mrb[0].mxu0
      %v5225 = vadd.f32 %v5064, %v5224
      %v5226 = vpop.f32.mrb[0].mxu0
      %5227 = vmatprep.mubr.bf16.mxu0 0
      %5228 = vmatmul.mubr.bf16.gmra.mrb[0].mxu0 %v1938
      %v5229 = vpop.f32.mrb[0].mxu0
      %v5230 = vadd.f32 %v5069, %v5229
      %v5231 = vpop.f32.mrb[0].mxu0
      %v5232 = vpop.f32.mrb[0].mxu0
      %v5233 = vadd.f32 %v5072, %v5232
      %v5234 = vpop.f32.mrb[0].mxu0
      %5235 = vmatprep.mubr.bf16.mxu0 0
      %5236 = vmatmul.mubr.bf16.gmra.mrb[0].mxu0 %v1959
      %v5237 = vpop.f32.mrb[0].mxu0
      %v5238 = vadd.f32 %v5077, %v5237
      %v5239 = vpop.f32.mrb[0].mxu0
      %v5240 = vpop.f32.mrb[0].mxu0
      %v5241 = vadd.f32 %v5080, %v5240
      %v5242 = vpop.f32.mrb[0].mxu0
      %5243 = vmatprep.mubr.bf16.mxu0 0
      %5244 = vmatmul.mubr.bf16.gmra.mrb[0].mxu0 %v1980
      %v5245 = vpop.f32.mrb[0].mxu0
      %v5246 = vadd.f32 %v5085, %v5245
      %v5247 = vpop.f32.mrb[0].mxu0
      %v5248 = vpop.f32.mrb[0].mxu0
      %v5249 = vadd.f32 %v5088, %v5248
      %v5250 = vpop.f32.mrb[0].mxu0
      %5251 = vmatprep.mubr.bf16.mxu0 0
      %5252 = vmatmul.mubr.bf16.gmra.mrb[0].mxu0 %v2001
      %v5253 = vpop.f32.mrb[0].mxu0
      %v5254 = vadd.f32 %v5093, %v5253
      %v5255 = vpop.f32.mrb[0].mxu0
      %v5256 = vpop.f32.mrb[0].mxu0
      %v5257 = vadd.f32 %v5096, %v5256
      %v5258 = vpop.f32.mrb[0].mxu0
      %5259 = vmatprep.mubr.bf16.mxu0 0
      %5260 = vmatmul.mubr.bf16.gmra.mrb[0].mxu0 %v2022
      %v5261 = vpop.f32.mrb[0].mxu0
      %v5262 = vadd.f32 %v5101, %v5261
      %v5263 = vpop.f32.mrb[0].mxu0
      %v5264 = vpop.f32.mrb[0].mxu0
      %v5265 = vadd.f32 %v5104, %v5264
      %v5266 = vpop.f32.mrb[0].mxu0
      %5267 = vmatprep.mubr.bf16.mxu0 0
      %5268 = vmatmul.mubr.bf16.gmra.mrb[0].mxu0 %v2043
      %v5269 = vpop.f32.mrb[0].mxu0
      %v5270 = vadd.f32 %v5109, %v5269
      %v5271 = vpop.f32.mrb[0].mxu0
      %v5272 = vpop.f32.mrb[0].mxu0
      %v5273 = vadd.f32 %v5112, %v5272
      %v5274 = vpop.f32.mrb[0].mxu0
      %5275 = vmatprep.mubr.bf16.mxu0 0
      %5276 = vmatmul.mubr.bf16.gmra.mrb[0].mxu0 %v2064
      %v5277 = vpop.f32.mrb[0].mxu0
      %v5278 = vadd.f32 %v5117, %v5277
      %v5279 = vpop.f32.mrb[0].mxu0
      %v5280 = vpop.f32.mrb[0].mxu0
      %v5281 = vadd.f32 %v5120, %v5280
      %v5282 = vpop.f32.mrb[0].mxu0
      %5283 = vmatprep.mubr.bf16.mxu0 0
      %5284 = vmatmul.mubr.bf16.gmra.mrb[0].mxu0 %v2085
      %v5285 = vpop.f32.mrb[0].mxu0
      %v5286 = vadd.f32 %v5125, %v5285
      %v5287 = vpop.f32.mrb[0].mxu0
      %v5288 = vpop.f32.mrb[0].mxu0
      %v5289 = vadd.f32 %v5128, %v5288
      %v5290 = vpop.f32.mrb[0].mxu0
      %5291 = vmatprep.mubr.bf16.mxu0 0
      %5292 = vmatmul.mubr.bf16.gmra.mrb[0].mxu0 %v2106
      %v5293 = vpop.f32.mrb[0].mxu0
      %v5294 = vadd.f32 %v5133, %v5293
      %v5295 = vpop.f32.mrb[0].mxu0
      %v5296 = vpop.f32.mrb[0].mxu0
      %v5297 = vadd.f32 %v5136, %v5296
      %v5298 = vpop.f32.mrb[0].mxu0
      %5299 = vmatprep.mubr.bf16.mxu0 0
      %5300 = vmatmul.mubr.bf16.gmra.mrb[0].mxu0 %v2127
      %v5301 = vpop.f32.mrb[0].mxu0
      %v5302 = vadd.f32 %v5141, %v5301
      %v5303 = vpop.f32.mrb[0].mxu0
      %v5304 = vpop.f32.mrb[0].mxu0
      %v5305 = vadd.f32 %v5144, %v5304
      %v5306 = vpop.f32.mrb[0].mxu0
      %5307 = vmatprep.mubr.bf16.mxu0 0
      %5308 = vmatmul.mubr.bf16.gmra.mrb[0].mxu0 %v2148
      %v5309 = vpop.f32.mrb[0].mxu0
      %v5310 = vadd.f32 %v5149, %v5309
      %v5311 = vpop.f32.mrb[0].mxu0
      %v5312 = vpop.f32.mrb[0].mxu0
      %v5313 = vadd.f32 %v5152, %v5312
      %v5314 = vpop.f32.mrb[0].mxu0
      %5315 = vmatprep.mubr.bf16.mxu0 0
      %5316 = vmatmul.mubr.bf16.gmra.mrb[0].mxu0 %v2169
      %v5317 = vpop.f32.mrb[0].mxu0
      %v5318 = vadd.f32 %v5157, %v5317
      %v5319 = vpop.f32.mrb[0].mxu0
      %v5320 = vpop.f32.mrb[0].mxu0
      %v5321 = vadd.f32 %v5160, %v5320
      %v5322 = vpop.f32.mrb[0].mxu0
      %5323 = vmatprep.mubr.bf16.mxu0 0
      %5324 = vmatmul.mubr.bf16.gmra.mrb[0].mxu0 %v2190
      %v5325 = vpop.f32.mrb[0].mxu0
      %v5326 = vadd.f32 %v5165, %v5325
      %v5327 = vpop.f32.mrb[0].mxu0
      %v5328 = vpop.f32.mrb[0].mxu0
      %v5329 = vadd.f32 %v5168, %v5328
      %v5330 = vpop.f32.mrb[0].mxu0
      %5331 = vmatprep.mubr.bf16.mxu0 0
      %5332 = vmatmul.mubr.bf16.gmra.mrb[0].mxu0 %v2211
      %v5333 = vpop.f32.mrb[0].mxu0
      %v5334 = vadd.f32 %v5173, %v5333
      %v5335 = vpop.f32.mrb[0].mxu0
      %v5336 = vpop.f32.mrb[0].mxu0
      %v5337 = vadd.f32 %v5176, %v5336
      %v5338 = vpop.f32.mrb[0].mxu0
      %5339 = vmatprep.mubr.bf16.mxu0 0
      %5340 = vmatmul.mubr.bf16.gmra.mrb[0].mxu0 %v2232
      %v5341 = vpop.f32.mrb[0].mxu0
      %v5342 = vadd.f32 %v5181, %v5341
      %v5343 = vpop.f32.mrb[0].mxu0
      %v5344 = vpop.f32.mrb[0].mxu0
      %v5345 = vadd.f32 %v5184, %v5344
      %v5346 = vpop.f32.mrb[0].mxu0
      %5347 = vdwg.mxu0
      %v5348 = vxor.u32 %v5222, 2147483648
      %v5349 = vxor.u32 %v5225, 2147483648
      %v5350 = vxor.u32 %v5230, 2147483648
      %v5351 = vxor.u32 %v5233, 2147483648
      %v5352 = vxor.u32 %v5238, 2147483648
      %v5353 = vxor.u32 %v5241, 2147483648
      %v5354 = vxor.u32 %v5246, 2147483648
      %v5355 = vxor.u32 %v5249, 2147483648
      %v5356 = vxor.u32 %v5254, 2147483648
      %v5357 = vxor.u32 %v5257, 2147483648
      %v5358 = vxor.u32 %v5262, 2147483648
      %v5359 = vxor.u32 %v5265, 2147483648
      %v5360 = vxor.u32 %v5270, 2147483648
      %v5361 = vxor.u32 %v5273, 2147483648
      %v5362 = vxor.u32 %v5278, 2147483648
      %v5363 = vxor.u32 %v5281, 2147483648
      %v5364 = vxor.u32 %v5286, 2147483648
      %v5365 = vxor.u32 %v5289, 2147483648
      %v5366 = vxor.u32 %v5294, 2147483648
      %v5367 = vxor.u32 %v5297, 2147483648
      %v5368 = vxor.u32 %v5302, 2147483648
      %v5369 = vxor.u32 %v5305, 2147483648
      %v5370 = vxor.u32 %v5310, 2147483648
      %v5371 = vxor.u32 %v5313, 2147483648
      %v5372 = vxor.u32 %v5318, 2147483648
      %v5373 = vxor.u32 %v5321, 2147483648
      %v5374 = vxor.u32 %v5326, 2147483648
      %v5375 = vxor.u32 %v5329, 2147483648
      %v5376 = vxor.u32 %v5334, 2147483648
      %v5377 = vxor.u32 %v5337, 2147483648
      %v5378 = vxor.u32 %v5342, 2147483648
      %v5379 = vxor.u32 %v5345, 2147483648
      %v5380 = vmul.f32 %v5348, 1.442695
      %v5381 = vpow.pop %v5380
      %v5382 = vmul.f32 %v5349, 1.442695
      %v5383 = vpow.pop %v5382
      %v5384 = vmul.f32 %v5350, 1.442695
      %v5385 = vpow.pop %v5384
      %v5386 = vmul.f32 %v5351, 1.442695
      %v5387 = vpow.pop %v5386
      %v5388 = vmul.f32 %v5352, 1.442695
      %v5389 = vpow.pop %v5388
      %v5390 = vmul.f32 %v5353, 1.442695
      %v5391 = vpow.pop %v5390
      %v5392 = vmul.f32 %v5354, 1.442695
      %v5393 = vpow.pop %v5392
      %v5394 = vmul.f32 %v5355, 1.442695
      %v5395 = vpow.pop %v5394
      %v5396 = vmul.f32 %v5356, 1.442695
      %v5397 = vpow.pop %v5396
      %v5398 = vmul.f32 %v5357, 1.442695
      %v5399 = vpow.pop %v5398
      %v5400 = vmul.f32 %v5358, 1.442695
      %v5401 = vpow.pop %v5400
      %v5402 = vmul.f32 %v5359, 1.442695
      %v5403 = vpow.pop %v5402
      %v5404 = vmul.f32 %v5360, 1.442695
      %v5405 = vpow.pop %v5404
      %v5406 = vmul.f32 %v5361, 1.442695
      %v5407 = vpow.pop %v5406
      %v5408 = vmul.f32 %v5362, 1.442695
      %v5409 = vpow.pop %v5408
      %v5410 = vmul.f32 %v5363, 1.442695
      %v5411 = vpow.pop %v5410
      %v5412 = vmul.f32 %v5364, 1.442695
      %v5413 = vpow.pop %v5412
      %v5414 = vmul.f32 %v5365, 1.442695
      %v5415 = vpow.pop %v5414
      %v5416 = vmul.f32 %v5366, 1.442695
      %v5417 = vpow.pop %v5416
      %v5418 = vmul.f32 %v5367, 1.442695
      %v5419 = vpow.pop %v5418
      %v5420 = vmul.f32 %v5368, 1.442695
      %v5421 = vpow.pop %v5420
      %v5422 = vmul.f32 %v5369, 1.442695
      %v5423 = vpow.pop %v5422
      %v5424 = vmul.f32 %v5370, 1.442695
      %v5425 = vpow.pop %v5424
      %v5426 = vmul.f32 %v5371, 1.442695
      %v5427 = vpow.pop %v5426
      %v5428 = vmul.f32 %v5372, 1.442695
      %v5429 = vpow.pop %v5428
      %v5430 = vmul.f32 %v5373, 1.442695
      %v5431 = vpow.pop %v5430
      %v5432 = vmul.f32 %v5374, 1.442695
      %v5433 = vpow.pop %v5432
      %v5434 = vmul.f32 %v5375, 1.442695
      %v5435 = vpow.pop %v5434
      %v5436 = vmul.f32 %v5376, 1.442695
      %v5437 = vpow.pop %v5436
      %v5438 = vmul.f32 %v5377, 1.442695
      %v5439 = vpow.pop %v5438
      %v5440 = vmul.f32 %v5378, 1.442695
      %v5441 = vpow.pop %v5440
      %v5442 = vmul.f32 %v5379, 1.442695
      %v5443 = vpow.pop %v5442
      %v5444 = vadd.f32 %v5381, 1.0
      %v5445 = vadd.f32 %v5383, 1.0
      %v5446 = vadd.f32 %v5385, 1.0
      %v5447 = vadd.f32 %v5387, 1.0
      %v5448 = vadd.f32 %v5389, 1.0
      %v5449 = vadd.f32 %v5391, 1.0
      %v5450 = vadd.f32 %v5393, 1.0
      %v5451 = vadd.f32 %v5395, 1.0
      %v5452 = vadd.f32 %v5397, 1.0
      %v5453 = vadd.f32 %v5399, 1.0
      %v5454 = vadd.f32 %v5401, 1.0
      %v5455 = vadd.f32 %v5403, 1.0
      %v5456 = vadd.f32 %v5405, 1.0
      %v5457 = vadd.f32 %v5407, 1.0
      %v5458 = vadd.f32 %v5409, 1.0
      %v5459 = vadd.f32 %v5411, 1.0
      %v5460 = vadd.f32 %v5413, 1.0
      %v5461 = vadd.f32 %v5415, 1.0
      %v5462 = vadd.f32 %v5417, 1.0
      %v5463 = vadd.f32 %v5419, 1.0
      %v5464 = vadd.f32 %v5421, 1.0
      %v5465 = vadd.f32 %v5423, 1.0
      %v5466 = vadd.f32 %v5425, 1.0
      %v5467 = vadd.f32 %v5427, 1.0
      %v5468 = vadd.f32 %v5429, 1.0
      %v5469 = vadd.f32 %v5431, 1.0
      %v5470 = vadd.f32 %v5433, 1.0
      %v5471 = vadd.f32 %v5435, 1.0
      %v5472 = vadd.f32 %v5437, 1.0
      %v5473 = vadd.f32 %v5439, 1.0
      %v5474 = vadd.f32 %v5441, 1.0
      %v5475 = vadd.f32 %v5443, 1.0
      %v5476 = vrcp.pop %v5444
      %v5477 = vmul.f32 1.0, %v5476
      %v5478 = vrcp.pop %v5445
      %v5479 = vmul.f32 1.0, %v5478
      %v5480 = vrcp.pop %v5446
      %v5481 = vmul.f32 1.0, %v5480
      %v5482 = vrcp.pop %v5447
      %v5483 = vmul.f32 1.0, %v5482
      %v5484 = vrcp.pop %v5448
      %v5485 = vmul.f32 1.0, %v5484
      %v5486 = vrcp.pop %v5449
      %v5487 = vmul.f32 1.0, %v5486
      %v5488 = vrcp.pop %v5450
      %v5489 = vmul.f32 1.0, %v5488
      %v5490 = vrcp.pop %v5451
      %v5491 = vmul.f32 1.0, %v5490
      %v5492 = vrcp.pop %v5452
      %v5493 = vmul.f32 1.0, %v5492
      %v5494 = vrcp.pop %v5453
      %v5495 = vmul.f32 1.0, %v5494
      %v5496 = vrcp.pop %v5454
      %v5497 = vmul.f32 1.0, %v5496
      %v5498 = vrcp.pop %v5455
      %v5499 = vmul.f32 1.0, %v5498
      %v5500 = vrcp.pop %v5456
      %v5501 = vmul.f32 1.0, %v5500
      %v5502 = vrcp.pop %v5457
      %v5503 = vmul.f32 1.0, %v5502
      %v5504 = vrcp.pop %v5458
      %v5505 = vmul.f32 1.0, %v5504
      %v5506 = vrcp.pop %v5459
      %v5507 = vmul.f32 1.0, %v5506
      %v5508 = vrcp.pop %v5460
      %v5509 = vmul.f32 1.0, %v5508
      %v5510 = vrcp.pop %v5461
      %v5511 = vmul.f32 1.0, %v5510
      %v5512 = vrcp.pop %v5462
      %v5513 = vmul.f32 1.0, %v5512
      %v5514 = vrcp.pop %v5463
      %v5515 = vmul.f32 1.0, %v5514
      %v5516 = vrcp.pop %v5464
      %v5517 = vmul.f32 1.0, %v5516
      %v5518 = vrcp.pop %v5465
      %v5519 = vmul.f32 1.0, %v5518
      %v5520 = vrcp.pop %v5466
      %v5521 = vmul.f32 1.0, %v5520
      %v5522 = vrcp.pop %v5467
      %v5523 = vmul.f32 1.0, %v5522
      %v5524 = vrcp.pop %v5468
      %v5525 = vmul.f32 1.0, %v5524
      %v5526 = vrcp.pop %v5469
      %v5527 = vmul.f32 1.0, %v5526
      %v5528 = vrcp.pop %v5470
      %v5529 = vmul.f32 1.0, %v5528
      %v5530 = vrcp.pop %v5471
      %v5531 = vmul.f32 1.0, %v5530
      %v5532 = vrcp.pop %v5472
      %v5533 = vmul.f32 1.0, %v5532
      %v5534 = vrcp.pop %v5473
      %v5535 = vmul.f32 1.0, %v5534
      %v5536 = vrcp.pop %v5474
      %v5537 = vmul.f32 1.0, %v5536
      %v5538 = vrcp.pop %v5475
      %v5539 = vmul.f32 1.0, %v5538
      %v5540 = vmax.f32 %v5477, 0.0
      %v5541 = vmax.f32 %v5479, 0.0
      %v5542 = vmax.f32 %v5481, 0.0
      %v5543 = vmax.f32 %v5483, 0.0
      %v5544 = vmax.f32 %v5485, 0.0
      %v5545 = vmax.f32 %v5487, 0.0
      %v5546 = vmax.f32 %v5489, 0.0
      %v5547 = vmax.f32 %v5491, 0.0
      %v5548 = vmax.f32 %v5493, 0.0
      %v5549 = vmax.f32 %v5495, 0.0
      %v5550 = vmax.f32 %v5497, 0.0
      %v5551 = vmax.f32 %v5499, 0.0
      %v5552 = vmax.f32 %v5501, 0.0
      %v5553 = vmax.f32 %v5503, 0.0
      %v5554 = vmax.f32 %v5505, 0.0
      %v5555 = vmax.f32 %v5507, 0.0
      %v5556 = vmax.f32 %v5509, 0.0
      %v5557 = vmax.f32 %v5511, 0.0
      %v5558 = vmax.f32 %v5513, 0.0
      %v5559 = vmax.f32 %v5515, 0.0
      %v5560 = vmax.f32 %v5517, 0.0
      %v5561 = vmax.f32 %v5519, 0.0
      %v5562 = vmax.f32 %v5521, 0.0
      %v5563 = vmax.f32 %v5523, 0.0
      %v5564 = vmax.f32 %v5525, 0.0
      %v5565 = vmax.f32 %v5527, 0.0
      %v5566 = vmax.f32 %v5529, 0.0
      %v5567 = vmax.f32 %v5531, 0.0
      %v5568 = vmax.f32 %v5533, 0.0
      %v5569 = vmax.f32 %v5535, 0.0
      %v5570 = vmax.f32 %v5537, 0.0
      %v5571 = vmax.f32 %v5539, 0.0
      %5572 = vst [vmem:[%s175] sm:$0xff] %v5540
      %5573 = vst [vmem:[%s175 + $0x8] sm:$0xff] %v5541
      %5574 = vst [vmem:[%s175 + $0x10] sm:$0xff] %v5542
      %5575 = vst [vmem:[%s175 + $0x18] sm:$0xff] %v5543
      %5576 = vst [vmem:[%s175 + $0x20] sm:$0xff] %v5544
      %5577 = vst [vmem:[%s175 + $0x28] sm:$0xff] %v5545
      %5578 = vst [vmem:[%s175 + $0x30] sm:$0xff] %v5546
      %5579 = vst [vmem:[%s175 + $0x38] sm:$0xff] %v5547
      %5580 = vst [vmem:[%s175 + $0x40] sm:$0xff] %v5548
      %5581 = vst [vmem:[%s175 + $0x48] sm:$0xff] %v5549
      %5582 = vst [vmem:[%s175 + $0x50] sm:$0xff] %v5550
      %5583 = vst [vmem:[%s175 + $0x58] sm:$0xff] %v5551
      %5584 = vst [vmem:[%s175 + $0x60] sm:$0xff] %v5552
      %5585 = vst [vmem:[%s175 + $0x68] sm:$0xff] %v5553
      %5586 = vst [vmem:[%s175 + $0x70] sm:$0xff] %v5554
      %5587 = vst [vmem:[%s175 + $0x78] sm:$0xff] %v5555
      %5588 = vst [vmem:[%s175 + $0x80] sm:$0xff] %v5556
      %5589 = vst [vmem:[%s175 + $0x88] sm:$0xff] %v5557
      %5590 = vst [vmem:[%s175 + $0x90] sm:$0xff] %v5558
      %5591 = vst [vmem:[%s175 + $0x98] sm:$0xff] %v5559
      %5592 = vst [vmem:[%s175 + $0xa0] sm:$0xff] %v5560
      %5593 = vst [vmem:[%s175 + $0xa8] sm:$0xff] %v5561
      %5594 = vst [vmem:[%s175 + $0xb0] sm:$0xff] %v5562
      %5595 = vst [vmem:[%s175 + $0xb8] sm:$0xff] %v5563
      %5596 = vst [vmem:[%s175 + $0xc0] sm:$0xff] %v5564
      %5597 = vst [vmem:[%s175 + $0xc8] sm:$0xff] %v5565
      %5598 = vst [vmem:[%s175 + $0xd0] sm:$0xff] %v5566
      %5599 = vst [vmem:[%s175 + $0xd8] sm:$0xff] %v5567
      %5600 = vst [vmem:[%s175 + $0xe0] sm:$0xff] %v5568
      %5601 = vst [vmem:[%s175 + $0xe8] sm:$0xff] %v5569
      %5602 = vst [vmem:[%s175 + $0xf0] sm:$0xff] %v5570
      %5603 = vst [vmem:[%s175 + $0xf8] sm:$0xff] %v5571
      %s5604 = smul.u32 32, %s14
      %p5605 = scmp.lt.s32.totalorder %s5604, 63
      %s5606 = scalar_select %p5605, %s5604, 63
      %s5607 = smul.addr %s5606, 8
      %s5608 = scalar_lea.vmem %s3, %s5607
      // Predicated region
      $region33: #{transnet_forward.61} parent=31 // pred_check
        %p5609 = pneg %p100
      $region34: #{transnet_forward.61} parent=31 // pred_check_branch
        %5611 = sbr.rel (%p5609) target = $region36
      $region35: #{transnet_forward.61} parent=31 // pred_region
        %s5612 = smul.u32 32, %s14
      $region36: #{transnet_forward.61} parent=31 // pred_fallthru
        _
    $region32: #{transnet_forward.61} parent=5 // pred_fallthru
      _
    %p5613 = scmp.le.s32.totalorder 2, %s9
    // Predicated region
    $region37: #{transnet_forward.61} parent=5 // pred_check
      %p5614 = pneg %p5613
    $region38: #{transnet_forward.61} parent=5 // pred_check_branch
      %5616 = sbr.rel (%p5614) target = $region40
    $region39: #{transnet_forward.61} parent=5 // pred_region
      %s5617 = ssub.s32 %s9, 2
      // Predicated region
      $region41: #{transnet_forward.61} parent=39 // pred_check
        %p5618 = pneg %p106
      $region42: #{transnet_forward.61} parent=39 // pred_check_branch
        %5620 = sbr.rel (%p5618) target = $region44
      $region43: #{transnet_forward.61} parent=39 // pred_region
        %s5621 = smul.u32 32, %s15
        %p5622 = scmp.lt.s32.totalorder %s5621, 63
        %s5623 = scalar_select %p5622, %s5621, 63
        %s5624 = smul.addr %s5623, 8
        %s5625 = scalar_lea.vmem %s3, %s5624
      $region44: #{transnet_forward.61} parent=39 // pred_fallthru
        _
    $region40: #{transnet_forward.61} parent=5 // pred_fallthru
      _
  $region6: #{transnet_forward.61} parent=0 // loop_footer
    %s13 = sadd.s32 1, %s9
  $region7: #{transnet_forward.61} parent=0 // loop_footer_branch
    %8 = sbr.rel target = $region3
  $region8: #{transnet_forward.61} parent=0 // loop_exit
    _

</llo_original>
